<compile_context>
chip_gen: v7x
topology: tpu7x:2x2x1
jax: 0.10.0
libtpu: 0.0.40
codegen_flags: <defaults>
</compile_context>

<pallas_src>
import functools

import jax
import jax.numpy as jnp
from jax.experimental import pallas as pl
from jax.experimental.pallas import tpu as pltpu


# ----------------------------------------------------------------------------
# small helpers
# ----------------------------------------------------------------------------
def _round_up(n, m):
    return ((n + m - 1) // m) * m


def _pick_tile(m, target):
    """Largest multiple of 8 <= target that divides m (else the full dim)."""
    t = min(target, m)
    t -= t % 8
    while t >= 8:
        if m % t == 0:
            return t
        t -= 8
    return m


def _vmem_limit(block_bytes):
    """Generation-aware scoped-VMEM budget (v7x: 64 MiB/TC, v5e/v6e: 128 MiB)."""
    cap = 64 << 20                       # conservative fallback = v7x capacity
    try:
        cap = int(getattr(pltpu.get_tpu_info(), "vmem_capacity_bytes", cap))
    except Exception:
        pass
    ceiling = max(32 << 20, cap - (16 << 20))      # leave compiler headroom
    need = 2 * int(block_bytes) + (8 << 20)        # double-buffering + slack
    return int(max(32 << 20, min(need, ceiling)))


# ----------------------------------------------------------------------------
# Pallas kernel 1: M-tiled matmul + bias (1x1 conv / channel compressor).
#   x2: (M, K) bf16, w: (K, N) bf16, b: (N,) f32 -> (M, N) out_dtype
#   B is folded into M by the caller; TM up to 2048 amortizes per-step overhead.
# ----------------------------------------------------------------------------
def _mm_bias_kernel(x_ref, w_ref, b_ref, o_ref):
    acc = jnp.dot(x_ref[...], w_ref[...], preferred_element_type=jnp.float32)
    o_ref[...] = (acc + b_ref[...]).astype(o_ref.dtype)


def matmul_bias(x2, w, b, *, out_dtype, tile_m=2048):
    M, K = x2.shape
    N = w.shape[1]
    TM = _pick_tile(M, tile_m)
    blk = (TM * K * x2.dtype.itemsize + K * N * w.dtype.itemsize
           + N * 4 + TM * N * jnp.dtype(out_dtype).itemsize)
    return pl.pallas_call(
        _mm_bias_kernel,
        out_shape=jax.ShapeDtypeStruct((M, N), out_dtype),
        grid=(M // TM,),
        in_specs=[
            pl.BlockSpec((TM, K), lambda m: (m, 0)),
            pl.BlockSpec((K, N), lambda m: (0, 0)),
            pl.BlockSpec((1, N), lambda m: (0, 0)),
        ],
        out_specs=pl.BlockSpec((TM, N), lambda m: (m, 0)),
        compiler_params=pltpu.CompilerParams(
            dimension_semantics=("parallel",),
            vmem_limit_bytes=_vmem_limit(blk)),
    )(x2, w, b.reshape(1, N))


# ----------------------------------------------------------------------------
# Pallas kernel 2: kenc x kenc "same" convolution (content encoder).
# The zero-padded compressed features stay VMEM-resident per batch (small for
# CARAFE-scale images).  Each grid step builds an im2col tile (TH*W, kenc^2*Ccp)
# in VMEM scratch and runs ONE MXU matmul against the flattened weight slab
# (f32 accumulation) -- no per-tap accumulator read-modify-write.
# TODO(synk): for very large images on v7x (64 MiB VMEM) switch the resident
#             whole-image input to halo'd H-band manual DMA (P4 style).
# ----------------------------------------------------------------------------
def _enc_conv_kernel(cp_ref, w_ref, b_ref, o_ref, col_ref, *, KENC, TH):
    _, _, W, Np = o_ref.shape
    Ccp = cp_ref.shape[-1]
    row0 = pl.multiple_of(pl.program_id(1) * TH, TH)
    for di in range(KENC):
        for dj in range(KENC):
            t = di * KENC + dj
            tap = cp_ref[0, pl.ds(row0 + di, TH), pl.ds(dj, W), :]   # (TH, W, Ccp)
            col_ref[:, t * Ccp:(t + 1) * Ccp] = tap.reshape(TH * W, Ccp)
    acc = jnp.dot(col_ref[...], w_ref[...], preferred_element_type=jnp.float32)
    o_ref[0] = (acc + b_ref[...]).reshape(TH, W, Np).astype(o_ref.dtype)


def encoder_conv(comp_pad, w_flat, b_enc, H, W, kenc):
    # comp_pad: (B, Hp, Wp, Ccp) bf16; w_flat: (kenc^2*Ccp, Np) bf16; b: (Np,) f32
    B, Hp, Wp, Ccp = comp_pad.shape
    K2C, Np = w_flat.shape
    TH = _pick_tile(H, 32)
    blk = (Hp * Wp * Ccp * comp_pad.dtype.itemsize
           + K2C * Np * w_flat.dtype.itemsize
           + TH * W * K2C * comp_pad.dtype.itemsize       # im2col scratch
           + TH * W * Np * 4 + Np * 4)
    kernel = functools.partial(_enc_conv_kernel, KENC=kenc, TH=TH)
    return pl.pallas_call(
        kernel,
        out_shape=jax.ShapeDtypeStruct((B, H, W, Np), jnp.float32),
        grid=(B, H // TH),
        in_specs=[
            # resident per batch (index_map ignores the h axis -> fetched once)
            pl.BlockSpec((1, Hp, Wp, Ccp), lambda b_, h_: (b_, 0, 0, 0)),
            pl.BlockSpec((K2C, Np), lambda b_, h_: (0, 0)),
            pl.BlockSpec((1, Np), lambda b_, h_: (0, 0)),
        ],
        out_specs=pl.BlockSpec((1, TH, W, Np), lambda b_, h_: (b_, h_, 0, 0)),
        scratch_shapes=[pltpu.VMEM((TH * W, K2C), comp_pad.dtype)],
        compiler_params=pltpu.CompilerParams(
            dimension_semantics=("parallel", "parallel"),
            vmem_limit_bytes=_vmem_limit(blk)),
        # TODO(synk): constant/resident blocks could use pipeline_mode=
        #             pl.Buffered(1) to drop their second buffer on v7x.
    )(comp_pad, w_flat, b_enc.reshape(1, Np))


# ----------------------------------------------------------------------------
# Pallas kernel 3: fused softmax (kernel normalizer) + CARAFE reassembly.
# grid = (B, C_tiles, sigma^2) with the phase axis innermost:
#   * the padded source slab xpad(b, :, :, c) is DMA'd once per (b, c) -- the
#     block index is constant across the phase axis (no sigma^2 over-read),
#   * the per-batch logits block (s2, H, W, k2) is resident across (c, phase),
#   * the softmax for all sigma^2 phases is computed once per (b, c) into VMEM
#     scratch (at phase == 0) and reused by the remaining phases,
#   * accumulation is strip-tiled (TS-row strips) so acc / tap temporaries are
#     small instead of a full (H, W, TC) f32 slab,
#   * output is bf16 (lane-dense 128-padded channels).
# NOTE: scratch reuse requires the phase axis to stay innermost + "arbitrary".
# ----------------------------------------------------------------------------
def _carafe_kernel(wm_ref, xp_ref, o_ref, wsm_ref, *, KUP, TS):
    phase = pl.program_id(2)

    @pl.when(phase == 0)
    def _():
        w = wm_ref[...]                                            # (s2, H, W, k2) f32
        e = jnp.exp(w - jnp.max(w, axis=-1, keepdims=True))
        inv = pl.reciprocal(jnp.sum(e, axis=-1, keepdims=True), approx=True)
        wsm_ref[...] = e * inv

    _, H, W, TC = o_ref.shape

    def strip(s, carry):
        r0 = pl.multiple_of(s * TS, TS)
        wstrip = wsm_ref[phase, pl.ds(r0, TS), :, :]               # (TS, W, k2) f32
        acc = jnp.zeros((TS, W, TC), jnp.float32)
        for m in range(KUP):
            for n in range(KUP):
                t = m * KUP + n
                tap = xp_ref[0, pl.ds(r0 + m, TS), pl.ds(n, W), :]  # (TS, W, TC) bf16
                acc = acc + wstrip[:, :, t:t + 1] * tap.astype(jnp.float32)
        o_ref[0, pl.ds(r0, TS), :, :] = acc.astype(o_ref.dtype)
        return carry

    jax.lax.fori_loop(0, H // TS, strip, 0)


def carafe_reassemble(wlogits, xpad, sigma, kup):
    # wlogits: (B*s2, H, W, kup^2) f32   xpad: (B, H+kup-1, W+kup-1, Cp) bf16
    G, H, W, k2 = wlogits.shape
    _, Hp, Wp, Cp = xpad.shape
    s2 = sigma * sigma
    B = G // s2
    TC = 128 if Cp % 128 == 0 else Cp
    TS = _pick_tile(H, 8)
    blk = (s2 * H * W * k2 * 4                      # resident logits block
           + Hp * Wp * TC * xpad.dtype.itemsize     # source slab
           + H * W * TC * 2                         # bf16 output block
           + s2 * H * W * k2 * 4)                   # softmax scratch
    kernel = functools.partial(_carafe_kernel, KUP=kup, TS=TS)
    return pl.pallas_call(
        kernel,
        out_shape=jax.ShapeDtypeStruct((G, H, W, Cp), jnp.bfloat16),
        grid=(B, Cp // TC, s2),
        in_specs=[
            # covers all s2 phases of batch b; resident across (c, phase)
            pl.BlockSpec((s2, H, W, k2), lambda b_, c_, p_: (b_, 0, 0, 0)),
            # constant across the innermost phase axis -> one DMA per (b, c)
            pl.BlockSpec((1, Hp, Wp, TC), lambda b_, c_, p_: (b_, 0, 0, c_)),
        ],
        out_specs=pl.BlockSpec((1, H, W, TC),
                               lambda b_, c_, p_: (b_ * s2 + p_, 0, 0, c_)),
        scratch_shapes=[pltpu.VMEM((s2, H, W, k2), jnp.float32)],
        compiler_params=pltpu.CompilerParams(
            dimension_semantics=("parallel", "parallel", "arbitrary"),
            vmem_limit_bytes=_vmem_limit(blk)),
    )(wlogits, xpad)


# ----------------------------------------------------------------------------
# Forward wrapper (NCHW in / NCHW out, mirrors the PyTorch module).
# ----------------------------------------------------------------------------
def carafe_module_forward(x_nchw, params, upscale_factor, upsample_kernel_size):
    B, Cin, H, W = x_nchw.shape
    sigma = upscale_factor
    kup = upsample_kernel_size
    kenc = kup - 2
    k2 = kup * kup
    s2 = sigma * sigma
    cenc = s2 * k2

    w_comp, b_comp = params["w_comp"], params["b_comp"]      # (Cin, Cc), (Cc,)
    w_enc, b_enc = params["w_enc"], params["b_enc"]          # (ke, ke, Cc, cenc), (cenc,)
    Ccomp = w_comp.shape[1]

    # Lane-dense (128-padded) channels everywhere; zero pads keep results exact.
    Cp = _round_up(Cin, 128)
    Ccp = _round_up(Ccomp, 128)
    Np = _round_up(cenc, 128)

    w_comp_p = jnp.zeros((Cp, Ccp), jnp.bfloat16).at[:Cin, :Ccomp].set(
        w_comp.astype(jnp.bfloat16))
    b_comp_p = jnp.zeros((Ccp,), jnp.float32).at[:Ccomp].set(b_comp.astype(jnp.float32))
    w_enc_p = jnp.zeros((kenc, kenc, Ccp, Np), jnp.bfloat16).at[
        :, :, :Ccomp, :cenc].set(w_enc.astype(jnp.bfloat16))
    w_enc_flat = w_enc_p.reshape(kenc * kenc * Ccp, Np)      # tap-major, matches im2col
    b_enc_p = jnp.zeros((Np,), jnp.float32).at[:cenc].set(b_enc.astype(jnp.float32))

    # NHWC bf16 with channel padding; shared by the compressor and the reassembly.
    x_nhwc = jnp.transpose(x_nchw, (0, 2, 3, 1)).astype(jnp.bfloat16)
    x_p = jnp.pad(x_nhwc, ((0, 0), (0, 0), (0, 0), (0, Cp - Cin)))

    # 1) channel compressor: 1x1 conv == one (B*H*W, Cp) @ (Cp, Ccp) matmul.
    comp = matmul_bias(x_p.reshape(B * H * W, Cp), w_comp_p, b_comp_p,
                       out_dtype=jnp.bfloat16).reshape(B, H, W, Ccp)

    # 2) content encoder: kenc x kenc 'same' conv, in-kernel im2col + one matmul.
    pe = kenc // 2
    comp_pad = jnp.pad(comp, ((0, 0), (pe, pe), (pe, pe), (0, 0)))
    content = encoder_conv(comp_pad, w_enc_flat, b_enc_p, H, W, kenc)  # (B,H,W,Np) f32

    # 3) pixel shuffle (layout glue on the small logits tensor):
    #    encoder channel = tap*sigma^2 + ph*sigma + pw  ->  row g = b*s2 + ph*sigma + pw
    content = content[..., :cenc].reshape(B, H, W, k2, sigma, sigma)
    wlogits = jnp.transpose(content, (0, 4, 5, 1, 2, 3)).reshape(B * s2, H, W, k2)

    # 4+5) fused softmax normalizer + content-aware reassembly (Pallas).
    r = kup // 2
    xpad = jnp.pad(x_p, ((0, 0), (r, r), (r, r), (0, 0)))
    out_ph = carafe_reassemble(wlogits, xpad, sigma, kup)    # (B*s2, H, W, Cp) bf16

    # phase recombination + NHWC -> NCHW, done on bf16 with channels sliced first
    # so the big transpose moves the minimum number of bytes.
    out = out_ph[..., :Cin].reshape(B, sigma, sigma, H, W, Cin)
    out = jnp.transpose(out, (0, 5, 3, 1, 4, 2)).reshape(B, Cin, H * sigma, W * sigma)
    return out.astype(x_nchw.dtype)


# ----------------------------------------------------------------------------
# Pure-JAX f32 reference (NCHW, mirrors the PyTorch module) for verification.
# TODO(synk): CarafeLayer source was not provided; standard CARAFE semantics
#             (zero-padded k_up x k_up neighborhood of the source pixel) used.
# ----------------------------------------------------------------------------
def reference_forward(x_nchw, params, sigma, kup):
    kenc = kup - 2
    w1 = jnp.transpose(params["w_comp"], (1, 0))[:, :, None, None]     # OIHW
    comp = jax.lax.conv_general_dilated(
        x_nchw, w1, (1, 1), "VALID",
        dimension_numbers=("NCHW", "OIHW", "NCHW"))
    comp = comp + params["b_comp"][None, :, None, None]

    w2 = jnp.transpose(params["w_enc"], (3, 2, 0, 1))                  # OIHW
    content = jax.lax.conv_general_dilated(
        comp, w2, (1, 1), [(kenc // 2, kenc // 2)] * 2,
        dimension_numbers=("NCHW", "OIHW", "NCHW"))
    content = content + params["b_enc"][None, :, None, None]

    B, Cenc, H, W = content.shape
    k2 = kup * kup
    ps = content.reshape(B, k2, sigma, sigma, H, W)
    ps = jnp.transpose(ps, (0, 1, 4, 2, 5, 3)).reshape(B, k2, H * sigma, W * sigma)
    km = jax.nn.softmax(ps, axis=1)

    r = kup // 2
    xpad = jnp.pad(x_nchw, ((0, 0), (0, 0), (r, r), (r, r)))
    Ho, Wo = H * sigma, W * sigma
    ii = jnp.arange(Ho) // sigma
    jj = jnp.arange(Wo) // sigma
    out = jnp.zeros((B, x_nchw.shape[1], Ho, Wo), x_nchw.dtype)
    for m in range(kup):
        for n in range(kup):
            g = xpad[:, :, ii + m, :][:, :, :, jj + n]
            out = out + km[:, m * kup + n, None, :, :] * g
    return out


# ----------------------------------------------------------------------------
if __name__ == "__main__":
    B, Cin, H, W = 2, 4, 16, 16
    sigma, kup = 2, 5            # upscale_factor, upsample_kernel_size
    ccomp = 16                   # compressed_channels (kept small)
    kenc = kup - 2
    cenc = (sigma * kup) ** 2

    key = jax.random.PRNGKey(0)
    k_x, k_w1, k_b1, k_w2, k_b2 = jax.random.split(key, 5)
    x = jax.random.normal(k_x, (B, Cin, H, W), jnp.float32)
    params = dict(
        w_comp=jax.random.normal(k_w1, (Cin, ccomp), jnp.float32) * 0.1,
        b_comp=jax.random.normal(k_b1, (ccomp,), jnp.float32) * 0.1,
        w_enc=jax.random.normal(k_w2, (kenc, kenc, ccomp, cenc), jnp.float32) * 0.1,
        b_enc=jax.random.normal(k_b2, (cenc,), jnp.float32) * 0.1,
    )

    fwd = jax.jit(functools.partial(carafe_module_forward,
                                    upscale_factor=sigma,
                                    upsample_kernel_size=kup))
    out = jax.block_until_ready(fwd(x, params))
    assert out.shape == (B, Cin, H * sigma, W * sigma), out.shape

    ref = reference_forward(x, params, sigma, kup)
    max_err = float(jnp.max(jnp.abs(out - ref)))
    # bf16 matmul operands / bf16 taps / bf16 output store + approx reciprocal
    # -> loosened tolerance vs. the pure-f32 reference.
    assert jnp.allclose(out, ref, atol=4e-2, rtol=4e-2), max_err

    print("KERNEL_OK")
</pallas_src>

<mosaic_0001>
module attributes {stable_mosaic.version = 11 : i64} {
  func.func @_mm_bias_kernel(%arg0: i32, %arg1: memref<512x128xbf16, #tpu.memory_space<vmem>>, %arg2: memref<128x128xbf16, #tpu.memory_space<vmem>>, %arg3: memref<1x128xf32, #tpu.memory_space<vmem>>, %arg4: memref<512x128xbf16, #tpu.memory_space<vmem>>) attributes {dimension_semantics = [#tpu.dimension_semantics<parallel>], iteration_bounds = array<i64: 1>, scalar_prefetch = 0 : i64, scratch_operands = 0 : i64, tpu.core_type = #tpu.core_type<tc>, window_params = [{transform_indices = @transform_0, window_bounds = array<i64: 512, 128>}, {pipeline_mode = #tpu.pipeline_mode<synchronous>, transform_indices = @transform_1, window_bounds = array<i64: 128, 128>}, {pipeline_mode = #tpu.pipeline_mode<synchronous>, transform_indices = @transform_2, window_bounds = array<i64: 1, 128>}, {transform_indices = @transform_3, window_bounds = array<i64: 512, 128>}]} {
    %c0 = arith.constant 0 : index
    %c0_0 = arith.constant 0 : index
    %0 = vector.load %arg1[%c0, %c0_0] : memref<512x128xbf16, #tpu.memory_space<vmem>>, vector<512x128xbf16>
    %c0_1 = arith.constant 0 : index
    %c0_2 = arith.constant 0 : index
    %1 = vector.load %arg2[%c0_1, %c0_2] : memref<128x128xbf16, #tpu.memory_space<vmem>>, vector<128x128xbf16>
    %cst = arith.constant dense<0.000000e+00> : vector<512x128xf32>
    %2 = tpu.matmul %0, %1, %cst {dimension_numbers = #tpu.dot_dimension_numbers<[1], [0], [0], [1], [0, 0, 1, 1], [], []>} : vector<512x128xbf16>, vector<128x128xbf16>, vector<512x128xf32> -> vector<512x128xf32>
    %c0_3 = arith.constant 0 : index
    %c0_4 = arith.constant 0 : index
    %3 = vector.load %arg3[%c0_3, %c0_4] : memref<1x128xf32, #tpu.memory_space<vmem>>, vector<1x128xf32>
    %4 = vector.broadcast %3 : vector<1x128xf32> to vector<512x128xf32>
    %5 = arith.addf %2, %4 : vector<512x128xf32>
    %6 = arith.truncf %5 : vector<512x128xf32> to vector<512x128xbf16>
    %c0_5 = arith.constant 0 : index
    %c0_6 = arith.constant 0 : index
    %7 = vector.load %arg4[%c0_5, %c0_6] : memref<512x128xbf16, #tpu.memory_space<vmem>>, vector<512x128xbf16>
    tpu.vector_store %arg4[%c0_5, %c0_6], %6 {strides = array<i32>} : memref<512x128xbf16, #tpu.memory_space<vmem>>, vector<512x128xbf16>,
    return
  }
  func.func @transform_0(%arg0: i32) -> (i32, i32) {
    %c0_i32 = arith.constant 0 : i32
    %c0_i32_0 = arith.constant 0 : i32
    return %arg0, %c0_i32 : i32, i32
  }
  func.func @transform_1(%arg0: i32) -> (i32, i32) {
    %c0_i32 = arith.constant 0 : i32
    %c0_i32_0 = arith.constant 0 : i32
    %c0_i32_1 = arith.constant 0 : i32
    return %c0_i32, %c0_i32_0 : i32, i32
  }
  func.func @transform_2(%arg0: i32) -> (i32, i32) {
    %c0_i32 = arith.constant 0 : i32
    %c0_i32_0 = arith.constant 0 : i32
    %c0_i32_1 = arith.constant 0 : i32
    return %c0_i32, %c0_i32_0 : i32, i32
  }
  func.func @transform_3(%arg0: i32) -> (i32, i32) {
    %c0_i32 = arith.constant 0 : i32
    %c0_i32_0 = arith.constant 0 : i32
    return %arg0, %c0_i32 : i32, i32
  }
}

module attributes {stable_mosaic.version = 11 : i64} {
  func.func @_enc_conv_kernel(%arg0: i32, %arg1: i32, %arg2: memref<1x18x18x128xbf16, #tpu.memory_space<vmem>>, %arg3: memref<1152x128xbf16, #tpu.memory_space<vmem>>, %arg4: memref<1x128xf32, #tpu.memory_space<vmem>>, %arg5: memref<1x16x16x128xf32, #tpu.memory_space<vmem>>, %arg6: memref<256x1152xbf16, #tpu.memory_space<vmem>>) attributes {dimension_semantics = [#tpu.dimension_semantics<parallel>, #tpu.dimension_semantics<parallel>], iteration_bounds = array<i64: 2, 1>, scalar_prefetch = 0 : i64, scratch_operands = 1 : i64, tpu.core_type = #tpu.core_type<tc>, window_params = [{transform_indices = @transform_0, window_bounds = array<i64: 1, 18, 18, 128>}, {pipeline_mode = #tpu.pipeline_mode<synchronous>, transform_indices = @transform_1, window_bounds = array<i64: 1152, 128>}, {pipeline_mode = #tpu.pipeline_mode<synchronous>, transform_indices = @transform_2, window_bounds = array<i64: 1, 128>}, {transform_indices = @transform_3, window_bounds = array<i64: 1, 16, 16, 128>}]} {
    %c16_i32 = arith.constant 16 : i32
    %0 = arith.muli %arg1, %c16_i32 : i32
    %1 = tpu.assume_multiple %0, 16 : i32
    %c0_i32 = arith.constant 0 : i32
    %2 = arith.addi %1, %c0_i32 : i32
    %c0 = arith.constant 0 : index
    %3 = arith.index_cast %2 : i32 to index
    %c0_0 = arith.constant 0 : index
    %c0_1 = arith.constant 0 : index
    %4 = vector.load %arg2[%c0, %3, %c0_0, %c0_1] : memref<1x18x18x128xbf16, #tpu.memory_space<vmem>>, vector<1x16x16x128xbf16>
    %5 = vector.shape_cast %4 : vector<1x16x16x128xbf16> to vector<16x16x128xbf16>
    %6 = vector.shape_cast %5 : vector<16x16x128xbf16> to vector<256x128xbf16>
    %c0_2 = arith.constant 0 : index
    %c0_3 = arith.constant 0 : index
    %7 = vector.load %arg6[%c0_2, %c0_3] : memref<256x1152xbf16, #tpu.memory_space<vmem>>, vector<256x128xbf16>
    tpu.vector_store %arg6[%c0_2, %c0_3], %6 {strides = array<i32>} : memref<256x1152xbf16, #tpu.memory_space<vmem>>, vector<256x128xbf16>,
    %c0_i32_4 = arith.constant 0 : i32
    %8 = arith.addi %1, %c0_i32_4 : i32
    %c0_5 = arith.constant 0 : index
    %9 = arith.index_cast %8 : i32 to index
    %c1 = arith.constant 1 : index
    %c0_6 = arith.constant 0 : index
    %10 = vector.load %arg2[%c0_5, %9, %c1, %c0_6] : memref<1x18x18x128xbf16, #tpu.memory_space<vmem>>, vector<1x16x16x128xbf16>
    %11 = vector.shape_cast %10 : vector<1x16x16x128xbf16> to vector<16x16x128xbf16>
    %12 = vector.shape_cast %11 : vector<16x16x128xbf16> to vector<256x128xbf16>
    %c0_7 = arith.constant 0 : index
    %c128 = arith.constant 128 : index
    %13 = vector.load %arg6[%c0_7, %c128] : memref<256x1152xbf16, #tpu.memory_space<vmem>>, vector<256x128xbf16>
    tpu.vector_store %arg6[%c0_7, %c128], %12 {strides = array<i32>} : memref<256x1152xbf16, #tpu.memory_space<vmem>>, vector<256x128xbf16>,
    %c0_i32_8 = arith.constant 0 : i32
    %14 = arith.addi %1, %c0_i32_8 : i32
    %c0_9 = arith.constant 0 : index
    %15 = arith.index_cast %14 : i32 to index
    %c2 = arith.constant 2 : index
    %c0_10 = arith.constant 0 : index
    %16 = vector.load %arg2[%c0_9, %15, %c2, %c0_10] : memref<1x18x18x128xbf16, #tpu.memory_space<vmem>>, vector<1x16x16x128xbf16>
    %17 = vector.shape_cast %16 : vector<1x16x16x128xbf16> to vector<16x16x128xbf16>
    %18 = vector.shape_cast %17 : vector<16x16x128xbf16> to vector<256x128xbf16>
    %c0_11 = arith.constant 0 : index
    %c256 = arith.constant 256 : index
    %19 = vector.load %arg6[%c0_11, %c256] : memref<256x1152xbf16, #tpu.memory_space<vmem>>, vector<256x128xbf16>
    tpu.vector_store %arg6[%c0_11, %c256], %18 {strides = array<i32>} : memref<256x1152xbf16, #tpu.memory_space<vmem>>, vector<256x128xbf16>,
    %c1_i32 = arith.constant 1 : i32
    %20 = arith.addi %1, %c1_i32 : i32
    %c0_12 = arith.constant 0 : index
    %21 = arith.index_cast %20 : i32 to index
    %c0_13 = arith.constant 0 : index
    %c0_14 = arith.constant 0 : index
    %22 = vector.load %arg2[%c0_12, %21, %c0_13, %c0_14] : memref<1x18x18x128xbf16, #tpu.memory_space<vmem>>, vector<1x16x16x128xbf16>
    %23 = vector.shape_cast %22 : vector<1x16x16x128xbf16> to vector<16x16x128xbf16>
    %24 = vector.shape_cast %23 : vector<16x16x128xbf16> to vector<256x128xbf16>
    %c0_15 = arith.constant 0 : index
    %c384 = arith.constant 384 : index
    %25 = vector.load %arg6[%c0_15, %c384] : memref<256x1152xbf16, #tpu.memory_space<vmem>>, vector<256x128xbf16>
    tpu.vector_store %arg6[%c0_15, %c384], %24 {strides = array<i32>} : memref<256x1152xbf16, #tpu.memory_space<vmem>>, vector<256x128xbf16>,
    %c1_i32_16 = arith.constant 1 : i32
    %26 = arith.addi %1, %c1_i32_16 : i32
    %c0_17 = arith.constant 0 : index
    %27 = arith.index_cast %26 : i32 to index
    %c1_18 = arith.constant 1 : index
    %c0_19 = arith.constant 0 : index
    %28 = vector.load %arg2[%c0_17, %27, %c1_18, %c0_19] : memref<1x18x18x128xbf16, #tpu.memory_space<vmem>>, vector<1x16x16x128xbf16>
    %29 = vector.shape_cast %28 : vector<1x16x16x128xbf16> to vector<16x16x128xbf16>
    %30 = vector.shape_cast %29 : vector<16x16x128xbf16> to vector<256x128xbf16>
    %c0_20 = arith.constant 0 : index
    %c512 = arith.constant 512 : index
    %31 = vector.load %arg6[%c0_20, %c512] : memref<256x1152xbf16, #tpu.memory_space<vmem>>, vector<256x128xbf16>
    tpu.vector_store %arg6[%c0_20, %c512], %30 {strides = array<i32>} : memref<256x1152xbf16, #tpu.memory_space<vmem>>, vector<256x128xbf16>,
    %c1_i32_21 = arith.constant 1 : i32
    %32 = arith.addi %1, %c1_i32_21 : i32
    %c0_22 = arith.constant 0 : index
    %33 = arith.index_cast %32 : i32 to index
    %c2_23 = arith.constant 2 : index
    %c0_24 = arith.constant 0 : index
    %34 = vector.load %arg2[%c0_22, %33, %c2_23, %c0_24] : memref<1x18x18x128xbf16, #tpu.memory_space<vmem>>, vector<1x16x16x128xbf16>
    %35 = vector.shape_cast %34 : vector<1x16x16x128xbf16> to vector<16x16x128xbf16>
    %36 = vector.shape_cast %35 : vector<16x16x128xbf16> to vector<256x128xbf16>
    %c0_25 = arith.constant 0 : index
    %c640 = arith.constant 640 : index
    %37 = vector.load %arg6[%c0_25, %c640] : memref<256x1152xbf16, #tpu.memory_space<vmem>>, vector<256x128xbf16>
    tpu.vector_store %arg6[%c0_25, %c640], %36 {strides = array<i32>} : memref<256x1152xbf16, #tpu.memory_space<vmem>>, vector<256x128xbf16>,
    %c2_i32 = arith.constant 2 : i32
    %38 = arith.addi %1, %c2_i32 : i32
    %c0_26 = arith.constant 0 : index
    %39 = arith.index_cast %38 : i32 to index
    %c0_27 = arith.constant 0 : index
    %c0_28 = arith.constant 0 : index
    %40 = vector.load %arg2[%c0_26, %39, %c0_27, %c0_28] : memref<1x18x18x128xbf16, #tpu.memory_space<vmem>>, vector<1x16x16x128xbf16>
    %41 = vector.shape_cast %40 : vector<1x16x16x128xbf16> to vector<16x16x128xbf16>
    %42 = vector.shape_cast %41 : vector<16x16x128xbf16> to vector<256x128xbf16>
    %c0_29 = arith.constant 0 : index
    %c768 = arith.constant 768 : index
    %43 = vector.load %arg6[%c0_29, %c768] : memref<256x1152xbf16, #tpu.memory_space<vmem>>, vector<256x128xbf16>
    tpu.vector_store %arg6[%c0_29, %c768], %42 {strides = array<i32>} : memref<256x1152xbf16, #tpu.memory_space<vmem>>, vector<256x128xbf16>,
    %c2_i32_30 = arith.constant 2 : i32
    %44 = arith.addi %1, %c2_i32_30 : i32
    %c0_31 = arith.constant 0 : index
    %45 = arith.index_cast %44 : i32 to index
    %c1_32 = arith.constant 1 : index
    %c0_33 = arith.constant 0 : index
    %46 = vector.load %arg2[%c0_31, %45, %c1_32, %c0_33] : memref<1x18x18x128xbf16, #tpu.memory_space<vmem>>, vector<1x16x16x128xbf16>
    %47 = vector.shape_cast %46 : vector<1x16x16x128xbf16> to vector<16x16x128xbf16>
    %48 = vector.shape_cast %47 : vector<16x16x128xbf16> to vector<256x128xbf16>
    %c0_34 = arith.constant 0 : index
    %c896 = arith.constant 896 : index
    %49 = vector.load %arg6[%c0_34, %c896] : memref<256x1152xbf16, #tpu.memory_space<vmem>>, vector<256x128xbf16>
    tpu.vector_store %arg6[%c0_34, %c896], %48 {strides = array<i32>} : memref<256x1152xbf16, #tpu.memory_space<vmem>>, vector<256x128xbf16>,
    %c2_i32_35 = arith.constant 2 : i32
    %50 = arith.addi %1, %c2_i32_35 : i32
    %c0_36 = arith.constant 0 : index
    %51 = arith.index_cast %50 : i32 to index
    %c2_37 = arith.constant 2 : index
    %c0_38 = arith.constant 0 : index
    %52 = vector.load %arg2[%c0_36, %51, %c2_37, %c0_38] : memref<1x18x18x128xbf16, #tpu.memory_space<vmem>>, vector<1x16x16x128xbf16>
    %53 = vector.shape_cast %52 : vector<1x16x16x128xbf16> to vector<16x16x128xbf16>
    %54 = vector.shape_cast %53 : vector<16x16x128xbf16> to vector<256x128xbf16>
    %c0_39 = arith.constant 0 : index
    %c1024 = arith.constant 1024 : index
    %55 = vector.load %arg6[%c0_39, %c1024] : memref<256x1152xbf16, #tpu.memory_space<vmem>>, vector<256x128xbf16>
    tpu.vector_store %arg6[%c0_39, %c1024], %54 {strides = array<i32>} : memref<256x1152xbf16, #tpu.memory_space<vmem>>, vector<256x128xbf16>,
    %c0_40 = arith.constant 0 : index
    %c0_41 = arith.constant 0 : index
    %56 = vector.load %arg6[%c0_40, %c0_41] : memref<256x1152xbf16, #tpu.memory_space<vmem>>, vector<256x1152xbf16>
    %c0_42 = arith.constant 0 : index
    %c0_43 = arith.constant 0 : index
    %57 = vector.load %arg3[%c0_42, %c0_43] : memref<1152x128xbf16, #tpu.memory_space<vmem>>, vector<1152x128xbf16>
    %cst = arith.constant dense<0.000000e+00> : vector<256x128xf32>
    %58 = tpu.matmul %56, %57, %cst {dimension_numbers = #tpu.dot_dimension_numbers<[1], [0], [0], [1], [0, 0, 1, 1], [], []>} : vector<256x1152xbf16>, vector<1152x128xbf16>, vector<256x128xf32> -> vector<256x128xf32>
    %c0_44 = arith.constant 0 : index
    %c0_45 = arith.constant 0 : index
    %59 = vector.load %arg4[%c0_44, %c0_45] : memref<1x128xf32, #tpu.memory_space<vmem>>, vector<1x128xf32>
    %60 = vector.broadcast %59 : vector<1x128xf32> to vector<256x128xf32>
    %61 = arith.addf %58, %60 : vector<256x128xf32>
    %62 = vector.shape_cast %61 : vector<256x128xf32> to vector<16x16x128xf32>
    %c0_46 = arith.constant 0 : index
    %c0_47 = arith.constant 0 : index
    %c0_48 = arith.constant 0 : index
    %c0_49 = arith.constant 0 : index
    %63 = vector.load %arg5[%c0_46, %c0_47, %c0_48, %c0_49] : memref<1x16x16x128xf32, #tpu.memory_space<vmem>>, vector<1x16x16x128xf32>
    %64 = vector.shape_cast %63 : vector<1x16x16x128xf32> to vector<16x16x128xf32>
    %65 = vector.shape_cast %62 : vector<16x16x128xf32> to vector<1x16x16x128xf32>
    tpu.vector_store %arg5[%c0_46, %c0_47, %c0_48, %c0_49], %65 {strides = array<i32>} : memref<1x16x16x128xf32, #tpu.memory_space<vmem>>, vector<1x16x16x128xf32>,
    return
  }
  func.func @transform_0(%arg0: i32, %arg1: i32) -> (i32, i32, i32, i32) {
    %c0_i32 = arith.constant 0 : i32
    %c0_i32_0 = arith.constant 0 : i32
    %c0_i32_1 = arith.constant 0 : i32
    %c0_i32_2 = arith.constant 0 : i32
    return %arg0, %c0_i32, %c0_i32_0, %c0_i32_1 : i32, i32, i32, i32
  }
  func.func @transform_1(%arg0: i32, %arg1: i32) -> (i32, i32) {
    %c0_i32 = arith.constant 0 : i32
    %c0_i32_0 = arith.constant 0 : i32
    %c0_i32_1 = arith.constant 0 : i32
    return %c0_i32, %c0_i32_0 : i32, i32
  }
  func.func @transform_2(%arg0: i32, %arg1: i32) -> (i32, i32) {
    %c0_i32 = arith.constant 0 : i32
    %c0_i32_0 = arith.constant 0 : i32
    %c0_i32_1 = arith.constant 0 : i32
    return %c0_i32, %c0_i32_0 : i32, i32
  }
  func.func @transform_3(%arg0: i32, %arg1: i32) -> (i32, i32, i32, i32) {
    %c0_i32 = arith.constant 0 : i32
    %c0_i32_0 = arith.constant 0 : i32
    %c0_i32_1 = arith.constant 0 : i32
    return %arg0, %arg1, %c0_i32, %c0_i32_0 : i32, i32, i32, i32
  }
}

module attributes {stable_mosaic.version = 11 : i64} {
  func.func @_carafe_kernel(%arg0: i32, %arg1: i32, %arg2: i32, %arg3: memref<4x16x16x25xf32, #tpu.memory_space<vmem>>, %arg4: memref<1x20x20x128xbf16, #tpu.memory_space<vmem>>, %arg5: memref<1x16x16x128xbf16, #tpu.memory_space<vmem>>, %arg6: memref<4x16x16x25xf32, #tpu.memory_space<vmem>>) attributes {dimension_semantics = [#tpu.dimension_semantics<parallel>, #tpu.dimension_semantics<parallel>, #tpu.dimension_semantics<arbitrary>], iteration_bounds = array<i64: 2, 1, 4>, scalar_prefetch = 0 : i64, scratch_operands = 1 : i64, tpu.core_type = #tpu.core_type<tc>, window_params = [{transform_indices = @transform_0, window_bounds = array<i64: 4, 16, 16, 25>}, {transform_indices = @transform_1, window_bounds = array<i64: 1, 20, 20, 128>}, {transform_indices = @transform_2, window_bounds = array<i64: 1, 16, 16, 128>}]} {
    %c0_i32 = arith.constant 0 : i32
    %0 = arith.cmpi eq, %arg2, %c0_i32 : i32
    %1 = arith.extui %0 : i1 to i32
    %c0_i32_0 = arith.constant 0 : i32
    %2 = arith.cmpi ne, %1, %c0_i32_0 : i32
    scf.if %2 {
      %c0 = arith.constant 0 : index
      %c0_3 = arith.constant 0 : index
      %c0_4 = arith.constant 0 : index
      %c0_5 = arith.constant 0 : index
      %4 = vector.load %arg3[%c0, %c0_3, %c0_4, %c0_5] : memref<4x16x16x25xf32, #tpu.memory_space<vmem>>, vector<4x16x16x25xf32>
      %cst = arith.constant dense<0xFF800000> : vector<4x16x16xf32>
      %5 = vector.multi_reduction <maximumf>, %4, %cst [3] : vector<4x16x16x25xf32> to vector<4x16x16xf32>
      %6 = vector.shape_cast %5 : vector<4x16x16xf32> to vector<4x16x16x1xf32>
      %7 = vector.broadcast %6 : vector<4x16x16x1xf32> to vector<4x16x16x25xf32>
      %8 = arith.subf %4, %7 : vector<4x16x16x25xf32>
      %9 = math.exp %8 : vector<4x16x16x25xf32>
      %cst_6 = arith.constant dense<0.000000e+00> : vector<4x16x16xf32>
      %10 = vector.multi_reduction <add>, %9, %cst_6 [3] : vector<4x16x16x25xf32> to vector<4x16x16xf32>
      %11 = vector.shape_cast %10 : vector<4x16x16xf32> to vector<4x16x16x1xf32>
      %12 = tpu.reciprocal %11 {approx = true} : vector<4x16x16x1xf32> -> vector<4x16x16x1xf32>
      %13 = vector.broadcast %12 : vector<4x16x16x1xf32> to vector<4x16x16x25xf32>
      %14 = arith.mulf %9, %13 : vector<4x16x16x25xf32>
      %c0_7 = arith.constant 0 : index
      %c0_8 = arith.constant 0 : index
      %c0_9 = arith.constant 0 : index
      %c0_10 = arith.constant 0 : index
      %15 = vector.load %arg6[%c0_7, %c0_8, %c0_9, %c0_10] : memref<4x16x16x25xf32, #tpu.memory_space<vmem>>, vector<4x16x16x25xf32>
      tpu.vector_store %arg6[%c0_7, %c0_8, %c0_9, %c0_10], %14 {strides = array<i32>} : memref<4x16x16x25xf32, #tpu.memory_space<vmem>>, vector<4x16x16x25xf32>,
    } else {
    }
    %c0_i32_1 = arith.constant 0 : i32
    %c2_i32 = arith.constant 2 : i32
    %3 = arith.addi %c0_i32_1, %c2_i32 : i32
    %c1_i32 = arith.constant 1 : i32
    scf.for %arg7 = %c0_i32_1 to %3 step %c1_i32  : i32 {
      %c8_i32 = arith.constant 8 : i32
      %4 = arith.muli %arg7, %c8_i32 : i32
      %5 = tpu.assume_multiple %4, 8 : i32
      %6 = arith.index_cast %arg2 : i32 to index
      %7 = arith.index_cast %5 : i32 to index
      %c0 = arith.constant 0 : index
      %c0_3 = arith.constant 0 : index
      %8 = vector.load %arg6[%6, %7, %c0, %c0_3] : memref<4x16x16x25xf32, #tpu.memory_space<vmem>>, vector<1x8x16x25xf32>
      %9 = vector.shape_cast %8 : vector<1x8x16x25xf32> to vector<8x16x25xf32>
      %cst = arith.constant 0.000000e+00 : f32
      %10 = vector.broadcast %cst : f32 to vector<8x16x128xf32>
      %c0_i32_4 = arith.constant 0 : i32
      %11 = arith.addi %5, %c0_i32_4 : i32
      %c0_5 = arith.constant 0 : index
      %12 = arith.index_cast %11 : i32 to index
      %c0_6 = arith.constant 0 : index
      %c0_7 = arith.constant 0 : index
      %13 = vector.load %arg4[%c0_5, %12, %c0_6, %c0_7] : memref<1x20x20x128xbf16, #tpu.memory_space<vmem>>, vector<1x8x16x128xbf16>
      %14 = vector.shape_cast %13 : vector<1x8x16x128xbf16> to vector<8x16x128xbf16>
      %15 = vector.extract_strided_slice %9 {offsets = [0, 0, 0], sizes = [8, 16, 1], strides = [1, 1, 1]} : vector<8x16x25xf32> to vector<8x16x1xf32>
      %16 = arith.extf %14 : vector<8x16x128xbf16> to vector<8x16x128xf32>
      %17 = vector.broadcast %15 : vector<8x16x1xf32> to vector<8x16x128xf32>
      %18 = arith.mulf %17, %16 : vector<8x16x128xf32>
      %19 = arith.addf %10, %18 : vector<8x16x128xf32>
      %c0_i32_8 = arith.constant 0 : i32
      %20 = arith.addi %5, %c0_i32_8 : i32
      %c0_9 = arith.constant 0 : index
      %21 = arith.index_cast %20 : i32 to index
      %c1 = arith.constant 1 : index
      %c0_10 = arith.constant 0 : index
      %22 = vector.load %arg4[%c0_9, %21, %c1, %c0_10] : memref<1x20x20x128xbf16, #tpu.memory_space<vmem>>, vector<1x8x16x128xbf16>
      %23 = vector.shape_cast %22 : vector<1x8x16x128xbf16> to vector<8x16x128xbf16>
      %24 = vector.extract_strided_slice %9 {offsets = [0, 0, 1], sizes = [8, 16, 1], strides = [1, 1, 1]} : vector<8x16x25xf32> to vector<8x16x1xf32>
      %25 = arith.extf %23 : vector<8x16x128xbf16> to vector<8x16x128xf32>
      %26 = vector.broadcast %24 : vector<8x16x1xf32> to vector<8x16x128xf32>
      %27 = arith.mulf %26, %25 : vector<8x16x128xf32>
      %28 = arith.addf %19, %27 : vector<8x16x128xf32>
      %c0_i32_11 = arith.constant 0 : i32
      %29 = arith.addi %5, %c0_i32_11 : i32
      %c0_12 = arith.constant 0 : index
      %30 = arith.index_cast %29 : i32 to index
      %c2 = arith.constant 2 : index
      %c0_13 = arith.constant 0 : index
      %31 = vector.load %arg4[%c0_12, %30, %c2, %c0_13] : memref<1x20x20x128xbf16, #tpu.memory_space<vmem>>, vector<1x8x16x128xbf16>
      %32 = vector.shape_cast %31 : vector<1x8x16x128xbf16> to vector<8x16x128xbf16>
      %33 = vector.extract_strided_slice %9 {offsets = [0, 0, 2], sizes = [8, 16, 1], strides = [1, 1, 1]} : vector<8x16x25xf32> to vector<8x16x1xf32>
      %34 = arith.extf %32 : vector<8x16x128xbf16> to vector<8x16x128xf32>
      %35 = vector.broadcast %33 : vector<8x16x1xf32> to vector<8x16x128xf32>
      %36 = arith.mulf %35, %34 : vector<8x16x128xf32>
      %37 = arith.addf %28, %36 : vector<8x16x128xf32>
      %c0_i32_14 = arith.constant 0 : i32
      %38 = arith.addi %5, %c0_i32_14 : i32
      %c0_15 = arith.constant 0 : index
      %39 = arith.index_cast %38 : i32 to index
      %c3 = arith.constant 3 : index
      %c0_16 = arith.constant 0 : index
      %40 = vector.load %arg4[%c0_15, %39, %c3, %c0_16] : memref<1x20x20x128xbf16, #tpu.memory_space<vmem>>, vector<1x8x16x128xbf16>
      %41 = vector.shape_cast %40 : vector<1x8x16x128xbf16> to vector<8x16x128xbf16>
      %42 = vector.extract_strided_slice %9 {offsets = [0, 0, 3], sizes = [8, 16, 1], strides = [1, 1, 1]} : vector<8x16x25xf32> to vector<8x16x1xf32>
      %43 = arith.extf %41 : vector<8x16x128xbf16> to vector<8x16x128xf32>
      %44 = vector.broadcast %42 : vector<8x16x1xf32> to vector<8x16x128xf32>
      %45 = arith.mulf %44, %43 : vector<8x16x128xf32>
      %46 = arith.addf %37, %45 : vector<8x16x128xf32>
      %c0_i32_17 = arith.constant 0 : i32
      %47 = arith.addi %5, %c0_i32_17 : i32
      %c0_18 = arith.constant 0 : index
      %48 = arith.index_cast %47 : i32 to index
      %c4 = arith.constant 4 : index
      %c0_19 = arith.constant 0 : index
      %49 = vector.load %arg4[%c0_18, %48, %c4, %c0_19] : memref<1x20x20x128xbf16, #tpu.memory_space<vmem>>, vector<1x8x16x128xbf16>
      %50 = vector.shape_cast %49 : vector<1x8x16x128xbf16> to vector<8x16x128xbf16>
      %51 = vector.extract_strided_slice %9 {offsets = [0, 0, 4], sizes = [8, 16, 1], strides = [1, 1, 1]} : vector<8x16x25xf32> to vector<8x16x1xf32>
      %52 = arith.extf %50 : vector<8x16x128xbf16> to vector<8x16x128xf32>
      %53 = vector.broadcast %51 : vector<8x16x1xf32> to vector<8x16x128xf32>
      %54 = arith.mulf %53, %52 : vector<8x16x128xf32>
      %55 = arith.addf %46, %54 : vector<8x16x128xf32>
      %c1_i32_20 = arith.constant 1 : i32
      %56 = arith.addi %5, %c1_i32_20 : i32
      %c0_21 = arith.constant 0 : index
      %57 = arith.index_cast %56 : i32 to index
      %c0_22 = arith.constant 0 : index
      %c0_23 = arith.constant 0 : index
      %58 = vector.load %arg4[%c0_21, %57, %c0_22, %c0_23] : memref<1x20x20x128xbf16, #tpu.memory_space<vmem>>, vector<1x8x16x128xbf16>
      %59 = vector.shape_cast %58 : vector<1x8x16x128xbf16> to vector<8x16x128xbf16>
      %60 = vector.extract_strided_slice %9 {offsets = [0, 0, 5], sizes = [8, 16, 1], strides = [1, 1, 1]} : vector<8x16x25xf32> to vector<8x16x1xf32>
      %61 = arith.extf %59 : vector<8x16x128xbf16> to vector<8x16x128xf32>
      %62 = vector.broadcast %60 : vector<8x16x1xf32> to vector<8x16x128xf32>
      %63 = arith.mulf %62, %61 : vector<8x16x128xf32>
      %64 = arith.addf %55, %63 : vector<8x16x128xf32>
      %c1_i32_24 = arith.constant 1 : i32
      %65 = arith.addi %5, %c1_i32_24 : i32
      %c0_25 = arith.constant 0 : index
      %66 = arith.index_cast %65 : i32 to index
      %c1_26 = arith.constant 1 : index
      %c0_27 = arith.constant 0 : index
      %67 = vector.load %arg4[%c0_25, %66, %c1_26, %c0_27] : memref<1x20x20x128xbf16, #tpu.memory_space<vmem>>, vector<1x8x16x128xbf16>
      %68 = vector.shape_cast %67 : vector<1x8x16x128xbf16> to vector<8x16x128xbf16>
      %69 = vector.extract_strided_slice %9 {offsets = [0, 0, 6], sizes = [8, 16, 1], strides = [1, 1, 1]} : vector<8x16x25xf32> to vector<8x16x1xf32>
      %70 = arith.extf %68 : vector<8x16x128xbf16> to vector<8x16x128xf32>
      %71 = vector.broadcast %69 : vector<8x16x1xf32> to vector<8x16x128xf32>
      %72 = arith.mulf %71, %70 : vector<8x16x128xf32>
      %73 = arith.addf %64, %72 : vector<8x16x128xf32>
      %c1_i32_28 = arith.constant 1 : i32
      %74 = arith.addi %5, %c1_i32_28 : i32
      %c0_29 = arith.constant 0 : index
      %75 = arith.index_cast %74 : i32 to index
      %c2_30 = arith.constant 2 : index
      %c0_31 = arith.constant 0 : index
      %76 = vector.load %arg4[%c0_29, %75, %c2_30, %c0_31] : memref<1x20x20x128xbf16, #tpu.memory_space<vmem>>, vector<1x8x16x128xbf16>
      %77 = vector.shape_cast %76 : vector<1x8x16x128xbf16> to vector<8x16x128xbf16>
      %78 = vector.extract_strided_slice %9 {offsets = [0, 0, 7], sizes = [8, 16, 1], strides = [1, 1, 1]} : vector<8x16x25xf32> to vector<8x16x1xf32>
      %79 = arith.extf %77 : vector<8x16x128xbf16> to vector<8x16x128xf32>
      %80 = vector.broadcast %78 : vector<8x16x1xf32> to vector<8x16x128xf32>
      %81 = arith.mulf %80, %79 : vector<8x16x128xf32>
      %82 = arith.addf %73, %81 : vector<8x16x128xf32>
      %c1_i32_32 = arith.constant 1 : i32
      %83 = arith.addi %5, %c1_i32_32 : i32
      %c0_33 = arith.constant 0 : index
      %84 = arith.index_cast %83 : i32 to index
      %c3_34 = arith.constant 3 : index
      %c0_35 = arith.constant 0 : index
      %85 = vector.load %arg4[%c0_33, %84, %c3_34, %c0_35] : memref<1x20x20x128xbf16, #tpu.memory_space<vmem>>, vector<1x8x16x128xbf16>
      %86 = vector.shape_cast %85 : vector<1x8x16x128xbf16> to vector<8x16x128xbf16>
      %87 = vector.extract_strided_slice %9 {offsets = [0, 0, 8], sizes = [8, 16, 1], strides = [1, 1, 1]} : vector<8x16x25xf32> to vector<8x16x1xf32>
      %88 = arith.extf %86 : vector<8x16x128xbf16> to vector<8x16x128xf32>
      %89 = vector.broadcast %87 : vector<8x16x1xf32> to vector<8x16x128xf32>
      %90 = arith.mulf %89, %88 : vector<8x16x128xf32>
      %91 = arith.addf %82, %90 : vector<8x16x128xf32>
      %c1_i32_36 = arith.constant 1 : i32
      %92 = arith.addi %5, %c1_i32_36 : i32
      %c0_37 = arith.constant 0 : index
      %93 = arith.index_cast %92 : i32 to index
      %c4_38 = arith.constant 4 : index
      %c0_39 = arith.constant 0 : index
      %94 = vector.load %arg4[%c0_37, %93, %c4_38, %c0_39] : memref<1x20x20x128xbf16, #tpu.memory_space<vmem>>, vector<1x8x16x128xbf16>
      %95 = vector.shape_cast %94 : vector<1x8x16x128xbf16> to vector<8x16x128xbf16>
      %96 = vector.extract_strided_slice %9 {offsets = [0, 0, 9], sizes = [8, 16, 1], strides = [1, 1, 1]} : vector<8x16x25xf32> to vector<8x16x1xf32>
      %97 = arith.extf %95 : vector<8x16x128xbf16> to vector<8x16x128xf32>
      %98 = vector.broadcast %96 : vector<8x16x1xf32> to vector<8x16x128xf32>
      %99 = arith.mulf %98, %97 : vector<8x16x128xf32>
      %100 = arith.addf %91, %99 : vector<8x16x128xf32>
      %c2_i32_40 = arith.constant 2 : i32
      %101 = arith.addi %5, %c2_i32_40 : i32
      %c0_41 = arith.constant 0 : index
      %102 = arith.index_cast %101 : i32 to index
      %c0_42 = arith.constant 0 : index
      %c0_43 = arith.constant 0 : index
      %103 = vector.load %arg4[%c0_41, %102, %c0_42, %c0_43] : memref<1x20x20x128xbf16, #tpu.memory_space<vmem>>, vector<1x8x16x128xbf16>
      %104 = vector.shape_cast %103 : vector<1x8x16x128xbf16> to vector<8x16x128xbf16>
      %105 = vector.extract_strided_slice %9 {offsets = [0, 0, 10], sizes = [8, 16, 1], strides = [1, 1, 1]} : vector<8x16x25xf32> to vector<8x16x1xf32>
      %106 = arith.extf %104 : vector<8x16x128xbf16> to vector<8x16x128xf32>
      %107 = vector.broadcast %105 : vector<8x16x1xf32> to vector<8x16x128xf32>
      %108 = arith.mulf %107, %106 : vector<8x16x128xf32>
      %109 = arith.addf %100, %108 : vector<8x16x128xf32>
      %c2_i32_44 = arith.constant 2 : i32
      %110 = arith.addi %5, %c2_i32_44 : i32
      %c0_45 = arith.constant 0 : index
      %111 = arith.index_cast %110 : i32 to index
      %c1_46 = arith.constant 1 : index
      %c0_47 = arith.constant 0 : index
      %112 = vector.load %arg4[%c0_45, %111, %c1_46, %c0_47] : memref<1x20x20x128xbf16, #tpu.memory_space<vmem>>, vector<1x8x16x128xbf16>
      %113 = vector.shape_cast %112 : vector<1x8x16x128xbf16> to vector<8x16x128xbf16>
      %114 = vector.extract_strided_slice %9 {offsets = [0, 0, 11], sizes = [8, 16, 1], strides = [1, 1, 1]} : vector<8x16x25xf32> to vector<8x16x1xf32>
      %115 = arith.extf %113 : vector<8x16x128xbf16> to vector<8x16x128xf32>
      %116 = vector.broadcast %114 : vector<8x16x1xf32> to vector<8x16x128xf32>
      %117 = arith.mulf %116, %115 : vector<8x16x128xf32>
      %118 = arith.addf %109, %117 : vector<8x16x128xf32>
      %c2_i32_48 = arith.constant 2 : i32
      %119 = arith.addi %5, %c2_i32_48 : i32
      %c0_49 = arith.constant 0 : index
      %120 = arith.index_cast %119 : i32 to index
      %c2_50 = arith.constant 2 : index
      %c0_51 = arith.constant 0 : index
      %121 = vector.load %arg4[%c0_49, %120, %c2_50, %c0_51] : memref<1x20x20x128xbf16, #tpu.memory_space<vmem>>, vector<1x8x16x128xbf16>
      %122 = vector.shape_cast %121 : vector<1x8x16x128xbf16> to vector<8x16x128xbf16>
      %123 = vector.extract_strided_slice %9 {offsets = [0, 0, 12], sizes = [8, 16, 1], strides = [1, 1, 1]} : vector<8x16x25xf32> to vector<8x16x1xf32>
      %124 = arith.extf %122 : vector<8x16x128xbf16> to vector<8x16x128xf32>
      %125 = vector.broadcast %123 : vector<8x16x1xf32> to vector<8x16x128xf32>
      %126 = arith.mulf %125, %124 : vector<8x16x128xf32>
      %127 = arith.addf %118, %126 : vector<8x16x128xf32>
      %c2_i32_52 = arith.constant 2 : i32
      %128 = arith.addi %5, %c2_i32_52 : i32
      %c0_53 = arith.constant 0 : index
      %129 = arith.index_cast %128 : i32 to index
      %c3_54 = arith.constant 3 : index
      %c0_55 = arith.constant 0 : index
      %130 = vector.load %arg4[%c0_53, %129, %c3_54, %c0_55] : memref<1x20x20x128xbf16, #tpu.memory_space<vmem>>, vector<1x8x16x128xbf16>
      %131 = vector.shape_cast %130 : vector<1x8x16x128xbf16> to vector<8x16x128xbf16>
      %132 = vector.extract_strided_slice %9 {offsets = [0, 0, 13], sizes = [8, 16, 1], strides = [1, 1, 1]} : vector<8x16x25xf32> to vector<8x16x1xf32>
      %133 = arith.extf %131 : vector<8x16x128xbf16> to vector<8x16x128xf32>
      %134 = vector.broadcast %132 : vector<8x16x1xf32> to vector<8x16x128xf32>
      %135 = arith.mulf %134, %133 : vector<8x16x128xf32>
      %136 = arith.addf %127, %135 : vector<8x16x128xf32>
      %c2_i32_56 = arith.constant 2 : i32
      %137 = arith.addi %5, %c2_i32_56 : i32
      %c0_57 = arith.constant 0 : index
      %138 = arith.index_cast %137 : i32 to index
      %c4_58 = arith.constant 4 : index
      %c0_59 = arith.constant 0 : index
      %139 = vector.load %arg4[%c0_57, %138, %c4_58, %c0_59] : memref<1x20x20x128xbf16, #tpu.memory_space<vmem>>, vector<1x8x16x128xbf16>
      %140 = vector.shape_cast %139 : vector<1x8x16x128xbf16> to vector<8x16x128xbf16>
      %141 = vector.extract_strided_slice %9 {offsets = [0, 0, 14], sizes = [8, 16, 1], strides = [1, 1, 1]} : vector<8x16x25xf32> to vector<8x16x1xf32>
      %142 = arith.extf %140 : vector<8x16x128xbf16> to vector<8x16x128xf32>
      %143 = vector.broadcast %141 : vector<8x16x1xf32> to vector<8x16x128xf32>
      %144 = arith.mulf %143, %142 : vector<8x16x128xf32>
      %145 = arith.addf %136, %144 : vector<8x16x128xf32>
      %c3_i32 = arith.constant 3 : i32
      %146 = arith.addi %5, %c3_i32 : i32
      %c0_60 = arith.constant 0 : index
      %147 = arith.index_cast %146 : i32 to index
      %c0_61 = arith.constant 0 : index
      %c0_62 = arith.constant 0 : index
      %148 = vector.load %arg4[%c0_60, %147, %c0_61, %c0_62] : memref<1x20x20x128xbf16, #tpu.memory_space<vmem>>, vector<1x8x16x128xbf16>
      %149 = vector.shape_cast %148 : vector<1x8x16x128xbf16> to vector<8x16x128xbf16>
      %150 = vector.extract_strided_slice %9 {offsets = [0, 0, 15], sizes = [8, 16, 1], strides = [1, 1, 1]} : vector<8x16x25xf32> to vector<8x16x1xf32>
      %151 = arith.extf %149 : vector<8x16x128xbf16> to vector<8x16x128xf32>
      %152 = vector.broadcast %150 : vector<8x16x1xf32> to vector<8x16x128xf32>
      %153 = arith.mulf %152, %151 : vector<8x16x128xf32>
      %154 = arith.addf %145, %153 : vector<8x16x128xf32>
      %c3_i32_63 = arith.constant 3 : i32
      %155 = arith.addi %5, %c3_i32_63 : i32
      %c0_64 = arith.constant 0 : index
      %156 = arith.index_cast %155 : i32 to index
      %c1_65 = arith.constant 1 : index
      %c0_66 = arith.constant 0 : index
      %157 = vector.load %arg4[%c0_64, %156, %c1_65, %c0_66] : memref<1x20x20x128xbf16, #tpu.memory_space<vmem>>, vector<1x8x16x128xbf16>
      %158 = vector.shape_cast %157 : vector<1x8x16x128xbf16> to vector<8x16x128xbf16>
      %159 = vector.extract_strided_slice %9 {offsets = [0, 0, 16], sizes = [8, 16, 1], strides = [1, 1, 1]} : vector<8x16x25xf32> to vector<8x16x1xf32>
      %160 = arith.extf %158 : vector<8x16x128xbf16> to vector<8x16x128xf32>
      %161 = vector.broadcast %159 : vector<8x16x1xf32> to vector<8x16x128xf32>
      %162 = arith.mulf %161, %160 : vector<8x16x128xf32>
      %163 = arith.addf %154, %162 : vector<8x16x128xf32>
      %c3_i32_67 = arith.constant 3 : i32
      %164 = arith.addi %5, %c3_i32_67 : i32
      %c0_68 = arith.constant 0 : index
      %165 = arith.index_cast %164 : i32 to index
      %c2_69 = arith.constant 2 : index
      %c0_70 = arith.constant 0 : index
      %166 = vector.load %arg4[%c0_68, %165, %c2_69, %c0_70] : memref<1x20x20x128xbf16, #tpu.memory_space<vmem>>, vector<1x8x16x128xbf16>
      %167 = vector.shape_cast %166 : vector<1x8x16x128xbf16> to vector<8x16x128xbf16>
      %168 = vector.extract_strided_slice %9 {offsets = [0, 0, 17], sizes = [8, 16, 1], strides = [1, 1, 1]} : vector<8x16x25xf32> to vector<8x16x1xf32>
      %169 = arith.extf %167 : vector<8x16x128xbf16> to vector<8x16x128xf32>
      %170 = vector.broadcast %168 : vector<8x16x1xf32> to vector<8x16x128xf32>
      %171 = arith.mulf %170, %169 : vector<8x16x128xf32>
      %172 = arith.addf %163, %171 : vector<8x16x128xf32>
      %c3_i32_71 = arith.constant 3 : i32
      %173 = arith.addi %5, %c3_i32_71 : i32
      %c0_72 = arith.constant 0 : index
      %174 = arith.index_cast %173 : i32 to index
      %c3_73 = arith.constant 3 : index
      %c0_74 = arith.constant 0 : index
      %175 = vector.load %arg4[%c0_72, %174, %c3_73, %c0_74] : memref<1x20x20x128xbf16, #tpu.memory_space<vmem>>, vector<1x8x16x128xbf16>
      %176 = vector.shape_cast %175 : vector<1x8x16x128xbf16> to vector<8x16x128xbf16>
      %177 = vector.extract_strided_slice %9 {offsets = [0, 0, 18], sizes = [8, 16, 1], strides = [1, 1, 1]} : vector<8x16x25xf32> to vector<8x16x1xf32>
      %178 = arith.extf %176 : vector<8x16x128xbf16> to vector<8x16x128xf32>
      %179 = vector.broadcast %177 : vector<8x16x1xf32> to vector<8x16x128xf32>
      %180 = arith.mulf %179, %178 : vector<8x16x128xf32>
      %181 = arith.addf %172, %180 : vector<8x16x128xf32>
      %c3_i32_75 = arith.constant 3 : i32
      %182 = arith.addi %5, %c3_i32_75 : i32
      %c0_76 = arith.constant 0 : index
      %183 = arith.index_cast %182 : i32 to index
      %c4_77 = arith.constant 4 : index
      %c0_78 = arith.constant 0 : index
      %184 = vector.load %arg4[%c0_76, %183, %c4_77, %c0_78] : memref<1x20x20x128xbf16, #tpu.memory_space<vmem>>, vector<1x8x16x128xbf16>
      %185 = vector.shape_cast %184 : vector<1x8x16x128xbf16> to vector<8x16x128xbf16>
      %186 = vector.extract_strided_slice %9 {offsets = [0, 0, 19], sizes = [8, 16, 1], strides = [1, 1, 1]} : vector<8x16x25xf32> to vector<8x16x1xf32>
      %187 = arith.extf %185 : vector<8x16x128xbf16> to vector<8x16x128xf32>
      %188 = vector.broadcast %186 : vector<8x16x1xf32> to vector<8x16x128xf32>
      %189 = arith.mulf %188, %187 : vector<8x16x128xf32>
      %190 = arith.addf %181, %189 : vector<8x16x128xf32>
      %c4_i32 = arith.constant 4 : i32
      %191 = arith.addi %5, %c4_i32 : i32
      %c0_79 = arith.constant 0 : index
      %192 = arith.index_cast %191 : i32 to index
      %c0_80 = arith.constant 0 : index
      %c0_81 = arith.constant 0 : index
      %193 = vector.load %arg4[%c0_79, %192, %c0_80, %c0_81] : memref<1x20x20x128xbf16, #tpu.memory_space<vmem>>, vector<1x8x16x128xbf16>
      %194 = vector.shape_cast %193 : vector<1x8x16x128xbf16> to vector<8x16x128xbf16>
      %195 = vector.extract_strided_slice %9 {offsets = [0, 0, 20], sizes = [8, 16, 1], strides = [1, 1, 1]} : vector<8x16x25xf32> to vector<8x16x1xf32>
      %196 = arith.extf %194 : vector<8x16x128xbf16> to vector<8x16x128xf32>
      %197 = vector.broadcast %195 : vector<8x16x1xf32> to vector<8x16x128xf32>
      %198 = arith.mulf %197, %196 : vector<8x16x128xf32>
      %199 = arith.addf %190, %198 : vector<8x16x128xf32>
      %c4_i32_82 = arith.constant 4 : i32
      %200 = arith.addi %5, %c4_i32_82 : i32
      %c0_83 = arith.constant 0 : index
      %201 = arith.index_cast %200 : i32 to index
      %c1_84 = arith.constant 1 : index
      %c0_85 = arith.constant 0 : index
      %202 = vector.load %arg4[%c0_83, %201, %c1_84, %c0_85] : memref<1x20x20x128xbf16, #tpu.memory_space<vmem>>, vector<1x8x16x128xbf16>
      %203 = vector.shape_cast %202 : vector<1x8x16x128xbf16> to vector<8x16x128xbf16>
      %204 = vector.extract_strided_slice %9 {offsets = [0, 0, 21], sizes = [8, 16, 1], strides = [1, 1, 1]} : vector<8x16x25xf32> to vector<8x16x1xf32>
      %205 = arith.extf %203 : vector<8x16x128xbf16> to vector<8x16x128xf32>
      %206 = vector.broadcast %204 : vector<8x16x1xf32> to vector<8x16x128xf32>
      %207 = arith.mulf %206, %205 : vector<8x16x128xf32>
      %208 = arith.addf %199, %207 : vector<8x16x128xf32>
      %c4_i32_86 = arith.constant 4 : i32
      %209 = arith.addi %5, %c4_i32_86 : i32
      %c0_87 = arith.constant 0 : index
      %210 = arith.index_cast %209 : i32 to index
      %c2_88 = arith.constant 2 : index
      %c0_89 = arith.constant 0 : index
      %211 = vector.load %arg4[%c0_87, %210, %c2_88, %c0_89] : memref<1x20x20x128xbf16, #tpu.memory_space<vmem>>, vector<1x8x16x128xbf16>
      %212 = vector.shape_cast %211 : vector<1x8x16x128xbf16> to vector<8x16x128xbf16>
      %213 = vector.extract_strided_slice %9 {offsets = [0, 0, 22], sizes = [8, 16, 1], strides = [1, 1, 1]} : vector<8x16x25xf32> to vector<8x16x1xf32>
      %214 = arith.extf %212 : vector<8x16x128xbf16> to vector<8x16x128xf32>
      %215 = vector.broadcast %213 : vector<8x16x1xf32> to vector<8x16x128xf32>
      %216 = arith.mulf %215, %214 : vector<8x16x128xf32>
      %217 = arith.addf %208, %216 : vector<8x16x128xf32>
      %c4_i32_90 = arith.constant 4 : i32
      %218 = arith.addi %5, %c4_i32_90 : i32
      %c0_91 = arith.constant 0 : index
      %219 = arith.index_cast %218 : i32 to index
      %c3_92 = arith.constant 3 : index
      %c0_93 = arith.constant 0 : index
      %220 = vector.load %arg4[%c0_91, %219, %c3_92, %c0_93] : memref<1x20x20x128xbf16, #tpu.memory_space<vmem>>, vector<1x8x16x128xbf16>
      %221 = vector.shape_cast %220 : vector<1x8x16x128xbf16> to vector<8x16x128xbf16>
      %222 = vector.extract_strided_slice %9 {offsets = [0, 0, 23], sizes = [8, 16, 1], strides = [1, 1, 1]} : vector<8x16x25xf32> to vector<8x16x1xf32>
      %223 = arith.extf %221 : vector<8x16x128xbf16> to vector<8x16x128xf32>
      %224 = vector.broadcast %222 : vector<8x16x1xf32> to vector<8x16x128xf32>
      %225 = arith.mulf %224, %223 : vector<8x16x128xf32>
      %226 = arith.addf %217, %225 : vector<8x16x128xf32>
      %c4_i32_94 = arith.constant 4 : i32
      %227 = arith.addi %5, %c4_i32_94 : i32
      %c0_95 = arith.constant 0 : index
      %228 = arith.index_cast %227 : i32 to index
      %c4_96 = arith.constant 4 : index
      %c0_97 = arith.constant 0 : index
      %229 = vector.load %arg4[%c0_95, %228, %c4_96, %c0_97] : memref<1x20x20x128xbf16, #tpu.memory_space<vmem>>, vector<1x8x16x128xbf16>
      %230 = vector.shape_cast %229 : vector<1x8x16x128xbf16> to vector<8x16x128xbf16>
      %231 = vector.extract_strided_slice %9 {offsets = [0, 0, 24], sizes = [8, 16, 1], strides = [1, 1, 1]} : vector<8x16x25xf32> to vector<8x16x1xf32>
      %232 = arith.extf %230 : vector<8x16x128xbf16> to vector<8x16x128xf32>
      %233 = vector.broadcast %231 : vector<8x16x1xf32> to vector<8x16x128xf32>
      %234 = arith.mulf %233, %232 : vector<8x16x128xf32>
      %235 = arith.addf %226, %234 : vector<8x16x128xf32>
      %236 = arith.truncf %235 : vector<8x16x128xf32> to vector<8x16x128xbf16>
      %c0_98 = arith.constant 0 : index
      %237 = arith.index_cast %5 : i32 to index
      %c0_99 = arith.constant 0 : index
      %c0_100 = arith.constant 0 : index
      %238 = vector.load %arg5[%c0_98, %237, %c0_99, %c0_100] : memref<1x16x16x128xbf16, #tpu.memory_space<vmem>>, vector<1x8x16x128xbf16>
      %239 = vector.shape_cast %238 : vector<1x8x16x128xbf16> to vector<8x16x128xbf16>
      %240 = vector.shape_cast %236 : vector<8x16x128xbf16> to vector<1x8x16x128xbf16>
      tpu.vector_store %arg5[%c0_98, %237, %c0_99, %c0_100], %240 {strides = array<i32>} : memref<1x16x16x128xbf16, #tpu.memory_space<vmem>>, vector<1x8x16x128xbf16>,
    }
    %c2_i32_2 = arith.constant 2 : i32
    return
  }
  func.func @transform_0(%arg0: i32, %arg1: i32, %arg2: i32) -> (i32, i32, i32, i32) {
    %c0_i32 = arith.constant 0 : i32
    %c0_i32_0 = arith.constant 0 : i32
    %c0_i32_1 = arith.constant 0 : i32
    %c0_i32_2 = arith.constant 0 : i32
    return %arg0, %c0_i32, %c0_i32_0, %c0_i32_1 : i32, i32, i32, i32
  }
  func.func @transform_1(%arg0: i32, %arg1: i32, %arg2: i32) -> (i32, i32, i32, i32) {
    %c0_i32 = arith.constant 0 : i32
    %c0_i32_0 = arith.constant 0 : i32
    %c0_i32_1 = arith.constant 0 : i32
    return %arg0, %c0_i32, %c0_i32_0, %arg1 : i32, i32, i32, i32
  }
  func.func @transform_2(%arg0: i32, %arg1: i32, %arg2: i32) -> (i32, i32, i32, i32) {
    %c4_i32 = arith.constant 4 : i32
    %0 = arith.muli %arg0, %c4_i32 : i32
    %1 = arith.addi %0, %arg2 : i32
    %c0_i32 = arith.constant 0 : i32
    %c0_i32_0 = arith.constant 0 : i32
    %c0_i32_1 = arith.constant 0 : i32
    return %1, %c0_i32, %c0_i32_0, %arg1 : i32, i32, i32, i32
  }
}

</mosaic_0001>

<llo_original>
// kernel: carafe_module_forward.3
$region0: #{carafe_module_forward.3}
  #allocation0 [shape = 'u32[]', space=smem, size = 0x4, offset = 0x4, fixed_abs, tag = 'smem constant byte address 0x4 - core index']
  #allocation1 [shape = 'u32[144,128]{1,0:T(1,128)}', space=vmem, size = 0x12000, scoped, tag = 'internal scratch']
  %s0 = inlined_call_operand.vmem [shape: bf16[512,128], index: 0, kind: input, shape index: {}]
  %s1 = inlined_call_operand.vmem [shape: bf16[128,128], index: 1, kind: input, shape index: {}]
  %s2 = inlined_call_operand.vmem [shape: f32[1,128], index: 2, kind: input, shape index: {}]
  %s3 = inlined_call_operand.vmem [shape: bf16[512,128], index: 3, kind: output, shape index: {}]
  %s4 = sld [smem:[#allocation0]]
  $region22: #{carafe_module_forward.3} parent=0
    _
  %s6 = ssub.s32 1, %s4
  %s7 = scalar_select 0, %s6, %s4
  // Predicated region
  $region2: #{carafe_module_forward.3} parent=0 // pred_check
    _
  $region3: #{carafe_module_forward.3} parent=0 // pred_check_branch
    %9 = sbr.rel (0) target = $region5
  $region4: #{carafe_module_forward.3} parent=0 // pred_region
    _
  $region5: #{carafe_module_forward.3} parent=0 // pred_fallthru
    _
  // Predicated region
  $region6: #{carafe_module_forward.3} parent=0 // pred_check
    _
  $region7: #{carafe_module_forward.3} parent=0 // pred_check_branch
    %11 = sbr.rel (0) target = $region9
  $region8: #{carafe_module_forward.3} parent=0 // pred_region
    _
  $region9: #{carafe_module_forward.3} parent=0 // pred_fallthru
    _
  // Predicated region
  $region10: #{carafe_module_forward.3} parent=0 // pred_check
    _
  $region11: #{carafe_module_forward.3} parent=0 // pred_check_branch
    %13 = sbr.rel (0) target = $region13
  $region12: #{carafe_module_forward.3} parent=0 // pred_region
    _
  $region13: #{carafe_module_forward.3} parent=0 // pred_fallthru
    _
  %v15 = vld [vmem:[%s0] sm:$0xf]
  %v16 = vld [vmem:[%s0 + $0x4] sm:$0xf]
  %v17 = vld [vmem:[%s0 + $0x8] sm:$0xf]
  %v18 = vld [vmem:[%s0 + $0xc] sm:$0xf]
  %v19 = vld [vmem:[%s0 + $0x10] sm:$0xf]
  %v20 = vld [vmem:[%s0 + $0x14] sm:$0xf]
  %v21 = vld [vmem:[%s0 + $0x18] sm:$0xf]
  %v22 = vld [vmem:[%s0 + $0x1c] sm:$0xf]
  %v23 = vld [vmem:[%s0 + $0x20] sm:$0xf]
  %v24 = vld [vmem:[%s0 + $0x24] sm:$0xf]
  %v25 = vld [vmem:[%s0 + $0x28] sm:$0xf]
  %v26 = vld [vmem:[%s0 + $0x2c] sm:$0xf]
  %v27 = vld [vmem:[%s0 + $0x30] sm:$0xf]
  %v28 = vld [vmem:[%s0 + $0x34] sm:$0xf]
  %v29 = vld [vmem:[%s0 + $0x38] sm:$0xf]
  %v30 = vld [vmem:[%s0 + $0x3c] sm:$0xf]
  %v31 = vld [vmem:[%s0 + $0x40] sm:$0xf]
  %v32 = vld [vmem:[%s0 + $0x44] sm:$0xf]
  %v33 = vld [vmem:[%s0 + $0x48] sm:$0xf]
  %v34 = vld [vmem:[%s0 + $0x4c] sm:$0xf]
  %v35 = vld [vmem:[%s0 + $0x50] sm:$0xf]
  %v36 = vld [vmem:[%s0 + $0x54] sm:$0xf]
  %v37 = vld [vmem:[%s0 + $0x58] sm:$0xf]
  %v38 = vld [vmem:[%s0 + $0x5c] sm:$0xf]
  %v39 = vld [vmem:[%s0 + $0x60] sm:$0xf]
  %v40 = vld [vmem:[%s0 + $0x64] sm:$0xf]
  %v41 = vld [vmem:[%s0 + $0x68] sm:$0xf]
  %v42 = vld [vmem:[%s0 + $0x6c] sm:$0xf]
  %v43 = vld [vmem:[%s0 + $0x70] sm:$0xf]
  %v44 = vld [vmem:[%s0 + $0x74] sm:$0xf]
  %v45 = vld [vmem:[%s0 + $0x78] sm:$0xf]
  %v46 = vld [vmem:[%s0 + $0x7c] sm:$0xf]
  %v47 = vld [vmem:[%s0 + $0x80] sm:$0xf]
  %v48 = vld [vmem:[%s0 + $0x84] sm:$0xf]
  %v49 = vld [vmem:[%s0 + $0x88] sm:$0xf]
  %v50 = vld [vmem:[%s0 + $0x8c] sm:$0xf]
  %v51 = vld [vmem:[%s0 + $0x90] sm:$0xf]
  %v52 = vld [vmem:[%s0 + $0x94] sm:$0xf]
  %v53 = vld [vmem:[%s0 + $0x98] sm:$0xf]
  %v54 = vld [vmem:[%s0 + $0x9c] sm:$0xf]
  %v55 = vld [vmem:[%s0 + $0xa0] sm:$0xf]
  %v56 = vld [vmem:[%s0 + $0xa4] sm:$0xf]
  %v57 = vld [vmem:[%s0 + $0xa8] sm:$0xf]
  %v58 = vld [vmem:[%s0 + $0xac] sm:$0xf]
  %v59 = vld [vmem:[%s0 + $0xb0] sm:$0xf]
  %v60 = vld [vmem:[%s0 + $0xb4] sm:$0xf]
  %v61 = vld [vmem:[%s0 + $0xb8] sm:$0xf]
  %v62 = vld [vmem:[%s0 + $0xbc] sm:$0xf]
  %v63 = vld [vmem:[%s0 + $0xc0] sm:$0xf]
  %v64 = vld [vmem:[%s0 + $0xc4] sm:$0xf]
  %v65 = vld [vmem:[%s0 + $0xc8] sm:$0xf]
  %v66 = vld [vmem:[%s0 + $0xcc] sm:$0xf]
  %v67 = vld [vmem:[%s0 + $0xd0] sm:$0xf]
  %v68 = vld [vmem:[%s0 + $0xd4] sm:$0xf]
  %v69 = vld [vmem:[%s0 + $0xd8] sm:$0xf]
  %v70 = vld [vmem:[%s0 + $0xdc] sm:$0xf]
  %v71 = vld [vmem:[%s0 + $0xe0] sm:$0xf]
  %v72 = vld [vmem:[%s0 + $0xe4] sm:$0xf]
  %v73 = vld [vmem:[%s0 + $0xe8] sm:$0xf]
  %v74 = vld [vmem:[%s0 + $0xec] sm:$0xf]
  %v75 = vld [vmem:[%s0 + $0xf0] sm:$0xf]
  %v76 = vld [vmem:[%s0 + $0xf4] sm:$0xf]
  %v77 = vld [vmem:[%s0 + $0xf8] sm:$0xf]
  %v78 = vld [vmem:[%s0 + $0xfc] sm:$0xf]
  %v79 = vld [vmem:[%s1] sm:$0xf]
  %v80 = vld [vmem:[%s1 + $0x4] sm:$0xf]
  %v81 = vld [vmem:[%s1 + $0x8] sm:$0xf]
  %v82 = vld [vmem:[%s1 + $0xc] sm:$0xf]
  %v83 = vld [vmem:[%s1 + $0x10] sm:$0xf]
  %v84 = vld [vmem:[%s1 + $0x14] sm:$0xf]
  %v85 = vld [vmem:[%s1 + $0x18] sm:$0xf]
  %v86 = vld [vmem:[%s1 + $0x1c] sm:$0xf]
  %v87 = vld [vmem:[%s1 + $0x20] sm:$0xf]
  %v88 = vld [vmem:[%s1 + $0x24] sm:$0xf]
  %v89 = vld [vmem:[%s1 + $0x28] sm:$0xf]
  %v90 = vld [vmem:[%s1 + $0x2c] sm:$0xf]
  %v91 = vld [vmem:[%s1 + $0x30] sm:$0xf]
  %v92 = vld [vmem:[%s1 + $0x34] sm:$0xf]
  %v93 = vld [vmem:[%s1 + $0x38] sm:$0xf]
  %v94 = vld [vmem:[%s1 + $0x3c] sm:$0xf]
  %v95 = vld [vmem:[%s2] sm:$0x1]
  %v97 = vlaneseq
  %v98 = vshrl.u32 %v97, 7
  %v99 = vsub.s32 0, %v98
  %v100 = vrot.slane %v95, %v99
  %v166 = vunpack.c.l.b16 %v15
  %v167 = vunpack.c.l.b16 %v16
  %v168 = vunpack.c.l.b16 %v17
  %v169 = vunpack.c.l.b16 %v18
  %v170 = vunpack.c.l.b16 %v19
  %v171 = vunpack.c.l.b16 %v20
  %v172 = vunpack.c.l.b16 %v21
  %v173 = vunpack.c.l.b16 %v22
  %v174 = vunpack.c.l.b16 %v23
  %v175 = vunpack.c.l.b16 %v24
  %v176 = vunpack.c.l.b16 %v25
  %v177 = vunpack.c.l.b16 %v26
  %v178 = vunpack.c.l.b16 %v27
  %v179 = vunpack.c.l.b16 %v28
  %v180 = vunpack.c.l.b16 %v29
  %v181 = vunpack.c.l.b16 %v30
  %v182 = vunpack.c.l.b16 %v31
  %v183 = vunpack.c.l.b16 %v32
  %v184 = vunpack.c.l.b16 %v33
  %v185 = vunpack.c.l.b16 %v34
  %v186 = vunpack.c.l.b16 %v35
  %v187 = vunpack.c.l.b16 %v36
  %v188 = vunpack.c.l.b16 %v37
  %v189 = vunpack.c.l.b16 %v38
  %v190 = vunpack.c.l.b16 %v39
  %v191 = vunpack.c.l.b16 %v40
  %v192 = vunpack.c.l.b16 %v41
  %v193 = vunpack.c.l.b16 %v42
  %v194 = vunpack.c.l.b16 %v43
  %v195 = vunpack.c.l.b16 %v44
  %v196 = vunpack.c.l.b16 %v45
  %v197 = vunpack.c.l.b16 %v46
  %v198 = vunpack.c.l.b16 %v47
  %v199 = vunpack.c.l.b16 %v48
  %v200 = vunpack.c.l.b16 %v49
  %v201 = vunpack.c.l.b16 %v50
  %v202 = vunpack.c.l.b16 %v51
  %v203 = vunpack.c.l.b16 %v52
  %v204 = vunpack.c.l.b16 %v53
  %v205 = vunpack.c.l.b16 %v54
  %v206 = vunpack.c.l.b16 %v55
  %v207 = vunpack.c.l.b16 %v56
  %v208 = vunpack.c.l.b16 %v57
  %v209 = vunpack.c.l.b16 %v58
  %v210 = vunpack.c.l.b16 %v59
  %v211 = vunpack.c.l.b16 %v60
  %v212 = vunpack.c.l.b16 %v61
  %v213 = vunpack.c.l.b16 %v62
  %v214 = vunpack.c.l.b16 %v63
  %v215 = vunpack.c.l.b16 %v64
  %v216 = vunpack.c.l.b16 %v65
  %v217 = vunpack.c.l.b16 %v66
  %v218 = vunpack.c.l.b16 %v67
  %v219 = vunpack.c.l.b16 %v68
  %v220 = vunpack.c.l.b16 %v69
  %v221 = vunpack.c.l.b16 %v70
  %v222 = vunpack.c.l.b16 %v71
  %v223 = vunpack.c.l.b16 %v72
  %v224 = vunpack.c.l.b16 %v73
  %v225 = vunpack.c.l.b16 %v74
  %v226 = vunpack.c.l.b16 %v75
  %v227 = vunpack.c.l.b16 %v76
  %v228 = vunpack.c.l.b16 %v77
  %v229 = vunpack.c.l.b16 %v78
  %v230 = vpack.c.b16 %v167, %v166
  %v231 = vpack.c.b16 %v169, %v168
  %v232 = vpack.c.b16 %v171, %v170
  %v233 = vpack.c.b16 %v173, %v172
  %v234 = vpack.c.b16 %v175, %v174
  %v235 = vpack.c.b16 %v177, %v176
  %v236 = vpack.c.b16 %v179, %v178
  %v237 = vpack.c.b16 %v181, %v180
  %v238 = vpack.c.b16 %v183, %v182
  %v239 = vpack.c.b16 %v185, %v184
  %v240 = vpack.c.b16 %v187, %v186
  %v241 = vpack.c.b16 %v189, %v188
  %v242 = vpack.c.b16 %v191, %v190
  %v243 = vpack.c.b16 %v193, %v192
  %v244 = vpack.c.b16 %v195, %v194
  %v245 = vpack.c.b16 %v197, %v196
  %v246 = vpack.c.b16 %v199, %v198
  %v247 = vpack.c.b16 %v201, %v200
  %v248 = vpack.c.b16 %v203, %v202
  %v249 = vpack.c.b16 %v205, %v204
  %v250 = vpack.c.b16 %v207, %v206
  %v251 = vpack.c.b16 %v209, %v208
  %v252 = vpack.c.b16 %v211, %v210
  %v253 = vpack.c.b16 %v213, %v212
  %v254 = vpack.c.b16 %v215, %v214
  %v255 = vpack.c.b16 %v217, %v216
  %v256 = vpack.c.b16 %v219, %v218
  %v257 = vpack.c.b16 %v221, %v220
  %v258 = vpack.c.b16 %v223, %v222
  %v259 = vpack.c.b16 %v225, %v224
  %v260 = vpack.c.b16 %v227, %v226
  %v261 = vpack.c.b16 %v229, %v228
  %v310 = vunpack.c.l.b16 %v79
  %v311 = vunpack.c.l.b16 %v80
  %v312 = vunpack.c.l.b16 %v81
  %v313 = vunpack.c.l.b16 %v82
  %v314 = vunpack.c.l.b16 %v83
  %v315 = vunpack.c.l.b16 %v84
  %v316 = vunpack.c.l.b16 %v85
  %v317 = vunpack.c.l.b16 %v86
  %v318 = vunpack.c.l.b16 %v87
  %v319 = vunpack.c.l.b16 %v88
  %v320 = vunpack.c.l.b16 %v89
  %v321 = vunpack.c.l.b16 %v90
  %v322 = vunpack.c.l.b16 %v91
  %v323 = vunpack.c.l.b16 %v92
  %v324 = vunpack.c.l.b16 %v93
  %v325 = vunpack.c.l.b16 %v94
  %v326 = vpack.c.b16 %v311, %v310
  %v327 = vpack.c.b16 %v313, %v312
  %v328 = vpack.c.b16 %v315, %v314
  %v329 = vpack.c.b16 %v317, %v316
  %v330 = vpack.c.b16 %v319, %v318
  %v331 = vpack.c.b16 %v321, %v320
  %v332 = vpack.c.b16 %v323, %v322
  %v333 = vpack.c.b16 %v325, %v324
  %342 = vmatprep.subr.bf16.mxu0 0
  %343 = vmatpush1.bf16.msra.mxu0 %v326
  %344 = vmatprep.subr.bf16.mxu0 0
  %345 = vmatpush1.bf16.msra.mxu0 %v327
  %346 = vmatprep.subr.bf16.mxu0 0
  %347 = vmatpush1.bf16.msra.mxu0 %v328
  %348 = vmatprep.subr.bf16.mxu0 0
  %349 = vmatpush1.bf16.msra.mxu0 %v329
  %350 = vmatprep.subr.bf16.mxu0 0
  %351 = vmatpush1.bf16.msra.mxu0 %v330
  %352 = vmatprep.subr.bf16.mxu0 0
  %353 = vmatpush1.bf16.msra.mxu0 %v331
  %354 = vmatprep.subr.bf16.mxu0 0
  %355 = vmatpush1.bf16.msra.mxu0 %v332
  %356 = vmatprep.subr.bf16.mxu0 0
  %357 = vmatpush1.bf16.msra.mxu0 %v333
  %358 = vmatprep.subr.bf16.mxu0 0
  %359 = vmatpush1.bf16.msra.mxu0 0
  %360 = vmatprep.subr.bf16.mxu0 0
  %361 = vmatpush1.bf16.msra.mxu0 0
  %362 = vmatprep.subr.bf16.mxu0 0
  %363 = vmatpush1.bf16.msra.mxu0 0
  %364 = vmatprep.subr.bf16.mxu0 0
  %365 = vmatpush1.bf16.msra.mxu0 0
  %366 = vmatprep.subr.bf16.mxu0 0
  %367 = vmatpush1.bf16.msra.mxu0 0
  %368 = vmatprep.subr.bf16.mxu0 0
  %369 = vmatpush1.bf16.msra.mxu0 0
  %370 = vmatprep.subr.bf16.mxu0 0
  %371 = vmatpush1.bf16.msra.mxu0 0
  %372 = vmatprep.subr.bf16.mxu0 0
  %373 = vmatpush1.bf16.msra.mxu0 0
  %374 = vmatprep.mubr.bf16.mxu0 0
  %375 = vmatmul.mubr.bf16.gmra.mrb[0].mxu0 %v230
  %v376 = vpop.f32.mrb[0].mxu0
  %v377 = vadd.f32 %v100, %v376
  %v378 = vpop.f32.mrb[0].mxu0
  %v379 = vpop.f32.mrb[0].mxu0
  %v380 = vadd.f32 %v100, %v379
  %v381 = vpop.f32.mrb[0].mxu0
  %382 = vmatprep.mubr.bf16.mxu0 0
  %383 = vmatmul.mubr.bf16.gmra.mrb[0].mxu0 %v231
  %v384 = vpop.f32.mrb[0].mxu0
  %v385 = vadd.f32 %v100, %v384
  %v386 = vpop.f32.mrb[0].mxu0
  %v387 = vpop.f32.mrb[0].mxu0
  %v388 = vadd.f32 %v100, %v387
  %v389 = vpop.f32.mrb[0].mxu0
  %390 = vmatprep.mubr.bf16.mxu0 0
  %391 = vmatmul.mubr.bf16.gmra.mrb[0].mxu0 %v232
  %v392 = vpop.f32.mrb[0].mxu0
  %v393 = vadd.f32 %v100, %v392
  %v394 = vpop.f32.mrb[0].mxu0
  %v395 = vpop.f32.mrb[0].mxu0
  %v396 = vadd.f32 %v100, %v395
  %v397 = vpop.f32.mrb[0].mxu0
  %398 = vmatprep.mubr.bf16.mxu0 0
  %399 = vmatmul.mubr.bf16.gmra.mrb[0].mxu0 %v233
  %v400 = vpop.f32.mrb[0].mxu0
  %v401 = vadd.f32 %v100, %v400
  %v402 = vpop.f32.mrb[0].mxu0
  %v403 = vpop.f32.mrb[0].mxu0
  %v404 = vadd.f32 %v100, %v403
  %v405 = vpop.f32.mrb[0].mxu0
  %406 = vmatprep.mubr.bf16.mxu0 0
  %407 = vmatmul.mubr.bf16.gmra.mrb[0].mxu0 %v234
  %v408 = vpop.f32.mrb[0].mxu0
  %v409 = vadd.f32 %v100, %v408
  %v410 = vpop.f32.mrb[0].mxu0
  %v411 = vpop.f32.mrb[0].mxu0
  %v412 = vadd.f32 %v100, %v411
  %v413 = vpop.f32.mrb[0].mxu0
  %414 = vmatprep.mubr.bf16.mxu0 0
  %415 = vmatmul.mubr.bf16.gmra.mrb[0].mxu0 %v235
  %v416 = vpop.f32.mrb[0].mxu0
  %v417 = vadd.f32 %v100, %v416
  %v418 = vpop.f32.mrb[0].mxu0
  %v419 = vpop.f32.mrb[0].mxu0
  %v420 = vadd.f32 %v100, %v419
  %v421 = vpop.f32.mrb[0].mxu0
  %422 = vmatprep.mubr.bf16.mxu0 0
  %423 = vmatmul.mubr.bf16.gmra.mrb[0].mxu0 %v236
  %v424 = vpop.f32.mrb[0].mxu0
  %v425 = vadd.f32 %v100, %v424
  %v426 = vpop.f32.mrb[0].mxu0
  %v427 = vpop.f32.mrb[0].mxu0
  %v428 = vadd.f32 %v100, %v427
  %v429 = vpop.f32.mrb[0].mxu0
  %430 = vmatprep.mubr.bf16.mxu0 0
  %431 = vmatmul.mubr.bf16.gmra.mrb[0].mxu0 %v237
  %v432 = vpop.f32.mrb[0].mxu0
  %v433 = vadd.f32 %v100, %v432
  %v434 = vpop.f32.mrb[0].mxu0
  %v435 = vpop.f32.mrb[0].mxu0
  %v436 = vadd.f32 %v100, %v435
  %v437 = vpop.f32.mrb[0].mxu0
  %438 = vmatprep.mubr.bf16.mxu0 0
  %439 = vmatmul.mubr.bf16.gmra.mrb[0].mxu0 %v238
  %v440 = vpop.f32.mrb[0].mxu0
  %v441 = vadd.f32 %v100, %v440
  %v442 = vpop.f32.mrb[0].mxu0
  %v443 = vpop.f32.mrb[0].mxu0
  %v444 = vadd.f32 %v100, %v443
  %v445 = vpop.f32.mrb[0].mxu0
  %446 = vmatprep.mubr.bf16.mxu0 0
  %447 = vmatmul.mubr.bf16.gmra.mrb[0].mxu0 %v239
  %v448 = vpop.f32.mrb[0].mxu0
  %v449 = vadd.f32 %v100, %v448
  %v450 = vpop.f32.mrb[0].mxu0
  %v451 = vpop.f32.mrb[0].mxu0
  %v452 = vadd.f32 %v100, %v451
  %v453 = vpop.f32.mrb[0].mxu0
  %454 = vmatprep.mubr.bf16.mxu0 0
  %455 = vmatmul.mubr.bf16.gmra.mrb[0].mxu0 %v240
  %v456 = vpop.f32.mrb[0].mxu0
  %v457 = vadd.f32 %v100, %v456
  %v458 = vpop.f32.mrb[0].mxu0
  %v459 = vpop.f32.mrb[0].mxu0
  %v460 = vadd.f32 %v100, %v459
  %v461 = vpop.f32.mrb[0].mxu0
  %462 = vmatprep.mubr.bf16.mxu0 0
  %463 = vmatmul.mubr.bf16.gmra.mrb[0].mxu0 %v241
  %v464 = vpop.f32.mrb[0].mxu0
  %v465 = vadd.f32 %v100, %v464
  %v466 = vpop.f32.mrb[0].mxu0
  %v467 = vpop.f32.mrb[0].mxu0
  %v468 = vadd.f32 %v100, %v467
  %v469 = vpop.f32.mrb[0].mxu0
  %470 = vmatprep.mubr.bf16.mxu0 0
  %471 = vmatmul.mubr.bf16.gmra.mrb[0].mxu0 %v242
  %v472 = vpop.f32.mrb[0].mxu0
  %v473 = vadd.f32 %v100, %v472
  %v474 = vpop.f32.mrb[0].mxu0
  %v475 = vpop.f32.mrb[0].mxu0
  %v476 = vadd.f32 %v100, %v475
  %v477 = vpop.f32.mrb[0].mxu0
  %478 = vmatprep.mubr.bf16.mxu0 0
  %479 = vmatmul.mubr.bf16.gmra.mrb[0].mxu0 %v243
  %v480 = vpop.f32.mrb[0].mxu0
  %v481 = vadd.f32 %v100, %v480
  %v482 = vpop.f32.mrb[0].mxu0
  %v483 = vpop.f32.mrb[0].mxu0
  %v484 = vadd.f32 %v100, %v483
  %v485 = vpop.f32.mrb[0].mxu0
  %486 = vmatprep.mubr.bf16.mxu0 0
  %487 = vmatmul.mubr.bf16.gmra.mrb[0].mxu0 %v244
  %v488 = vpop.f32.mrb[0].mxu0
  %v489 = vadd.f32 %v100, %v488
  %v490 = vpop.f32.mrb[0].mxu0
  %v491 = vpop.f32.mrb[0].mxu0
  %v492 = vadd.f32 %v100, %v491
  %v493 = vpop.f32.mrb[0].mxu0
  %494 = vmatprep.mubr.bf16.mxu0 0
  %495 = vmatmul.mubr.bf16.gmra.mrb[0].mxu0 %v245
  %v496 = vpop.f32.mrb[0].mxu0
  %v497 = vadd.f32 %v100, %v496
  %v498 = vpop.f32.mrb[0].mxu0
  %v499 = vpop.f32.mrb[0].mxu0
  %v500 = vadd.f32 %v100, %v499
  %v501 = vpop.f32.mrb[0].mxu0
  %502 = vmatprep.mubr.bf16.mxu0 0
  %503 = vmatmul.mubr.bf16.gmra.mrb[0].mxu0 %v246
  %v504 = vpop.f32.mrb[0].mxu0
  %v505 = vadd.f32 %v100, %v504
  %v506 = vpop.f32.mrb[0].mxu0
  %v507 = vpop.f32.mrb[0].mxu0
  %v508 = vadd.f32 %v100, %v507
  %v509 = vpop.f32.mrb[0].mxu0
  %510 = vmatprep.mubr.bf16.mxu0 0
  %511 = vmatmul.mubr.bf16.gmra.mrb[0].mxu0 %v247
  %v512 = vpop.f32.mrb[0].mxu0
  %v513 = vadd.f32 %v100, %v512
  %v514 = vpop.f32.mrb[0].mxu0
  %v515 = vpop.f32.mrb[0].mxu0
  %v516 = vadd.f32 %v100, %v515
  %v517 = vpop.f32.mrb[0].mxu0
  %518 = vmatprep.mubr.bf16.mxu0 0
  %519 = vmatmul.mubr.bf16.gmra.mrb[0].mxu0 %v248
  %v520 = vpop.f32.mrb[0].mxu0
  %v521 = vadd.f32 %v100, %v520
  %v522 = vpop.f32.mrb[0].mxu0
  %v523 = vpop.f32.mrb[0].mxu0
  %v524 = vadd.f32 %v100, %v523
  %v525 = vpop.f32.mrb[0].mxu0
  %526 = vmatprep.mubr.bf16.mxu0 0
  %527 = vmatmul.mubr.bf16.gmra.mrb[0].mxu0 %v249
  %v528 = vpop.f32.mrb[0].mxu0
  %v529 = vadd.f32 %v100, %v528
  %v530 = vpop.f32.mrb[0].mxu0
  %v531 = vpop.f32.mrb[0].mxu0
  %v532 = vadd.f32 %v100, %v531
  %v533 = vpop.f32.mrb[0].mxu0
  %534 = vmatprep.mubr.bf16.mxu0 0
  %535 = vmatmul.mubr.bf16.gmra.mrb[0].mxu0 %v250
  %v536 = vpop.f32.mrb[0].mxu0
  %v537 = vadd.f32 %v100, %v536
  %v538 = vpop.f32.mrb[0].mxu0
  %v539 = vpop.f32.mrb[0].mxu0
  %v540 = vadd.f32 %v100, %v539
  %v541 = vpop.f32.mrb[0].mxu0
  %542 = vmatprep.mubr.bf16.mxu0 0
  %543 = vmatmul.mubr.bf16.gmra.mrb[0].mxu0 %v251
  %v544 = vpop.f32.mrb[0].mxu0
  %v545 = vadd.f32 %v100, %v544
  %v546 = vpop.f32.mrb[0].mxu0
  %v547 = vpop.f32.mrb[0].mxu0
  %v548 = vadd.f32 %v100, %v547
  %v549 = vpop.f32.mrb[0].mxu0
  %550 = vmatprep.mubr.bf16.mxu0 0
  %551 = vmatmul.mubr.bf16.gmra.mrb[0].mxu0 %v252
  %v552 = vpop.f32.mrb[0].mxu0
  %v553 = vadd.f32 %v100, %v552
  %v554 = vpop.f32.mrb[0].mxu0
  %v555 = vpop.f32.mrb[0].mxu0
  %v556 = vadd.f32 %v100, %v555
  %v557 = vpop.f32.mrb[0].mxu0
  %558 = vmatprep.mubr.bf16.mxu0 0
  %559 = vmatmul.mubr.bf16.gmra.mrb[0].mxu0 %v253
  %v560 = vpop.f32.mrb[0].mxu0
  %v561 = vadd.f32 %v100, %v560
  %v562 = vpop.f32.mrb[0].mxu0
  %v563 = vpop.f32.mrb[0].mxu0
  %v564 = vadd.f32 %v100, %v563
  %v565 = vpop.f32.mrb[0].mxu0
  %566 = vmatprep.mubr.bf16.mxu0 0
  %567 = vmatmul.mubr.bf16.gmra.mrb[0].mxu0 %v254
  %v568 = vpop.f32.mrb[0].mxu0
  %v569 = vadd.f32 %v100, %v568
  %v570 = vpop.f32.mrb[0].mxu0
  %v571 = vpop.f32.mrb[0].mxu0
  %v572 = vadd.f32 %v100, %v571
  %v573 = vpop.f32.mrb[0].mxu0
  %574 = vmatprep.mubr.bf16.mxu0 0
  %575 = vmatmul.mubr.bf16.gmra.mrb[0].mxu0 %v255
  %v576 = vpop.f32.mrb[0].mxu0
  %v577 = vadd.f32 %v100, %v576
  %v578 = vpop.f32.mrb[0].mxu0
  %v579 = vpop.f32.mrb[0].mxu0
  %v580 = vadd.f32 %v100, %v579
  %v581 = vpop.f32.mrb[0].mxu0
  %582 = vmatprep.mubr.bf16.mxu0 0
  %583 = vmatmul.mubr.bf16.gmra.mrb[0].mxu0 %v256
  %v584 = vpop.f32.mrb[0].mxu0
  %v585 = vadd.f32 %v100, %v584
  %v586 = vpop.f32.mrb[0].mxu0
  %v587 = vpop.f32.mrb[0].mxu0
  %v588 = vadd.f32 %v100, %v587
  %v589 = vpop.f32.mrb[0].mxu0
  %590 = vmatprep.mubr.bf16.mxu0 0
  %591 = vmatmul.mubr.bf16.gmra.mrb[0].mxu0 %v257
  %v592 = vpop.f32.mrb[0].mxu0
  %v593 = vadd.f32 %v100, %v592
  %v594 = vpop.f32.mrb[0].mxu0
  %v595 = vpop.f32.mrb[0].mxu0
  %v596 = vadd.f32 %v100, %v595
  %v597 = vpop.f32.mrb[0].mxu0
  %598 = vmatprep.mubr.bf16.mxu0 0
  %599 = vmatmul.mubr.bf16.gmra.mrb[0].mxu0 %v258
  %v600 = vpop.f32.mrb[0].mxu0
  %v601 = vadd.f32 %v100, %v600
  %v602 = vpop.f32.mrb[0].mxu0
  %v603 = vpop.f32.mrb[0].mxu0
  %v604 = vadd.f32 %v100, %v603
  %v605 = vpop.f32.mrb[0].mxu0
  %606 = vmatprep.mubr.bf16.mxu0 0
  %607 = vmatmul.mubr.bf16.gmra.mrb[0].mxu0 %v259
  %v608 = vpop.f32.mrb[0].mxu0
  %v609 = vadd.f32 %v100, %v608
  %v610 = vpop.f32.mrb[0].mxu0
  %v611 = vpop.f32.mrb[0].mxu0
  %v612 = vadd.f32 %v100, %v611
  %v613 = vpop.f32.mrb[0].mxu0
  %614 = vmatprep.mubr.bf16.mxu0 0
  %615 = vmatmul.mubr.bf16.gmra.mrb[0].mxu0 %v260
  %v616 = vpop.f32.mrb[0].mxu0
  %v617 = vadd.f32 %v100, %v616
  %v618 = vpop.f32.mrb[0].mxu0
  %v619 = vpop.f32.mrb[0].mxu0
  %v620 = vadd.f32 %v100, %v619
  %v621 = vpop.f32.mrb[0].mxu0
  %622 = vmatprep.mubr.bf16.mxu0 0
  %623 = vmatmul.mubr.bf16.gmra.mrb[0].mxu0 %v261
  %v624 = vpop.f32.mrb[0].mxu0
  %v625 = vadd.f32 %v100, %v624
  %v626 = vpop.f32.mrb[0].mxu0
  %v627 = vpop.f32.mrb[0].mxu0
  %v628 = vadd.f32 %v100, %v627
  %v629 = vpop.f32.mrb[0].mxu0
  %630 = vdwg.mxu0
  %v631 = vpack.c.bf16 %v380, %v377
  %v632 = vpack.c.bf16 %v388, %v385
  %v633 = vpack.c.bf16 %v396, %v393
  %v634 = vpack.c.bf16 %v404, %v401
  %v635 = vpack.c.bf16 %v412, %v409
  %v636 = vpack.c.bf16 %v420, %v417
  %v637 = vpack.c.bf16 %v428, %v425
  %v638 = vpack.c.bf16 %v436, %v433
  %v639 = vpack.c.bf16 %v444, %v441
  %v640 = vpack.c.bf16 %v452, %v449
  %v641 = vpack.c.bf16 %v460, %v457
  %v642 = vpack.c.bf16 %v468, %v465
  %v643 = vpack.c.bf16 %v476, %v473
  %v644 = vpack.c.bf16 %v484, %v481
  %v645 = vpack.c.bf16 %v492, %v489
  %v646 = vpack.c.bf16 %v500, %v497
  %v647 = vpack.c.bf16 %v508, %v505
  %v648 = vpack.c.bf16 %v516, %v513
  %v649 = vpack.c.bf16 %v524, %v521
  %v650 = vpack.c.bf16 %v532, %v529
  %v651 = vpack.c.bf16 %v540, %v537
  %v652 = vpack.c.bf16 %v548, %v545
  %v653 = vpack.c.bf16 %v556, %v553
  %v654 = vpack.c.bf16 %v564, %v561
  %v655 = vpack.c.bf16 %v572, %v569
  %v656 = vpack.c.bf16 %v580, %v577
  %v657 = vpack.c.bf16 %v588, %v585
  %v658 = vpack.c.bf16 %v596, %v593
  %v659 = vpack.c.bf16 %v604, %v601
  %v660 = vpack.c.bf16 %v612, %v609
  %v661 = vpack.c.bf16 %v620, %v617
  %v662 = vpack.c.bf16 %v628, %v625
  %v695 = vunpack.c.l.b16 %v631
  %v696 = vunpack.c.h.b16 %v631
  %v697 = vunpack.c.l.b16 %v632
  %v698 = vunpack.c.h.b16 %v632
  %v699 = vunpack.c.l.b16 %v633
  %v700 = vunpack.c.h.b16 %v633
  %v701 = vunpack.c.l.b16 %v634
  %v702 = vunpack.c.h.b16 %v634
  %v703 = vunpack.c.l.b16 %v635
  %v704 = vunpack.c.h.b16 %v635
  %v705 = vunpack.c.l.b16 %v636
  %v706 = vunpack.c.h.b16 %v636
  %v707 = vunpack.c.l.b16 %v637
  %v708 = vunpack.c.h.b16 %v637
  %v709 = vunpack.c.l.b16 %v638
  %v710 = vunpack.c.h.b16 %v638
  %v711 = vunpack.c.l.b16 %v639
  %v712 = vunpack.c.h.b16 %v639
  %v713 = vunpack.c.l.b16 %v640
  %v714 = vunpack.c.h.b16 %v640
  %v715 = vunpack.c.l.b16 %v641
  %v716 = vunpack.c.h.b16 %v641
  %v717 = vunpack.c.l.b16 %v642
  %v718 = vunpack.c.h.b16 %v642
  %v719 = vunpack.c.l.b16 %v643
  %v720 = vunpack.c.h.b16 %v643
  %v721 = vunpack.c.l.b16 %v644
  %v722 = vunpack.c.h.b16 %v644
  %v723 = vunpack.c.l.b16 %v645
  %v724 = vunpack.c.h.b16 %v645
  %v725 = vunpack.c.l.b16 %v646
  %v726 = vunpack.c.h.b16 %v646
  %v727 = vunpack.c.l.b16 %v647
  %v728 = vunpack.c.h.b16 %v647
  %v729 = vunpack.c.l.b16 %v648
  %v730 = vunpack.c.h.b16 %v648
  %v731 = vunpack.c.l.b16 %v649
  %v732 = vunpack.c.h.b16 %v649
  %v733 = vunpack.c.l.b16 %v650
  %v734 = vunpack.c.h.b16 %v650
  %v735 = vunpack.c.l.b16 %v651
  %v736 = vunpack.c.h.b16 %v651
  %v737 = vunpack.c.l.b16 %v652
  %v738 = vunpack.c.h.b16 %v652
  %v739 = vunpack.c.l.b16 %v653
  %v740 = vunpack.c.h.b16 %v653
  %v741 = vunpack.c.l.b16 %v654
  %v742 = vunpack.c.h.b16 %v654
  %v743 = vunpack.c.l.b16 %v655
  %v744 = vunpack.c.h.b16 %v655
  %v745 = vunpack.c.l.b16 %v656
  %v746 = vunpack.c.h.b16 %v656
  %v747 = vunpack.c.l.b16 %v657
  %v748 = vunpack.c.h.b16 %v657
  %v749 = vunpack.c.l.b16 %v658
  %v750 = vunpack.c.h.b16 %v658
  %v751 = vunpack.c.l.b16 %v659
  %v752 = vunpack.c.h.b16 %v659
  %v753 = vunpack.c.l.b16 %v660
  %v754 = vunpack.c.h.b16 %v660
  %v755 = vunpack.c.l.b16 %v661
  %v756 = vunpack.c.h.b16 %v661
  %v757 = vunpack.c.l.b16 %v662
  %v758 = vunpack.c.h.b16 %v662
  %v759 = vpack.c.b16 %v695, %v695
  %v760 = vpack.c.b16 %v696, %v696
  %v761 = vpack.c.b16 %v697, %v697
  %v762 = vpack.c.b16 %v698, %v698
  %v763 = vpack.c.b16 %v699, %v699
  %v764 = vpack.c.b16 %v700, %v700
  %v765 = vpack.c.b16 %v701, %v701
  %v766 = vpack.c.b16 %v702, %v702
  %v767 = vpack.c.b16 %v703, %v703
  %v768 = vpack.c.b16 %v704, %v704
  %v769 = vpack.c.b16 %v705, %v705
  %v770 = vpack.c.b16 %v706, %v706
  %v771 = vpack.c.b16 %v707, %v707
  %v772 = vpack.c.b16 %v708, %v708
  %v773 = vpack.c.b16 %v709, %v709
  %v774 = vpack.c.b16 %v710, %v710
  %v775 = vpack.c.b16 %v711, %v711
  %v776 = vpack.c.b16 %v712, %v712
  %v777 = vpack.c.b16 %v713, %v713
  %v778 = vpack.c.b16 %v714, %v714
  %v779 = vpack.c.b16 %v715, %v715
  %v780 = vpack.c.b16 %v716, %v716
  %v781 = vpack.c.b16 %v717, %v717
  %v782 = vpack.c.b16 %v718, %v718
  %v783 = vpack.c.b16 %v719, %v719
  %v784 = vpack.c.b16 %v720, %v720
  %v785 = vpack.c.b16 %v721, %v721
  %v786 = vpack.c.b16 %v722, %v722
  %v787 = vpack.c.b16 %v723, %v723
  %v788 = vpack.c.b16 %v724, %v724
  %v789 = vpack.c.b16 %v725, %v725
  %v790 = vpack.c.b16 %v726, %v726
  %v791 = vpack.c.b16 %v727, %v727
  %v792 = vpack.c.b16 %v728, %v728
  %v793 = vpack.c.b16 %v729, %v729
  %v794 = vpack.c.b16 %v730, %v730
  %v795 = vpack.c.b16 %v731, %v731
  %v796 = vpack.c.b16 %v732, %v732
  %v797 = vpack.c.b16 %v733, %v733
  %v798 = vpack.c.b16 %v734, %v734
  %v799 = vpack.c.b16 %v735, %v735
  %v800 = vpack.c.b16 %v736, %v736
  %v801 = vpack.c.b16 %v737, %v737
  %v802 = vpack.c.b16 %v738, %v738
  %v803 = vpack.c.b16 %v739, %v739
  %v804 = vpack.c.b16 %v740, %v740
  %v805 = vpack.c.b16 %v741, %v741
  %v806 = vpack.c.b16 %v742, %v742
  %v807 = vpack.c.b16 %v743, %v743
  %v808 = vpack.c.b16 %v744, %v744
  %v809 = vpack.c.b16 %v745, %v745
  %v810 = vpack.c.b16 %v746, %v746
  %v811 = vpack.c.b16 %v747, %v747
  %v812 = vpack.c.b16 %v748, %v748
  %v813 = vpack.c.b16 %v749, %v749
  %v814 = vpack.c.b16 %v750, %v750
  %v815 = vpack.c.b16 %v751, %v751
  %v816 = vpack.c.b16 %v752, %v752
  %v817 = vpack.c.b16 %v753, %v753
  %v818 = vpack.c.b16 %v754, %v754
  %v819 = vpack.c.b16 %v755, %v755
  %v820 = vpack.c.b16 %v756, %v756
  %v821 = vpack.c.b16 %v757, %v757
  %v822 = vpack.c.b16 %v758, %v758
  %887 = vst [vmem:[%s3] sm:$0xf] %v759
  %888 = vst [vmem:[%s3 + $0x4] sm:$0xf] %v760
  %889 = vst [vmem:[%s3 + $0x8] sm:$0xf] %v761
  %890 = vst [vmem:[%s3 + $0xc] sm:$0xf] %v762
  %891 = vst [vmem:[%s3 + $0x10] sm:$0xf] %v763
  %892 = vst [vmem:[%s3 + $0x14] sm:$0xf] %v764
  %893 = vst [vmem:[%s3 + $0x18] sm:$0xf] %v765
  %894 = vst [vmem:[%s3 + $0x1c] sm:$0xf] %v766
  %895 = vst [vmem:[%s3 + $0x20] sm:$0xf] %v767
  %896 = vst [vmem:[%s3 + $0x24] sm:$0xf] %v768
  %897 = vst [vmem:[%s3 + $0x28] sm:$0xf] %v769
  %898 = vst [vmem:[%s3 + $0x2c] sm:$0xf] %v770
  %899 = vst [vmem:[%s3 + $0x30] sm:$0xf] %v771
  %900 = vst [vmem:[%s3 + $0x34] sm:$0xf] %v772
  %901 = vst [vmem:[%s3 + $0x38] sm:$0xf] %v773
  %902 = vst [vmem:[%s3 + $0x3c] sm:$0xf] %v774
  %903 = vst [vmem:[%s3 + $0x40] sm:$0xf] %v775
  %904 = vst [vmem:[%s3 + $0x44] sm:$0xf] %v776
  %905 = vst [vmem:[%s3 + $0x48] sm:$0xf] %v777
  %906 = vst [vmem:[%s3 + $0x4c] sm:$0xf] %v778
  %907 = vst [vmem:[%s3 + $0x50] sm:$0xf] %v779
  %908 = vst [vmem:[%s3 + $0x54] sm:$0xf] %v780
  %909 = vst [vmem:[%s3 + $0x58] sm:$0xf] %v781
  %910 = vst [vmem:[%s3 + $0x5c] sm:$0xf] %v782
  %911 = vst [vmem:[%s3 + $0x60] sm:$0xf] %v783
  %912 = vst [vmem:[%s3 + $0x64] sm:$0xf] %v784
  %913 = vst [vmem:[%s3 + $0x68] sm:$0xf] %v785
  %914 = vst [vmem:[%s3 + $0x6c] sm:$0xf] %v786
  %915 = vst [vmem:[%s3 + $0x70] sm:$0xf] %v787
  %916 = vst [vmem:[%s3 + $0x74] sm:$0xf] %v788
  %917 = vst [vmem:[%s3 + $0x78] sm:$0xf] %v789
  %918 = vst [vmem:[%s3 + $0x7c] sm:$0xf] %v790
  %919 = vst [vmem:[%s3 + $0x80] sm:$0xf] %v791
  %920 = vst [vmem:[%s3 + $0x84] sm:$0xf] %v792
  %921 = vst [vmem:[%s3 + $0x88] sm:$0xf] %v793
  %922 = vst [vmem:[%s3 + $0x8c] sm:$0xf] %v794
  %923 = vst [vmem:[%s3 + $0x90] sm:$0xf] %v795
  %924 = vst [vmem:[%s3 + $0x94] sm:$0xf] %v796
  %925 = vst [vmem:[%s3 + $0x98] sm:$0xf] %v797
  %926 = vst [vmem:[%s3 + $0x9c] sm:$0xf] %v798
  %927 = vst [vmem:[%s3 + $0xa0] sm:$0xf] %v799
  %928 = vst [vmem:[%s3 + $0xa4] sm:$0xf] %v800
  %929 = vst [vmem:[%s3 + $0xa8] sm:$0xf] %v801
  %930 = vst [vmem:[%s3 + $0xac] sm:$0xf] %v802
  %931 = vst [vmem:[%s3 + $0xb0] sm:$0xf] %v803
  %932 = vst [vmem:[%s3 + $0xb4] sm:$0xf] %v804
  %933 = vst [vmem:[%s3 + $0xb8] sm:$0xf] %v805
  %934 = vst [vmem:[%s3 + $0xbc] sm:$0xf] %v806
  %935 = vst [vmem:[%s3 + $0xc0] sm:$0xf] %v807
  %936 = vst [vmem:[%s3 + $0xc4] sm:$0xf] %v808
  %937 = vst [vmem:[%s3 + $0xc8] sm:$0xf] %v809
  %938 = vst [vmem:[%s3 + $0xcc] sm:$0xf] %v810
  %939 = vst [vmem:[%s3 + $0xd0] sm:$0xf] %v811
  %940 = vst [vmem:[%s3 + $0xd4] sm:$0xf] %v812
  %941 = vst [vmem:[%s3 + $0xd8] sm:$0xf] %v813
  %942 = vst [vmem:[%s3 + $0xdc] sm:$0xf] %v814
  %943 = vst [vmem:[%s3 + $0xe0] sm:$0xf] %v815
  %944 = vst [vmem:[%s3 + $0xe4] sm:$0xf] %v816
  %945 = vst [vmem:[%s3 + $0xe8] sm:$0xf] %v817
  %946 = vst [vmem:[%s3 + $0xec] sm:$0xf] %v818
  %947 = vst [vmem:[%s3 + $0xf0] sm:$0xf] %v819
  %948 = vst [vmem:[%s3 + $0xf4] sm:$0xf] %v820
  %949 = vst [vmem:[%s3 + $0xf8] sm:$0xf] %v821
  %950 = vst [vmem:[%s3 + $0xfc] sm:$0xf] %v822
  // Predicated region
  $region14: #{carafe_module_forward.3} parent=0 // pred_check
    _
  $region15: #{carafe_module_forward.3} parent=0 // pred_check_branch
    %952 = sbr.rel (0) target = $region17
  $region16: #{carafe_module_forward.3} parent=0 // pred_region
    _
  $region17: #{carafe_module_forward.3} parent=0 // pred_fallthru
    _
  // Predicated region
  $region18: #{carafe_module_forward.3} parent=0 // pred_check
    _
  $region19: #{carafe_module_forward.3} parent=0 // pred_check_branch
    %954 = sbr.rel (0) target = $region21
  $region20: #{carafe_module_forward.3} parent=0 // pred_region
    _
  $region21: #{carafe_module_forward.3} parent=0 // pred_fallthru
    _

// kernel: carafe_module_forward.4
$region0: #{carafe_module_forward.4}
  #allocation0 [shape = 'u32[]', space=smem, size = 0x4, offset = 0x4, fixed_abs, tag = 'smem constant byte address 0x4 - core index']
  #allocation1 [shape = 'u32[144,128]{1,0:T(1,128)}', space=vmem, size = 0x12000, scoped, tag = 'internal scratch']
  #allocation2 [shape = 'bf16[256,1152]{1,0:T(16,128)(2,1)}', space=vmem, size = 0x90000, scoped, tag = 'scratch operand']
  %s0 = inlined_call_operand.vmem [shape: bf16[2,18,18,128], index: 0, kind: input, shape index: {}]
  %s1 = inlined_call_operand.vmem [shape: bf16[1152,128], index: 1, kind: input, shape index: {}]
  %s2 = inlined_call_operand.vmem [shape: f32[1,128], index: 2, kind: input, shape index: {}]
  %s3 = inlined_call_operand.vmem [shape: f32[2,16,16,128], index: 3, kind: output, shape index: {}]
  %s4 = sld [smem:[#allocation0]]
  $region45: #{carafe_module_forward.4} parent=0
    _
  %s6 = ssub.s32 1, %s4
  %s7 = scalar_select 0, %s6, %s4
  loop: start=0, step=1, limit=4
  $region2: #{carafe_module_forward.4} parent=0 // loop_pre_header
    _
  $region3: #{carafe_module_forward.4} parent=0 // loop_header
    %s9 = sphi 0, %s13
    %p10 = scmp.ge.s32.totalorder %s9, 4
    %s16 = sphi 0, %s28
    %s17 = sphi 0, %s24
    %s18 = sphi 0, %s16
    %s19 = sphi 0, %s17
    %s20 = sphi 0, %s18
    %s21 = sphi 0, %s19
    %s31 = sphi 0, %s33
    %s34 = sphi 0, %s31
    %s35 = sphi 0, %s34
    %s51 = sphi 0, %s35
    %s55 = sphi 0, %s55
    %s57 = sphi 0, %s55
    %s58 = sphi 0, %s57
    %s72 = sphi 0, %s58
    %s76 = sphi 0, %s76
    %s78 = sphi 0, %s76
    %s79 = sphi 0, %s78
    %s93 = sphi 0, %s79
    %s101 = sphi 0, %s103
    %s104 = sphi 0, %s101
    %s105 = sphi 0, %s104
    %s121 = sphi 0, %s105
  $region4: #{carafe_module_forward.4} parent=0 // loop_header_branch
    %12 = sbr.rel (%p10) target = $region8
  $region5: #{carafe_module_forward.4} parent=0 // loop_body
    %s14 = ssub.s32 %s9, 1
    %s15 = ssub.s32 %s9, 2
    %s22 = sadd.s32 1, %s17
    %p23 = scmp.ge.s32.totalorder %s22, 1
    %s24 = scalar_select %p23, 0, %s22
    %s25 = sadd.s32 1, %s16
    %s26 = scalar_select %p23, %s25, %s16
    %p27 = scmp.ge.s32.totalorder %s26, 2
    %s28 = scalar_select %p27, 0, %s26
    %s29 = ssub.s32 %s16, %s28
    %p30 = scmp.eq.s32.totalorder %s29, 0
    %s32 = sadd.s32 %s31, 1
    %s33 = scalar_select %p30, %s31, %s32
    %p36 = pneg %p30
    %p37 = scmp.eq.s32.totalorder %s9, 1
    %p38 = por %p36, %p37
    %p39 = scmp.ne.s32.totalorder %s31, %s34
    %p40 = scmp.eq.s32.totalorder %s9, 0
    %p41 = por %p39, %p40
    %p42 = scmp.ne.s32.totalorder %s31, %s34
    %p43 = scmp.eq.s32.totalorder %s14, 1
    %p44 = por %p42, %p43
    %p45 = scmp.ne.s32.totalorder %s34, %s35
    %p46 = scmp.eq.s32.totalorder %s14, 0
    %p47 = por %p45, %p46
    %p48 = scmp.ne.s32.totalorder %s34, %s35
    %p49 = scmp.eq.s32.totalorder %s15, 1
    %p50 = por %p48, %p49
    %p52 = scmp.ne.s32.totalorder %s35, %s51
    %p53 = scmp.eq.s32.totalorder %s15, 0
    %p54 = por %p52, %p53
    %s56 = sadd.s32 %s55, 1
    %p59 = scmp.eq.s32.totalorder %s9, 1
    %p60 = scmp.ne.s32.totalorder %s55, %s57
    %p61 = scmp.eq.s32.totalorder %s9, 0
    %p62 = por %p60, %p61
    %p63 = scmp.ne.s32.totalorder %s55, %s57
    %p64 = scmp.eq.s32.totalorder %s14, 1
    %p65 = por %p63, %p64
    %p66 = scmp.ne.s32.totalorder %s57, %s58
    %p67 = scmp.eq.s32.totalorder %s14, 0
    %p68 = por %p66, %p67
    %p69 = scmp.ne.s32.totalorder %s57, %s58
    %p70 = scmp.eq.s32.totalorder %s15, 1
    %p71 = por %p69, %p70
    %p73 = scmp.ne.s32.totalorder %s58, %s72
    %p74 = scmp.eq.s32.totalorder %s15, 0
    %p75 = por %p73, %p74
    %s77 = sadd.s32 %s76, 1
    %p80 = scmp.eq.s32.totalorder %s9, 1
    %p81 = scmp.ne.s32.totalorder %s76, %s78
    %p82 = scmp.eq.s32.totalorder %s9, 0
    %p83 = por %p81, %p82
    %p84 = scmp.ne.s32.totalorder %s76, %s78
    %p85 = scmp.eq.s32.totalorder %s14, 1
    %p86 = por %p84, %p85
    %p87 = scmp.ne.s32.totalorder %s78, %s79
    %p88 = scmp.eq.s32.totalorder %s14, 0
    %p89 = por %p87, %p88
    %p90 = scmp.ne.s32.totalorder %s78, %s79
    %p91 = scmp.eq.s32.totalorder %s15, 1
    %p92 = por %p90, %p91
    %p94 = scmp.ne.s32.totalorder %s79, %s93
    %p95 = scmp.eq.s32.totalorder %s15, 0
    %p96 = por %p94, %p95
    %s97 = ssub.s32 %s16, %s28
    %s98 = ssub.s32 %s17, %s24
    %s99 = sor.u32 %s97, %s98
    %p100 = scmp.eq.s32.totalorder %s99, 0
    %s102 = sadd.s32 %s101, 1
    %s103 = scalar_select %p100, %s101, %s102
    %p106 = pneg %p100
    %p107 = scmp.eq.s32.totalorder %s9, 1
    %p108 = por %p106, %p107
    %p109 = scmp.ne.s32.totalorder %s101, %s104
    %p110 = scmp.eq.s32.totalorder %s9, 0
    %p111 = por %p109, %p110
    %p112 = scmp.ne.s32.totalorder %s101, %s104
    %p113 = scmp.eq.s32.totalorder %s14, 1
    %p114 = por %p112, %p113
    %p115 = scmp.ne.s32.totalorder %s104, %s105
    %p116 = scmp.eq.s32.totalorder %s14, 0
    %p117 = por %p115, %p116
    %p118 = scmp.ne.s32.totalorder %s104, %s105
    %p119 = scmp.eq.s32.totalorder %s15, 1
    %p120 = por %p118, %p119
    %p122 = scmp.ne.s32.totalorder %s105, %s121
    %p123 = scmp.eq.s32.totalorder %s15, 0
    %p124 = por %p122, %p123
    %p125 = scmp.le.s32.totalorder 1, %s9
    %p126 = scmp.lt.s32.totalorder %s9, 3
    %p127 = pnand %p125, %p126
    %p128 = pneg %p127
    // Predicated region
    $region9: #{carafe_module_forward.4} parent=5 // pred_check
      _
    $region10: #{carafe_module_forward.4} parent=5 // pred_check_branch
      %130 = sbr.rel (%p127) target = $region12
    $region11: #{carafe_module_forward.4} parent=5 // pred_region
      %s131 = ssub.s32 %s9, 1
      // Predicated region
      $region13: #{carafe_module_forward.4} parent=11 // pred_check
        %p132 = pneg %p68
      $region14: #{carafe_module_forward.4} parent=11 // pred_check_branch
        %134 = sbr.rel (%p132) target = $region16
      $region15: #{carafe_module_forward.4} parent=11 // pred_region
        _
      $region16: #{carafe_module_forward.4} parent=11 // pred_fallthru
        _
      // Predicated region
      $region17: #{carafe_module_forward.4} parent=11 // pred_check
        %p135 = pneg %p89
      $region18: #{carafe_module_forward.4} parent=11 // pred_check_branch
        %137 = sbr.rel (%p135) target = $region20
      $region19: #{carafe_module_forward.4} parent=11 // pred_region
        _
      $region20: #{carafe_module_forward.4} parent=11 // pred_fallthru
        _
    $region12: #{carafe_module_forward.4} parent=5 // pred_fallthru
      _
    %p138 = scmp.lt.s32.totalorder %s9, 2
    // Predicated region
    $region21: #{carafe_module_forward.4} parent=5 // pred_check
      %p139 = pneg %p138
    $region22: #{carafe_module_forward.4} parent=5 // pred_check_branch
      %141 = sbr.rel (%p139) target = $region24
    $region23: #{carafe_module_forward.4} parent=5 // pred_region
      // Predicated region
      $region25: #{carafe_module_forward.4} parent=23 // pred_check
        %p142 = pneg %p41
      $region26: #{carafe_module_forward.4} parent=23 // pred_check_branch
        %144 = sbr.rel (%p142) target = $region28
      $region27: #{carafe_module_forward.4} parent=23 // pred_region
        %p145 = scmp.lt.s32.totalorder %s16, 1
        %s146 = scalar_select %p145, %s16, 1
        %s147 = smul.addr %s146, 54
        %s148 = smul.addr %s147, 4
        %s149 = scalar_lea.vmem %s0, %s148
      $region28: #{carafe_module_forward.4} parent=23 // pred_fallthru
        _
    $region24: #{carafe_module_forward.4} parent=5 // pred_fallthru
      _
    %p150 = scmp.le.s32.totalorder 1, %s9
    %p151 = scmp.lt.s32.totalorder %s9, 3
    %p152 = pnand %p150, %p151
    %p153 = pneg %p152
    // Predicated region
    $region29: #{carafe_module_forward.4} parent=5 // pred_check
      _
    $region30: #{carafe_module_forward.4} parent=5 // pred_check_branch
      %155 = sbr.rel (%p152) target = $region32
    $region31: #{carafe_module_forward.4} parent=5 // pred_region
      %s156 = ssub.s32 %s9, 1
      %p157 = scmp.lt.s32.totalorder %s18, 1
      %s158 = scalar_select %p157, %s18, 1
      %s159 = smul.addr %s158, 54
      %s160 = smul.addr %s159, 4
      %s161 = scalar_lea.vmem %s0, %s160
      %p162 = pneg %p47
      %p163 = pneg %p44
      %p164 = pneg %p68
      %p165 = pneg %p65
      %p166 = pneg %p89
      %p167 = pneg %p86
      %p168 = pneg %p117
      %p169 = pneg %p114
      %s170 = smul.u32 16, %s19
      %p171 = scmp.lt.s32.totalorder %s18, 1
      %s172 = scalar_select %p171, %s18, 1
      %p173 = scmp.lt.s32.totalorder %s170, 15
      %s174 = scalar_select %p173, %s170, 15
      %s175 = smul.addr %s174, 2
      %s176 = smul.addr %s172, 32
      %s177 = sadd.s32 %s175, %s176
      %s178 = smul.addr %s177, 8
      %s179 = scalar_lea.vmem %s3, %s178
      %p180 = scmp.lt.s32.totalorder %s18, 1
      %s181 = scalar_select %p180, %s18, 1
      %s182 = smul.addr %s181, 54
      %s183 = smul.addr %s182, 4
      %s184 = scalar_lea.vmem %s0, %s183
      %s185 = smul.u32 16, %s19
      %p186 = scmp.lt.s32.totalorder %s18, 1
      %s187 = scalar_select %p186, %s18, 1
      %p188 = scmp.lt.s32.totalorder %s185, 15
      %s189 = scalar_select %p188, %s185, 15
      %s190 = smul.addr %s189, 2
      %s191 = smul.addr %s187, 32
      %s192 = sadd.s32 %s190, %s191
      %s193 = smul.addr %s192, 8
      %s194 = scalar_lea.vmem %s3, %s193
      %s195 = smul.u32 16, %s19
      %s197 = smul.u32 %s19, 16
      %s198 = smul.u32 %s197, 3
      %s199 = smul.addr %s198, 4
      %s200 = scalar_lea.vmem %s184, %s199
      %v201 = vld [vmem:[%s200] sm:$0xf]
      %v202 = vld [vmem:[%s200 + $0x4] sm:$0xf]
      %v203 = vld [vmem:[%s200 + $0xc] sm:$0xf]
      %v204 = vld [vmem:[%s200 + $0x10] sm:$0xf]
      %v205 = vld [vmem:[%s200 + $0x18] sm:$0xf]
      %v206 = vld [vmem:[%s200 + $0x1c] sm:$0xf]
      %v207 = vld [vmem:[%s200 + $0x24] sm:$0xf]
      %v208 = vld [vmem:[%s200 + $0x28] sm:$0xf]
      %v209 = vld [vmem:[%s200 + $0x30] sm:$0xf]
      %v210 = vld [vmem:[%s200 + $0x34] sm:$0xf]
      %v211 = vld [vmem:[%s200 + $0x3c] sm:$0xf]
      %v212 = vld [vmem:[%s200 + $0x40] sm:$0xf]
      %v213 = vld [vmem:[%s200 + $0x48] sm:$0xf]
      %v214 = vld [vmem:[%s200 + $0x4c] sm:$0xf]
      %v215 = vld [vmem:[%s200 + $0x54] sm:$0xf]
      %v216 = vld [vmem:[%s200 + $0x58] sm:$0xf]
      %v217 = vld [vmem:[%s200 + $0x60] sm:$0xf]
      %v218 = vld [vmem:[%s200 + $0x64] sm:$0xf]
      %v219 = vld [vmem:[%s200 + $0x6c] sm:$0xf]
      %v220 = vld [vmem:[%s200 + $0x70] sm:$0xf]
      %v221 = vld [vmem:[%s200 + $0x78] sm:$0xf]
      %v222 = vld [vmem:[%s200 + $0x7c] sm:$0xf]
      %v223 = vld [vmem:[%s200 + $0x84] sm:$0xf]
      %v224 = vld [vmem:[%s200 + $0x88] sm:$0xf]
      %v225 = vld [vmem:[%s200 + $0x90] sm:$0xf]
      %v226 = vld [vmem:[%s200 + $0x94] sm:$0xf]
      %v227 = vld [vmem:[%s200 + $0x9c] sm:$0xf]
      %v228 = vld [vmem:[%s200 + $0xa0] sm:$0xf]
      %v229 = vld [vmem:[%s200 + $0xa8] sm:$0xf]
      %v230 = vld [vmem:[%s200 + $0xac] sm:$0xf]
      %v231 = vld [vmem:[%s200 + $0xb4] sm:$0xf]
      %v232 = vld [vmem:[%s200 + $0xb8] sm:$0xf]
      %v265 = vunpack.c.l.b16 %v201
      %v266 = vunpack.c.l.b16 %v202
      %v267 = vunpack.c.l.b16 %v203
      %v268 = vunpack.c.l.b16 %v204
      %v269 = vunpack.c.l.b16 %v205
      %v270 = vunpack.c.l.b16 %v206
      %v271 = vunpack.c.l.b16 %v207
      %v272 = vunpack.c.l.b16 %v208
      %v273 = vunpack.c.l.b16 %v209
      %v274 = vunpack.c.l.b16 %v210
      %v275 = vunpack.c.l.b16 %v211
      %v276 = vunpack.c.l.b16 %v212
      %v277 = vunpack.c.l.b16 %v213
      %v278 = vunpack.c.l.b16 %v214
      %v279 = vunpack.c.l.b16 %v215
      %v280 = vunpack.c.l.b16 %v216
      %v281 = vunpack.c.l.b16 %v217
      %v282 = vunpack.c.l.b16 %v218
      %v283 = vunpack.c.l.b16 %v219
      %v284 = vunpack.c.l.b16 %v220
      %v285 = vunpack.c.l.b16 %v221
      %v286 = vunpack.c.l.b16 %v222
      %v287 = vunpack.c.l.b16 %v223
      %v288 = vunpack.c.l.b16 %v224
      %v289 = vunpack.c.l.b16 %v225
      %v290 = vunpack.c.l.b16 %v226
      %v291 = vunpack.c.l.b16 %v227
      %v292 = vunpack.c.l.b16 %v228
      %v293 = vunpack.c.l.b16 %v229
      %v294 = vunpack.c.l.b16 %v230
      %v295 = vunpack.c.l.b16 %v231
      %v296 = vunpack.c.l.b16 %v232
      %v297 = vpack.c.b16 %v266, %v265
      %v298 = vpack.c.b16 %v268, %v267
      %v299 = vpack.c.b16 %v270, %v269
      %v300 = vpack.c.b16 %v272, %v271
      %v301 = vpack.c.b16 %v274, %v273
      %v302 = vpack.c.b16 %v276, %v275
      %v303 = vpack.c.b16 %v278, %v277
      %v304 = vpack.c.b16 %v280, %v279
      %v305 = vpack.c.b16 %v282, %v281
      %v306 = vpack.c.b16 %v284, %v283
      %v307 = vpack.c.b16 %v286, %v285
      %v308 = vpack.c.b16 %v288, %v287
      %v309 = vpack.c.b16 %v290, %v289
      %v310 = vpack.c.b16 %v292, %v291
      %v311 = vpack.c.b16 %v294, %v293
      %v312 = vpack.c.b16 %v296, %v295
      %329 = vst [vmem:[#allocation2] sm:$0xff] %v297
      %330 = vst [vmem:[#allocation2 + $0x48] sm:$0xff] %v298
      %331 = vst [vmem:[#allocation2 + $0x90] sm:$0xff] %v299
      %332 = vst [vmem:[#allocation2 + $0xd8] sm:$0xff] %v300
      %333 = vst [vmem:[#allocation2 + $0x120] sm:$0xff] %v301
      %334 = vst [vmem:[#allocation2 + $0x168] sm:$0xff] %v302
      %335 = vst [vmem:[#allocation2 + $0x1b0] sm:$0xff] %v303
      %336 = vst [vmem:[#allocation2 + $0x1f8] sm:$0xff] %v304
      %337 = vst [vmem:[#allocation2 + $0x240] sm:$0xff] %v305
      %338 = vst [vmem:[#allocation2 + $0x288] sm:$0xff] %v306
      %339 = vst [vmem:[#allocation2 + $0x2d0] sm:$0xff] %v307
      %340 = vst [vmem:[#allocation2 + $0x318] sm:$0xff] %v308
      %341 = vst [vmem:[#allocation2 + $0x360] sm:$0xff] %v309
      %342 = vst [vmem:[#allocation2 + $0x3a8] sm:$0xff] %v310
      %343 = vst [vmem:[#allocation2 + $0x3f0] sm:$0xff] %v311
      %344 = vst [vmem:[#allocation2 + $0x438] sm:$0xff] %v312
      %v345 = vld [vmem:[%s200] sm:$0xf]
      %v346 = vld [vmem:[%s200 + $0x4] sm:$0xf]
      %v347 = vld [vmem:[%s200 + $0x8] sm:$0x1]
      %v348 = vld [vmem:[%s200 + $0xc] sm:$0xf]
      %v349 = vld [vmem:[%s200 + $0x10] sm:$0xf]
      %v350 = vld [vmem:[%s200 + $0x14] sm:$0x1]
      %v351 = vld [vmem:[%s200 + $0x18] sm:$0xf]
      %v352 = vld [vmem:[%s200 + $0x1c] sm:$0xf]
      %v353 = vld [vmem:[%s200 + $0x20] sm:$0x1]
      %v354 = vld [vmem:[%s200 + $0x24] sm:$0xf]
      %v355 = vld [vmem:[%s200 + $0x28] sm:$0xf]
      %v356 = vld [vmem:[%s200 + $0x2c] sm:$0x1]
      %v357 = vld [vmem:[%s200 + $0x30] sm:$0xf]
      %v358 = vld [vmem:[%s200 + $0x34] sm:$0xf]
      %v359 = vld [vmem:[%s200 + $0x38] sm:$0x1]
      %v360 = vld [vmem:[%s200 + $0x3c] sm:$0xf]
      %v361 = vld [vmem:[%s200 + $0x40] sm:$0xf]
      %v362 = vld [vmem:[%s200 + $0x44] sm:$0x1]
      %v363 = vld [vmem:[%s200 + $0x48] sm:$0xf]
      %v364 = vld [vmem:[%s200 + $0x4c] sm:$0xf]
      %v365 = vld [vmem:[%s200 + $0x50] sm:$0x1]
      %v366 = vld [vmem:[%s200 + $0x54] sm:$0xf]
      %v367 = vld [vmem:[%s200 + $0x58] sm:$0xf]
      %v368 = vld [vmem:[%s200 + $0x5c] sm:$0x1]
      %v369 = vld [vmem:[%s200 + $0x60] sm:$0xf]
      %v370 = vld [vmem:[%s200 + $0x64] sm:$0xf]
      %v371 = vld [vmem:[%s200 + $0x68] sm:$0x1]
      %v372 = vld [vmem:[%s200 + $0x6c] sm:$0xf]
      %v373 = vld [vmem:[%s200 + $0x70] sm:$0xf]
      %v374 = vld [vmem:[%s200 + $0x74] sm:$0x1]
      %v375 = vld [vmem:[%s200 + $0x78] sm:$0xf]
      %v376 = vld [vmem:[%s200 + $0x7c] sm:$0xf]
      %v377 = vld [vmem:[%s200 + $0x80] sm:$0x1]
      %v378 = vld [vmem:[%s200 + $0x84] sm:$0xf]
      %v379 = vld [vmem:[%s200 + $0x88] sm:$0xf]
      %v380 = vld [vmem:[%s200 + $0x8c] sm:$0x1]
      %v381 = vld [vmem:[%s200 + $0x90] sm:$0xf]
      %v382 = vld [vmem:[%s200 + $0x94] sm:$0xf]
      %v383 = vld [vmem:[%s200 + $0x98] sm:$0x1]
      %v384 = vld [vmem:[%s200 + $0x9c] sm:$0xf]
      %v385 = vld [vmem:[%s200 + $0xa0] sm:$0xf]
      %v386 = vld [vmem:[%s200 + $0xa4] sm:$0x1]
      %v387 = vld [vmem:[%s200 + $0xa8] sm:$0xf]
      %v388 = vld [vmem:[%s200 + $0xac] sm:$0xf]
      %v389 = vld [vmem:[%s200 + $0xb0] sm:$0x1]
      %v390 = vld [vmem:[%s200 + $0xb4] sm:$0xf]
      %v391 = vld [vmem:[%s200 + $0xb8] sm:$0xf]
      %v392 = vld [vmem:[%s200 + $0xbc] sm:$0x1]
      %vm393 = vsmask.f32 3328
      %vm394 = vsmask.f32 7440
      %vm395 = vmor %vm393, %vm394
      %v397 = vshrl.u32 %v345, 16
      %v399 = vrot.slane %v397, 4
      %v400 = vshll.u32 %v345, 16
      %v402 = vrot.slane %v400, 5
      %v403 = vor.u32 %v399, %v402
      %v404 = vrot.slane %v403, 4
      %v406 = vshll.u32 %v346, 16
      %v408 = vrot.slane %v406, 5
      %v409 = vsel %vm395, %v404, %v408
      %v410 = vshrl.u32 %v346, 16
      %v412 = vrot.slane %v410, 4
      %v413 = vor.u32 %v412, %v408
      %v414 = vrot.slane %v413, 4
      %v416 = vshll.u32 %v347, 16
      %v418 = vrot.slane %v416, 5
      %v419 = vsel %vm395, %v414, %v418
      %v421 = vshrl.u32 %v348, 16
      %v423 = vrot.slane %v421, 4
      %v424 = vshll.u32 %v348, 16
      %v426 = vrot.slane %v424, 5
      %v427 = vor.u32 %v423, %v426
      %v428 = vrot.slane %v427, 4
      %v430 = vshll.u32 %v349, 16
      %v432 = vrot.slane %v430, 5
      %v433 = vsel %vm395, %v428, %v432
      %v434 = vshrl.u32 %v349, 16
      %v436 = vrot.slane %v434, 4
      %v437 = vor.u32 %v436, %v432
      %v438 = vrot.slane %v437, 4
      %v440 = vshll.u32 %v350, 16
      %v442 = vrot.slane %v440, 5
      %v443 = vsel %vm395, %v438, %v442
      %v445 = vshrl.u32 %v351, 16
      %v447 = vrot.slane %v445, 4
      %v448 = vshll.u32 %v351, 16
      %v450 = vrot.slane %v448, 5
      %v451 = vor.u32 %v447, %v450
      %v452 = vrot.slane %v451, 4
      %v454 = vshll.u32 %v352, 16
      %v456 = vrot.slane %v454, 5
      %v457 = vsel %vm395, %v452, %v456
      %v458 = vshrl.u32 %v352, 16
      %v460 = vrot.slane %v458, 4
      %v461 = vor.u32 %v460, %v456
      %v462 = vrot.slane %v461, 4
      %v464 = vshll.u32 %v353, 16
      %v466 = vrot.slane %v464, 5
      %v467 = vsel %vm395, %v462, %v466
      %v469 = vshrl.u32 %v354, 16
      %v471 = vrot.slane %v469, 4
      %v472 = vshll.u32 %v354, 16
      %v474 = vrot.slane %v472, 5
      %v475 = vor.u32 %v471, %v474
      %v476 = vrot.slane %v475, 4
      %v478 = vshll.u32 %v355, 16
      %v480 = vrot.slane %v478, 5
      %v481 = vsel %vm395, %v476, %v480
      %v482 = vshrl.u32 %v355, 16
      %v484 = vrot.slane %v482, 4
      %v485 = vor.u32 %v484, %v480
      %v486 = vrot.slane %v485, 4
      %v488 = vshll.u32 %v356, 16
      %v490 = vrot.slane %v488, 5
      %v491 = vsel %vm395, %v486, %v490
      %v493 = vshrl.u32 %v357, 16
      %v495 = vrot.slane %v493, 4
      %v496 = vshll.u32 %v357, 16
      %v498 = vrot.slane %v496, 5
      %v499 = vor.u32 %v495, %v498
      %v500 = vrot.slane %v499, 4
      %v502 = vshll.u32 %v358, 16
      %v504 = vrot.slane %v502, 5
      %v505 = vsel %vm395, %v500, %v504
      %v506 = vshrl.u32 %v358, 16
      %v508 = vrot.slane %v506, 4
      %v509 = vor.u32 %v508, %v504
      %v510 = vrot.slane %v509, 4
      %v512 = vshll.u32 %v359, 16
      %v514 = vrot.slane %v512, 5
      %v515 = vsel %vm395, %v510, %v514
      %v517 = vshrl.u32 %v360, 16
      %v519 = vrot.slane %v517, 4
      %v520 = vshll.u32 %v360, 16
      %v522 = vrot.slane %v520, 5
      %v523 = vor.u32 %v519, %v522
      %v524 = vrot.slane %v523, 4
      %v526 = vshll.u32 %v361, 16
      %v528 = vrot.slane %v526, 5
      %v529 = vsel %vm395, %v524, %v528
      %v530 = vshrl.u32 %v361, 16
      %v532 = vrot.slane %v530, 4
      %v533 = vor.u32 %v532, %v528
      %v534 = vrot.slane %v533, 4
      %v536 = vshll.u32 %v362, 16
      %v538 = vrot.slane %v536, 5
      %v539 = vsel %vm395, %v534, %v538
      %v541 = vshrl.u32 %v363, 16
      %v543 = vrot.slane %v541, 4
      %v544 = vshll.u32 %v363, 16
      %v546 = vrot.slane %v544, 5
      %v547 = vor.u32 %v543, %v546
      %v548 = vrot.slane %v547, 4
      %v550 = vshll.u32 %v364, 16
      %v552 = vrot.slane %v550, 5
      %v553 = vsel %vm395, %v548, %v552
      %v554 = vshrl.u32 %v364, 16
      %v556 = vrot.slane %v554, 4
      %v557 = vor.u32 %v556, %v552
      %v558 = vrot.slane %v557, 4
      %v560 = vshll.u32 %v365, 16
      %v562 = vrot.slane %v560, 5
      %v563 = vsel %vm395, %v558, %v562
      %v565 = vshrl.u32 %v366, 16
      %v567 = vrot.slane %v565, 4
      %v568 = vshll.u32 %v366, 16
      %v570 = vrot.slane %v568, 5
      %v571 = vor.u32 %v567, %v570
      %v572 = vrot.slane %v571, 4
      %v574 = vshll.u32 %v367, 16
      %v576 = vrot.slane %v574, 5
      %v577 = vsel %vm395, %v572, %v576
      %v578 = vshrl.u32 %v367, 16
      %v580 = vrot.slane %v578, 4
      %v581 = vor.u32 %v580, %v576
      %v582 = vrot.slane %v581, 4
      %v584 = vshll.u32 %v368, 16
      %v586 = vrot.slane %v584, 5
      %v587 = vsel %vm395, %v582, %v586
      %v589 = vshrl.u32 %v369, 16
      %v591 = vrot.slane %v589, 4
      %v592 = vshll.u32 %v369, 16
      %v594 = vrot.slane %v592, 5
      %v595 = vor.u32 %v591, %v594
      %v596 = vrot.slane %v595, 4
      %v598 = vshll.u32 %v370, 16
      %v600 = vrot.slane %v598, 5
      %v601 = vsel %vm395, %v596, %v600
      %v602 = vshrl.u32 %v370, 16
      %v604 = vrot.slane %v602, 4
      %v605 = vor.u32 %v604, %v600
      %v606 = vrot.slane %v605, 4
      %v608 = vshll.u32 %v371, 16
      %v610 = vrot.slane %v608, 5
      %v611 = vsel %vm395, %v606, %v610
      %v613 = vshrl.u32 %v372, 16
      %v615 = vrot.slane %v613, 4
      %v616 = vshll.u32 %v372, 16
      %v618 = vrot.slane %v616, 5
      %v619 = vor.u32 %v615, %v618
      %v620 = vrot.slane %v619, 4
      %v622 = vshll.u32 %v373, 16
      %v624 = vrot.slane %v622, 5
      %v625 = vsel %vm395, %v620, %v624
      %v626 = vshrl.u32 %v373, 16
      %v628 = vrot.slane %v626, 4
      %v629 = vor.u32 %v628, %v624
      %v630 = vrot.slane %v629, 4
      %v632 = vshll.u32 %v374, 16
      %v634 = vrot.slane %v632, 5
      %v635 = vsel %vm395, %v630, %v634
      %v637 = vshrl.u32 %v375, 16
      %v639 = vrot.slane %v637, 4
      %v640 = vshll.u32 %v375, 16
      %v642 = vrot.slane %v640, 5
      %v643 = vor.u32 %v639, %v642
      %v644 = vrot.slane %v643, 4
      %v646 = vshll.u32 %v376, 16
      %v648 = vrot.slane %v646, 5
      %v649 = vsel %vm395, %v644, %v648
      %v650 = vshrl.u32 %v376, 16
      %v652 = vrot.slane %v650, 4
      %v653 = vor.u32 %v652, %v648
      %v654 = vrot.slane %v653, 4
      %v656 = vshll.u32 %v377, 16
      %v658 = vrot.slane %v656, 5
      %v659 = vsel %vm395, %v654, %v658
      %v661 = vshrl.u32 %v378, 16
      %v663 = vrot.slane %v661, 4
      %v664 = vshll.u32 %v378, 16
      %v666 = vrot.slane %v664, 5
      %v667 = vor.u32 %v663, %v666
      %v668 = vrot.slane %v667, 4
      %v670 = vshll.u32 %v379, 16
      %v672 = vrot.slane %v670, 5
      %v673 = vsel %vm395, %v668, %v672
      %v674 = vshrl.u32 %v379, 16
      %v676 = vrot.slane %v674, 4
      %v677 = vor.u32 %v676, %v672
      %v678 = vrot.slane %v677, 4
      %v680 = vshll.u32 %v380, 16
      %v682 = vrot.slane %v680, 5
      %v683 = vsel %vm395, %v678, %v682
      %v685 = vshrl.u32 %v381, 16
      %v687 = vrot.slane %v685, 4
      %v688 = vshll.u32 %v381, 16
      %v690 = vrot.slane %v688, 5
      %v691 = vor.u32 %v687, %v690
      %v692 = vrot.slane %v691, 4
      %v694 = vshll.u32 %v382, 16
      %v696 = vrot.slane %v694, 5
      %v697 = vsel %vm395, %v692, %v696
      %v698 = vshrl.u32 %v382, 16
      %v700 = vrot.slane %v698, 4
      %v701 = vor.u32 %v700, %v696
      %v702 = vrot.slane %v701, 4
      %v704 = vshll.u32 %v383, 16
      %v706 = vrot.slane %v704, 5
      %v707 = vsel %vm395, %v702, %v706
      %v709 = vshrl.u32 %v384, 16
      %v711 = vrot.slane %v709, 4
      %v712 = vshll.u32 %v384, 16
      %v714 = vrot.slane %v712, 5
      %v715 = vor.u32 %v711, %v714
      %v716 = vrot.slane %v715, 4
      %v718 = vshll.u32 %v385, 16
      %v720 = vrot.slane %v718, 5
      %v721 = vsel %vm395, %v716, %v720
      %v722 = vshrl.u32 %v385, 16
      %v724 = vrot.slane %v722, 4
      %v725 = vor.u32 %v724, %v720
      %v726 = vrot.slane %v725, 4
      %v728 = vshll.u32 %v386, 16
      %v730 = vrot.slane %v728, 5
      %v731 = vsel %vm395, %v726, %v730
      %v733 = vshrl.u32 %v387, 16
      %v735 = vrot.slane %v733, 4
      %v736 = vshll.u32 %v387, 16
      %v738 = vrot.slane %v736, 5
      %v739 = vor.u32 %v735, %v738
      %v740 = vrot.slane %v739, 4
      %v742 = vshll.u32 %v388, 16
      %v744 = vrot.slane %v742, 5
      %v745 = vsel %vm395, %v740, %v744
      %v746 = vshrl.u32 %v388, 16
      %v748 = vrot.slane %v746, 4
      %v749 = vor.u32 %v748, %v744
      %v750 = vrot.slane %v749, 4
      %v752 = vshll.u32 %v389, 16
      %v754 = vrot.slane %v752, 5
      %v755 = vsel %vm395, %v750, %v754
      %v757 = vshrl.u32 %v390, 16
      %v759 = vrot.slane %v757, 4
      %v760 = vshll.u32 %v390, 16
      %v762 = vrot.slane %v760, 5
      %v763 = vor.u32 %v759, %v762
      %v764 = vrot.slane %v763, 4
      %v766 = vshll.u32 %v391, 16
      %v768 = vrot.slane %v766, 5
      %v769 = vsel %vm395, %v764, %v768
      %v770 = vshrl.u32 %v391, 16
      %v772 = vrot.slane %v770, 4
      %v773 = vor.u32 %v772, %v768
      %v774 = vrot.slane %v773, 4
      %v776 = vshll.u32 %v392, 16
      %v778 = vrot.slane %v776, 5
      %v779 = vsel %vm395, %v774, %v778
      %v780 = vunpack.c.l.b16 %v409
      %v781 = vunpack.c.l.b16 %v419
      %v782 = vunpack.c.l.b16 %v433
      %v783 = vunpack.c.l.b16 %v443
      %v784 = vunpack.c.l.b16 %v457
      %v785 = vunpack.c.l.b16 %v467
      %v786 = vunpack.c.l.b16 %v481
      %v787 = vunpack.c.l.b16 %v491
      %v788 = vunpack.c.l.b16 %v505
      %v789 = vunpack.c.l.b16 %v515
      %v790 = vunpack.c.l.b16 %v529
      %v791 = vunpack.c.l.b16 %v539
      %v792 = vunpack.c.l.b16 %v553
      %v793 = vunpack.c.l.b16 %v563
      %v794 = vunpack.c.l.b16 %v577
      %v795 = vunpack.c.l.b16 %v587
      %v796 = vunpack.c.l.b16 %v601
      %v797 = vunpack.c.l.b16 %v611
      %v798 = vunpack.c.l.b16 %v625
      %v799 = vunpack.c.l.b16 %v635
      %v800 = vunpack.c.l.b16 %v649
      %v801 = vunpack.c.l.b16 %v659
      %v802 = vunpack.c.l.b16 %v673
      %v803 = vunpack.c.l.b16 %v683
      %v804 = vunpack.c.l.b16 %v697
      %v805 = vunpack.c.l.b16 %v707
      %v806 = vunpack.c.l.b16 %v721
      %v807 = vunpack.c.l.b16 %v731
      %v808 = vunpack.c.l.b16 %v745
      %v809 = vunpack.c.l.b16 %v755
      %v810 = vunpack.c.l.b16 %v769
      %v811 = vunpack.c.l.b16 %v779
      %v812 = vpack.c.b16 %v781, %v780
      %v813 = vpack.c.b16 %v783, %v782
      %v814 = vpack.c.b16 %v785, %v784
      %v815 = vpack.c.b16 %v787, %v786
      %v816 = vpack.c.b16 %v789, %v788
      %v817 = vpack.c.b16 %v791, %v790
      %v818 = vpack.c.b16 %v793, %v792
      %v819 = vpack.c.b16 %v795, %v794
      %v820 = vpack.c.b16 %v797, %v796
      %v821 = vpack.c.b16 %v799, %v798
      %v822 = vpack.c.b16 %v801, %v800
      %v823 = vpack.c.b16 %v803, %v802
      %v824 = vpack.c.b16 %v805, %v804
      %v825 = vpack.c.b16 %v807, %v806
      %v826 = vpack.c.b16 %v809, %v808
      %v827 = vpack.c.b16 %v811, %v810
      %844 = vst [vmem:[#allocation2 + $0x8] sm:$0xff] %v812
      %845 = vst [vmem:[#allocation2 + $0x50] sm:$0xff] %v813
      %846 = vst [vmem:[#allocation2 + $0x98] sm:$0xff] %v814
      %847 = vst [vmem:[#allocation2 + $0xe0] sm:$0xff] %v815
      %848 = vst [vmem:[#allocation2 + $0x128] sm:$0xff] %v816
      %849 = vst [vmem:[#allocation2 + $0x170] sm:$0xff] %v817
      %850 = vst [vmem:[#allocation2 + $0x1b8] sm:$0xff] %v818
      %851 = vst [vmem:[#allocation2 + $0x200] sm:$0xff] %v819
      %852 = vst [vmem:[#allocation2 + $0x248] sm:$0xff] %v820
      %853 = vst [vmem:[#allocation2 + $0x290] sm:$0xff] %v821
      %854 = vst [vmem:[#allocation2 + $0x2d8] sm:$0xff] %v822
      %855 = vst [vmem:[#allocation2 + $0x320] sm:$0xff] %v823
      %856 = vst [vmem:[#allocation2 + $0x368] sm:$0xff] %v824
      %857 = vst [vmem:[#allocation2 + $0x3b0] sm:$0xff] %v825
      %858 = vst [vmem:[#allocation2 + $0x3f8] sm:$0xff] %v826
      %859 = vst [vmem:[#allocation2 + $0x440] sm:$0xff] %v827
      %v860 = vld [vmem:[%s200] sm:$0xe]
      %v861 = vld [vmem:[%s200 + $0x4] sm:$0xf]
      %v862 = vld [vmem:[%s200 + $0x8] sm:$0x1]
      %v863 = vld [vmem:[%s200 + $0xc] sm:$0xe]
      %v864 = vld [vmem:[%s200 + $0x10] sm:$0xf]
      %v865 = vld [vmem:[%s200 + $0x14] sm:$0x1]
      %v866 = vld [vmem:[%s200 + $0x18] sm:$0xe]
      %v867 = vld [vmem:[%s200 + $0x1c] sm:$0xf]
      %v868 = vld [vmem:[%s200 + $0x20] sm:$0x1]
      %v869 = vld [vmem:[%s200 + $0x24] sm:$0xe]
      %v870 = vld [vmem:[%s200 + $0x28] sm:$0xf]
      %v871 = vld [vmem:[%s200 + $0x2c] sm:$0x1]
      %v872 = vld [vmem:[%s200 + $0x30] sm:$0xe]
      %v873 = vld [vmem:[%s200 + $0x34] sm:$0xf]
      %v874 = vld [vmem:[%s200 + $0x38] sm:$0x1]
      %v875 = vld [vmem:[%s200 + $0x3c] sm:$0xe]
      %v876 = vld [vmem:[%s200 + $0x40] sm:$0xf]
      %v877 = vld [vmem:[%s200 + $0x44] sm:$0x1]
      %v878 = vld [vmem:[%s200 + $0x48] sm:$0xe]
      %v879 = vld [vmem:[%s200 + $0x4c] sm:$0xf]
      %v880 = vld [vmem:[%s200 + $0x50] sm:$0x1]
      %v881 = vld [vmem:[%s200 + $0x54] sm:$0xe]
      %v882 = vld [vmem:[%s200 + $0x58] sm:$0xf]
      %v883 = vld [vmem:[%s200 + $0x5c] sm:$0x1]
      %v884 = vld [vmem:[%s200 + $0x60] sm:$0xe]
      %v885 = vld [vmem:[%s200 + $0x64] sm:$0xf]
      %v886 = vld [vmem:[%s200 + $0x68] sm:$0x1]
      %v887 = vld [vmem:[%s200 + $0x6c] sm:$0xe]
      %v888 = vld [vmem:[%s200 + $0x70] sm:$0xf]
      %v889 = vld [vmem:[%s200 + $0x74] sm:$0x1]
      %v890 = vld [vmem:[%s200 + $0x78] sm:$0xe]
      %v891 = vld [vmem:[%s200 + $0x7c] sm:$0xf]
      %v892 = vld [vmem:[%s200 + $0x80] sm:$0x1]
      %v893 = vld [vmem:[%s200 + $0x84] sm:$0xe]
      %v894 = vld [vmem:[%s200 + $0x88] sm:$0xf]
      %v895 = vld [vmem:[%s200 + $0x8c] sm:$0x1]
      %v896 = vld [vmem:[%s200 + $0x90] sm:$0xe]
      %v897 = vld [vmem:[%s200 + $0x94] sm:$0xf]
      %v898 = vld [vmem:[%s200 + $0x98] sm:$0x1]
      %v899 = vld [vmem:[%s200 + $0x9c] sm:$0xe]
      %v900 = vld [vmem:[%s200 + $0xa0] sm:$0xf]
      %v901 = vld [vmem:[%s200 + $0xa4] sm:$0x1]
      %v902 = vld [vmem:[%s200 + $0xa8] sm:$0xe]
      %v903 = vld [vmem:[%s200 + $0xac] sm:$0xf]
      %v904 = vld [vmem:[%s200 + $0xb0] sm:$0x1]
      %v905 = vld [vmem:[%s200 + $0xb4] sm:$0xe]
      %v906 = vld [vmem:[%s200 + $0xb8] sm:$0xf]
      %v907 = vld [vmem:[%s200 + $0xbc] sm:$0x1]
      %vm956 = vcmask 1042432
      %vm957 = vcmask 1046532
      %vm958 = vmor %vm956, %vm957
      %v959 = vrot.slane %v860, 5
      %v960 = vrot.slane %v959, 4
      %v961 = vrot.slane %v861, 5
      %v962 = vsel %vm958, %v960, %v961
      %v963 = vrot.slane %v961, 4
      %v964 = vrot.slane %v862, 5
      %v965 = vsel %vm958, %v963, %v964
      %v966 = vrot.slane %v863, 5
      %v967 = vrot.slane %v966, 4
      %v968 = vrot.slane %v864, 5
      %v969 = vsel %vm958, %v967, %v968
      %v970 = vrot.slane %v968, 4
      %v971 = vrot.slane %v865, 5
      %v972 = vsel %vm958, %v970, %v971
      %v973 = vrot.slane %v866, 5
      %v974 = vrot.slane %v973, 4
      %v975 = vrot.slane %v867, 5
      %v976 = vsel %vm958, %v974, %v975
      %v977 = vrot.slane %v975, 4
      %v978 = vrot.slane %v868, 5
      %v979 = vsel %vm958, %v977, %v978
      %v980 = vrot.slane %v869, 5
      %v981 = vrot.slane %v980, 4
      %v982 = vrot.slane %v870, 5
      %v983 = vsel %vm958, %v981, %v982
      %v984 = vrot.slane %v982, 4
      %v985 = vrot.slane %v871, 5
      %v986 = vsel %vm958, %v984, %v985
      %v987 = vrot.slane %v872, 5
      %v988 = vrot.slane %v987, 4
      %v989 = vrot.slane %v873, 5
      %v990 = vsel %vm958, %v988, %v989
      %v991 = vrot.slane %v989, 4
      %v992 = vrot.slane %v874, 5
      %v993 = vsel %vm958, %v991, %v992
      %v994 = vrot.slane %v875, 5
      %v995 = vrot.slane %v994, 4
      %v996 = vrot.slane %v876, 5
      %v997 = vsel %vm958, %v995, %v996
      %v998 = vrot.slane %v996, 4
      %v999 = vrot.slane %v877, 5
      %v1000 = vsel %vm958, %v998, %v999
      %v1001 = vrot.slane %v878, 5
      %v1002 = vrot.slane %v1001, 4
      %v1003 = vrot.slane %v879, 5
      %v1004 = vsel %vm958, %v1002, %v1003
      %v1005 = vrot.slane %v1003, 4
      %v1006 = vrot.slane %v880, 5
      %v1007 = vsel %vm958, %v1005, %v1006
      %v1008 = vrot.slane %v881, 5
      %v1009 = vrot.slane %v1008, 4
      %v1010 = vrot.slane %v882, 5
      %v1011 = vsel %vm958, %v1009, %v1010
      %v1012 = vrot.slane %v1010, 4
      %v1013 = vrot.slane %v883, 5
      %v1014 = vsel %vm958, %v1012, %v1013
      %v1015 = vrot.slane %v884, 5
      %v1016 = vrot.slane %v1015, 4
      %v1017 = vrot.slane %v885, 5
      %v1018 = vsel %vm958, %v1016, %v1017
      %v1019 = vrot.slane %v1017, 4
      %v1020 = vrot.slane %v886, 5
      %v1021 = vsel %vm958, %v1019, %v1020
      %v1022 = vrot.slane %v887, 5
      %v1023 = vrot.slane %v1022, 4
      %v1024 = vrot.slane %v888, 5
      %v1025 = vsel %vm958, %v1023, %v1024
      %v1026 = vrot.slane %v1024, 4
      %v1027 = vrot.slane %v889, 5
      %v1028 = vsel %vm958, %v1026, %v1027
      %v1029 = vrot.slane %v890, 5
      %v1030 = vrot.slane %v1029, 4
      %v1031 = vrot.slane %v891, 5
      %v1032 = vsel %vm958, %v1030, %v1031
      %v1033 = vrot.slane %v1031, 4
      %v1034 = vrot.slane %v892, 5
      %v1035 = vsel %vm958, %v1033, %v1034
      %v1036 = vrot.slane %v893, 5
      %v1037 = vrot.slane %v1036, 4
      %v1038 = vrot.slane %v894, 5
      %v1039 = vsel %vm958, %v1037, %v1038
      %v1040 = vrot.slane %v1038, 4
      %v1041 = vrot.slane %v895, 5
      %v1042 = vsel %vm958, %v1040, %v1041
      %v1043 = vrot.slane %v896, 5
      %v1044 = vrot.slane %v1043, 4
      %v1045 = vrot.slane %v897, 5
      %v1046 = vsel %vm958, %v1044, %v1045
      %v1047 = vrot.slane %v1045, 4
      %v1048 = vrot.slane %v898, 5
      %v1049 = vsel %vm958, %v1047, %v1048
      %v1050 = vrot.slane %v899, 5
      %v1051 = vrot.slane %v1050, 4
      %v1052 = vrot.slane %v900, 5
      %v1053 = vsel %vm958, %v1051, %v1052
      %v1054 = vrot.slane %v1052, 4
      %v1055 = vrot.slane %v901, 5
      %v1056 = vsel %vm958, %v1054, %v1055
      %v1057 = vrot.slane %v902, 5
      %v1058 = vrot.slane %v1057, 4
      %v1059 = vrot.slane %v903, 5
      %v1060 = vsel %vm958, %v1058, %v1059
      %v1061 = vrot.slane %v1059, 4
      %v1062 = vrot.slane %v904, 5
      %v1063 = vsel %vm958, %v1061, %v1062
      %v1064 = vrot.slane %v905, 5
      %v1065 = vrot.slane %v1064, 4
      %v1066 = vrot.slane %v906, 5
      %v1067 = vsel %vm958, %v1065, %v1066
      %v1068 = vrot.slane %v1066, 4
      %v1069 = vrot.slane %v907, 5
      %v1070 = vsel %vm958, %v1068, %v1069
      %v1071 = vunpack.c.l.b16 %v962
      %v1072 = vunpack.c.l.b16 %v965
      %v1073 = vunpack.c.l.b16 %v969
      %v1074 = vunpack.c.l.b16 %v972
      %v1075 = vunpack.c.l.b16 %v976
      %v1076 = vunpack.c.l.b16 %v979
      %v1077 = vunpack.c.l.b16 %v983
      %v1078 = vunpack.c.l.b16 %v986
      %v1079 = vunpack.c.l.b16 %v990
      %v1080 = vunpack.c.l.b16 %v993
      %v1081 = vunpack.c.l.b16 %v997
      %v1082 = vunpack.c.l.b16 %v1000
      %v1083 = vunpack.c.l.b16 %v1004
      %v1084 = vunpack.c.l.b16 %v1007
      %v1085 = vunpack.c.l.b16 %v1011
      %v1086 = vunpack.c.l.b16 %v1014
      %v1087 = vunpack.c.l.b16 %v1018
      %v1088 = vunpack.c.l.b16 %v1021
      %v1089 = vunpack.c.l.b16 %v1025
      %v1090 = vunpack.c.l.b16 %v1028
      %v1091 = vunpack.c.l.b16 %v1032
      %v1092 = vunpack.c.l.b16 %v1035
      %v1093 = vunpack.c.l.b16 %v1039
      %v1094 = vunpack.c.l.b16 %v1042
      %v1095 = vunpack.c.l.b16 %v1046
      %v1096 = vunpack.c.l.b16 %v1049
      %v1097 = vunpack.c.l.b16 %v1053
      %v1098 = vunpack.c.l.b16 %v1056
      %v1099 = vunpack.c.l.b16 %v1060
      %v1100 = vunpack.c.l.b16 %v1063
      %v1101 = vunpack.c.l.b16 %v1067
      %v1102 = vunpack.c.l.b16 %v1070
      %v1103 = vpack.c.b16 %v1072, %v1071
      %v1104 = vpack.c.b16 %v1074, %v1073
      %v1105 = vpack.c.b16 %v1076, %v1075
      %v1106 = vpack.c.b16 %v1078, %v1077
      %v1107 = vpack.c.b16 %v1080, %v1079
      %v1108 = vpack.c.b16 %v1082, %v1081
      %v1109 = vpack.c.b16 %v1084, %v1083
      %v1110 = vpack.c.b16 %v1086, %v1085
      %v1111 = vpack.c.b16 %v1088, %v1087
      %v1112 = vpack.c.b16 %v1090, %v1089
      %v1113 = vpack.c.b16 %v1092, %v1091
      %v1114 = vpack.c.b16 %v1094, %v1093
      %v1115 = vpack.c.b16 %v1096, %v1095
      %v1116 = vpack.c.b16 %v1098, %v1097
      %v1117 = vpack.c.b16 %v1100, %v1099
      %v1118 = vpack.c.b16 %v1102, %v1101
      %1135 = vst [vmem:[#allocation2 + $0x10] sm:$0xff] %v1103
      %1136 = vst [vmem:[#allocation2 + $0x58] sm:$0xff] %v1104
      %1137 = vst [vmem:[#allocation2 + $0xa0] sm:$0xff] %v1105
      %1138 = vst [vmem:[#allocation2 + $0xe8] sm:$0xff] %v1106
      %1139 = vst [vmem:[#allocation2 + $0x130] sm:$0xff] %v1107
      %1140 = vst [vmem:[#allocation2 + $0x178] sm:$0xff] %v1108
      %1141 = vst [vmem:[#allocation2 + $0x1c0] sm:$0xff] %v1109
      %1142 = vst [vmem:[#allocation2 + $0x208] sm:$0xff] %v1110
      %1143 = vst [vmem:[#allocation2 + $0x250] sm:$0xff] %v1111
      %1144 = vst [vmem:[#allocation2 + $0x298] sm:$0xff] %v1112
      %1145 = vst [vmem:[#allocation2 + $0x2e0] sm:$0xff] %v1113
      %1146 = vst [vmem:[#allocation2 + $0x328] sm:$0xff] %v1114
      %1147 = vst [vmem:[#allocation2 + $0x370] sm:$0xff] %v1115
      %1148 = vst [vmem:[#allocation2 + $0x3b8] sm:$0xff] %v1116
      %1149 = vst [vmem:[#allocation2 + $0x400] sm:$0xff] %v1117
      %1150 = vst [vmem:[#allocation2 + $0x448] sm:$0xff] %v1118
      %s1151 = sadd.s32 %s197, 1
      %s1152 = smul.u32 %s1151, 3
      %s1153 = smul.addr %s1152, 4
      %s1154 = scalar_lea.vmem %s184, %s1153
      %v1155 = vld [vmem:[%s1154] sm:$0xf]
      %v1156 = vld [vmem:[%s1154 + $0x4] sm:$0xf]
      %v1157 = vld [vmem:[%s1154 + $0xc] sm:$0xf]
      %v1158 = vld [vmem:[%s1154 + $0x10] sm:$0xf]
      %v1159 = vld [vmem:[%s1154 + $0x18] sm:$0xf]
      %v1160 = vld [vmem:[%s1154 + $0x1c] sm:$0xf]
      %v1161 = vld [vmem:[%s1154 + $0x24] sm:$0xf]
      %v1162 = vld [vmem:[%s1154 + $0x28] sm:$0xf]
      %v1163 = vld [vmem:[%s1154 + $0x30] sm:$0xf]
      %v1164 = vld [vmem:[%s1154 + $0x34] sm:$0xf]
      %v1165 = vld [vmem:[%s1154 + $0x3c] sm:$0xf]
      %v1166 = vld [vmem:[%s1154 + $0x40] sm:$0xf]
      %v1167 = vld [vmem:[%s1154 + $0x48] sm:$0xf]
      %v1168 = vld [vmem:[%s1154 + $0x4c] sm:$0xf]
      %v1169 = vld [vmem:[%s1154 + $0x54] sm:$0xf]
      %v1170 = vld [vmem:[%s1154 + $0x58] sm:$0xf]
      %v1171 = vld [vmem:[%s1154 + $0x60] sm:$0xf]
      %v1172 = vld [vmem:[%s1154 + $0x64] sm:$0xf]
      %v1173 = vld [vmem:[%s1154 + $0x6c] sm:$0xf]
      %v1174 = vld [vmem:[%s1154 + $0x70] sm:$0xf]
      %v1175 = vld [vmem:[%s1154 + $0x78] sm:$0xf]
      %v1176 = vld [vmem:[%s1154 + $0x7c] sm:$0xf]
      %v1177 = vld [vmem:[%s1154 + $0x84] sm:$0xf]
      %v1178 = vld [vmem:[%s1154 + $0x88] sm:$0xf]
      %v1179 = vld [vmem:[%s1154 + $0x90] sm:$0xf]
      %v1180 = vld [vmem:[%s1154 + $0x94] sm:$0xf]
      %v1181 = vld [vmem:[%s1154 + $0x9c] sm:$0xf]
      %v1182 = vld [vmem:[%s1154 + $0xa0] sm:$0xf]
      %v1183 = vld [vmem:[%s1154 + $0xa8] sm:$0xf]
      %v1184 = vld [vmem:[%s1154 + $0xac] sm:$0xf]
      %v1185 = vld [vmem:[%s1154 + $0xb4] sm:$0xf]
      %v1186 = vld [vmem:[%s1154 + $0xb8] sm:$0xf]
      %v1219 = vunpack.c.l.b16 %v1155
      %v1220 = vunpack.c.l.b16 %v1156
      %v1221 = vunpack.c.l.b16 %v1157
      %v1222 = vunpack.c.l.b16 %v1158
      %v1223 = vunpack.c.l.b16 %v1159
      %v1224 = vunpack.c.l.b16 %v1160
      %v1225 = vunpack.c.l.b16 %v1161
      %v1226 = vunpack.c.l.b16 %v1162
      %v1227 = vunpack.c.l.b16 %v1163
      %v1228 = vunpack.c.l.b16 %v1164
      %v1229 = vunpack.c.l.b16 %v1165
      %v1230 = vunpack.c.l.b16 %v1166
      %v1231 = vunpack.c.l.b16 %v1167
      %v1232 = vunpack.c.l.b16 %v1168
      %v1233 = vunpack.c.l.b16 %v1169
      %v1234 = vunpack.c.l.b16 %v1170
      %v1235 = vunpack.c.l.b16 %v1171
      %v1236 = vunpack.c.l.b16 %v1172
      %v1237 = vunpack.c.l.b16 %v1173
      %v1238 = vunpack.c.l.b16 %v1174
      %v1239 = vunpack.c.l.b16 %v1175
      %v1240 = vunpack.c.l.b16 %v1176
      %v1241 = vunpack.c.l.b16 %v1177
      %v1242 = vunpack.c.l.b16 %v1178
      %v1243 = vunpack.c.l.b16 %v1179
      %v1244 = vunpack.c.l.b16 %v1180
      %v1245 = vunpack.c.l.b16 %v1181
      %v1246 = vunpack.c.l.b16 %v1182
      %v1247 = vunpack.c.l.b16 %v1183
      %v1248 = vunpack.c.l.b16 %v1184
      %v1249 = vunpack.c.l.b16 %v1185
      %v1250 = vunpack.c.l.b16 %v1186
      %v1251 = vpack.c.b16 %v1220, %v1219
      %v1252 = vpack.c.b16 %v1222, %v1221
      %v1253 = vpack.c.b16 %v1224, %v1223
      %v1254 = vpack.c.b16 %v1226, %v1225
      %v1255 = vpack.c.b16 %v1228, %v1227
      %v1256 = vpack.c.b16 %v1230, %v1229
      %v1257 = vpack.c.b16 %v1232, %v1231
      %v1258 = vpack.c.b16 %v1234, %v1233
      %v1259 = vpack.c.b16 %v1236, %v1235
      %v1260 = vpack.c.b16 %v1238, %v1237
      %v1261 = vpack.c.b16 %v1240, %v1239
      %v1262 = vpack.c.b16 %v1242, %v1241
      %v1263 = vpack.c.b16 %v1244, %v1243
      %v1264 = vpack.c.b16 %v1246, %v1245
      %v1265 = vpack.c.b16 %v1248, %v1247
      %v1266 = vpack.c.b16 %v1250, %v1249
      %1283 = vst [vmem:[#allocation2 + $0x18] sm:$0xff] %v1251
      %1284 = vst [vmem:[#allocation2 + $0x60] sm:$0xff] %v1252
      %1285 = vst [vmem:[#allocation2 + $0xa8] sm:$0xff] %v1253
      %1286 = vst [vmem:[#allocation2 + $0xf0] sm:$0xff] %v1254
      %1287 = vst [vmem:[#allocation2 + $0x138] sm:$0xff] %v1255
      %1288 = vst [vmem:[#allocation2 + $0x180] sm:$0xff] %v1256
      %1289 = vst [vmem:[#allocation2 + $0x1c8] sm:$0xff] %v1257
      %1290 = vst [vmem:[#allocation2 + $0x210] sm:$0xff] %v1258
      %1291 = vst [vmem:[#allocation2 + $0x258] sm:$0xff] %v1259
      %1292 = vst [vmem:[#allocation2 + $0x2a0] sm:$0xff] %v1260
      %1293 = vst [vmem:[#allocation2 + $0x2e8] sm:$0xff] %v1261
      %1294 = vst [vmem:[#allocation2 + $0x330] sm:$0xff] %v1262
      %1295 = vst [vmem:[#allocation2 + $0x378] sm:$0xff] %v1263
      %1296 = vst [vmem:[#allocation2 + $0x3c0] sm:$0xff] %v1264
      %1297 = vst [vmem:[#allocation2 + $0x408] sm:$0xff] %v1265
      %1298 = vst [vmem:[#allocation2 + $0x450] sm:$0xff] %v1266
      %v1299 = vld [vmem:[%s1154] sm:$0xf]
      %v1300 = vld [vmem:[%s1154 + $0x4] sm:$0xf]
      %v1301 = vld [vmem:[%s1154 + $0x8] sm:$0x1]
      %v1302 = vld [vmem:[%s1154 + $0xc] sm:$0xf]
      %v1303 = vld [vmem:[%s1154 + $0x10] sm:$0xf]
      %v1304 = vld [vmem:[%s1154 + $0x14] sm:$0x1]
      %v1305 = vld [vmem:[%s1154 + $0x18] sm:$0xf]
      %v1306 = vld [vmem:[%s1154 + $0x1c] sm:$0xf]
      %v1307 = vld [vmem:[%s1154 + $0x20] sm:$0x1]
      %v1308 = vld [vmem:[%s1154 + $0x24] sm:$0xf]
      %v1309 = vld [vmem:[%s1154 + $0x28] sm:$0xf]
      %v1310 = vld [vmem:[%s1154 + $0x2c] sm:$0x1]
      %v1311 = vld [vmem:[%s1154 + $0x30] sm:$0xf]
      %v1312 = vld [vmem:[%s1154 + $0x34] sm:$0xf]
      %v1313 = vld [vmem:[%s1154 + $0x38] sm:$0x1]
      %v1314 = vld [vmem:[%s1154 + $0x3c] sm:$0xf]
      %v1315 = vld [vmem:[%s1154 + $0x40] sm:$0xf]
      %v1316 = vld [vmem:[%s1154 + $0x44] sm:$0x1]
      %v1317 = vld [vmem:[%s1154 + $0x48] sm:$0xf]
      %v1318 = vld [vmem:[%s1154 + $0x4c] sm:$0xf]
      %v1319 = vld [vmem:[%s1154 + $0x50] sm:$0x1]
      %v1320 = vld [vmem:[%s1154 + $0x54] sm:$0xf]
      %v1321 = vld [vmem:[%s1154 + $0x58] sm:$0xf]
      %v1322 = vld [vmem:[%s1154 + $0x5c] sm:$0x1]
      %v1323 = vld [vmem:[%s1154 + $0x60] sm:$0xf]
      %v1324 = vld [vmem:[%s1154 + $0x64] sm:$0xf]
      %v1325 = vld [vmem:[%s1154 + $0x68] sm:$0x1]
      %v1326 = vld [vmem:[%s1154 + $0x6c] sm:$0xf]
      %v1327 = vld [vmem:[%s1154 + $0x70] sm:$0xf]
      %v1328 = vld [vmem:[%s1154 + $0x74] sm:$0x1]
      %v1329 = vld [vmem:[%s1154 + $0x78] sm:$0xf]
      %v1330 = vld [vmem:[%s1154 + $0x7c] sm:$0xf]
      %v1331 = vld [vmem:[%s1154 + $0x80] sm:$0x1]
      %v1332 = vld [vmem:[%s1154 + $0x84] sm:$0xf]
      %v1333 = vld [vmem:[%s1154 + $0x88] sm:$0xf]
      %v1334 = vld [vmem:[%s1154 + $0x8c] sm:$0x1]
      %v1335 = vld [vmem:[%s1154 + $0x90] sm:$0xf]
      %v1336 = vld [vmem:[%s1154 + $0x94] sm:$0xf]
      %v1337 = vld [vmem:[%s1154 + $0x98] sm:$0x1]
      %v1338 = vld [vmem:[%s1154 + $0x9c] sm:$0xf]
      %v1339 = vld [vmem:[%s1154 + $0xa0] sm:$0xf]
      %v1340 = vld [vmem:[%s1154 + $0xa4] sm:$0x1]
      %v1341 = vld [vmem:[%s1154 + $0xa8] sm:$0xf]
      %v1342 = vld [vmem:[%s1154 + $0xac] sm:$0xf]
      %v1343 = vld [vmem:[%s1154 + $0xb0] sm:$0x1]
      %v1344 = vld [vmem:[%s1154 + $0xb4] sm:$0xf]
      %v1345 = vld [vmem:[%s1154 + $0xb8] sm:$0xf]
      %v1346 = vld [vmem:[%s1154 + $0xbc] sm:$0x1]
      %v1348 = vshrl.u32 %v1299, 16
      %v1350 = vrot.slane %v1348, 4
      %v1351 = vshll.u32 %v1299, 16
      %v1353 = vrot.slane %v1351, 5
      %v1354 = vor.u32 %v1350, %v1353
      %v1355 = vrot.slane %v1354, 4
      %v1357 = vshll.u32 %v1300, 16
      %v1359 = vrot.slane %v1357, 5
      %v1360 = vsel %vm395, %v1355, %v1359
      %v1361 = vshrl.u32 %v1300, 16
      %v1363 = vrot.slane %v1361, 4
      %v1364 = vor.u32 %v1363, %v1359
      %v1365 = vrot.slane %v1364, 4
      %v1367 = vshll.u32 %v1301, 16
      %v1369 = vrot.slane %v1367, 5
      %v1370 = vsel %vm395, %v1365, %v1369
      %v1372 = vshrl.u32 %v1302, 16
      %v1374 = vrot.slane %v1372, 4
      %v1375 = vshll.u32 %v1302, 16
      %v1377 = vrot.slane %v1375, 5
      %v1378 = vor.u32 %v1374, %v1377
      %v1379 = vrot.slane %v1378, 4
      %v1381 = vshll.u32 %v1303, 16
      %v1383 = vrot.slane %v1381, 5
      %v1384 = vsel %vm395, %v1379, %v1383
      %v1385 = vshrl.u32 %v1303, 16
      %v1387 = vrot.slane %v1385, 4
      %v1388 = vor.u32 %v1387, %v1383
      %v1389 = vrot.slane %v1388, 4
      %v1391 = vshll.u32 %v1304, 16
      %v1393 = vrot.slane %v1391, 5
      %v1394 = vsel %vm395, %v1389, %v1393
      %v1396 = vshrl.u32 %v1305, 16
      %v1398 = vrot.slane %v1396, 4
      %v1399 = vshll.u32 %v1305, 16
      %v1401 = vrot.slane %v1399, 5
      %v1402 = vor.u32 %v1398, %v1401
      %v1403 = vrot.slane %v1402, 4
      %v1405 = vshll.u32 %v1306, 16
      %v1407 = vrot.slane %v1405, 5
      %v1408 = vsel %vm395, %v1403, %v1407
      %v1409 = vshrl.u32 %v1306, 16
      %v1411 = vrot.slane %v1409, 4
      %v1412 = vor.u32 %v1411, %v1407
      %v1413 = vrot.slane %v1412, 4
      %v1415 = vshll.u32 %v1307, 16
      %v1417 = vrot.slane %v1415, 5
      %v1418 = vsel %vm395, %v1413, %v1417
      %v1420 = vshrl.u32 %v1308, 16
      %v1422 = vrot.slane %v1420, 4
      %v1423 = vshll.u32 %v1308, 16
      %v1425 = vrot.slane %v1423, 5
      %v1426 = vor.u32 %v1422, %v1425
      %v1427 = vrot.slane %v1426, 4
      %v1429 = vshll.u32 %v1309, 16
      %v1431 = vrot.slane %v1429, 5
      %v1432 = vsel %vm395, %v1427, %v1431
      %v1433 = vshrl.u32 %v1309, 16
      %v1435 = vrot.slane %v1433, 4
      %v1436 = vor.u32 %v1435, %v1431
      %v1437 = vrot.slane %v1436, 4
      %v1439 = vshll.u32 %v1310, 16
      %v1441 = vrot.slane %v1439, 5
      %v1442 = vsel %vm395, %v1437, %v1441
      %v1444 = vshrl.u32 %v1311, 16
      %v1446 = vrot.slane %v1444, 4
      %v1447 = vshll.u32 %v1311, 16
      %v1449 = vrot.slane %v1447, 5
      %v1450 = vor.u32 %v1446, %v1449
      %v1451 = vrot.slane %v1450, 4
      %v1453 = vshll.u32 %v1312, 16
      %v1455 = vrot.slane %v1453, 5
      %v1456 = vsel %vm395, %v1451, %v1455
      %v1457 = vshrl.u32 %v1312, 16
      %v1459 = vrot.slane %v1457, 4
      %v1460 = vor.u32 %v1459, %v1455
      %v1461 = vrot.slane %v1460, 4
      %v1463 = vshll.u32 %v1313, 16
      %v1465 = vrot.slane %v1463, 5
      %v1466 = vsel %vm395, %v1461, %v1465
      %v1468 = vshrl.u32 %v1314, 16
      %v1470 = vrot.slane %v1468, 4
      %v1471 = vshll.u32 %v1314, 16
      %v1473 = vrot.slane %v1471, 5
      %v1474 = vor.u32 %v1470, %v1473
      %v1475 = vrot.slane %v1474, 4
      %v1477 = vshll.u32 %v1315, 16
      %v1479 = vrot.slane %v1477, 5
      %v1480 = vsel %vm395, %v1475, %v1479
      %v1481 = vshrl.u32 %v1315, 16
      %v1483 = vrot.slane %v1481, 4
      %v1484 = vor.u32 %v1483, %v1479
      %v1485 = vrot.slane %v1484, 4
      %v1487 = vshll.u32 %v1316, 16
      %v1489 = vrot.slane %v1487, 5
      %v1490 = vsel %vm395, %v1485, %v1489
      %v1492 = vshrl.u32 %v1317, 16
      %v1494 = vrot.slane %v1492, 4
      %v1495 = vshll.u32 %v1317, 16
      %v1497 = vrot.slane %v1495, 5
      %v1498 = vor.u32 %v1494, %v1497
      %v1499 = vrot.slane %v1498, 4
      %v1501 = vshll.u32 %v1318, 16
      %v1503 = vrot.slane %v1501, 5
      %v1504 = vsel %vm395, %v1499, %v1503
      %v1505 = vshrl.u32 %v1318, 16
      %v1507 = vrot.slane %v1505, 4
      %v1508 = vor.u32 %v1507, %v1503
      %v1509 = vrot.slane %v1508, 4
      %v1511 = vshll.u32 %v1319, 16
      %v1513 = vrot.slane %v1511, 5
      %v1514 = vsel %vm395, %v1509, %v1513
      %v1516 = vshrl.u32 %v1320, 16
      %v1518 = vrot.slane %v1516, 4
      %v1519 = vshll.u32 %v1320, 16
      %v1521 = vrot.slane %v1519, 5
      %v1522 = vor.u32 %v1518, %v1521
      %v1523 = vrot.slane %v1522, 4
      %v1525 = vshll.u32 %v1321, 16
      %v1527 = vrot.slane %v1525, 5
      %v1528 = vsel %vm395, %v1523, %v1527
      %v1529 = vshrl.u32 %v1321, 16
      %v1531 = vrot.slane %v1529, 4
      %v1532 = vor.u32 %v1531, %v1527
      %v1533 = vrot.slane %v1532, 4
      %v1535 = vshll.u32 %v1322, 16
      %v1537 = vrot.slane %v1535, 5
      %v1538 = vsel %vm395, %v1533, %v1537
      %v1540 = vshrl.u32 %v1323, 16
      %v1542 = vrot.slane %v1540, 4
      %v1543 = vshll.u32 %v1323, 16
      %v1545 = vrot.slane %v1543, 5
      %v1546 = vor.u32 %v1542, %v1545
      %v1547 = vrot.slane %v1546, 4
      %v1549 = vshll.u32 %v1324, 16
      %v1551 = vrot.slane %v1549, 5
      %v1552 = vsel %vm395, %v1547, %v1551
      %v1553 = vshrl.u32 %v1324, 16
      %v1555 = vrot.slane %v1553, 4
      %v1556 = vor.u32 %v1555, %v1551
      %v1557 = vrot.slane %v1556, 4
      %v1559 = vshll.u32 %v1325, 16
      %v1561 = vrot.slane %v1559, 5
      %v1562 = vsel %vm395, %v1557, %v1561
      %v1564 = vshrl.u32 %v1326, 16
      %v1566 = vrot.slane %v1564, 4
      %v1567 = vshll.u32 %v1326, 16
      %v1569 = vrot.slane %v1567, 5
      %v1570 = vor.u32 %v1566, %v1569
      %v1571 = vrot.slane %v1570, 4
      %v1573 = vshll.u32 %v1327, 16
      %v1575 = vrot.slane %v1573, 5
      %v1576 = vsel %vm395, %v1571, %v1575
      %v1577 = vshrl.u32 %v1327, 16
      %v1579 = vrot.slane %v1577, 4
      %v1580 = vor.u32 %v1579, %v1575
      %v1581 = vrot.slane %v1580, 4
      %v1583 = vshll.u32 %v1328, 16
      %v1585 = vrot.slane %v1583, 5
      %v1586 = vsel %vm395, %v1581, %v1585
      %v1588 = vshrl.u32 %v1329, 16
      %v1590 = vrot.slane %v1588, 4
      %v1591 = vshll.u32 %v1329, 16
      %v1593 = vrot.slane %v1591, 5
      %v1594 = vor.u32 %v1590, %v1593
      %v1595 = vrot.slane %v1594, 4
      %v1597 = vshll.u32 %v1330, 16
      %v1599 = vrot.slane %v1597, 5
      %v1600 = vsel %vm395, %v1595, %v1599
      %v1601 = vshrl.u32 %v1330, 16
      %v1603 = vrot.slane %v1601, 4
      %v1604 = vor.u32 %v1603, %v1599
      %v1605 = vrot.slane %v1604, 4
      %v1607 = vshll.u32 %v1331, 16
      %v1609 = vrot.slane %v1607, 5
      %v1610 = vsel %vm395, %v1605, %v1609
      %v1612 = vshrl.u32 %v1332, 16
      %v1614 = vrot.slane %v1612, 4
      %v1615 = vshll.u32 %v1332, 16
      %v1617 = vrot.slane %v1615, 5
      %v1618 = vor.u32 %v1614, %v1617
      %v1619 = vrot.slane %v1618, 4
      %v1621 = vshll.u32 %v1333, 16
      %v1623 = vrot.slane %v1621, 5
      %v1624 = vsel %vm395, %v1619, %v1623
      %v1625 = vshrl.u32 %v1333, 16
      %v1627 = vrot.slane %v1625, 4
      %v1628 = vor.u32 %v1627, %v1623
      %v1629 = vrot.slane %v1628, 4
      %v1631 = vshll.u32 %v1334, 16
      %v1633 = vrot.slane %v1631, 5
      %v1634 = vsel %vm395, %v1629, %v1633
      %v1636 = vshrl.u32 %v1335, 16
      %v1638 = vrot.slane %v1636, 4
      %v1639 = vshll.u32 %v1335, 16
      %v1641 = vrot.slane %v1639, 5
      %v1642 = vor.u32 %v1638, %v1641
      %v1643 = vrot.slane %v1642, 4
      %v1645 = vshll.u32 %v1336, 16
      %v1647 = vrot.slane %v1645, 5
      %v1648 = vsel %vm395, %v1643, %v1647
      %v1649 = vshrl.u32 %v1336, 16
      %v1651 = vrot.slane %v1649, 4
      %v1652 = vor.u32 %v1651, %v1647
      %v1653 = vrot.slane %v1652, 4
      %v1655 = vshll.u32 %v1337, 16
      %v1657 = vrot.slane %v1655, 5
      %v1658 = vsel %vm395, %v1653, %v1657
      %v1660 = vshrl.u32 %v1338, 16
      %v1662 = vrot.slane %v1660, 4
      %v1663 = vshll.u32 %v1338, 16
      %v1665 = vrot.slane %v1663, 5
      %v1666 = vor.u32 %v1662, %v1665
      %v1667 = vrot.slane %v1666, 4
      %v1669 = vshll.u32 %v1339, 16
      %v1671 = vrot.slane %v1669, 5
      %v1672 = vsel %vm395, %v1667, %v1671
      %v1673 = vshrl.u32 %v1339, 16
      %v1675 = vrot.slane %v1673, 4
      %v1676 = vor.u32 %v1675, %v1671
      %v1677 = vrot.slane %v1676, 4
      %v1679 = vshll.u32 %v1340, 16
      %v1681 = vrot.slane %v1679, 5
      %v1682 = vsel %vm395, %v1677, %v1681
      %v1684 = vshrl.u32 %v1341, 16
      %v1686 = vrot.slane %v1684, 4
      %v1687 = vshll.u32 %v1341, 16
      %v1689 = vrot.slane %v1687, 5
      %v1690 = vor.u32 %v1686, %v1689
      %v1691 = vrot.slane %v1690, 4
      %v1693 = vshll.u32 %v1342, 16
      %v1695 = vrot.slane %v1693, 5
      %v1696 = vsel %vm395, %v1691, %v1695
      %v1697 = vshrl.u32 %v1342, 16
      %v1699 = vrot.slane %v1697, 4
      %v1700 = vor.u32 %v1699, %v1695
      %v1701 = vrot.slane %v1700, 4
      %v1703 = vshll.u32 %v1343, 16
      %v1705 = vrot.slane %v1703, 5
      %v1706 = vsel %vm395, %v1701, %v1705
      %v1708 = vshrl.u32 %v1344, 16
      %v1710 = vrot.slane %v1708, 4
      %v1711 = vshll.u32 %v1344, 16
      %v1713 = vrot.slane %v1711, 5
      %v1714 = vor.u32 %v1710, %v1713
      %v1715 = vrot.slane %v1714, 4
      %v1717 = vshll.u32 %v1345, 16
      %v1719 = vrot.slane %v1717, 5
      %v1720 = vsel %vm395, %v1715, %v1719
      %v1721 = vshrl.u32 %v1345, 16
      %v1723 = vrot.slane %v1721, 4
      %v1724 = vor.u32 %v1723, %v1719
      %v1725 = vrot.slane %v1724, 4
      %v1727 = vshll.u32 %v1346, 16
      %v1729 = vrot.slane %v1727, 5
      %v1730 = vsel %vm395, %v1725, %v1729
      %v1731 = vunpack.c.l.b16 %v1360
      %v1732 = vunpack.c.l.b16 %v1370
      %v1733 = vunpack.c.l.b16 %v1384
      %v1734 = vunpack.c.l.b16 %v1394
      %v1735 = vunpack.c.l.b16 %v1408
      %v1736 = vunpack.c.l.b16 %v1418
      %v1737 = vunpack.c.l.b16 %v1432
      %v1738 = vunpack.c.l.b16 %v1442
      %v1739 = vunpack.c.l.b16 %v1456
      %v1740 = vunpack.c.l.b16 %v1466
      %v1741 = vunpack.c.l.b16 %v1480
      %v1742 = vunpack.c.l.b16 %v1490
      %v1743 = vunpack.c.l.b16 %v1504
      %v1744 = vunpack.c.l.b16 %v1514
      %v1745 = vunpack.c.l.b16 %v1528
      %v1746 = vunpack.c.l.b16 %v1538
      %v1747 = vunpack.c.l.b16 %v1552
      %v1748 = vunpack.c.l.b16 %v1562
      %v1749 = vunpack.c.l.b16 %v1576
      %v1750 = vunpack.c.l.b16 %v1586
      %v1751 = vunpack.c.l.b16 %v1600
      %v1752 = vunpack.c.l.b16 %v1610
      %v1753 = vunpack.c.l.b16 %v1624
      %v1754 = vunpack.c.l.b16 %v1634
      %v1755 = vunpack.c.l.b16 %v1648
      %v1756 = vunpack.c.l.b16 %v1658
      %v1757 = vunpack.c.l.b16 %v1672
      %v1758 = vunpack.c.l.b16 %v1682
      %v1759 = vunpack.c.l.b16 %v1696
      %v1760 = vunpack.c.l.b16 %v1706
      %v1761 = vunpack.c.l.b16 %v1720
      %v1762 = vunpack.c.l.b16 %v1730
      %v1763 = vpack.c.b16 %v1732, %v1731
      %v1764 = vpack.c.b16 %v1734, %v1733
      %v1765 = vpack.c.b16 %v1736, %v1735
      %v1766 = vpack.c.b16 %v1738, %v1737
      %v1767 = vpack.c.b16 %v1740, %v1739
      %v1768 = vpack.c.b16 %v1742, %v1741
      %v1769 = vpack.c.b16 %v1744, %v1743
      %v1770 = vpack.c.b16 %v1746, %v1745
      %v1771 = vpack.c.b16 %v1748, %v1747
      %v1772 = vpack.c.b16 %v1750, %v1749
      %v1773 = vpack.c.b16 %v1752, %v1751
      %v1774 = vpack.c.b16 %v1754, %v1753
      %v1775 = vpack.c.b16 %v1756, %v1755
      %v1776 = vpack.c.b16 %v1758, %v1757
      %v1777 = vpack.c.b16 %v1760, %v1759
      %v1778 = vpack.c.b16 %v1762, %v1761
      %1795 = vst [vmem:[#allocation2 + $0x20] sm:$0xff] %v1763
      %1796 = vst [vmem:[#allocation2 + $0x68] sm:$0xff] %v1764
      %1797 = vst [vmem:[#allocation2 + $0xb0] sm:$0xff] %v1765
      %1798 = vst [vmem:[#allocation2 + $0xf8] sm:$0xff] %v1766
      %1799 = vst [vmem:[#allocation2 + $0x140] sm:$0xff] %v1767
      %1800 = vst [vmem:[#allocation2 + $0x188] sm:$0xff] %v1768
      %1801 = vst [vmem:[#allocation2 + $0x1d0] sm:$0xff] %v1769
      %1802 = vst [vmem:[#allocation2 + $0x218] sm:$0xff] %v1770
      %1803 = vst [vmem:[#allocation2 + $0x260] sm:$0xff] %v1771
      %1804 = vst [vmem:[#allocation2 + $0x2a8] sm:$0xff] %v1772
      %1805 = vst [vmem:[#allocation2 + $0x2f0] sm:$0xff] %v1773
      %1806 = vst [vmem:[#allocation2 + $0x338] sm:$0xff] %v1774
      %1807 = vst [vmem:[#allocation2 + $0x380] sm:$0xff] %v1775
      %1808 = vst [vmem:[#allocation2 + $0x3c8] sm:$0xff] %v1776
      %1809 = vst [vmem:[#allocation2 + $0x410] sm:$0xff] %v1777
      %1810 = vst [vmem:[#allocation2 + $0x458] sm:$0xff] %v1778
      %v1811 = vld [vmem:[%s1154] sm:$0xe]
      %v1812 = vld [vmem:[%s1154 + $0x4] sm:$0xf]
      %v1813 = vld [vmem:[%s1154 + $0x8] sm:$0x1]
      %v1814 = vld [vmem:[%s1154 + $0xc] sm:$0xe]
      %v1815 = vld [vmem:[%s1154 + $0x10] sm:$0xf]
      %v1816 = vld [vmem:[%s1154 + $0x14] sm:$0x1]
      %v1817 = vld [vmem:[%s1154 + $0x18] sm:$0xe]
      %v1818 = vld [vmem:[%s1154 + $0x1c] sm:$0xf]
      %v1819 = vld [vmem:[%s1154 + $0x20] sm:$0x1]
      %v1820 = vld [vmem:[%s1154 + $0x24] sm:$0xe]
      %v1821 = vld [vmem:[%s1154 + $0x28] sm:$0xf]
      %v1822 = vld [vmem:[%s1154 + $0x2c] sm:$0x1]
      %v1823 = vld [vmem:[%s1154 + $0x30] sm:$0xe]
      %v1824 = vld [vmem:[%s1154 + $0x34] sm:$0xf]
      %v1825 = vld [vmem:[%s1154 + $0x38] sm:$0x1]
      %v1826 = vld [vmem:[%s1154 + $0x3c] sm:$0xe]
      %v1827 = vld [vmem:[%s1154 + $0x40] sm:$0xf]
      %v1828 = vld [vmem:[%s1154 + $0x44] sm:$0x1]
      %v1829 = vld [vmem:[%s1154 + $0x48] sm:$0xe]
      %v1830 = vld [vmem:[%s1154 + $0x4c] sm:$0xf]
      %v1831 = vld [vmem:[%s1154 + $0x50] sm:$0x1]
      %v1832 = vld [vmem:[%s1154 + $0x54] sm:$0xe]
      %v1833 = vld [vmem:[%s1154 + $0x58] sm:$0xf]
      %v1834 = vld [vmem:[%s1154 + $0x5c] sm:$0x1]
      %v1835 = vld [vmem:[%s1154 + $0x60] sm:$0xe]
      %v1836 = vld [vmem:[%s1154 + $0x64] sm:$0xf]
      %v1837 = vld [vmem:[%s1154 + $0x68] sm:$0x1]
      %v1838 = vld [vmem:[%s1154 + $0x6c] sm:$0xe]
      %v1839 = vld [vmem:[%s1154 + $0x70] sm:$0xf]
      %v1840 = vld [vmem:[%s1154 + $0x74] sm:$0x1]
      %v1841 = vld [vmem:[%s1154 + $0x78] sm:$0xe]
      %v1842 = vld [vmem:[%s1154 + $0x7c] sm:$0xf]
      %v1843 = vld [vmem:[%s1154 + $0x80] sm:$0x1]
      %v1844 = vld [vmem:[%s1154 + $0x84] sm:$0xe]
      %v1845 = vld [vmem:[%s1154 + $0x88] sm:$0xf]
      %v1846 = vld [vmem:[%s1154 + $0x8c] sm:$0x1]
      %v1847 = vld [vmem:[%s1154 + $0x90] sm:$0xe]
      %v1848 = vld [vmem:[%s1154 + $0x94] sm:$0xf]
      %v1849 = vld [vmem:[%s1154 + $0x98] sm:$0x1]
      %v1850 = vld [vmem:[%s1154 + $0x9c] sm:$0xe]
      %v1851 = vld [vmem:[%s1154 + $0xa0] sm:$0xf]
      %v1852 = vld [vmem:[%s1154 + $0xa4] sm:$0x1]
      %v1853 = vld [vmem:[%s1154 + $0xa8] sm:$0xe]
      %v1854 = vld [vmem:[%s1154 + $0xac] sm:$0xf]
      %v1855 = vld [vmem:[%s1154 + $0xb0] sm:$0x1]
      %v1856 = vld [vmem:[%s1154 + $0xb4] sm:$0xe]
      %v1857 = vld [vmem:[%s1154 + $0xb8] sm:$0xf]
      %v1858 = vld [vmem:[%s1154 + $0xbc] sm:$0x1]
      %v1907 = vrot.slane %v1811, 5
      %v1908 = vrot.slane %v1907, 4
      %v1909 = vrot.slane %v1812, 5
      %v1910 = vsel %vm958, %v1908, %v1909
      %v1911 = vrot.slane %v1909, 4
      %v1912 = vrot.slane %v1813, 5
      %v1913 = vsel %vm958, %v1911, %v1912
      %v1914 = vrot.slane %v1814, 5
      %v1915 = vrot.slane %v1914, 4
      %v1916 = vrot.slane %v1815, 5
      %v1917 = vsel %vm958, %v1915, %v1916
      %v1918 = vrot.slane %v1916, 4
      %v1919 = vrot.slane %v1816, 5
      %v1920 = vsel %vm958, %v1918, %v1919
      %v1921 = vrot.slane %v1817, 5
      %v1922 = vrot.slane %v1921, 4
      %v1923 = vrot.slane %v1818, 5
      %v1924 = vsel %vm958, %v1922, %v1923
      %v1925 = vrot.slane %v1923, 4
      %v1926 = vrot.slane %v1819, 5
      %v1927 = vsel %vm958, %v1925, %v1926
      %v1928 = vrot.slane %v1820, 5
      %v1929 = vrot.slane %v1928, 4
      %v1930 = vrot.slane %v1821, 5
      %v1931 = vsel %vm958, %v1929, %v1930
      %v1932 = vrot.slane %v1930, 4
      %v1933 = vrot.slane %v1822, 5
      %v1934 = vsel %vm958, %v1932, %v1933
      %v1935 = vrot.slane %v1823, 5
      %v1936 = vrot.slane %v1935, 4
      %v1937 = vrot.slane %v1824, 5
      %v1938 = vsel %vm958, %v1936, %v1937
      %v1939 = vrot.slane %v1937, 4
      %v1940 = vrot.slane %v1825, 5
      %v1941 = vsel %vm958, %v1939, %v1940
      %v1942 = vrot.slane %v1826, 5
      %v1943 = vrot.slane %v1942, 4
      %v1944 = vrot.slane %v1827, 5
      %v1945 = vsel %vm958, %v1943, %v1944
      %v1946 = vrot.slane %v1944, 4
      %v1947 = vrot.slane %v1828, 5
      %v1948 = vsel %vm958, %v1946, %v1947
      %v1949 = vrot.slane %v1829, 5
      %v1950 = vrot.slane %v1949, 4
      %v1951 = vrot.slane %v1830, 5
      %v1952 = vsel %vm958, %v1950, %v1951
      %v1953 = vrot.slane %v1951, 4
      %v1954 = vrot.slane %v1831, 5
      %v1955 = vsel %vm958, %v1953, %v1954
      %v1956 = vrot.slane %v1832, 5
      %v1957 = vrot.slane %v1956, 4
      %v1958 = vrot.slane %v1833, 5
      %v1959 = vsel %vm958, %v1957, %v1958
      %v1960 = vrot.slane %v1958, 4
      %v1961 = vrot.slane %v1834, 5
      %v1962 = vsel %vm958, %v1960, %v1961
      %v1963 = vrot.slane %v1835, 5
      %v1964 = vrot.slane %v1963, 4
      %v1965 = vrot.slane %v1836, 5
      %v1966 = vsel %vm958, %v1964, %v1965
      %v1967 = vrot.slane %v1965, 4
      %v1968 = vrot.slane %v1837, 5
      %v1969 = vsel %vm958, %v1967, %v1968
      %v1970 = vrot.slane %v1838, 5
      %v1971 = vrot.slane %v1970, 4
      %v1972 = vrot.slane %v1839, 5
      %v1973 = vsel %vm958, %v1971, %v1972
      %v1974 = vrot.slane %v1972, 4
      %v1975 = vrot.slane %v1840, 5
      %v1976 = vsel %vm958, %v1974, %v1975
      %v1977 = vrot.slane %v1841, 5
      %v1978 = vrot.slane %v1977, 4
      %v1979 = vrot.slane %v1842, 5
      %v1980 = vsel %vm958, %v1978, %v1979
      %v1981 = vrot.slane %v1979, 4
      %v1982 = vrot.slane %v1843, 5
      %v1983 = vsel %vm958, %v1981, %v1982
      %v1984 = vrot.slane %v1844, 5
      %v1985 = vrot.slane %v1984, 4
      %v1986 = vrot.slane %v1845, 5
      %v1987 = vsel %vm958, %v1985, %v1986
      %v1988 = vrot.slane %v1986, 4
      %v1989 = vrot.slane %v1846, 5
      %v1990 = vsel %vm958, %v1988, %v1989
      %v1991 = vrot.slane %v1847, 5
      %v1992 = vrot.slane %v1991, 4
      %v1993 = vrot.slane %v1848, 5
      %v1994 = vsel %vm958, %v1992, %v1993
      %v1995 = vrot.slane %v1993, 4
      %v1996 = vrot.slane %v1849, 5
      %v1997 = vsel %vm958, %v1995, %v1996
      %v1998 = vrot.slane %v1850, 5
      %v1999 = vrot.slane %v1998, 4
      %v2000 = vrot.slane %v1851, 5
      %v2001 = vsel %vm958, %v1999, %v2000
      %v2002 = vrot.slane %v2000, 4
      %v2003 = vrot.slane %v1852, 5
      %v2004 = vsel %vm958, %v2002, %v2003
      %v2005 = vrot.slane %v1853, 5
      %v2006 = vrot.slane %v2005, 4
      %v2007 = vrot.slane %v1854, 5
      %v2008 = vsel %vm958, %v2006, %v2007
      %v2009 = vrot.slane %v2007, 4
      %v2010 = vrot.slane %v1855, 5
      %v2011 = vsel %vm958, %v2009, %v2010
      %v2012 = vrot.slane %v1856, 5
      %v2013 = vrot.slane %v2012, 4
      %v2014 = vrot.slane %v1857, 5
      %v2015 = vsel %vm958, %v2013, %v2014
      %v2016 = vrot.slane %v2014, 4
      %v2017 = vrot.slane %v1858, 5
      %v2018 = vsel %vm958, %v2016, %v2017
      %v2019 = vunpack.c.l.b16 %v1910
      %v2020 = vunpack.c.l.b16 %v1913
      %v2021 = vunpack.c.l.b16 %v1917
      %v2022 = vunpack.c.l.b16 %v1920
      %v2023 = vunpack.c.l.b16 %v1924
      %v2024 = vunpack.c.l.b16 %v1927
      %v2025 = vunpack.c.l.b16 %v1931
      %v2026 = vunpack.c.l.b16 %v1934
      %v2027 = vunpack.c.l.b16 %v1938
      %v2028 = vunpack.c.l.b16 %v1941
      %v2029 = vunpack.c.l.b16 %v1945
      %v2030 = vunpack.c.l.b16 %v1948
      %v2031 = vunpack.c.l.b16 %v1952
      %v2032 = vunpack.c.l.b16 %v1955
      %v2033 = vunpack.c.l.b16 %v1959
      %v2034 = vunpack.c.l.b16 %v1962
      %v2035 = vunpack.c.l.b16 %v1966
      %v2036 = vunpack.c.l.b16 %v1969
      %v2037 = vunpack.c.l.b16 %v1973
      %v2038 = vunpack.c.l.b16 %v1976
      %v2039 = vunpack.c.l.b16 %v1980
      %v2040 = vunpack.c.l.b16 %v1983
      %v2041 = vunpack.c.l.b16 %v1987
      %v2042 = vunpack.c.l.b16 %v1990
      %v2043 = vunpack.c.l.b16 %v1994
      %v2044 = vunpack.c.l.b16 %v1997
      %v2045 = vunpack.c.l.b16 %v2001
      %v2046 = vunpack.c.l.b16 %v2004
      %v2047 = vunpack.c.l.b16 %v2008
      %v2048 = vunpack.c.l.b16 %v2011
      %v2049 = vunpack.c.l.b16 %v2015
      %v2050 = vunpack.c.l.b16 %v2018
      %v2051 = vpack.c.b16 %v2020, %v2019
      %v2052 = vpack.c.b16 %v2022, %v2021
      %v2053 = vpack.c.b16 %v2024, %v2023
      %v2054 = vpack.c.b16 %v2026, %v2025
      %v2055 = vpack.c.b16 %v2028, %v2027
      %v2056 = vpack.c.b16 %v2030, %v2029
      %v2057 = vpack.c.b16 %v2032, %v2031
      %v2058 = vpack.c.b16 %v2034, %v2033
      %v2059 = vpack.c.b16 %v2036, %v2035
      %v2060 = vpack.c.b16 %v2038, %v2037
      %v2061 = vpack.c.b16 %v2040, %v2039
      %v2062 = vpack.c.b16 %v2042, %v2041
      %v2063 = vpack.c.b16 %v2044, %v2043
      %v2064 = vpack.c.b16 %v2046, %v2045
      %v2065 = vpack.c.b16 %v2048, %v2047
      %v2066 = vpack.c.b16 %v2050, %v2049
      %2083 = vst [vmem:[#allocation2 + $0x28] sm:$0xff] %v2051
      %2084 = vst [vmem:[#allocation2 + $0x70] sm:$0xff] %v2052
      %2085 = vst [vmem:[#allocation2 + $0xb8] sm:$0xff] %v2053
      %2086 = vst [vmem:[#allocation2 + $0x100] sm:$0xff] %v2054
      %2087 = vst [vmem:[#allocation2 + $0x148] sm:$0xff] %v2055
      %2088 = vst [vmem:[#allocation2 + $0x190] sm:$0xff] %v2056
      %2089 = vst [vmem:[#allocation2 + $0x1d8] sm:$0xff] %v2057
      %2090 = vst [vmem:[#allocation2 + $0x220] sm:$0xff] %v2058
      %2091 = vst [vmem:[#allocation2 + $0x268] sm:$0xff] %v2059
      %2092 = vst [vmem:[#allocation2 + $0x2b0] sm:$0xff] %v2060
      %2093 = vst [vmem:[#allocation2 + $0x2f8] sm:$0xff] %v2061
      %2094 = vst [vmem:[#allocation2 + $0x340] sm:$0xff] %v2062
      %2095 = vst [vmem:[#allocation2 + $0x388] sm:$0xff] %v2063
      %2096 = vst [vmem:[#allocation2 + $0x3d0] sm:$0xff] %v2064
      %2097 = vst [vmem:[#allocation2 + $0x418] sm:$0xff] %v2065
      %2098 = vst [vmem:[#allocation2 + $0x460] sm:$0xff] %v2066
      %s2099 = sadd.s32 %s197, 2
      %s2100 = smul.u32 %s2099, 3
      %s2101 = smul.addr %s2100, 4
      %s2102 = scalar_lea.vmem %s184, %s2101
      %v2103 = vld [vmem:[%s2102] sm:$0xf]
      %v2104 = vld [vmem:[%s2102 + $0x4] sm:$0xf]
      %v2105 = vld [vmem:[%s2102 + $0xc] sm:$0xf]
      %v2106 = vld [vmem:[%s2102 + $0x10] sm:$0xf]
      %v2107 = vld [vmem:[%s2102 + $0x18] sm:$0xf]
      %v2108 = vld [vmem:[%s2102 + $0x1c] sm:$0xf]
      %v2109 = vld [vmem:[%s2102 + $0x24] sm:$0xf]
      %v2110 = vld [vmem:[%s2102 + $0x28] sm:$0xf]
      %v2111 = vld [vmem:[%s2102 + $0x30] sm:$0xf]
      %v2112 = vld [vmem:[%s2102 + $0x34] sm:$0xf]
      %v2113 = vld [vmem:[%s2102 + $0x3c] sm:$0xf]
      %v2114 = vld [vmem:[%s2102 + $0x40] sm:$0xf]
      %v2115 = vld [vmem:[%s2102 + $0x48] sm:$0xf]
      %v2116 = vld [vmem:[%s2102 + $0x4c] sm:$0xf]
      %v2117 = vld [vmem:[%s2102 + $0x54] sm:$0xf]
      %v2118 = vld [vmem:[%s2102 + $0x58] sm:$0xf]
      %v2119 = vld [vmem:[%s2102 + $0x60] sm:$0xf]
      %v2120 = vld [vmem:[%s2102 + $0x64] sm:$0xf]
      %v2121 = vld [vmem:[%s2102 + $0x6c] sm:$0xf]
      %v2122 = vld [vmem:[%s2102 + $0x70] sm:$0xf]
      %v2123 = vld [vmem:[%s2102 + $0x78] sm:$0xf]
      %v2124 = vld [vmem:[%s2102 + $0x7c] sm:$0xf]
      %v2125 = vld [vmem:[%s2102 + $0x84] sm:$0xf]
      %v2126 = vld [vmem:[%s2102 + $0x88] sm:$0xf]
      %v2127 = vld [vmem:[%s2102 + $0x90] sm:$0xf]
      %v2128 = vld [vmem:[%s2102 + $0x94] sm:$0xf]
      %v2129 = vld [vmem:[%s2102 + $0x9c] sm:$0xf]
      %v2130 = vld [vmem:[%s2102 + $0xa0] sm:$0xf]
      %v2131 = vld [vmem:[%s2102 + $0xa8] sm:$0xf]
      %v2132 = vld [vmem:[%s2102 + $0xac] sm:$0xf]
      %v2133 = vld [vmem:[%s2102 + $0xb4] sm:$0xf]
      %v2134 = vld [vmem:[%s2102 + $0xb8] sm:$0xf]
      %v2167 = vunpack.c.l.b16 %v2103
      %v2168 = vunpack.c.l.b16 %v2104
      %v2169 = vunpack.c.l.b16 %v2105
      %v2170 = vunpack.c.l.b16 %v2106
      %v2171 = vunpack.c.l.b16 %v2107
      %v2172 = vunpack.c.l.b16 %v2108
      %v2173 = vunpack.c.l.b16 %v2109
      %v2174 = vunpack.c.l.b16 %v2110
      %v2175 = vunpack.c.l.b16 %v2111
      %v2176 = vunpack.c.l.b16 %v2112
      %v2177 = vunpack.c.l.b16 %v2113
      %v2178 = vunpack.c.l.b16 %v2114
      %v2179 = vunpack.c.l.b16 %v2115
      %v2180 = vunpack.c.l.b16 %v2116
      %v2181 = vunpack.c.l.b16 %v2117
      %v2182 = vunpack.c.l.b16 %v2118
      %v2183 = vunpack.c.l.b16 %v2119
      %v2184 = vunpack.c.l.b16 %v2120
      %v2185 = vunpack.c.l.b16 %v2121
      %v2186 = vunpack.c.l.b16 %v2122
      %v2187 = vunpack.c.l.b16 %v2123
      %v2188 = vunpack.c.l.b16 %v2124
      %v2189 = vunpack.c.l.b16 %v2125
      %v2190 = vunpack.c.l.b16 %v2126
      %v2191 = vunpack.c.l.b16 %v2127
      %v2192 = vunpack.c.l.b16 %v2128
      %v2193 = vunpack.c.l.b16 %v2129
      %v2194 = vunpack.c.l.b16 %v2130
      %v2195 = vunpack.c.l.b16 %v2131
      %v2196 = vunpack.c.l.b16 %v2132
      %v2197 = vunpack.c.l.b16 %v2133
      %v2198 = vunpack.c.l.b16 %v2134
      %v2199 = vpack.c.b16 %v2168, %v2167
      %v2200 = vpack.c.b16 %v2170, %v2169
      %v2201 = vpack.c.b16 %v2172, %v2171
      %v2202 = vpack.c.b16 %v2174, %v2173
      %v2203 = vpack.c.b16 %v2176, %v2175
      %v2204 = vpack.c.b16 %v2178, %v2177
      %v2205 = vpack.c.b16 %v2180, %v2179
      %v2206 = vpack.c.b16 %v2182, %v2181
      %v2207 = vpack.c.b16 %v2184, %v2183
      %v2208 = vpack.c.b16 %v2186, %v2185
      %v2209 = vpack.c.b16 %v2188, %v2187
      %v2210 = vpack.c.b16 %v2190, %v2189
      %v2211 = vpack.c.b16 %v2192, %v2191
      %v2212 = vpack.c.b16 %v2194, %v2193
      %v2213 = vpack.c.b16 %v2196, %v2195
      %v2214 = vpack.c.b16 %v2198, %v2197
      %2231 = vst [vmem:[#allocation2 + $0x30] sm:$0xff] %v2199
      %2232 = vst [vmem:[#allocation2 + $0x78] sm:$0xff] %v2200
      %2233 = vst [vmem:[#allocation2 + $0xc0] sm:$0xff] %v2201
      %2234 = vst [vmem:[#allocation2 + $0x108] sm:$0xff] %v2202
      %2235 = vst [vmem:[#allocation2 + $0x150] sm:$0xff] %v2203
      %2236 = vst [vmem:[#allocation2 + $0x198] sm:$0xff] %v2204
      %2237 = vst [vmem:[#allocation2 + $0x1e0] sm:$0xff] %v2205
      %2238 = vst [vmem:[#allocation2 + $0x228] sm:$0xff] %v2206
      %2239 = vst [vmem:[#allocation2 + $0x270] sm:$0xff] %v2207
      %2240 = vst [vmem:[#allocation2 + $0x2b8] sm:$0xff] %v2208
      %2241 = vst [vmem:[#allocation2 + $0x300] sm:$0xff] %v2209
      %2242 = vst [vmem:[#allocation2 + $0x348] sm:$0xff] %v2210
      %2243 = vst [vmem:[#allocation2 + $0x390] sm:$0xff] %v2211
      %2244 = vst [vmem:[#allocation2 + $0x3d8] sm:$0xff] %v2212
      %2245 = vst [vmem:[#allocation2 + $0x420] sm:$0xff] %v2213
      %2246 = vst [vmem:[#allocation2 + $0x468] sm:$0xff] %v2214
      %v2247 = vld [vmem:[%s2102] sm:$0xf]
      %v2248 = vld [vmem:[%s2102 + $0x4] sm:$0xf]
      %v2249 = vld [vmem:[%s2102 + $0x8] sm:$0x1]
      %v2250 = vld [vmem:[%s2102 + $0xc] sm:$0xf]
      %v2251 = vld [vmem:[%s2102 + $0x10] sm:$0xf]
      %v2252 = vld [vmem:[%s2102 + $0x14] sm:$0x1]
      %v2253 = vld [vmem:[%s2102 + $0x18] sm:$0xf]
      %v2254 = vld [vmem:[%s2102 + $0x1c] sm:$0xf]
      %v2255 = vld [vmem:[%s2102 + $0x20] sm:$0x1]
      %v2256 = vld [vmem:[%s2102 + $0x24] sm:$0xf]
      %v2257 = vld [vmem:[%s2102 + $0x28] sm:$0xf]
      %v2258 = vld [vmem:[%s2102 + $0x2c] sm:$0x1]
      %v2259 = vld [vmem:[%s2102 + $0x30] sm:$0xf]
      %v2260 = vld [vmem:[%s2102 + $0x34] sm:$0xf]
      %v2261 = vld [vmem:[%s2102 + $0x38] sm:$0x1]
      %v2262 = vld [vmem:[%s2102 + $0x3c] sm:$0xf]
      %v2263 = vld [vmem:[%s2102 + $0x40] sm:$0xf]
      %v2264 = vld [vmem:[%s2102 + $0x44] sm:$0x1]
      %v2265 = vld [vmem:[%s2102 + $0x48] sm:$0xf]
      %v2266 = vld [vmem:[%s2102 + $0x4c] sm:$0xf]
      %v2267 = vld [vmem:[%s2102 + $0x50] sm:$0x1]
      %v2268 = vld [vmem:[%s2102 + $0x54] sm:$0xf]
      %v2269 = vld [vmem:[%s2102 + $0x58] sm:$0xf]
      %v2270 = vld [vmem:[%s2102 + $0x5c] sm:$0x1]
      %v2271 = vld [vmem:[%s2102 + $0x60] sm:$0xf]
      %v2272 = vld [vmem:[%s2102 + $0x64] sm:$0xf]
      %v2273 = vld [vmem:[%s2102 + $0x68] sm:$0x1]
      %v2274 = vld [vmem:[%s2102 + $0x6c] sm:$0xf]
      %v2275 = vld [vmem:[%s2102 + $0x70] sm:$0xf]
      %v2276 = vld [vmem:[%s2102 + $0x74] sm:$0x1]
      %v2277 = vld [vmem:[%s2102 + $0x78] sm:$0xf]
      %v2278 = vld [vmem:[%s2102 + $0x7c] sm:$0xf]
      %v2279 = vld [vmem:[%s2102 + $0x80] sm:$0x1]
      %v2280 = vld [vmem:[%s2102 + $0x84] sm:$0xf]
      %v2281 = vld [vmem:[%s2102 + $0x88] sm:$0xf]
      %v2282 = vld [vmem:[%s2102 + $0x8c] sm:$0x1]
      %v2283 = vld [vmem:[%s2102 + $0x90] sm:$0xf]
      %v2284 = vld [vmem:[%s2102 + $0x94] sm:$0xf]
      %v2285 = vld [vmem:[%s2102 + $0x98] sm:$0x1]
      %v2286 = vld [vmem:[%s2102 + $0x9c] sm:$0xf]
      %v2287 = vld [vmem:[%s2102 + $0xa0] sm:$0xf]
      %v2288 = vld [vmem:[%s2102 + $0xa4] sm:$0x1]
      %v2289 = vld [vmem:[%s2102 + $0xa8] sm:$0xf]
      %v2290 = vld [vmem:[%s2102 + $0xac] sm:$0xf]
      %v2291 = vld [vmem:[%s2102 + $0xb0] sm:$0x1]
      %v2292 = vld [vmem:[%s2102 + $0xb4] sm:$0xf]
      %v2293 = vld [vmem:[%s2102 + $0xb8] sm:$0xf]
      %v2294 = vld [vmem:[%s2102 + $0xbc] sm:$0x1]
      %v2296 = vshrl.u32 %v2247, 16
      %v2298 = vrot.slane %v2296, 4
      %v2299 = vshll.u32 %v2247, 16
      %v2301 = vrot.slane %v2299, 5
      %v2302 = vor.u32 %v2298, %v2301
      %v2303 = vrot.slane %v2302, 4
      %v2305 = vshll.u32 %v2248, 16
      %v2307 = vrot.slane %v2305, 5
      %v2308 = vsel %vm395, %v2303, %v2307
      %v2309 = vshrl.u32 %v2248, 16
      %v2311 = vrot.slane %v2309, 4
      %v2312 = vor.u32 %v2311, %v2307
      %v2313 = vrot.slane %v2312, 4
      %v2315 = vshll.u32 %v2249, 16
      %v2317 = vrot.slane %v2315, 5
      %v2318 = vsel %vm395, %v2313, %v2317
      %v2320 = vshrl.u32 %v2250, 16
      %v2322 = vrot.slane %v2320, 4
      %v2323 = vshll.u32 %v2250, 16
      %v2325 = vrot.slane %v2323, 5
      %v2326 = vor.u32 %v2322, %v2325
      %v2327 = vrot.slane %v2326, 4
      %v2329 = vshll.u32 %v2251, 16
      %v2331 = vrot.slane %v2329, 5
      %v2332 = vsel %vm395, %v2327, %v2331
      %v2333 = vshrl.u32 %v2251, 16
      %v2335 = vrot.slane %v2333, 4
      %v2336 = vor.u32 %v2335, %v2331
      %v2337 = vrot.slane %v2336, 4
      %v2339 = vshll.u32 %v2252, 16
      %v2341 = vrot.slane %v2339, 5
      %v2342 = vsel %vm395, %v2337, %v2341
      %v2344 = vshrl.u32 %v2253, 16
      %v2346 = vrot.slane %v2344, 4
      %v2347 = vshll.u32 %v2253, 16
      %v2349 = vrot.slane %v2347, 5
      %v2350 = vor.u32 %v2346, %v2349
      %v2351 = vrot.slane %v2350, 4
      %v2353 = vshll.u32 %v2254, 16
      %v2355 = vrot.slane %v2353, 5
      %v2356 = vsel %vm395, %v2351, %v2355
      %v2357 = vshrl.u32 %v2254, 16
      %v2359 = vrot.slane %v2357, 4
      %v2360 = vor.u32 %v2359, %v2355
      %v2361 = vrot.slane %v2360, 4
      %v2363 = vshll.u32 %v2255, 16
      %v2365 = vrot.slane %v2363, 5
      %v2366 = vsel %vm395, %v2361, %v2365
      %v2368 = vshrl.u32 %v2256, 16
      %v2370 = vrot.slane %v2368, 4
      %v2371 = vshll.u32 %v2256, 16
      %v2373 = vrot.slane %v2371, 5
      %v2374 = vor.u32 %v2370, %v2373
      %v2375 = vrot.slane %v2374, 4
      %v2377 = vshll.u32 %v2257, 16
      %v2379 = vrot.slane %v2377, 5
      %v2380 = vsel %vm395, %v2375, %v2379
      %v2381 = vshrl.u32 %v2257, 16
      %v2383 = vrot.slane %v2381, 4
      %v2384 = vor.u32 %v2383, %v2379
      %v2385 = vrot.slane %v2384, 4
      %v2387 = vshll.u32 %v2258, 16
      %v2389 = vrot.slane %v2387, 5
      %v2390 = vsel %vm395, %v2385, %v2389
      %v2392 = vshrl.u32 %v2259, 16
      %v2394 = vrot.slane %v2392, 4
      %v2395 = vshll.u32 %v2259, 16
      %v2397 = vrot.slane %v2395, 5
      %v2398 = vor.u32 %v2394, %v2397
      %v2399 = vrot.slane %v2398, 4
      %v2401 = vshll.u32 %v2260, 16
      %v2403 = vrot.slane %v2401, 5
      %v2404 = vsel %vm395, %v2399, %v2403
      %v2405 = vshrl.u32 %v2260, 16
      %v2407 = vrot.slane %v2405, 4
      %v2408 = vor.u32 %v2407, %v2403
      %v2409 = vrot.slane %v2408, 4
      %v2411 = vshll.u32 %v2261, 16
      %v2413 = vrot.slane %v2411, 5
      %v2414 = vsel %vm395, %v2409, %v2413
      %v2416 = vshrl.u32 %v2262, 16
      %v2418 = vrot.slane %v2416, 4
      %v2419 = vshll.u32 %v2262, 16
      %v2421 = vrot.slane %v2419, 5
      %v2422 = vor.u32 %v2418, %v2421
      %v2423 = vrot.slane %v2422, 4
      %v2425 = vshll.u32 %v2263, 16
      %v2427 = vrot.slane %v2425, 5
      %v2428 = vsel %vm395, %v2423, %v2427
      %v2429 = vshrl.u32 %v2263, 16
      %v2431 = vrot.slane %v2429, 4
      %v2432 = vor.u32 %v2431, %v2427
      %v2433 = vrot.slane %v2432, 4
      %v2435 = vshll.u32 %v2264, 16
      %v2437 = vrot.slane %v2435, 5
      %v2438 = vsel %vm395, %v2433, %v2437
      %v2440 = vshrl.u32 %v2265, 16
      %v2442 = vrot.slane %v2440, 4
      %v2443 = vshll.u32 %v2265, 16
      %v2445 = vrot.slane %v2443, 5
      %v2446 = vor.u32 %v2442, %v2445
      %v2447 = vrot.slane %v2446, 4
      %v2449 = vshll.u32 %v2266, 16
      %v2451 = vrot.slane %v2449, 5
      %v2452 = vsel %vm395, %v2447, %v2451
      %v2453 = vshrl.u32 %v2266, 16
      %v2455 = vrot.slane %v2453, 4
      %v2456 = vor.u32 %v2455, %v2451
      %v2457 = vrot.slane %v2456, 4
      %v2459 = vshll.u32 %v2267, 16
      %v2461 = vrot.slane %v2459, 5
      %v2462 = vsel %vm395, %v2457, %v2461
      %v2464 = vshrl.u32 %v2268, 16
      %v2466 = vrot.slane %v2464, 4
      %v2467 = vshll.u32 %v2268, 16
      %v2469 = vrot.slane %v2467, 5
      %v2470 = vor.u32 %v2466, %v2469
      %v2471 = vrot.slane %v2470, 4
      %v2473 = vshll.u32 %v2269, 16
      %v2475 = vrot.slane %v2473, 5
      %v2476 = vsel %vm395, %v2471, %v2475
      %v2477 = vshrl.u32 %v2269, 16
      %v2479 = vrot.slane %v2477, 4
      %v2480 = vor.u32 %v2479, %v2475
      %v2481 = vrot.slane %v2480, 4
      %v2483 = vshll.u32 %v2270, 16
      %v2485 = vrot.slane %v2483, 5
      %v2486 = vsel %vm395, %v2481, %v2485
      %v2488 = vshrl.u32 %v2271, 16
      %v2490 = vrot.slane %v2488, 4
      %v2491 = vshll.u32 %v2271, 16
      %v2493 = vrot.slane %v2491, 5
      %v2494 = vor.u32 %v2490, %v2493
      %v2495 = vrot.slane %v2494, 4
      %v2497 = vshll.u32 %v2272, 16
      %v2499 = vrot.slane %v2497, 5
      %v2500 = vsel %vm395, %v2495, %v2499
      %v2501 = vshrl.u32 %v2272, 16
      %v2503 = vrot.slane %v2501, 4
      %v2504 = vor.u32 %v2503, %v2499
      %v2505 = vrot.slane %v2504, 4
      %v2507 = vshll.u32 %v2273, 16
      %v2509 = vrot.slane %v2507, 5
      %v2510 = vsel %vm395, %v2505, %v2509
      %v2512 = vshrl.u32 %v2274, 16
      %v2514 = vrot.slane %v2512, 4
      %v2515 = vshll.u32 %v2274, 16
      %v2517 = vrot.slane %v2515, 5
      %v2518 = vor.u32 %v2514, %v2517
      %v2519 = vrot.slane %v2518, 4
      %v2521 = vshll.u32 %v2275, 16
      %v2523 = vrot.slane %v2521, 5
      %v2524 = vsel %vm395, %v2519, %v2523
      %v2525 = vshrl.u32 %v2275, 16
      %v2527 = vrot.slane %v2525, 4
      %v2528 = vor.u32 %v2527, %v2523
      %v2529 = vrot.slane %v2528, 4
      %v2531 = vshll.u32 %v2276, 16
      %v2533 = vrot.slane %v2531, 5
      %v2534 = vsel %vm395, %v2529, %v2533
      %v2536 = vshrl.u32 %v2277, 16
      %v2538 = vrot.slane %v2536, 4
      %v2539 = vshll.u32 %v2277, 16
      %v2541 = vrot.slane %v2539, 5
      %v2542 = vor.u32 %v2538, %v2541
      %v2543 = vrot.slane %v2542, 4
      %v2545 = vshll.u32 %v2278, 16
      %v2547 = vrot.slane %v2545, 5
      %v2548 = vsel %vm395, %v2543, %v2547
      %v2549 = vshrl.u32 %v2278, 16
      %v2551 = vrot.slane %v2549, 4
      %v2552 = vor.u32 %v2551, %v2547
      %v2553 = vrot.slane %v2552, 4
      %v2555 = vshll.u32 %v2279, 16
      %v2557 = vrot.slane %v2555, 5
      %v2558 = vsel %vm395, %v2553, %v2557
      %v2560 = vshrl.u32 %v2280, 16
      %v2562 = vrot.slane %v2560, 4
      %v2563 = vshll.u32 %v2280, 16
      %v2565 = vrot.slane %v2563, 5
      %v2566 = vor.u32 %v2562, %v2565
      %v2567 = vrot.slane %v2566, 4
      %v2569 = vshll.u32 %v2281, 16
      %v2571 = vrot.slane %v2569, 5
      %v2572 = vsel %vm395, %v2567, %v2571
      %v2573 = vshrl.u32 %v2281, 16
      %v2575 = vrot.slane %v2573, 4
      %v2576 = vor.u32 %v2575, %v2571
      %v2577 = vrot.slane %v2576, 4
      %v2579 = vshll.u32 %v2282, 16
      %v2581 = vrot.slane %v2579, 5
      %v2582 = vsel %vm395, %v2577, %v2581
      %v2584 = vshrl.u32 %v2283, 16
      %v2586 = vrot.slane %v2584, 4
      %v2587 = vshll.u32 %v2283, 16
      %v2589 = vrot.slane %v2587, 5
      %v2590 = vor.u32 %v2586, %v2589
      %v2591 = vrot.slane %v2590, 4
      %v2593 = vshll.u32 %v2284, 16
      %v2595 = vrot.slane %v2593, 5
      %v2596 = vsel %vm395, %v2591, %v2595
      %v2597 = vshrl.u32 %v2284, 16
      %v2599 = vrot.slane %v2597, 4
      %v2600 = vor.u32 %v2599, %v2595
      %v2601 = vrot.slane %v2600, 4
      %v2603 = vshll.u32 %v2285, 16
      %v2605 = vrot.slane %v2603, 5
      %v2606 = vsel %vm395, %v2601, %v2605
      %v2608 = vshrl.u32 %v2286, 16
      %v2610 = vrot.slane %v2608, 4
      %v2611 = vshll.u32 %v2286, 16
      %v2613 = vrot.slane %v2611, 5
      %v2614 = vor.u32 %v2610, %v2613
      %v2615 = vrot.slane %v2614, 4
      %v2617 = vshll.u32 %v2287, 16
      %v2619 = vrot.slane %v2617, 5
      %v2620 = vsel %vm395, %v2615, %v2619
      %v2621 = vshrl.u32 %v2287, 16
      %v2623 = vrot.slane %v2621, 4
      %v2624 = vor.u32 %v2623, %v2619
      %v2625 = vrot.slane %v2624, 4
      %v2627 = vshll.u32 %v2288, 16
      %v2629 = vrot.slane %v2627, 5
      %v2630 = vsel %vm395, %v2625, %v2629
      %v2632 = vshrl.u32 %v2289, 16
      %v2634 = vrot.slane %v2632, 4
      %v2635 = vshll.u32 %v2289, 16
      %v2637 = vrot.slane %v2635, 5
      %v2638 = vor.u32 %v2634, %v2637
      %v2639 = vrot.slane %v2638, 4
      %v2641 = vshll.u32 %v2290, 16
      %v2643 = vrot.slane %v2641, 5
      %v2644 = vsel %vm395, %v2639, %v2643
      %v2645 = vshrl.u32 %v2290, 16
      %v2647 = vrot.slane %v2645, 4
      %v2648 = vor.u32 %v2647, %v2643
      %v2649 = vrot.slane %v2648, 4
      %v2651 = vshll.u32 %v2291, 16
      %v2653 = vrot.slane %v2651, 5
      %v2654 = vsel %vm395, %v2649, %v2653
      %v2656 = vshrl.u32 %v2292, 16
      %v2658 = vrot.slane %v2656, 4
      %v2659 = vshll.u32 %v2292, 16
      %v2661 = vrot.slane %v2659, 5
      %v2662 = vor.u32 %v2658, %v2661
      %v2663 = vrot.slane %v2662, 4
      %v2665 = vshll.u32 %v2293, 16
      %v2667 = vrot.slane %v2665, 5
      %v2668 = vsel %vm395, %v2663, %v2667
      %v2669 = vshrl.u32 %v2293, 16
      %v2671 = vrot.slane %v2669, 4
      %v2672 = vor.u32 %v2671, %v2667
      %v2673 = vrot.slane %v2672, 4
      %v2675 = vshll.u32 %v2294, 16
      %v2677 = vrot.slane %v2675, 5
      %v2678 = vsel %vm395, %v2673, %v2677
      %v2679 = vunpack.c.l.b16 %v2308
      %v2680 = vunpack.c.l.b16 %v2318
      %v2681 = vunpack.c.l.b16 %v2332
      %v2682 = vunpack.c.l.b16 %v2342
      %v2683 = vunpack.c.l.b16 %v2356
      %v2684 = vunpack.c.l.b16 %v2366
      %v2685 = vunpack.c.l.b16 %v2380
      %v2686 = vunpack.c.l.b16 %v2390
      %v2687 = vunpack.c.l.b16 %v2404
      %v2688 = vunpack.c.l.b16 %v2414
      %v2689 = vunpack.c.l.b16 %v2428
      %v2690 = vunpack.c.l.b16 %v2438
      %v2691 = vunpack.c.l.b16 %v2452
      %v2692 = vunpack.c.l.b16 %v2462
      %v2693 = vunpack.c.l.b16 %v2476
      %v2694 = vunpack.c.l.b16 %v2486
      %v2695 = vunpack.c.l.b16 %v2500
      %v2696 = vunpack.c.l.b16 %v2510
      %v2697 = vunpack.c.l.b16 %v2524
      %v2698 = vunpack.c.l.b16 %v2534
      %v2699 = vunpack.c.l.b16 %v2548
      %v2700 = vunpack.c.l.b16 %v2558
      %v2701 = vunpack.c.l.b16 %v2572
      %v2702 = vunpack.c.l.b16 %v2582
      %v2703 = vunpack.c.l.b16 %v2596
      %v2704 = vunpack.c.l.b16 %v2606
      %v2705 = vunpack.c.l.b16 %v2620
      %v2706 = vunpack.c.l.b16 %v2630
      %v2707 = vunpack.c.l.b16 %v2644
      %v2708 = vunpack.c.l.b16 %v2654
      %v2709 = vunpack.c.l.b16 %v2668
      %v2710 = vunpack.c.l.b16 %v2678
      %v2711 = vpack.c.b16 %v2680, %v2679
      %v2712 = vpack.c.b16 %v2682, %v2681
      %v2713 = vpack.c.b16 %v2684, %v2683
      %v2714 = vpack.c.b16 %v2686, %v2685
      %v2715 = vpack.c.b16 %v2688, %v2687
      %v2716 = vpack.c.b16 %v2690, %v2689
      %v2717 = vpack.c.b16 %v2692, %v2691
      %v2718 = vpack.c.b16 %v2694, %v2693
      %v2719 = vpack.c.b16 %v2696, %v2695
      %v2720 = vpack.c.b16 %v2698, %v2697
      %v2721 = vpack.c.b16 %v2700, %v2699
      %v2722 = vpack.c.b16 %v2702, %v2701
      %v2723 = vpack.c.b16 %v2704, %v2703
      %v2724 = vpack.c.b16 %v2706, %v2705
      %v2725 = vpack.c.b16 %v2708, %v2707
      %v2726 = vpack.c.b16 %v2710, %v2709
      %2743 = vst [vmem:[#allocation2 + $0x38] sm:$0xff] %v2711
      %2744 = vst [vmem:[#allocation2 + $0x80] sm:$0xff] %v2712
      %2745 = vst [vmem:[#allocation2 + $0xc8] sm:$0xff] %v2713
      %2746 = vst [vmem:[#allocation2 + $0x110] sm:$0xff] %v2714
      %2747 = vst [vmem:[#allocation2 + $0x158] sm:$0xff] %v2715
      %2748 = vst [vmem:[#allocation2 + $0x1a0] sm:$0xff] %v2716
      %2749 = vst [vmem:[#allocation2 + $0x1e8] sm:$0xff] %v2717
      %2750 = vst [vmem:[#allocation2 + $0x230] sm:$0xff] %v2718
      %2751 = vst [vmem:[#allocation2 + $0x278] sm:$0xff] %v2719
      %2752 = vst [vmem:[#allocation2 + $0x2c0] sm:$0xff] %v2720
      %2753 = vst [vmem:[#allocation2 + $0x308] sm:$0xff] %v2721
      %2754 = vst [vmem:[#allocation2 + $0x350] sm:$0xff] %v2722
      %2755 = vst [vmem:[#allocation2 + $0x398] sm:$0xff] %v2723
      %2756 = vst [vmem:[#allocation2 + $0x3e0] sm:$0xff] %v2724
      %2757 = vst [vmem:[#allocation2 + $0x428] sm:$0xff] %v2725
      %2758 = vst [vmem:[#allocation2 + $0x470] sm:$0xff] %v2726
      %v2759 = vld [vmem:[%s2102] sm:$0xe]
      %v2760 = vld [vmem:[%s2102 + $0x4] sm:$0xf]
      %v2761 = vld [vmem:[%s2102 + $0x8] sm:$0x1]
      %v2762 = vld [vmem:[%s2102 + $0xc] sm:$0xe]
      %v2763 = vld [vmem:[%s2102 + $0x10] sm:$0xf]
      %v2764 = vld [vmem:[%s2102 + $0x14] sm:$0x1]
      %v2765 = vld [vmem:[%s2102 + $0x18] sm:$0xe]
      %v2766 = vld [vmem:[%s2102 + $0x1c] sm:$0xf]
      %v2767 = vld [vmem:[%s2102 + $0x20] sm:$0x1]
      %v2768 = vld [vmem:[%s2102 + $0x24] sm:$0xe]
      %v2769 = vld [vmem:[%s2102 + $0x28] sm:$0xf]
      %v2770 = vld [vmem:[%s2102 + $0x2c] sm:$0x1]
      %v2771 = vld [vmem:[%s2102 + $0x30] sm:$0xe]
      %v2772 = vld [vmem:[%s2102 + $0x34] sm:$0xf]
      %v2773 = vld [vmem:[%s2102 + $0x38] sm:$0x1]
      %v2774 = vld [vmem:[%s2102 + $0x3c] sm:$0xe]
      %v2775 = vld [vmem:[%s2102 + $0x40] sm:$0xf]
      %v2776 = vld [vmem:[%s2102 + $0x44] sm:$0x1]
      %v2777 = vld [vmem:[%s2102 + $0x48] sm:$0xe]
      %v2778 = vld [vmem:[%s2102 + $0x4c] sm:$0xf]
      %v2779 = vld [vmem:[%s2102 + $0x50] sm:$0x1]
      %v2780 = vld [vmem:[%s2102 + $0x54] sm:$0xe]
      %v2781 = vld [vmem:[%s2102 + $0x58] sm:$0xf]
      %v2782 = vld [vmem:[%s2102 + $0x5c] sm:$0x1]
      %v2783 = vld [vmem:[%s2102 + $0x60] sm:$0xe]
      %v2784 = vld [vmem:[%s2102 + $0x64] sm:$0xf]
      %v2785 = vld [vmem:[%s2102 + $0x68] sm:$0x1]
      %v2786 = vld [vmem:[%s2102 + $0x6c] sm:$0xe]
      %v2787 = vld [vmem:[%s2102 + $0x70] sm:$0xf]
      %v2788 = vld [vmem:[%s2102 + $0x74] sm:$0x1]
      %v2789 = vld [vmem:[%s2102 + $0x78] sm:$0xe]
      %v2790 = vld [vmem:[%s2102 + $0x7c] sm:$0xf]
      %v2791 = vld [vmem:[%s2102 + $0x80] sm:$0x1]
      %v2792 = vld [vmem:[%s2102 + $0x84] sm:$0xe]
      %v2793 = vld [vmem:[%s2102 + $0x88] sm:$0xf]
      %v2794 = vld [vmem:[%s2102 + $0x8c] sm:$0x1]
      %v2795 = vld [vmem:[%s2102 + $0x90] sm:$0xe]
      %v2796 = vld [vmem:[%s2102 + $0x94] sm:$0xf]
      %v2797 = vld [vmem:[%s2102 + $0x98] sm:$0x1]
      %v2798 = vld [vmem:[%s2102 + $0x9c] sm:$0xe]
      %v2799 = vld [vmem:[%s2102 + $0xa0] sm:$0xf]
      %v2800 = vld [vmem:[%s2102 + $0xa4] sm:$0x1]
      %v2801 = vld [vmem:[%s2102 + $0xa8] sm:$0xe]
      %v2802 = vld [vmem:[%s2102 + $0xac] sm:$0xf]
      %v2803 = vld [vmem:[%s2102 + $0xb0] sm:$0x1]
      %v2804 = vld [vmem:[%s2102 + $0xb4] sm:$0xe]
      %v2805 = vld [vmem:[%s2102 + $0xb8] sm:$0xf]
      %v2806 = vld [vmem:[%s2102 + $0xbc] sm:$0x1]
      %v2855 = vrot.slane %v2759, 5
      %v2856 = vrot.slane %v2855, 4
      %v2857 = vrot.slane %v2760, 5
      %v2858 = vsel %vm958, %v2856, %v2857
      %v2859 = vrot.slane %v2857, 4
      %v2860 = vrot.slane %v2761, 5
      %v2861 = vsel %vm958, %v2859, %v2860
      %v2862 = vrot.slane %v2762, 5
      %v2863 = vrot.slane %v2862, 4
      %v2864 = vrot.slane %v2763, 5
      %v2865 = vsel %vm958, %v2863, %v2864
      %v2866 = vrot.slane %v2864, 4
      %v2867 = vrot.slane %v2764, 5
      %v2868 = vsel %vm958, %v2866, %v2867
      %v2869 = vrot.slane %v2765, 5
      %v2870 = vrot.slane %v2869, 4
      %v2871 = vrot.slane %v2766, 5
      %v2872 = vsel %vm958, %v2870, %v2871
      %v2873 = vrot.slane %v2871, 4
      %v2874 = vrot.slane %v2767, 5
      %v2875 = vsel %vm958, %v2873, %v2874
      %v2876 = vrot.slane %v2768, 5
      %v2877 = vrot.slane %v2876, 4
      %v2878 = vrot.slane %v2769, 5
      %v2879 = vsel %vm958, %v2877, %v2878
      %v2880 = vrot.slane %v2878, 4
      %v2881 = vrot.slane %v2770, 5
      %v2882 = vsel %vm958, %v2880, %v2881
      %v2883 = vrot.slane %v2771, 5
      %v2884 = vrot.slane %v2883, 4
      %v2885 = vrot.slane %v2772, 5
      %v2886 = vsel %vm958, %v2884, %v2885
      %v2887 = vrot.slane %v2885, 4
      %v2888 = vrot.slane %v2773, 5
      %v2889 = vsel %vm958, %v2887, %v2888
      %v2890 = vrot.slane %v2774, 5
      %v2891 = vrot.slane %v2890, 4
      %v2892 = vrot.slane %v2775, 5
      %v2893 = vsel %vm958, %v2891, %v2892
      %v2894 = vrot.slane %v2892, 4
      %v2895 = vrot.slane %v2776, 5
      %v2896 = vsel %vm958, %v2894, %v2895
      %v2897 = vrot.slane %v2777, 5
      %v2898 = vrot.slane %v2897, 4
      %v2899 = vrot.slane %v2778, 5
      %v2900 = vsel %vm958, %v2898, %v2899
      %v2901 = vrot.slane %v2899, 4
      %v2902 = vrot.slane %v2779, 5
      %v2903 = vsel %vm958, %v2901, %v2902
      %v2904 = vrot.slane %v2780, 5
      %v2905 = vrot.slane %v2904, 4
      %v2906 = vrot.slane %v2781, 5
      %v2907 = vsel %vm958, %v2905, %v2906
      %v2908 = vrot.slane %v2906, 4
      %v2909 = vrot.slane %v2782, 5
      %v2910 = vsel %vm958, %v2908, %v2909
      %v2911 = vrot.slane %v2783, 5
      %v2912 = vrot.slane %v2911, 4
      %v2913 = vrot.slane %v2784, 5
      %v2914 = vsel %vm958, %v2912, %v2913
      %v2915 = vrot.slane %v2913, 4
      %v2916 = vrot.slane %v2785, 5
      %v2917 = vsel %vm958, %v2915, %v2916
      %v2918 = vrot.slane %v2786, 5
      %v2919 = vrot.slane %v2918, 4
      %v2920 = vrot.slane %v2787, 5
      %v2921 = vsel %vm958, %v2919, %v2920
      %v2922 = vrot.slane %v2920, 4
      %v2923 = vrot.slane %v2788, 5
      %v2924 = vsel %vm958, %v2922, %v2923
      %v2925 = vrot.slane %v2789, 5
      %v2926 = vrot.slane %v2925, 4
      %v2927 = vrot.slane %v2790, 5
      %v2928 = vsel %vm958, %v2926, %v2927
      %v2929 = vrot.slane %v2927, 4
      %v2930 = vrot.slane %v2791, 5
      %v2931 = vsel %vm958, %v2929, %v2930
      %v2932 = vrot.slane %v2792, 5
      %v2933 = vrot.slane %v2932, 4
      %v2934 = vrot.slane %v2793, 5
      %v2935 = vsel %vm958, %v2933, %v2934
      %v2936 = vrot.slane %v2934, 4
      %v2937 = vrot.slane %v2794, 5
      %v2938 = vsel %vm958, %v2936, %v2937
      %v2939 = vrot.slane %v2795, 5
      %v2940 = vrot.slane %v2939, 4
      %v2941 = vrot.slane %v2796, 5
      %v2942 = vsel %vm958, %v2940, %v2941
      %v2943 = vrot.slane %v2941, 4
      %v2944 = vrot.slane %v2797, 5
      %v2945 = vsel %vm958, %v2943, %v2944
      %v2946 = vrot.slane %v2798, 5
      %v2947 = vrot.slane %v2946, 4
      %v2948 = vrot.slane %v2799, 5
      %v2949 = vsel %vm958, %v2947, %v2948
      %v2950 = vrot.slane %v2948, 4
      %v2951 = vrot.slane %v2800, 5
      %v2952 = vsel %vm958, %v2950, %v2951
      %v2953 = vrot.slane %v2801, 5
      %v2954 = vrot.slane %v2953, 4
      %v2955 = vrot.slane %v2802, 5
      %v2956 = vsel %vm958, %v2954, %v2955
      %v2957 = vrot.slane %v2955, 4
      %v2958 = vrot.slane %v2803, 5
      %v2959 = vsel %vm958, %v2957, %v2958
      %v2960 = vrot.slane %v2804, 5
      %v2961 = vrot.slane %v2960, 4
      %v2962 = vrot.slane %v2805, 5
      %v2963 = vsel %vm958, %v2961, %v2962
      %v2964 = vrot.slane %v2962, 4
      %v2965 = vrot.slane %v2806, 5
      %v2966 = vsel %vm958, %v2964, %v2965
      %v2967 = vunpack.c.l.b16 %v2858
      %v2968 = vunpack.c.l.b16 %v2861
      %v2969 = vunpack.c.l.b16 %v2865
      %v2970 = vunpack.c.l.b16 %v2868
      %v2971 = vunpack.c.l.b16 %v2872
      %v2972 = vunpack.c.l.b16 %v2875
      %v2973 = vunpack.c.l.b16 %v2879
      %v2974 = vunpack.c.l.b16 %v2882
      %v2975 = vunpack.c.l.b16 %v2886
      %v2976 = vunpack.c.l.b16 %v2889
      %v2977 = vunpack.c.l.b16 %v2893
      %v2978 = vunpack.c.l.b16 %v2896
      %v2979 = vunpack.c.l.b16 %v2900
      %v2980 = vunpack.c.l.b16 %v2903
      %v2981 = vunpack.c.l.b16 %v2907
      %v2982 = vunpack.c.l.b16 %v2910
      %v2983 = vunpack.c.l.b16 %v2914
      %v2984 = vunpack.c.l.b16 %v2917
      %v2985 = vunpack.c.l.b16 %v2921
      %v2986 = vunpack.c.l.b16 %v2924
      %v2987 = vunpack.c.l.b16 %v2928
      %v2988 = vunpack.c.l.b16 %v2931
      %v2989 = vunpack.c.l.b16 %v2935
      %v2990 = vunpack.c.l.b16 %v2938
      %v2991 = vunpack.c.l.b16 %v2942
      %v2992 = vunpack.c.l.b16 %v2945
      %v2993 = vunpack.c.l.b16 %v2949
      %v2994 = vunpack.c.l.b16 %v2952
      %v2995 = vunpack.c.l.b16 %v2956
      %v2996 = vunpack.c.l.b16 %v2959
      %v2997 = vunpack.c.l.b16 %v2963
      %v2998 = vunpack.c.l.b16 %v2966
      %v2999 = vpack.c.b16 %v2968, %v2967
      %v3000 = vpack.c.b16 %v2970, %v2969
      %v3001 = vpack.c.b16 %v2972, %v2971
      %v3002 = vpack.c.b16 %v2974, %v2973
      %v3003 = vpack.c.b16 %v2976, %v2975
      %v3004 = vpack.c.b16 %v2978, %v2977
      %v3005 = vpack.c.b16 %v2980, %v2979
      %v3006 = vpack.c.b16 %v2982, %v2981
      %v3007 = vpack.c.b16 %v2984, %v2983
      %v3008 = vpack.c.b16 %v2986, %v2985
      %v3009 = vpack.c.b16 %v2988, %v2987
      %v3010 = vpack.c.b16 %v2990, %v2989
      %v3011 = vpack.c.b16 %v2992, %v2991
      %v3012 = vpack.c.b16 %v2994, %v2993
      %v3013 = vpack.c.b16 %v2996, %v2995
      %v3014 = vpack.c.b16 %v2998, %v2997
      %3031 = vst [vmem:[#allocation2 + $0x40] sm:$0xff] %v2999
      %3032 = vst [vmem:[#allocation2 + $0x88] sm:$0xff] %v3000
      %3033 = vst [vmem:[#allocation2 + $0xd0] sm:$0xff] %v3001
      %3034 = vst [vmem:[#allocation2 + $0x118] sm:$0xff] %v3002
      %3035 = vst [vmem:[#allocation2 + $0x160] sm:$0xff] %v3003
      %3036 = vst [vmem:[#allocation2 + $0x1a8] sm:$0xff] %v3004
      %3037 = vst [vmem:[#allocation2 + $0x1f0] sm:$0xff] %v3005
      %3038 = vst [vmem:[#allocation2 + $0x238] sm:$0xff] %v3006
      %3039 = vst [vmem:[#allocation2 + $0x280] sm:$0xff] %v3007
      %3040 = vst [vmem:[#allocation2 + $0x2c8] sm:$0xff] %v3008
      %3041 = vst [vmem:[#allocation2 + $0x310] sm:$0xff] %v3009
      %3042 = vst [vmem:[#allocation2 + $0x358] sm:$0xff] %v3010
      %3043 = vst [vmem:[#allocation2 + $0x3a0] sm:$0xff] %v3011
      %3044 = vst [vmem:[#allocation2 + $0x3e8] sm:$0xff] %v3012
      %3045 = vst [vmem:[#allocation2 + $0x430] sm:$0xff] %v3013
      %3046 = vst [vmem:[#allocation2 + $0x478] sm:$0xff] %v3014
      %v3047 = vld [vmem:[#allocation2] sm:$0xff]
      %v3048 = vld [vmem:[#allocation2 + $0x8] sm:$0xff]
      %v3049 = vld [vmem:[#allocation2 + $0x10] sm:$0xff]
      %v3050 = vld [vmem:[#allocation2 + $0x18] sm:$0xff]
      %v3051 = vld [vmem:[#allocation2 + $0x20] sm:$0xff]
      %v3052 = vld [vmem:[#allocation2 + $0x28] sm:$0xff]
      %v3053 = vld [vmem:[#allocation2 + $0x30] sm:$0xff]
      %v3054 = vld [vmem:[#allocation2 + $0x38] sm:$0xff]
      %v3055 = vld [vmem:[#allocation2 + $0x40] sm:$0xff]
      %v3056 = vld [vmem:[#allocation2 + $0x48] sm:$0xff]
      %v3057 = vld [vmem:[#allocation2 + $0x50] sm:$0xff]
      %v3058 = vld [vmem:[#allocation2 + $0x58] sm:$0xff]
      %v3059 = vld [vmem:[#allocation2 + $0x60] sm:$0xff]
      %v3060 = vld [vmem:[#allocation2 + $0x68] sm:$0xff]
      %v3061 = vld [vmem:[#allocation2 + $0x70] sm:$0xff]
      %v3062 = vld [vmem:[#allocation2 + $0x78] sm:$0xff]
      %v3063 = vld [vmem:[#allocation2 + $0x80] sm:$0xff]
      %v3064 = vld [vmem:[#allocation2 + $0x88] sm:$0xff]
      %v3065 = vld [vmem:[#allocation2 + $0x90] sm:$0xff]
      %v3066 = vld [vmem:[#allocation2 + $0x98] sm:$0xff]
      %v3067 = vld [vmem:[#allocation2 + $0xa0] sm:$0xff]
      %v3068 = vld [vmem:[#allocation2 + $0xa8] sm:$0xff]
      %v3069 = vld [vmem:[#allocation2 + $0xb0] sm:$0xff]
      %v3070 = vld [vmem:[#allocation2 + $0xb8] sm:$0xff]
      %v3071 = vld [vmem:[#allocation2 + $0xc0] sm:$0xff]
      %v3072 = vld [vmem:[#allocation2 + $0xc8] sm:$0xff]
      %v3073 = vld [vmem:[#allocation2 + $0xd0] sm:$0xff]
      %v3074 = vld [vmem:[#allocation2 + $0xd8] sm:$0xff]
      %v3075 = vld [vmem:[#allocation2 + $0xe0] sm:$0xff]
      %v3076 = vld [vmem:[#allocation2 + $0xe8] sm:$0xff]
      %v3077 = vld [vmem:[#allocation2 + $0xf0] sm:$0xff]
      %v3078 = vld [vmem:[#allocation2 + $0xf8] sm:$0xff]
      %v3079 = vld [vmem:[#allocation2 + $0x100] sm:$0xff]
      %v3080 = vld [vmem:[#allocation2 + $0x108] sm:$0xff]
      %v3081 = vld [vmem:[#allocation2 + $0x110] sm:$0xff]
      %v3082 = vld [vmem:[#allocation2 + $0x118] sm:$0xff]
      %v3083 = vld [vmem:[#allocation2 + $0x120] sm:$0xff]
      %v3084 = vld [vmem:[#allocation2 + $0x128] sm:$0xff]
      %v3085 = vld [vmem:[#allocation2 + $0x130] sm:$0xff]
      %v3086 = vld [vmem:[#allocation2 + $0x138] sm:$0xff]
      %v3087 = vld [vmem:[#allocation2 + $0x140] sm:$0xff]
      %v3088 = vld [vmem:[#allocation2 + $0x148] sm:$0xff]
      %v3089 = vld [vmem:[#allocation2 + $0x150] sm:$0xff]
      %v3090 = vld [vmem:[#allocation2 + $0x158] sm:$0xff]
      %v3091 = vld [vmem:[#allocation2 + $0x160] sm:$0xff]
      %v3092 = vld [vmem:[#allocation2 + $0x168] sm:$0xff]
      %v3093 = vld [vmem:[#allocation2 + $0x170] sm:$0xff]
      %v3094 = vld [vmem:[#allocation2 + $0x178] sm:$0xff]
      %v3095 = vld [vmem:[#allocation2 + $0x180] sm:$0xff]
      %v3096 = vld [vmem:[#allocation2 + $0x188] sm:$0xff]
      %v3097 = vld [vmem:[#allocation2 + $0x190] sm:$0xff]
      %v3098 = vld [vmem:[#allocation2 + $0x198] sm:$0xff]
      %v3099 = vld [vmem:[#allocation2 + $0x1a0] sm:$0xff]
      %v3100 = vld [vmem:[#allocation2 + $0x1a8] sm:$0xff]
      %v3101 = vld [vmem:[#allocation2 + $0x1b0] sm:$0xff]
      %v3102 = vld [vmem:[#allocation2 + $0x1b8] sm:$0xff]
      %v3103 = vld [vmem:[#allocation2 + $0x1c0] sm:$0xff]
      %v3104 = vld [vmem:[#allocation2 + $0x1c8] sm:$0xff]
      %v3105 = vld [vmem:[#allocation2 + $0x1d0] sm:$0xff]
      %v3106 = vld [vmem:[#allocation2 + $0x1d8] sm:$0xff]
      %v3107 = vld [vmem:[#allocation2 + $0x1e0] sm:$0xff]
      %v3108 = vld [vmem:[#allocation2 + $0x1e8] sm:$0xff]
      %v3109 = vld [vmem:[#allocation2 + $0x1f0] sm:$0xff]
      %v3110 = vld [vmem:[#allocation2 + $0x1f8] sm:$0xff]
      %v3111 = vld [vmem:[#allocation2 + $0x200] sm:$0xff]
      %v3112 = vld [vmem:[#allocation2 + $0x208] sm:$0xff]
      %v3113 = vld [vmem:[#allocation2 + $0x210] sm:$0xff]
      %v3114 = vld [vmem:[#allocation2 + $0x218] sm:$0xff]
      %v3115 = vld [vmem:[#allocation2 + $0x220] sm:$0xff]
      %v3116 = vld [vmem:[#allocation2 + $0x228] sm:$0xff]
      %v3117 = vld [vmem:[#allocation2 + $0x230] sm:$0xff]
      %v3118 = vld [vmem:[#allocation2 + $0x238] sm:$0xff]
      %v3119 = vld [vmem:[#allocation2 + $0x240] sm:$0xff]
      %v3120 = vld [vmem:[#allocation2 + $0x248] sm:$0xff]
      %v3121 = vld [vmem:[#allocation2 + $0x250] sm:$0xff]
      %v3122 = vld [vmem:[#allocation2 + $0x258] sm:$0xff]
      %v3123 = vld [vmem:[#allocation2 + $0x260] sm:$0xff]
      %v3124 = vld [vmem:[#allocation2 + $0x268] sm:$0xff]
      %v3125 = vld [vmem:[#allocation2 + $0x270] sm:$0xff]
      %v3126 = vld [vmem:[#allocation2 + $0x278] sm:$0xff]
      %v3127 = vld [vmem:[#allocation2 + $0x280] sm:$0xff]
      %v3128 = vld [vmem:[#allocation2 + $0x288] sm:$0xff]
      %v3129 = vld [vmem:[#allocation2 + $0x290] sm:$0xff]
      %v3130 = vld [vmem:[#allocation2 + $0x298] sm:$0xff]
      %v3131 = vld [vmem:[#allocation2 + $0x2a0] sm:$0xff]
      %v3132 = vld [vmem:[#allocation2 + $0x2a8] sm:$0xff]
      %v3133 = vld [vmem:[#allocation2 + $0x2b0] sm:$0xff]
      %v3134 = vld [vmem:[#allocation2 + $0x2b8] sm:$0xff]
      %v3135 = vld [vmem:[#allocation2 + $0x2c0] sm:$0xff]
      %v3136 = vld [vmem:[#allocation2 + $0x2c8] sm:$0xff]
      %v3137 = vld [vmem:[#allocation2 + $0x2d0] sm:$0xff]
      %v3138 = vld [vmem:[#allocation2 + $0x2d8] sm:$0xff]
      %v3139 = vld [vmem:[#allocation2 + $0x2e0] sm:$0xff]
      %v3140 = vld [vmem:[#allocation2 + $0x2e8] sm:$0xff]
      %v3141 = vld [vmem:[#allocation2 + $0x2f0] sm:$0xff]
      %v3142 = vld [vmem:[#allocation2 + $0x2f8] sm:$0xff]
      %v3143 = vld [vmem:[#allocation2 + $0x300] sm:$0xff]
      %v3144 = vld [vmem:[#allocation2 + $0x308] sm:$0xff]
      %v3145 = vld [vmem:[#allocation2 + $0x310] sm:$0xff]
      %v3146 = vld [vmem:[#allocation2 + $0x318] sm:$0xff]
      %v3147 = vld [vmem:[#allocation2 + $0x320] sm:$0xff]
      %v3148 = vld [vmem:[#allocation2 + $0x328] sm:$0xff]
      %v3149 = vld [vmem:[#allocation2 + $0x330] sm:$0xff]
      %v3150 = vld [vmem:[#allocation2 + $0x338] sm:$0xff]
      %v3151 = vld [vmem:[#allocation2 + $0x340] sm:$0xff]
      %v3152 = vld [vmem:[#allocation2 + $0x348] sm:$0xff]
      %v3153 = vld [vmem:[#allocation2 + $0x350] sm:$0xff]
      %v3154 = vld [vmem:[#allocation2 + $0x358] sm:$0xff]
      %v3155 = vld [vmem:[#allocation2 + $0x360] sm:$0xff]
      %v3156 = vld [vmem:[#allocation2 + $0x368] sm:$0xff]
      %v3157 = vld [vmem:[#allocation2 + $0x370] sm:$0xff]
      %v3158 = vld [vmem:[#allocation2 + $0x378] sm:$0xff]
      %v3159 = vld [vmem:[#allocation2 + $0x380] sm:$0xff]
      %v3160 = vld [vmem:[#allocation2 + $0x388] sm:$0xff]
      %v3161 = vld [vmem:[#allocation2 + $0x390] sm:$0xff]
      %v3162 = vld [vmem:[#allocation2 + $0x398] sm:$0xff]
      %v3163 = vld [vmem:[#allocation2 + $0x3a0] sm:$0xff]
      %v3164 = vld [vmem:[#allocation2 + $0x3a8] sm:$0xff]
      %v3165 = vld [vmem:[#allocation2 + $0x3b0] sm:$0xff]
      %v3166 = vld [vmem:[#allocation2 + $0x3b8] sm:$0xff]
      %v3167 = vld [vmem:[#allocation2 + $0x3c0] sm:$0xff]
      %v3168 = vld [vmem:[#allocation2 + $0x3c8] sm:$0xff]
      %v3169 = vld [vmem:[#allocation2 + $0x3d0] sm:$0xff]
      %v3170 = vld [vmem:[#allocation2 + $0x3d8] sm:$0xff]
      %v3171 = vld [vmem:[#allocation2 + $0x3e0] sm:$0xff]
      %v3172 = vld [vmem:[#allocation2 + $0x3e8] sm:$0xff]
      %v3173 = vld [vmem:[#allocation2 + $0x3f0] sm:$0xff]
      %v3174 = vld [vmem:[#allocation2 + $0x3f8] sm:$0xff]
      %v3175 = vld [vmem:[#allocation2 + $0x400] sm:$0xff]
      %v3176 = vld [vmem:[#allocation2 + $0x408] sm:$0xff]
      %v3177 = vld [vmem:[#allocation2 + $0x410] sm:$0xff]
      %v3178 = vld [vmem:[#allocation2 + $0x418] sm:$0xff]
      %v3179 = vld [vmem:[#allocation2 + $0x420] sm:$0xff]
      %v3180 = vld [vmem:[#allocation2 + $0x428] sm:$0xff]
      %v3181 = vld [vmem:[#allocation2 + $0x430] sm:$0xff]
      %v3182 = vld [vmem:[#allocation2 + $0x438] sm:$0xff]
      %v3183 = vld [vmem:[#allocation2 + $0x440] sm:$0xff]
      %v3184 = vld [vmem:[#allocation2 + $0x448] sm:$0xff]
      %v3185 = vld [vmem:[#allocation2 + $0x450] sm:$0xff]
      %v3186 = vld [vmem:[#allocation2 + $0x458] sm:$0xff]
      %v3187 = vld [vmem:[#allocation2 + $0x460] sm:$0xff]
      %v3188 = vld [vmem:[#allocation2 + $0x468] sm:$0xff]
      %v3189 = vld [vmem:[#allocation2 + $0x470] sm:$0xff]
      %v3190 = vld [vmem:[#allocation2 + $0x478] sm:$0xff]
      %v3191 = vld [vmem:[%s1] sm:$0xf]
      %v3192 = vld [vmem:[%s1 + $0x4] sm:$0xf]
      %v3193 = vld [vmem:[%s1 + $0x8] sm:$0xf]
      %v3194 = vld [vmem:[%s1 + $0xc] sm:$0xf]
      %v3195 = vld [vmem:[%s1 + $0x10] sm:$0xf]
      %v3196 = vld [vmem:[%s1 + $0x14] sm:$0xf]
      %v3197 = vld [vmem:[%s1 + $0x18] sm:$0xf]
      %v3198 = vld [vmem:[%s1 + $0x1c] sm:$0xf]
      %v3199 = vld [vmem:[%s1 + $0x20] sm:$0xf]
      %v3200 = vld [vmem:[%s1 + $0x24] sm:$0xf]
      %v3201 = vld [vmem:[%s1 + $0x28] sm:$0xf]
      %v3202 = vld [vmem:[%s1 + $0x2c] sm:$0xf]
      %v3203 = vld [vmem:[%s1 + $0x30] sm:$0xf]
      %v3204 = vld [vmem:[%s1 + $0x34] sm:$0xf]
      %v3205 = vld [vmem:[%s1 + $0x38] sm:$0xf]
      %v3206 = vld [vmem:[%s1 + $0x3c] sm:$0xf]
      %v3207 = vld [vmem:[%s1 + $0x40] sm:$0xf]
      %v3208 = vld [vmem:[%s1 + $0x44] sm:$0xf]
      %v3209 = vld [vmem:[%s1 + $0x48] sm:$0xf]
      %v3210 = vld [vmem:[%s1 + $0x4c] sm:$0xf]
      %v3211 = vld [vmem:[%s1 + $0x50] sm:$0xf]
      %v3212 = vld [vmem:[%s1 + $0x54] sm:$0xf]
      %v3213 = vld [vmem:[%s1 + $0x58] sm:$0xf]
      %v3214 = vld [vmem:[%s1 + $0x5c] sm:$0xf]
      %v3215 = vld [vmem:[%s1 + $0x60] sm:$0xf]
      %v3216 = vld [vmem:[%s1 + $0x64] sm:$0xf]
      %v3217 = vld [vmem:[%s1 + $0x68] sm:$0xf]
      %v3218 = vld [vmem:[%s1 + $0x6c] sm:$0xf]
      %v3219 = vld [vmem:[%s1 + $0x70] sm:$0xf]
      %v3220 = vld [vmem:[%s1 + $0x74] sm:$0xf]
      %v3221 = vld [vmem:[%s1 + $0x78] sm:$0xf]
      %v3222 = vld [vmem:[%s1 + $0x7c] sm:$0xf]
      %v3223 = vld [vmem:[%s1 + $0x80] sm:$0xf]
      %v3224 = vld [vmem:[%s1 + $0x84] sm:$0xf]
      %v3225 = vld [vmem:[%s1 + $0x88] sm:$0xf]
      %v3226 = vld [vmem:[%s1 + $0x8c] sm:$0xf]
      %v3227 = vld [vmem:[%s1 + $0x90] sm:$0xf]
      %v3228 = vld [vmem:[%s1 + $0x94] sm:$0xf]
      %v3229 = vld [vmem:[%s1 + $0x98] sm:$0xf]
      %v3230 = vld [vmem:[%s1 + $0x9c] sm:$0xf]
      %v3231 = vld [vmem:[%s1 + $0xa0] sm:$0xf]
      %v3232 = vld [vmem:[%s1 + $0xa4] sm:$0xf]
      %v3233 = vld [vmem:[%s1 + $0xa8] sm:$0xf]
      %v3234 = vld [vmem:[%s1 + $0xac] sm:$0xf]
      %v3235 = vld [vmem:[%s1 + $0xb0] sm:$0xf]
      %v3236 = vld [vmem:[%s1 + $0xb4] sm:$0xf]
      %v3237 = vld [vmem:[%s1 + $0xb8] sm:$0xf]
      %v3238 = vld [vmem:[%s1 + $0xbc] sm:$0xf]
      %v3239 = vld [vmem:[%s1 + $0xc0] sm:$0xf]
      %v3240 = vld [vmem:[%s1 + $0xc4] sm:$0xf]
      %v3241 = vld [vmem:[%s1 + $0xc8] sm:$0xf]
      %v3242 = vld [vmem:[%s1 + $0xcc] sm:$0xf]
      %v3243 = vld [vmem:[%s1 + $0xd0] sm:$0xf]
      %v3244 = vld [vmem:[%s1 + $0xd4] sm:$0xf]
      %v3245 = vld [vmem:[%s1 + $0xd8] sm:$0xf]
      %v3246 = vld [vmem:[%s1 + $0xdc] sm:$0xf]
      %v3247 = vld [vmem:[%s1 + $0xe0] sm:$0xf]
      %v3248 = vld [vmem:[%s1 + $0xe4] sm:$0xf]
      %v3249 = vld [vmem:[%s1 + $0xe8] sm:$0xf]
      %v3250 = vld [vmem:[%s1 + $0xec] sm:$0xf]
      %v3251 = vld [vmem:[%s1 + $0xf0] sm:$0xf]
      %v3252 = vld [vmem:[%s1 + $0xf4] sm:$0xf]
      %v3253 = vld [vmem:[%s1 + $0xf8] sm:$0xf]
      %v3254 = vld [vmem:[%s1 + $0xfc] sm:$0xf]
      %v3255 = vld [vmem:[%s1 + $0x100] sm:$0xf]
      %v3256 = vld [vmem:[%s1 + $0x104] sm:$0xf]
      %v3257 = vld [vmem:[%s1 + $0x108] sm:$0xf]
      %v3258 = vld [vmem:[%s1 + $0x10c] sm:$0xf]
      %v3259 = vld [vmem:[%s1 + $0x110] sm:$0xf]
      %v3260 = vld [vmem:[%s1 + $0x114] sm:$0xf]
      %v3261 = vld [vmem:[%s1 + $0x118] sm:$0xf]
      %v3262 = vld [vmem:[%s1 + $0x11c] sm:$0xf]
      %v3263 = vld [vmem:[%s1 + $0x120] sm:$0xf]
      %v3264 = vld [vmem:[%s1 + $0x124] sm:$0xf]
      %v3265 = vld [vmem:[%s1 + $0x128] sm:$0xf]
      %v3266 = vld [vmem:[%s1 + $0x12c] sm:$0xf]
      %v3267 = vld [vmem:[%s1 + $0x130] sm:$0xf]
      %v3268 = vld [vmem:[%s1 + $0x134] sm:$0xf]
      %v3269 = vld [vmem:[%s1 + $0x138] sm:$0xf]
      %v3270 = vld [vmem:[%s1 + $0x13c] sm:$0xf]
      %v3271 = vld [vmem:[%s1 + $0x140] sm:$0xf]
      %v3272 = vld [vmem:[%s1 + $0x144] sm:$0xf]
      %v3273 = vld [vmem:[%s1 + $0x148] sm:$0xf]
      %v3274 = vld [vmem:[%s1 + $0x14c] sm:$0xf]
      %v3275 = vld [vmem:[%s1 + $0x150] sm:$0xf]
      %v3276 = vld [vmem:[%s1 + $0x154] sm:$0xf]
      %v3277 = vld [vmem:[%s1 + $0x158] sm:$0xf]
      %v3278 = vld [vmem:[%s1 + $0x15c] sm:$0xf]
      %v3279 = vld [vmem:[%s1 + $0x160] sm:$0xf]
      %v3280 = vld [vmem:[%s1 + $0x164] sm:$0xf]
      %v3281 = vld [vmem:[%s1 + $0x168] sm:$0xf]
      %v3282 = vld [vmem:[%s1 + $0x16c] sm:$0xf]
      %v3283 = vld [vmem:[%s1 + $0x170] sm:$0xf]
      %v3284 = vld [vmem:[%s1 + $0x174] sm:$0xf]
      %v3285 = vld [vmem:[%s1 + $0x178] sm:$0xf]
      %v3286 = vld [vmem:[%s1 + $0x17c] sm:$0xf]
      %v3287 = vld [vmem:[%s1 + $0x180] sm:$0xf]
      %v3288 = vld [vmem:[%s1 + $0x184] sm:$0xf]
      %v3289 = vld [vmem:[%s1 + $0x188] sm:$0xf]
      %v3290 = vld [vmem:[%s1 + $0x18c] sm:$0xf]
      %v3291 = vld [vmem:[%s1 + $0x190] sm:$0xf]
      %v3292 = vld [vmem:[%s1 + $0x194] sm:$0xf]
      %v3293 = vld [vmem:[%s1 + $0x198] sm:$0xf]
      %v3294 = vld [vmem:[%s1 + $0x19c] sm:$0xf]
      %v3295 = vld [vmem:[%s1 + $0x1a0] sm:$0xf]
      %v3296 = vld [vmem:[%s1 + $0x1a4] sm:$0xf]
      %v3297 = vld [vmem:[%s1 + $0x1a8] sm:$0xf]
      %v3298 = vld [vmem:[%s1 + $0x1ac] sm:$0xf]
      %v3299 = vld [vmem:[%s1 + $0x1b0] sm:$0xf]
      %v3300 = vld [vmem:[%s1 + $0x1b4] sm:$0xf]
      %v3301 = vld [vmem:[%s1 + $0x1b8] sm:$0xf]
      %v3302 = vld [vmem:[%s1 + $0x1bc] sm:$0xf]
      %v3303 = vld [vmem:[%s1 + $0x1c0] sm:$0xf]
      %v3304 = vld [vmem:[%s1 + $0x1c4] sm:$0xf]
      %v3305 = vld [vmem:[%s1 + $0x1c8] sm:$0xf]
      %v3306 = vld [vmem:[%s1 + $0x1cc] sm:$0xf]
      %v3307 = vld [vmem:[%s1 + $0x1d0] sm:$0xf]
      %v3308 = vld [vmem:[%s1 + $0x1d4] sm:$0xf]
      %v3309 = vld [vmem:[%s1 + $0x1d8] sm:$0xf]
      %v3310 = vld [vmem:[%s1 + $0x1dc] sm:$0xf]
      %v3311 = vld [vmem:[%s1 + $0x1e0] sm:$0xf]
      %v3312 = vld [vmem:[%s1 + $0x1e4] sm:$0xf]
      %v3313 = vld [vmem:[%s1 + $0x1e8] sm:$0xf]
      %v3314 = vld [vmem:[%s1 + $0x1ec] sm:$0xf]
      %v3315 = vld [vmem:[%s1 + $0x1f0] sm:$0xf]
      %v3316 = vld [vmem:[%s1 + $0x1f4] sm:$0xf]
      %v3317 = vld [vmem:[%s1 + $0x1f8] sm:$0xf]
      %v3318 = vld [vmem:[%s1 + $0x1fc] sm:$0xf]
      %v3319 = vld [vmem:[%s1 + $0x200] sm:$0xf]
      %v3320 = vld [vmem:[%s1 + $0x204] sm:$0xf]
      %v3321 = vld [vmem:[%s1 + $0x208] sm:$0xf]
      %v3322 = vld [vmem:[%s1 + $0x20c] sm:$0xf]
      %v3323 = vld [vmem:[%s1 + $0x210] sm:$0xf]
      %v3324 = vld [vmem:[%s1 + $0x214] sm:$0xf]
      %v3325 = vld [vmem:[%s1 + $0x218] sm:$0xf]
      %v3326 = vld [vmem:[%s1 + $0x21c] sm:$0xf]
      %v3327 = vld [vmem:[%s1 + $0x220] sm:$0xf]
      %v3328 = vld [vmem:[%s1 + $0x224] sm:$0xf]
      %v3329 = vld [vmem:[%s1 + $0x228] sm:$0xf]
      %v3330 = vld [vmem:[%s1 + $0x22c] sm:$0xf]
      %v3331 = vld [vmem:[%s1 + $0x230] sm:$0xf]
      %v3332 = vld [vmem:[%s1 + $0x234] sm:$0xf]
      %v3333 = vld [vmem:[%s1 + $0x238] sm:$0xf]
      %v3334 = vld [vmem:[%s1 + $0x23c] sm:$0xf]
      %v3335 = vld [vmem:[%s2] sm:$0x1]
      %v3337 = vlaneseq
      %v3338 = vshrl.u32 %v3337, 7
      %v3339 = vsub.s32 0, %v3338
      %v3340 = vrot.slane %v3335, %v3339
      %v3486 = vunpack.c.l.b16 %v3191
      %v3487 = vunpack.c.l.b16 %v3192
      %v3488 = vunpack.c.l.b16 %v3193
      %v3489 = vunpack.c.l.b16 %v3194
      %v3490 = vunpack.c.l.b16 %v3195
      %v3491 = vunpack.c.l.b16 %v3196
      %v3492 = vunpack.c.l.b16 %v3197
      %v3493 = vunpack.c.l.b16 %v3198
      %v3494 = vunpack.c.l.b16 %v3199
      %v3495 = vunpack.c.l.b16 %v3200
      %v3496 = vunpack.c.l.b16 %v3201
      %v3497 = vunpack.c.l.b16 %v3202
      %v3498 = vunpack.c.l.b16 %v3203
      %v3499 = vunpack.c.l.b16 %v3204
      %v3500 = vunpack.c.l.b16 %v3205
      %v3501 = vunpack.c.l.b16 %v3206
      %v3502 = vunpack.c.l.b16 %v3207
      %v3503 = vunpack.c.l.b16 %v3208
      %v3504 = vunpack.c.l.b16 %v3209
      %v3505 = vunpack.c.l.b16 %v3210
      %v3506 = vunpack.c.l.b16 %v3211
      %v3507 = vunpack.c.l.b16 %v3212
      %v3508 = vunpack.c.l.b16 %v3213
      %v3509 = vunpack.c.l.b16 %v3214
      %v3510 = vunpack.c.l.b16 %v3215
      %v3511 = vunpack.c.l.b16 %v3216
      %v3512 = vunpack.c.l.b16 %v3217
      %v3513 = vunpack.c.l.b16 %v3218
      %v3514 = vunpack.c.l.b16 %v3219
      %v3515 = vunpack.c.l.b16 %v3220
      %v3516 = vunpack.c.l.b16 %v3221
      %v3517 = vunpack.c.l.b16 %v3222
      %v3518 = vunpack.c.l.b16 %v3223
      %v3519 = vunpack.c.l.b16 %v3224
      %v3520 = vunpack.c.l.b16 %v3225
      %v3521 = vunpack.c.l.b16 %v3226
      %v3522 = vunpack.c.l.b16 %v3227
      %v3523 = vunpack.c.l.b16 %v3228
      %v3524 = vunpack.c.l.b16 %v3229
      %v3525 = vunpack.c.l.b16 %v3230
      %v3526 = vunpack.c.l.b16 %v3231
      %v3527 = vunpack.c.l.b16 %v3232
      %v3528 = vunpack.c.l.b16 %v3233
      %v3529 = vunpack.c.l.b16 %v3234
      %v3530 = vunpack.c.l.b16 %v3235
      %v3531 = vunpack.c.l.b16 %v3236
      %v3532 = vunpack.c.l.b16 %v3237
      %v3533 = vunpack.c.l.b16 %v3238
      %v3534 = vunpack.c.l.b16 %v3239
      %v3535 = vunpack.c.l.b16 %v3240
      %v3536 = vunpack.c.l.b16 %v3241
      %v3537 = vunpack.c.l.b16 %v3242
      %v3538 = vunpack.c.l.b16 %v3243
      %v3539 = vunpack.c.l.b16 %v3244
      %v3540 = vunpack.c.l.b16 %v3245
      %v3541 = vunpack.c.l.b16 %v3246
      %v3542 = vunpack.c.l.b16 %v3247
      %v3543 = vunpack.c.l.b16 %v3248
      %v3544 = vunpack.c.l.b16 %v3249
      %v3545 = vunpack.c.l.b16 %v3250
      %v3546 = vunpack.c.l.b16 %v3251
      %v3547 = vunpack.c.l.b16 %v3252
      %v3548 = vunpack.c.l.b16 %v3253
      %v3549 = vunpack.c.l.b16 %v3254
      %v3550 = vunpack.c.l.b16 %v3255
      %v3551 = vunpack.c.l.b16 %v3256
      %v3552 = vunpack.c.l.b16 %v3257
      %v3553 = vunpack.c.l.b16 %v3258
      %v3554 = vunpack.c.l.b16 %v3259
      %v3555 = vunpack.c.l.b16 %v3260
      %v3556 = vunpack.c.l.b16 %v3261
      %v3557 = vunpack.c.l.b16 %v3262
      %v3558 = vunpack.c.l.b16 %v3263
      %v3559 = vunpack.c.l.b16 %v3264
      %v3560 = vunpack.c.l.b16 %v3265
      %v3561 = vunpack.c.l.b16 %v3266
      %v3562 = vunpack.c.l.b16 %v3267
      %v3563 = vunpack.c.l.b16 %v3268
      %v3564 = vunpack.c.l.b16 %v3269
      %v3565 = vunpack.c.l.b16 %v3270
      %v3566 = vunpack.c.l.b16 %v3271
      %v3567 = vunpack.c.l.b16 %v3272
      %v3568 = vunpack.c.l.b16 %v3273
      %v3569 = vunpack.c.l.b16 %v3274
      %v3570 = vunpack.c.l.b16 %v3275
      %v3571 = vunpack.c.l.b16 %v3276
      %v3572 = vunpack.c.l.b16 %v3277
      %v3573 = vunpack.c.l.b16 %v3278
      %v3574 = vunpack.c.l.b16 %v3279
      %v3575 = vunpack.c.l.b16 %v3280
      %v3576 = vunpack.c.l.b16 %v3281
      %v3577 = vunpack.c.l.b16 %v3282
      %v3578 = vunpack.c.l.b16 %v3283
      %v3579 = vunpack.c.l.b16 %v3284
      %v3580 = vunpack.c.l.b16 %v3285
      %v3581 = vunpack.c.l.b16 %v3286
      %v3582 = vunpack.c.l.b16 %v3287
      %v3583 = vunpack.c.l.b16 %v3288
      %v3584 = vunpack.c.l.b16 %v3289
      %v3585 = vunpack.c.l.b16 %v3290
      %v3586 = vunpack.c.l.b16 %v3291
      %v3587 = vunpack.c.l.b16 %v3292
      %v3588 = vunpack.c.l.b16 %v3293
      %v3589 = vunpack.c.l.b16 %v3294
      %v3590 = vunpack.c.l.b16 %v3295
      %v3591 = vunpack.c.l.b16 %v3296
      %v3592 = vunpack.c.l.b16 %v3297
      %v3593 = vunpack.c.l.b16 %v3298
      %v3594 = vunpack.c.l.b16 %v3299
      %v3595 = vunpack.c.l.b16 %v3300
      %v3596 = vunpack.c.l.b16 %v3301
      %v3597 = vunpack.c.l.b16 %v3302
      %v3598 = vunpack.c.l.b16 %v3303
      %v3599 = vunpack.c.l.b16 %v3304
      %v3600 = vunpack.c.l.b16 %v3305
      %v3601 = vunpack.c.l.b16 %v3306
      %v3602 = vunpack.c.l.b16 %v3307
      %v3603 = vunpack.c.l.b16 %v3308
      %v3604 = vunpack.c.l.b16 %v3309
      %v3605 = vunpack.c.l.b16 %v3310
      %v3606 = vunpack.c.l.b16 %v3311
      %v3607 = vunpack.c.l.b16 %v3312
      %v3608 = vunpack.c.l.b16 %v3313
      %v3609 = vunpack.c.l.b16 %v3314
      %v3610 = vunpack.c.l.b16 %v3315
      %v3611 = vunpack.c.l.b16 %v3316
      %v3612 = vunpack.c.l.b16 %v3317
      %v3613 = vunpack.c.l.b16 %v3318
      %v3614 = vunpack.c.l.b16 %v3319
      %v3615 = vunpack.c.l.b16 %v3320
      %v3616 = vunpack.c.l.b16 %v3321
      %v3617 = vunpack.c.l.b16 %v3322
      %v3618 = vunpack.c.l.b16 %v3323
      %v3619 = vunpack.c.l.b16 %v3324
      %v3620 = vunpack.c.l.b16 %v3325
      %v3621 = vunpack.c.l.b16 %v3326
      %v3622 = vunpack.c.l.b16 %v3327
      %v3623 = vunpack.c.l.b16 %v3328
      %v3624 = vunpack.c.l.b16 %v3329
      %v3625 = vunpack.c.l.b16 %v3330
      %v3626 = vunpack.c.l.b16 %v3331
      %v3627 = vunpack.c.l.b16 %v3332
      %v3628 = vunpack.c.l.b16 %v3333
      %v3629 = vunpack.c.l.b16 %v3334
      %v3630 = vpack.c.b16 %v3487, %v3486
      %v3631 = vpack.c.b16 %v3489, %v3488
      %v3632 = vpack.c.b16 %v3491, %v3490
      %v3633 = vpack.c.b16 %v3493, %v3492
      %v3634 = vpack.c.b16 %v3495, %v3494
      %v3635 = vpack.c.b16 %v3497, %v3496
      %v3636 = vpack.c.b16 %v3499, %v3498
      %v3637 = vpack.c.b16 %v3501, %v3500
      %v3638 = vpack.c.b16 %v3503, %v3502
      %v3639 = vpack.c.b16 %v3505, %v3504
      %v3640 = vpack.c.b16 %v3507, %v3506
      %v3641 = vpack.c.b16 %v3509, %v3508
      %v3642 = vpack.c.b16 %v3511, %v3510
      %v3643 = vpack.c.b16 %v3513, %v3512
      %v3644 = vpack.c.b16 %v3515, %v3514
      %v3645 = vpack.c.b16 %v3517, %v3516
      %v3646 = vpack.c.b16 %v3519, %v3518
      %v3647 = vpack.c.b16 %v3521, %v3520
      %v3648 = vpack.c.b16 %v3523, %v3522
      %v3649 = vpack.c.b16 %v3525, %v3524
      %v3650 = vpack.c.b16 %v3527, %v3526
      %v3651 = vpack.c.b16 %v3529, %v3528
      %v3652 = vpack.c.b16 %v3531, %v3530
      %v3653 = vpack.c.b16 %v3533, %v3532
      %v3654 = vpack.c.b16 %v3535, %v3534
      %v3655 = vpack.c.b16 %v3537, %v3536
      %v3656 = vpack.c.b16 %v3539, %v3538
      %v3657 = vpack.c.b16 %v3541, %v3540
      %v3658 = vpack.c.b16 %v3543, %v3542
      %v3659 = vpack.c.b16 %v3545, %v3544
      %v3660 = vpack.c.b16 %v3547, %v3546
      %v3661 = vpack.c.b16 %v3549, %v3548
      %v3662 = vpack.c.b16 %v3551, %v3550
      %v3663 = vpack.c.b16 %v3553, %v3552
      %v3664 = vpack.c.b16 %v3555, %v3554
      %v3665 = vpack.c.b16 %v3557, %v3556
      %v3666 = vpack.c.b16 %v3559, %v3558
      %v3667 = vpack.c.b16 %v3561, %v3560
      %v3668 = vpack.c.b16 %v3563, %v3562
      %v3669 = vpack.c.b16 %v3565, %v3564
      %v3670 = vpack.c.b16 %v3567, %v3566
      %v3671 = vpack.c.b16 %v3569, %v3568
      %v3672 = vpack.c.b16 %v3571, %v3570
      %v3673 = vpack.c.b16 %v3573, %v3572
      %v3674 = vpack.c.b16 %v3575, %v3574
      %v3675 = vpack.c.b16 %v3577, %v3576
      %v3676 = vpack.c.b16 %v3579, %v3578
      %v3677 = vpack.c.b16 %v3581, %v3580
      %v3678 = vpack.c.b16 %v3583, %v3582
      %v3679 = vpack.c.b16 %v3585, %v3584
      %v3680 = vpack.c.b16 %v3587, %v3586
      %v3681 = vpack.c.b16 %v3589, %v3588
      %v3682 = vpack.c.b16 %v3591, %v3590
      %v3683 = vpack.c.b16 %v3593, %v3592
      %v3684 = vpack.c.b16 %v3595, %v3594
      %v3685 = vpack.c.b16 %v3597, %v3596
      %v3686 = vpack.c.b16 %v3599, %v3598
      %v3687 = vpack.c.b16 %v3601, %v3600
      %v3688 = vpack.c.b16 %v3603, %v3602
      %v3689 = vpack.c.b16 %v3605, %v3604
      %v3690 = vpack.c.b16 %v3607, %v3606
      %v3691 = vpack.c.b16 %v3609, %v3608
      %v3692 = vpack.c.b16 %v3611, %v3610
      %v3693 = vpack.c.b16 %v3613, %v3612
      %v3694 = vpack.c.b16 %v3615, %v3614
      %v3695 = vpack.c.b16 %v3617, %v3616
      %v3696 = vpack.c.b16 %v3619, %v3618
      %v3697 = vpack.c.b16 %v3621, %v3620
      %v3698 = vpack.c.b16 %v3623, %v3622
      %v3699 = vpack.c.b16 %v3625, %v3624
      %v3700 = vpack.c.b16 %v3627, %v3626
      %v3701 = vpack.c.b16 %v3629, %v3628
      %3774 = vmatprep.subr.bf16.mxu0 0
      %3775 = vmatpush1.bf16.msra.mxu0 %v3630
      %3776 = vmatprep.subr.bf16.mxu0 0
      %3777 = vmatpush1.bf16.msra.mxu0 %v3631
      %3778 = vmatprep.subr.bf16.mxu0 0
      %3779 = vmatpush1.bf16.msra.mxu0 %v3632
      %3780 = vmatprep.subr.bf16.mxu0 0
      %3781 = vmatpush1.bf16.msra.mxu0 %v3633
      %3782 = vmatprep.subr.bf16.mxu0 0
      %3783 = vmatpush1.bf16.msra.mxu0 %v3634
      %3784 = vmatprep.subr.bf16.mxu0 0
      %3785 = vmatpush1.bf16.msra.mxu0 %v3635
      %3786 = vmatprep.subr.bf16.mxu0 0
      %3787 = vmatpush1.bf16.msra.mxu0 %v3636
      %3788 = vmatprep.subr.bf16.mxu0 0
      %3789 = vmatpush1.bf16.msra.mxu0 %v3637
      %3790 = vmatprep.subr.bf16.mxu0 0
      %3791 = vmatpush1.bf16.msra.mxu0 %v3638
      %3792 = vmatprep.subr.bf16.mxu0 0
      %3793 = vmatpush1.bf16.msra.mxu0 %v3639
      %3794 = vmatprep.subr.bf16.mxu0 0
      %3795 = vmatpush1.bf16.msra.mxu0 %v3640
      %3796 = vmatprep.subr.bf16.mxu0 0
      %3797 = vmatpush1.bf16.msra.mxu0 %v3641
      %3798 = vmatprep.subr.bf16.mxu0 0
      %3799 = vmatpush1.bf16.msra.mxu0 %v3642
      %3800 = vmatprep.subr.bf16.mxu0 0
      %3801 = vmatpush1.bf16.msra.mxu0 %v3643
      %3802 = vmatprep.subr.bf16.mxu0 0
      %3803 = vmatpush1.bf16.msra.mxu0 %v3644
      %3804 = vmatprep.subr.bf16.mxu0 0
      %3805 = vmatpush1.bf16.msra.mxu0 %v3645
      %3806 = vmatprep.mubr.bf16.mxu0 %v3048
      %3807 = vmatmul.mubr.bf16.gmra.mrb[0].mxu0 %v3047
      %v3808 = vpop.f32.mrb[0].mxu0
      %v3809 = vadd.f32 %v3340, %v3808
      %v3810 = vpop.f32.mrb[0].mxu0
      %v3811 = vpop.f32.mrb[0].mxu0
      %v3812 = vadd.f32 %v3340, %v3811
      %v3813 = vpop.f32.mrb[0].mxu0
      %3814 = vmatprep.mubr.bf16.mxu0 %v3057
      %3815 = vmatmul.mubr.bf16.gmra.mrb[0].mxu0 %v3056
      %v3816 = vpop.f32.mrb[0].mxu0
      %v3817 = vadd.f32 %v3340, %v3816
      %v3818 = vpop.f32.mrb[0].mxu0
      %v3819 = vpop.f32.mrb[0].mxu0
      %v3820 = vadd.f32 %v3340, %v3819
      %v3821 = vpop.f32.mrb[0].mxu0
      %3822 = vmatprep.mubr.bf16.mxu0 %v3066
      %3823 = vmatmul.mubr.bf16.gmra.mrb[0].mxu0 %v3065
      %v3824 = vpop.f32.mrb[0].mxu0
      %v3825 = vadd.f32 %v3340, %v3824
      %v3826 = vpop.f32.mrb[0].mxu0
      %v3827 = vpop.f32.mrb[0].mxu0
      %v3828 = vadd.f32 %v3340, %v3827
      %v3829 = vpop.f32.mrb[0].mxu0
      %3830 = vmatprep.mubr.bf16.mxu0 %v3075
      %3831 = vmatmul.mubr.bf16.gmra.mrb[0].mxu0 %v3074
      %v3832 = vpop.f32.mrb[0].mxu0
      %v3833 = vadd.f32 %v3340, %v3832
      %v3834 = vpop.f32.mrb[0].mxu0
      %v3835 = vpop.f32.mrb[0].mxu0
      %v3836 = vadd.f32 %v3340, %v3835
      %v3837 = vpop.f32.mrb[0].mxu0
      %3838 = vmatprep.mubr.bf16.mxu0 %v3084
      %3839 = vmatmul.mubr.bf16.gmra.mrb[0].mxu0 %v3083
      %v3840 = vpop.f32.mrb[0].mxu0
      %v3841 = vadd.f32 %v3340, %v3840
      %v3842 = vpop.f32.mrb[0].mxu0
      %v3843 = vpop.f32.mrb[0].mxu0
      %v3844 = vadd.f32 %v3340, %v3843
      %v3845 = vpop.f32.mrb[0].mxu0
      %3846 = vmatprep.mubr.bf16.mxu0 %v3093
      %3847 = vmatmul.mubr.bf16.gmra.mrb[0].mxu0 %v3092
      %v3848 = vpop.f32.mrb[0].mxu0
      %v3849 = vadd.f32 %v3340, %v3848
      %v3850 = vpop.f32.mrb[0].mxu0
      %v3851 = vpop.f32.mrb[0].mxu0
      %v3852 = vadd.f32 %v3340, %v3851
      %v3853 = vpop.f32.mrb[0].mxu0
      %3854 = vmatprep.mubr.bf16.mxu0 %v3102
      %3855 = vmatmul.mubr.bf16.gmra.mrb[0].mxu0 %v3101
      %v3856 = vpop.f32.mrb[0].mxu0
      %v3857 = vadd.f32 %v3340, %v3856
      %v3858 = vpop.f32.mrb[0].mxu0
      %v3859 = vpop.f32.mrb[0].mxu0
      %v3860 = vadd.f32 %v3340, %v3859
      %v3861 = vpop.f32.mrb[0].mxu0
      %3862 = vmatprep.mubr.bf16.mxu0 %v3111
      %3863 = vmatmul.mubr.bf16.gmra.mrb[0].mxu0 %v3110
      %v3864 = vpop.f32.mrb[0].mxu0
      %v3865 = vadd.f32 %v3340, %v3864
      %v3866 = vpop.f32.mrb[0].mxu0
      %v3867 = vpop.f32.mrb[0].mxu0
      %v3868 = vadd.f32 %v3340, %v3867
      %v3869 = vpop.f32.mrb[0].mxu0
      %3870 = vmatprep.mubr.bf16.mxu0 %v3120
      %3871 = vmatmul.mubr.bf16.gmra.mrb[0].mxu0 %v3119
      %v3872 = vpop.f32.mrb[0].mxu0
      %v3873 = vadd.f32 %v3340, %v3872
      %v3874 = vpop.f32.mrb[0].mxu0
      %v3875 = vpop.f32.mrb[0].mxu0
      %v3876 = vadd.f32 %v3340, %v3875
      %v3877 = vpop.f32.mrb[0].mxu0
      %3878 = vmatprep.mubr.bf16.mxu0 %v3129
      %3879 = vmatmul.mubr.bf16.gmra.mrb[0].mxu0 %v3128
      %v3880 = vpop.f32.mrb[0].mxu0
      %v3881 = vadd.f32 %v3340, %v3880
      %v3882 = vpop.f32.mrb[0].mxu0
      %v3883 = vpop.f32.mrb[0].mxu0
      %v3884 = vadd.f32 %v3340, %v3883
      %v3885 = vpop.f32.mrb[0].mxu0
      %3886 = vmatprep.mubr.bf16.mxu0 %v3138
      %3887 = vmatmul.mubr.bf16.gmra.mrb[0].mxu0 %v3137
      %v3888 = vpop.f32.mrb[0].mxu0
      %v3889 = vadd.f32 %v3340, %v3888
      %v3890 = vpop.f32.mrb[0].mxu0
      %v3891 = vpop.f32.mrb[0].mxu0
      %v3892 = vadd.f32 %v3340, %v3891
      %v3893 = vpop.f32.mrb[0].mxu0
      %3894 = vmatprep.mubr.bf16.mxu0 %v3147
      %3895 = vmatmul.mubr.bf16.gmra.mrb[0].mxu0 %v3146
      %v3896 = vpop.f32.mrb[0].mxu0
      %v3897 = vadd.f32 %v3340, %v3896
      %v3898 = vpop.f32.mrb[0].mxu0
      %v3899 = vpop.f32.mrb[0].mxu0
      %v3900 = vadd.f32 %v3340, %v3899
      %v3901 = vpop.f32.mrb[0].mxu0
      %3902 = vmatprep.mubr.bf16.mxu0 %v3156
      %3903 = vmatmul.mubr.bf16.gmra.mrb[0].mxu0 %v3155
      %v3904 = vpop.f32.mrb[0].mxu0
      %v3905 = vadd.f32 %v3340, %v3904
      %v3906 = vpop.f32.mrb[0].mxu0
      %v3907 = vpop.f32.mrb[0].mxu0
      %v3908 = vadd.f32 %v3340, %v3907
      %v3909 = vpop.f32.mrb[0].mxu0
      %3910 = vmatprep.mubr.bf16.mxu0 %v3165
      %3911 = vmatmul.mubr.bf16.gmra.mrb[0].mxu0 %v3164
      %v3912 = vpop.f32.mrb[0].mxu0
      %v3913 = vadd.f32 %v3340, %v3912
      %v3914 = vpop.f32.mrb[0].mxu0
      %v3915 = vpop.f32.mrb[0].mxu0
      %v3916 = vadd.f32 %v3340, %v3915
      %v3917 = vpop.f32.mrb[0].mxu0
      %3918 = vmatprep.mubr.bf16.mxu0 %v3174
      %3919 = vmatmul.mubr.bf16.gmra.mrb[0].mxu0 %v3173
      %v3920 = vpop.f32.mrb[0].mxu0
      %v3921 = vadd.f32 %v3340, %v3920
      %v3922 = vpop.f32.mrb[0].mxu0
      %v3923 = vpop.f32.mrb[0].mxu0
      %v3924 = vadd.f32 %v3340, %v3923
      %v3925 = vpop.f32.mrb[0].mxu0
      %3926 = vmatprep.mubr.bf16.mxu0 %v3183
      %3927 = vmatmul.mubr.bf16.gmra.mrb[0].mxu0 %v3182
      %v3928 = vpop.f32.mrb[0].mxu0
      %v3929 = vadd.f32 %v3340, %v3928
      %v3930 = vpop.f32.mrb[0].mxu0
      %v3931 = vpop.f32.mrb[0].mxu0
      %v3932 = vadd.f32 %v3340, %v3931
      %v3933 = vpop.f32.mrb[0].mxu0
      %3934 = vdwg.mxu0
      %3935 = vmatprep.subr.bf16.mxu0 0
      %3936 = vmatpush1.bf16.msra.mxu0 %v3646
      %3937 = vmatprep.subr.bf16.mxu0 0
      %3938 = vmatpush1.bf16.msra.mxu0 %v3647
      %3939 = vmatprep.subr.bf16.mxu0 0
      %3940 = vmatpush1.bf16.msra.mxu0 %v3648
      %3941 = vmatprep.subr.bf16.mxu0 0
      %3942 = vmatpush1.bf16.msra.mxu0 %v3649
      %3943 = vmatprep.subr.bf16.mxu0 0
      %3944 = vmatpush1.bf16.msra.mxu0 %v3650
      %3945 = vmatprep.subr.bf16.mxu0 0
      %3946 = vmatpush1.bf16.msra.mxu0 %v3651
      %3947 = vmatprep.subr.bf16.mxu0 0
      %3948 = vmatpush1.bf16.msra.mxu0 %v3652
      %3949 = vmatprep.subr.bf16.mxu0 0
      %3950 = vmatpush1.bf16.msra.mxu0 %v3653
      %3951 = vmatprep.subr.bf16.mxu0 0
      %3952 = vmatpush1.bf16.msra.mxu0 %v3654
      %3953 = vmatprep.subr.bf16.mxu0 0
      %3954 = vmatpush1.bf16.msra.mxu0 %v3655
      %3955 = vmatprep.subr.bf16.mxu0 0
      %3956 = vmatpush1.bf16.msra.mxu0 %v3656
      %3957 = vmatprep.subr.bf16.mxu0 0
      %3958 = vmatpush1.bf16.msra.mxu0 %v3657
      %3959 = vmatprep.subr.bf16.mxu0 0
      %3960 = vmatpush1.bf16.msra.mxu0 %v3658
      %3961 = vmatprep.subr.bf16.mxu0 0
      %3962 = vmatpush1.bf16.msra.mxu0 %v3659
      %3963 = vmatprep.subr.bf16.mxu0 0
      %3964 = vmatpush1.bf16.msra.mxu0 %v3660
      %3965 = vmatprep.subr.bf16.mxu0 0
      %3966 = vmatpush1.bf16.msra.mxu0 %v3661
      %3967 = vmatprep.mubr.bf16.mxu0 %v3050
      %3968 = vmatmul.mubr.bf16.gmra.mrb[0].mxu0 %v3049
      %v3969 = vpop.f32.mrb[0].mxu0
      %v3970 = vadd.f32 %v3809, %v3969
      %v3971 = vpop.f32.mrb[0].mxu0
      %v3972 = vpop.f32.mrb[0].mxu0
      %v3973 = vadd.f32 %v3812, %v3972
      %v3974 = vpop.f32.mrb[0].mxu0
      %3975 = vmatprep.mubr.bf16.mxu0 %v3059
      %3976 = vmatmul.mubr.bf16.gmra.mrb[0].mxu0 %v3058
      %v3977 = vpop.f32.mrb[0].mxu0
      %v3978 = vadd.f32 %v3817, %v3977
      %v3979 = vpop.f32.mrb[0].mxu0
      %v3980 = vpop.f32.mrb[0].mxu0
      %v3981 = vadd.f32 %v3820, %v3980
      %v3982 = vpop.f32.mrb[0].mxu0
      %3983 = vmatprep.mubr.bf16.mxu0 %v3068
      %3984 = vmatmul.mubr.bf16.gmra.mrb[0].mxu0 %v3067
      %v3985 = vpop.f32.mrb[0].mxu0
      %v3986 = vadd.f32 %v3825, %v3985
      %v3987 = vpop.f32.mrb[0].mxu0
      %v3988 = vpop.f32.mrb[0].mxu0
      %v3989 = vadd.f32 %v3828, %v3988
      %v3990 = vpop.f32.mrb[0].mxu0
      %3991 = vmatprep.mubr.bf16.mxu0 %v3077
      %3992 = vmatmul.mubr.bf16.gmra.mrb[0].mxu0 %v3076
      %v3993 = vpop.f32.mrb[0].mxu0
      %v3994 = vadd.f32 %v3833, %v3993
      %v3995 = vpop.f32.mrb[0].mxu0
      %v3996 = vpop.f32.mrb[0].mxu0
      %v3997 = vadd.f32 %v3836, %v3996
      %v3998 = vpop.f32.mrb[0].mxu0
      %3999 = vmatprep.mubr.bf16.mxu0 %v3086
      %4000 = vmatmul.mubr.bf16.gmra.mrb[0].mxu0 %v3085
      %v4001 = vpop.f32.mrb[0].mxu0
      %v4002 = vadd.f32 %v3841, %v4001
      %v4003 = vpop.f32.mrb[0].mxu0
      %v4004 = vpop.f32.mrb[0].mxu0
      %v4005 = vadd.f32 %v3844, %v4004
      %v4006 = vpop.f32.mrb[0].mxu0
      %4007 = vmatprep.mubr.bf16.mxu0 %v3095
      %4008 = vmatmul.mubr.bf16.gmra.mrb[0].mxu0 %v3094
      %v4009 = vpop.f32.mrb[0].mxu0
      %v4010 = vadd.f32 %v3849, %v4009
      %v4011 = vpop.f32.mrb[0].mxu0
      %v4012 = vpop.f32.mrb[0].mxu0
      %v4013 = vadd.f32 %v3852, %v4012
      %v4014 = vpop.f32.mrb[0].mxu0
      %4015 = vmatprep.mubr.bf16.mxu0 %v3104
      %4016 = vmatmul.mubr.bf16.gmra.mrb[0].mxu0 %v3103
      %v4017 = vpop.f32.mrb[0].mxu0
      %v4018 = vadd.f32 %v3857, %v4017
      %v4019 = vpop.f32.mrb[0].mxu0
      %v4020 = vpop.f32.mrb[0].mxu0
      %v4021 = vadd.f32 %v3860, %v4020
      %v4022 = vpop.f32.mrb[0].mxu0
      %4023 = vmatprep.mubr.bf16.mxu0 %v3113
      %4024 = vmatmul.mubr.bf16.gmra.mrb[0].mxu0 %v3112
      %v4025 = vpop.f32.mrb[0].mxu0
      %v4026 = vadd.f32 %v3865, %v4025
      %v4027 = vpop.f32.mrb[0].mxu0
      %v4028 = vpop.f32.mrb[0].mxu0
      %v4029 = vadd.f32 %v3868, %v4028
      %v4030 = vpop.f32.mrb[0].mxu0
      %4031 = vmatprep.mubr.bf16.mxu0 %v3122
      %4032 = vmatmul.mubr.bf16.gmra.mrb[0].mxu0 %v3121
      %v4033 = vpop.f32.mrb[0].mxu0
      %v4034 = vadd.f32 %v3873, %v4033
      %v4035 = vpop.f32.mrb[0].mxu0
      %v4036 = vpop.f32.mrb[0].mxu0
      %v4037 = vadd.f32 %v3876, %v4036
      %v4038 = vpop.f32.mrb[0].mxu0
      %4039 = vmatprep.mubr.bf16.mxu0 %v3131
      %4040 = vmatmul.mubr.bf16.gmra.mrb[0].mxu0 %v3130
      %v4041 = vpop.f32.mrb[0].mxu0
      %v4042 = vadd.f32 %v3881, %v4041
      %v4043 = vpop.f32.mrb[0].mxu0
      %v4044 = vpop.f32.mrb[0].mxu0
      %v4045 = vadd.f32 %v3884, %v4044
      %v4046 = vpop.f32.mrb[0].mxu0
      %4047 = vmatprep.mubr.bf16.mxu0 %v3140
      %4048 = vmatmul.mubr.bf16.gmra.mrb[0].mxu0 %v3139
      %v4049 = vpop.f32.mrb[0].mxu0
      %v4050 = vadd.f32 %v3889, %v4049
      %v4051 = vpop.f32.mrb[0].mxu0
      %v4052 = vpop.f32.mrb[0].mxu0
      %v4053 = vadd.f32 %v3892, %v4052
      %v4054 = vpop.f32.mrb[0].mxu0
      %4055 = vmatprep.mubr.bf16.mxu0 %v3149
      %4056 = vmatmul.mubr.bf16.gmra.mrb[0].mxu0 %v3148
      %v4057 = vpop.f32.mrb[0].mxu0
      %v4058 = vadd.f32 %v3897, %v4057
      %v4059 = vpop.f32.mrb[0].mxu0
      %v4060 = vpop.f32.mrb[0].mxu0
      %v4061 = vadd.f32 %v3900, %v4060
      %v4062 = vpop.f32.mrb[0].mxu0
      %4063 = vmatprep.mubr.bf16.mxu0 %v3158
      %4064 = vmatmul.mubr.bf16.gmra.mrb[0].mxu0 %v3157
      %v4065 = vpop.f32.mrb[0].mxu0
      %v4066 = vadd.f32 %v3905, %v4065
      %v4067 = vpop.f32.mrb[0].mxu0
      %v4068 = vpop.f32.mrb[0].mxu0
      %v4069 = vadd.f32 %v3908, %v4068
      %v4070 = vpop.f32.mrb[0].mxu0
      %4071 = vmatprep.mubr.bf16.mxu0 %v3167
      %4072 = vmatmul.mubr.bf16.gmra.mrb[0].mxu0 %v3166
      %v4073 = vpop.f32.mrb[0].mxu0
      %v4074 = vadd.f32 %v3913, %v4073
      %v4075 = vpop.f32.mrb[0].mxu0
      %v4076 = vpop.f32.mrb[0].mxu0
      %v4077 = vadd.f32 %v3916, %v4076
      %v4078 = vpop.f32.mrb[0].mxu0
      %4079 = vmatprep.mubr.bf16.mxu0 %v3176
      %4080 = vmatmul.mubr.bf16.gmra.mrb[0].mxu0 %v3175
      %v4081 = vpop.f32.mrb[0].mxu0
      %v4082 = vadd.f32 %v3921, %v4081
      %v4083 = vpop.f32.mrb[0].mxu0
      %v4084 = vpop.f32.mrb[0].mxu0
      %v4085 = vadd.f32 %v3924, %v4084
      %v4086 = vpop.f32.mrb[0].mxu0
      %4087 = vmatprep.mubr.bf16.mxu0 %v3185
      %4088 = vmatmul.mubr.bf16.gmra.mrb[0].mxu0 %v3184
      %v4089 = vpop.f32.mrb[0].mxu0
      %v4090 = vadd.f32 %v3929, %v4089
      %v4091 = vpop.f32.mrb[0].mxu0
      %v4092 = vpop.f32.mrb[0].mxu0
      %v4093 = vadd.f32 %v3932, %v4092
      %v4094 = vpop.f32.mrb[0].mxu0
      %4095 = vdwg.mxu0
      %4096 = vmatprep.subr.bf16.mxu0 0
      %4097 = vmatpush1.bf16.msra.mxu0 %v3662
      %4098 = vmatprep.subr.bf16.mxu0 0
      %4099 = vmatpush1.bf16.msra.mxu0 %v3663
      %4100 = vmatprep.subr.bf16.mxu0 0
      %4101 = vmatpush1.bf16.msra.mxu0 %v3664
      %4102 = vmatprep.subr.bf16.mxu0 0
      %4103 = vmatpush1.bf16.msra.mxu0 %v3665
      %4104 = vmatprep.subr.bf16.mxu0 0
      %4105 = vmatpush1.bf16.msra.mxu0 %v3666
      %4106 = vmatprep.subr.bf16.mxu0 0
      %4107 = vmatpush1.bf16.msra.mxu0 %v3667
      %4108 = vmatprep.subr.bf16.mxu0 0
      %4109 = vmatpush1.bf16.msra.mxu0 %v3668
      %4110 = vmatprep.subr.bf16.mxu0 0
      %4111 = vmatpush1.bf16.msra.mxu0 %v3669
      %4112 = vmatprep.subr.bf16.mxu0 0
      %4113 = vmatpush1.bf16.msra.mxu0 %v3670
      %4114 = vmatprep.subr.bf16.mxu0 0
      %4115 = vmatpush1.bf16.msra.mxu0 %v3671
      %4116 = vmatprep.subr.bf16.mxu0 0
      %4117 = vmatpush1.bf16.msra.mxu0 %v3672
      %4118 = vmatprep.subr.bf16.mxu0 0
      %4119 = vmatpush1.bf16.msra.mxu0 %v3673
      %4120 = vmatprep.subr.bf16.mxu0 0
      %4121 = vmatpush1.bf16.msra.mxu0 %v3674
      %4122 = vmatprep.subr.bf16.mxu0 0
      %4123 = vmatpush1.bf16.msra.mxu0 %v3675
      %4124 = vmatprep.subr.bf16.mxu0 0
      %4125 = vmatpush1.bf16.msra.mxu0 %v3676
      %4126 = vmatprep.subr.bf16.mxu0 0
      %4127 = vmatpush1.bf16.msra.mxu0 %v3677
      %4128 = vmatprep.mubr.bf16.mxu0 %v3052
      %4129 = vmatmul.mubr.bf16.gmra.mrb[0].mxu0 %v3051
      %v4130 = vpop.f32.mrb[0].mxu0
      %v4131 = vadd.f32 %v3970, %v4130
      %v4132 = vpop.f32.mrb[0].mxu0
      %v4133 = vpop.f32.mrb[0].mxu0
      %v4134 = vadd.f32 %v3973, %v4133
      %v4135 = vpop.f32.mrb[0].mxu0
      %4136 = vmatprep.mubr.bf16.mxu0 %v3061
      %4137 = vmatmul.mubr.bf16.gmra.mrb[0].mxu0 %v3060
      %v4138 = vpop.f32.mrb[0].mxu0
      %v4139 = vadd.f32 %v3978, %v4138
      %v4140 = vpop.f32.mrb[0].mxu0
      %v4141 = vpop.f32.mrb[0].mxu0
      %v4142 = vadd.f32 %v3981, %v4141
      %v4143 = vpop.f32.mrb[0].mxu0
      %4144 = vmatprep.mubr.bf16.mxu0 %v3070
      %4145 = vmatmul.mubr.bf16.gmra.mrb[0].mxu0 %v3069
      %v4146 = vpop.f32.mrb[0].mxu0
      %v4147 = vadd.f32 %v3986, %v4146
      %v4148 = vpop.f32.mrb[0].mxu0
      %v4149 = vpop.f32.mrb[0].mxu0
      %v4150 = vadd.f32 %v3989, %v4149
      %v4151 = vpop.f32.mrb[0].mxu0
      %4152 = vmatprep.mubr.bf16.mxu0 %v3079
      %4153 = vmatmul.mubr.bf16.gmra.mrb[0].mxu0 %v3078
      %v4154 = vpop.f32.mrb[0].mxu0
      %v4155 = vadd.f32 %v3994, %v4154
      %v4156 = vpop.f32.mrb[0].mxu0
      %v4157 = vpop.f32.mrb[0].mxu0
      %v4158 = vadd.f32 %v3997, %v4157
      %v4159 = vpop.f32.mrb[0].mxu0
      %4160 = vmatprep.mubr.bf16.mxu0 %v3088
      %4161 = vmatmul.mubr.bf16.gmra.mrb[0].mxu0 %v3087
      %v4162 = vpop.f32.mrb[0].mxu0
      %v4163 = vadd.f32 %v4002, %v4162
      %v4164 = vpop.f32.mrb[0].mxu0
      %v4165 = vpop.f32.mrb[0].mxu0
      %v4166 = vadd.f32 %v4005, %v4165
      %v4167 = vpop.f32.mrb[0].mxu0
      %4168 = vmatprep.mubr.bf16.mxu0 %v3097
      %4169 = vmatmul.mubr.bf16.gmra.mrb[0].mxu0 %v3096
      %v4170 = vpop.f32.mrb[0].mxu0
      %v4171 = vadd.f32 %v4010, %v4170
      %v4172 = vpop.f32.mrb[0].mxu0
      %v4173 = vpop.f32.mrb[0].mxu0
      %v4174 = vadd.f32 %v4013, %v4173
      %v4175 = vpop.f32.mrb[0].mxu0
      %4176 = vmatprep.mubr.bf16.mxu0 %v3106
      %4177 = vmatmul.mubr.bf16.gmra.mrb[0].mxu0 %v3105
      %v4178 = vpop.f32.mrb[0].mxu0
      %v4179 = vadd.f32 %v4018, %v4178
      %v4180 = vpop.f32.mrb[0].mxu0
      %v4181 = vpop.f32.mrb[0].mxu0
      %v4182 = vadd.f32 %v4021, %v4181
      %v4183 = vpop.f32.mrb[0].mxu0
      %4184 = vmatprep.mubr.bf16.mxu0 %v3115
      %4185 = vmatmul.mubr.bf16.gmra.mrb[0].mxu0 %v3114
      %v4186 = vpop.f32.mrb[0].mxu0
      %v4187 = vadd.f32 %v4026, %v4186
      %v4188 = vpop.f32.mrb[0].mxu0
      %v4189 = vpop.f32.mrb[0].mxu0
      %v4190 = vadd.f32 %v4029, %v4189
      %v4191 = vpop.f32.mrb[0].mxu0
      %4192 = vmatprep.mubr.bf16.mxu0 %v3124
      %4193 = vmatmul.mubr.bf16.gmra.mrb[0].mxu0 %v3123
      %v4194 = vpop.f32.mrb[0].mxu0
      %v4195 = vadd.f32 %v4034, %v4194
      %v4196 = vpop.f32.mrb[0].mxu0
      %v4197 = vpop.f32.mrb[0].mxu0
      %v4198 = vadd.f32 %v4037, %v4197
      %v4199 = vpop.f32.mrb[0].mxu0
      %4200 = vmatprep.mubr.bf16.mxu0 %v3133
      %4201 = vmatmul.mubr.bf16.gmra.mrb[0].mxu0 %v3132
      %v4202 = vpop.f32.mrb[0].mxu0
      %v4203 = vadd.f32 %v4042, %v4202
      %v4204 = vpop.f32.mrb[0].mxu0
      %v4205 = vpop.f32.mrb[0].mxu0
      %v4206 = vadd.f32 %v4045, %v4205
      %v4207 = vpop.f32.mrb[0].mxu0
      %4208 = vmatprep.mubr.bf16.mxu0 %v3142
      %4209 = vmatmul.mubr.bf16.gmra.mrb[0].mxu0 %v3141
      %v4210 = vpop.f32.mrb[0].mxu0
      %v4211 = vadd.f32 %v4050, %v4210
      %v4212 = vpop.f32.mrb[0].mxu0
      %v4213 = vpop.f32.mrb[0].mxu0
      %v4214 = vadd.f32 %v4053, %v4213
      %v4215 = vpop.f32.mrb[0].mxu0
      %4216 = vmatprep.mubr.bf16.mxu0 %v3151
      %4217 = vmatmul.mubr.bf16.gmra.mrb[0].mxu0 %v3150
      %v4218 = vpop.f32.mrb[0].mxu0
      %v4219 = vadd.f32 %v4058, %v4218
      %v4220 = vpop.f32.mrb[0].mxu0
      %v4221 = vpop.f32.mrb[0].mxu0
      %v4222 = vadd.f32 %v4061, %v4221
      %v4223 = vpop.f32.mrb[0].mxu0
      %4224 = vmatprep.mubr.bf16.mxu0 %v3160
      %4225 = vmatmul.mubr.bf16.gmra.mrb[0].mxu0 %v3159
      %v4226 = vpop.f32.mrb[0].mxu0
      %v4227 = vadd.f32 %v4066, %v4226
      %v4228 = vpop.f32.mrb[0].mxu0
      %v4229 = vpop.f32.mrb[0].mxu0
      %v4230 = vadd.f32 %v4069, %v4229
      %v4231 = vpop.f32.mrb[0].mxu0
      %4232 = vmatprep.mubr.bf16.mxu0 %v3169
      %4233 = vmatmul.mubr.bf16.gmra.mrb[0].mxu0 %v3168
      %v4234 = vpop.f32.mrb[0].mxu0
      %v4235 = vadd.f32 %v4074, %v4234
      %v4236 = vpop.f32.mrb[0].mxu0
      %v4237 = vpop.f32.mrb[0].mxu0
      %v4238 = vadd.f32 %v4077, %v4237
      %v4239 = vpop.f32.mrb[0].mxu0
      %4240 = vmatprep.mubr.bf16.mxu0 %v3178
      %4241 = vmatmul.mubr.bf16.gmra.mrb[0].mxu0 %v3177
      %v4242 = vpop.f32.mrb[0].mxu0
      %v4243 = vadd.f32 %v4082, %v4242
      %v4244 = vpop.f32.mrb[0].mxu0
      %v4245 = vpop.f32.mrb[0].mxu0
      %v4246 = vadd.f32 %v4085, %v4245
      %v4247 = vpop.f32.mrb[0].mxu0
      %4248 = vmatprep.mubr.bf16.mxu0 %v3187
      %4249 = vmatmul.mubr.bf16.gmra.mrb[0].mxu0 %v3186
      %v4250 = vpop.f32.mrb[0].mxu0
      %v4251 = vadd.f32 %v4090, %v4250
      %v4252 = vpop.f32.mrb[0].mxu0
      %v4253 = vpop.f32.mrb[0].mxu0
      %v4254 = vadd.f32 %v4093, %v4253
      %v4255 = vpop.f32.mrb[0].mxu0
      %4256 = vdwg.mxu0
      %4257 = vmatprep.subr.bf16.mxu0 0
      %4258 = vmatpush1.bf16.msra.mxu0 %v3678
      %4259 = vmatprep.subr.bf16.mxu0 0
      %4260 = vmatpush1.bf16.msra.mxu0 %v3679
      %4261 = vmatprep.subr.bf16.mxu0 0
      %4262 = vmatpush1.bf16.msra.mxu0 %v3680
      %4263 = vmatprep.subr.bf16.mxu0 0
      %4264 = vmatpush1.bf16.msra.mxu0 %v3681
      %4265 = vmatprep.subr.bf16.mxu0 0
      %4266 = vmatpush1.bf16.msra.mxu0 %v3682
      %4267 = vmatprep.subr.bf16.mxu0 0
      %4268 = vmatpush1.bf16.msra.mxu0 %v3683
      %4269 = vmatprep.subr.bf16.mxu0 0
      %4270 = vmatpush1.bf16.msra.mxu0 %v3684
      %4271 = vmatprep.subr.bf16.mxu0 0
      %4272 = vmatpush1.bf16.msra.mxu0 %v3685
      %4273 = vmatprep.subr.bf16.mxu0 0
      %4274 = vmatpush1.bf16.msra.mxu0 %v3686
      %4275 = vmatprep.subr.bf16.mxu0 0
      %4276 = vmatpush1.bf16.msra.mxu0 %v3687
      %4277 = vmatprep.subr.bf16.mxu0 0
      %4278 = vmatpush1.bf16.msra.mxu0 %v3688
      %4279 = vmatprep.subr.bf16.mxu0 0
      %4280 = vmatpush1.bf16.msra.mxu0 %v3689
      %4281 = vmatprep.subr.bf16.mxu0 0
      %4282 = vmatpush1.bf16.msra.mxu0 %v3690
      %4283 = vmatprep.subr.bf16.mxu0 0
      %4284 = vmatpush1.bf16.msra.mxu0 %v3691
      %4285 = vmatprep.subr.bf16.mxu0 0
      %4286 = vmatpush1.bf16.msra.mxu0 %v3692
      %4287 = vmatprep.subr.bf16.mxu0 0
      %4288 = vmatpush1.bf16.msra.mxu0 %v3693
      %4289 = vmatprep.mubr.bf16.mxu0 %v3054
      %4290 = vmatmul.mubr.bf16.gmra.mrb[0].mxu0 %v3053
      %v4291 = vpop.f32.mrb[0].mxu0
      %v4292 = vadd.f32 %v4131, %v4291
      %v4293 = vpop.f32.mrb[0].mxu0
      %v4294 = vpop.f32.mrb[0].mxu0
      %v4295 = vadd.f32 %v4134, %v4294
      %v4296 = vpop.f32.mrb[0].mxu0
      %4297 = vmatprep.mubr.bf16.mxu0 %v3063
      %4298 = vmatmul.mubr.bf16.gmra.mrb[0].mxu0 %v3062
      %v4299 = vpop.f32.mrb[0].mxu0
      %v4300 = vadd.f32 %v4139, %v4299
      %v4301 = vpop.f32.mrb[0].mxu0
      %v4302 = vpop.f32.mrb[0].mxu0
      %v4303 = vadd.f32 %v4142, %v4302
      %v4304 = vpop.f32.mrb[0].mxu0
      %4305 = vmatprep.mubr.bf16.mxu0 %v3072
      %4306 = vmatmul.mubr.bf16.gmra.mrb[0].mxu0 %v3071
      %v4307 = vpop.f32.mrb[0].mxu0
      %v4308 = vadd.f32 %v4147, %v4307
      %v4309 = vpop.f32.mrb[0].mxu0
      %v4310 = vpop.f32.mrb[0].mxu0
      %v4311 = vadd.f32 %v4150, %v4310
      %v4312 = vpop.f32.mrb[0].mxu0
      %4313 = vmatprep.mubr.bf16.mxu0 %v3081
      %4314 = vmatmul.mubr.bf16.gmra.mrb[0].mxu0 %v3080
      %v4315 = vpop.f32.mrb[0].mxu0
      %v4316 = vadd.f32 %v4155, %v4315
      %v4317 = vpop.f32.mrb[0].mxu0
      %v4318 = vpop.f32.mrb[0].mxu0
      %v4319 = vadd.f32 %v4158, %v4318
      %v4320 = vpop.f32.mrb[0].mxu0
      %4321 = vmatprep.mubr.bf16.mxu0 %v3090
      %4322 = vmatmul.mubr.bf16.gmra.mrb[0].mxu0 %v3089
      %v4323 = vpop.f32.mrb[0].mxu0
      %v4324 = vadd.f32 %v4163, %v4323
      %v4325 = vpop.f32.mrb[0].mxu0
      %v4326 = vpop.f32.mrb[0].mxu0
      %v4327 = vadd.f32 %v4166, %v4326
      %v4328 = vpop.f32.mrb[0].mxu0
      %4329 = vmatprep.mubr.bf16.mxu0 %v3099
      %4330 = vmatmul.mubr.bf16.gmra.mrb[0].mxu0 %v3098
      %v4331 = vpop.f32.mrb[0].mxu0
      %v4332 = vadd.f32 %v4171, %v4331
      %v4333 = vpop.f32.mrb[0].mxu0
      %v4334 = vpop.f32.mrb[0].mxu0
      %v4335 = vadd.f32 %v4174, %v4334
      %v4336 = vpop.f32.mrb[0].mxu0
      %4337 = vmatprep.mubr.bf16.mxu0 %v3108
      %4338 = vmatmul.mubr.bf16.gmra.mrb[0].mxu0 %v3107
      %v4339 = vpop.f32.mrb[0].mxu0
      %v4340 = vadd.f32 %v4179, %v4339
      %v4341 = vpop.f32.mrb[0].mxu0
      %v4342 = vpop.f32.mrb[0].mxu0
      %v4343 = vadd.f32 %v4182, %v4342
      %v4344 = vpop.f32.mrb[0].mxu0
      %4345 = vmatprep.mubr.bf16.mxu0 %v3117
      %4346 = vmatmul.mubr.bf16.gmra.mrb[0].mxu0 %v3116
      %v4347 = vpop.f32.mrb[0].mxu0
      %v4348 = vadd.f32 %v4187, %v4347
      %v4349 = vpop.f32.mrb[0].mxu0
      %v4350 = vpop.f32.mrb[0].mxu0
      %v4351 = vadd.f32 %v4190, %v4350
      %v4352 = vpop.f32.mrb[0].mxu0
      %4353 = vmatprep.mubr.bf16.mxu0 %v3126
      %4354 = vmatmul.mubr.bf16.gmra.mrb[0].mxu0 %v3125
      %v4355 = vpop.f32.mrb[0].mxu0
      %v4356 = vadd.f32 %v4195, %v4355
      %v4357 = vpop.f32.mrb[0].mxu0
      %v4358 = vpop.f32.mrb[0].mxu0
      %v4359 = vadd.f32 %v4198, %v4358
      %v4360 = vpop.f32.mrb[0].mxu0
      %4361 = vmatprep.mubr.bf16.mxu0 %v3135
      %4362 = vmatmul.mubr.bf16.gmra.mrb[0].mxu0 %v3134
      %v4363 = vpop.f32.mrb[0].mxu0
      %v4364 = vadd.f32 %v4203, %v4363
      %v4365 = vpop.f32.mrb[0].mxu0
      %v4366 = vpop.f32.mrb[0].mxu0
      %v4367 = vadd.f32 %v4206, %v4366
      %v4368 = vpop.f32.mrb[0].mxu0
      %4369 = vmatprep.mubr.bf16.mxu0 %v3144
      %4370 = vmatmul.mubr.bf16.gmra.mrb[0].mxu0 %v3143
      %v4371 = vpop.f32.mrb[0].mxu0
      %v4372 = vadd.f32 %v4211, %v4371
      %v4373 = vpop.f32.mrb[0].mxu0
      %v4374 = vpop.f32.mrb[0].mxu0
      %v4375 = vadd.f32 %v4214, %v4374
      %v4376 = vpop.f32.mrb[0].mxu0
      %4377 = vmatprep.mubr.bf16.mxu0 %v3153
      %4378 = vmatmul.mubr.bf16.gmra.mrb[0].mxu0 %v3152
      %v4379 = vpop.f32.mrb[0].mxu0
      %v4380 = vadd.f32 %v4219, %v4379
      %v4381 = vpop.f32.mrb[0].mxu0
      %v4382 = vpop.f32.mrb[0].mxu0
      %v4383 = vadd.f32 %v4222, %v4382
      %v4384 = vpop.f32.mrb[0].mxu0
      %4385 = vmatprep.mubr.bf16.mxu0 %v3162
      %4386 = vmatmul.mubr.bf16.gmra.mrb[0].mxu0 %v3161
      %v4387 = vpop.f32.mrb[0].mxu0
      %v4388 = vadd.f32 %v4227, %v4387
      %v4389 = vpop.f32.mrb[0].mxu0
      %v4390 = vpop.f32.mrb[0].mxu0
      %v4391 = vadd.f32 %v4230, %v4390
      %v4392 = vpop.f32.mrb[0].mxu0
      %4393 = vmatprep.mubr.bf16.mxu0 %v3171
      %4394 = vmatmul.mubr.bf16.gmra.mrb[0].mxu0 %v3170
      %v4395 = vpop.f32.mrb[0].mxu0
      %v4396 = vadd.f32 %v4235, %v4395
      %v4397 = vpop.f32.mrb[0].mxu0
      %v4398 = vpop.f32.mrb[0].mxu0
      %v4399 = vadd.f32 %v4238, %v4398
      %v4400 = vpop.f32.mrb[0].mxu0
      %4401 = vmatprep.mubr.bf16.mxu0 %v3180
      %4402 = vmatmul.mubr.bf16.gmra.mrb[0].mxu0 %v3179
      %v4403 = vpop.f32.mrb[0].mxu0
      %v4404 = vadd.f32 %v4243, %v4403
      %v4405 = vpop.f32.mrb[0].mxu0
      %v4406 = vpop.f32.mrb[0].mxu0
      %v4407 = vadd.f32 %v4246, %v4406
      %v4408 = vpop.f32.mrb[0].mxu0
      %4409 = vmatprep.mubr.bf16.mxu0 %v3189
      %4410 = vmatmul.mubr.bf16.gmra.mrb[0].mxu0 %v3188
      %v4411 = vpop.f32.mrb[0].mxu0
      %v4412 = vadd.f32 %v4251, %v4411
      %v4413 = vpop.f32.mrb[0].mxu0
      %v4414 = vpop.f32.mrb[0].mxu0
      %v4415 = vadd.f32 %v4254, %v4414
      %v4416 = vpop.f32.mrb[0].mxu0
      %4417 = vdwg.mxu0
      %4418 = vmatprep.subr.bf16.mxu0 0
      %4419 = vmatpush1.bf16.msra.mxu0 %v3694
      %4420 = vmatprep.subr.bf16.mxu0 0
      %4421 = vmatpush1.bf16.msra.mxu0 %v3695
      %4422 = vmatprep.subr.bf16.mxu0 0
      %4423 = vmatpush1.bf16.msra.mxu0 %v3696
      %4424 = vmatprep.subr.bf16.mxu0 0
      %4425 = vmatpush1.bf16.msra.mxu0 %v3697
      %4426 = vmatprep.subr.bf16.mxu0 0
      %4427 = vmatpush1.bf16.msra.mxu0 %v3698
      %4428 = vmatprep.subr.bf16.mxu0 0
      %4429 = vmatpush1.bf16.msra.mxu0 %v3699
      %4430 = vmatprep.subr.bf16.mxu0 0
      %4431 = vmatpush1.bf16.msra.mxu0 %v3700
      %4432 = vmatprep.subr.bf16.mxu0 0
      %4433 = vmatpush1.bf16.msra.mxu0 %v3701
      %4434 = vmatprep.subr.bf16.mxu0 0
      %4435 = vmatpush1.bf16.msra.mxu0 0
      %4436 = vmatprep.subr.bf16.mxu0 0
      %4437 = vmatpush1.bf16.msra.mxu0 0
      %4438 = vmatprep.subr.bf16.mxu0 0
      %4439 = vmatpush1.bf16.msra.mxu0 0
      %4440 = vmatprep.subr.bf16.mxu0 0
      %4441 = vmatpush1.bf16.msra.mxu0 0
      %4442 = vmatprep.subr.bf16.mxu0 0
      %4443 = vmatpush1.bf16.msra.mxu0 0
      %4444 = vmatprep.subr.bf16.mxu0 0
      %4445 = vmatpush1.bf16.msra.mxu0 0
      %4446 = vmatprep.subr.bf16.mxu0 0
      %4447 = vmatpush1.bf16.msra.mxu0 0
      %4448 = vmatprep.subr.bf16.mxu0 0
      %4449 = vmatpush1.bf16.msra.mxu0 0
      %4450 = vmatprep.mubr.bf16.mxu0 0
      %4451 = vmatmul.mubr.bf16.gmra.mrb[0].mxu0 %v3055
      %v4452 = vpop.f32.mrb[0].mxu0
      %v4453 = vadd.f32 %v4292, %v4452
      %v4454 = vpop.f32.mrb[0].mxu0
      %v4455 = vpop.f32.mrb[0].mxu0
      %v4456 = vadd.f32 %v4295, %v4455
      %v4457 = vpop.f32.mrb[0].mxu0
      %4458 = vmatprep.mubr.bf16.mxu0 0
      %4459 = vmatmul.mubr.bf16.gmra.mrb[0].mxu0 %v3064
      %v4460 = vpop.f32.mrb[0].mxu0
      %v4461 = vadd.f32 %v4300, %v4460
      %v4462 = vpop.f32.mrb[0].mxu0
      %v4463 = vpop.f32.mrb[0].mxu0
      %v4464 = vadd.f32 %v4303, %v4463
      %v4465 = vpop.f32.mrb[0].mxu0
      %4466 = vmatprep.mubr.bf16.mxu0 0
      %4467 = vmatmul.mubr.bf16.gmra.mrb[0].mxu0 %v3073
      %v4468 = vpop.f32.mrb[0].mxu0
      %v4469 = vadd.f32 %v4308, %v4468
      %v4470 = vpop.f32.mrb[0].mxu0
      %v4471 = vpop.f32.mrb[0].mxu0
      %v4472 = vadd.f32 %v4311, %v4471
      %v4473 = vpop.f32.mrb[0].mxu0
      %4474 = vmatprep.mubr.bf16.mxu0 0
      %4475 = vmatmul.mubr.bf16.gmra.mrb[0].mxu0 %v3082
      %v4476 = vpop.f32.mrb[0].mxu0
      %v4477 = vadd.f32 %v4316, %v4476
      %v4478 = vpop.f32.mrb[0].mxu0
      %v4479 = vpop.f32.mrb[0].mxu0
      %v4480 = vadd.f32 %v4319, %v4479
      %v4481 = vpop.f32.mrb[0].mxu0
      %4482 = vmatprep.mubr.bf16.mxu0 0
      %4483 = vmatmul.mubr.bf16.gmra.mrb[0].mxu0 %v3091
      %v4484 = vpop.f32.mrb[0].mxu0
      %v4485 = vadd.f32 %v4324, %v4484
      %v4486 = vpop.f32.mrb[0].mxu0
      %v4487 = vpop.f32.mrb[0].mxu0
      %v4488 = vadd.f32 %v4327, %v4487
      %v4489 = vpop.f32.mrb[0].mxu0
      %4490 = vmatprep.mubr.bf16.mxu0 0
      %4491 = vmatmul.mubr.bf16.gmra.mrb[0].mxu0 %v3100
      %v4492 = vpop.f32.mrb[0].mxu0
      %v4493 = vadd.f32 %v4332, %v4492
      %v4494 = vpop.f32.mrb[0].mxu0
      %v4495 = vpop.f32.mrb[0].mxu0
      %v4496 = vadd.f32 %v4335, %v4495
      %v4497 = vpop.f32.mrb[0].mxu0
      %4498 = vmatprep.mubr.bf16.mxu0 0
      %4499 = vmatmul.mubr.bf16.gmra.mrb[0].mxu0 %v3109
      %v4500 = vpop.f32.mrb[0].mxu0
      %v4501 = vadd.f32 %v4340, %v4500
      %v4502 = vpop.f32.mrb[0].mxu0
      %v4503 = vpop.f32.mrb[0].mxu0
      %v4504 = vadd.f32 %v4343, %v4503
      %v4505 = vpop.f32.mrb[0].mxu0
      %4506 = vmatprep.mubr.bf16.mxu0 0
      %4507 = vmatmul.mubr.bf16.gmra.mrb[0].mxu0 %v3118
      %v4508 = vpop.f32.mrb[0].mxu0
      %v4509 = vadd.f32 %v4348, %v4508
      %v4510 = vpop.f32.mrb[0].mxu0
      %v4511 = vpop.f32.mrb[0].mxu0
      %v4512 = vadd.f32 %v4351, %v4511
      %v4513 = vpop.f32.mrb[0].mxu0
      %4514 = vmatprep.mubr.bf16.mxu0 0
      %4515 = vmatmul.mubr.bf16.gmra.mrb[0].mxu0 %v3127
      %v4516 = vpop.f32.mrb[0].mxu0
      %v4517 = vadd.f32 %v4356, %v4516
      %v4518 = vpop.f32.mrb[0].mxu0
      %v4519 = vpop.f32.mrb[0].mxu0
      %v4520 = vadd.f32 %v4359, %v4519
      %v4521 = vpop.f32.mrb[0].mxu0
      %4522 = vmatprep.mubr.bf16.mxu0 0
      %4523 = vmatmul.mubr.bf16.gmra.mrb[0].mxu0 %v3136
      %v4524 = vpop.f32.mrb[0].mxu0
      %v4525 = vadd.f32 %v4364, %v4524
      %v4526 = vpop.f32.mrb[0].mxu0
      %v4527 = vpop.f32.mrb[0].mxu0
      %v4528 = vadd.f32 %v4367, %v4527
      %v4529 = vpop.f32.mrb[0].mxu0
      %4530 = vmatprep.mubr.bf16.mxu0 0
      %4531 = vmatmul.mubr.bf16.gmra.mrb[0].mxu0 %v3145
      %v4532 = vpop.f32.mrb[0].mxu0
      %v4533 = vadd.f32 %v4372, %v4532
      %v4534 = vpop.f32.mrb[0].mxu0
      %v4535 = vpop.f32.mrb[0].mxu0
      %v4536 = vadd.f32 %v4375, %v4535
      %v4537 = vpop.f32.mrb[0].mxu0
      %4538 = vmatprep.mubr.bf16.mxu0 0
      %4539 = vmatmul.mubr.bf16.gmra.mrb[0].mxu0 %v3154
      %v4540 = vpop.f32.mrb[0].mxu0
      %v4541 = vadd.f32 %v4380, %v4540
      %v4542 = vpop.f32.mrb[0].mxu0
      %v4543 = vpop.f32.mrb[0].mxu0
      %v4544 = vadd.f32 %v4383, %v4543
      %v4545 = vpop.f32.mrb[0].mxu0
      %4546 = vmatprep.mubr.bf16.mxu0 0
      %4547 = vmatmul.mubr.bf16.gmra.mrb[0].mxu0 %v3163
      %v4548 = vpop.f32.mrb[0].mxu0
      %v4549 = vadd.f32 %v4388, %v4548
      %v4550 = vpop.f32.mrb[0].mxu0
      %v4551 = vpop.f32.mrb[0].mxu0
      %v4552 = vadd.f32 %v4391, %v4551
      %v4553 = vpop.f32.mrb[0].mxu0
      %4554 = vmatprep.mubr.bf16.mxu0 0
      %4555 = vmatmul.mubr.bf16.gmra.mrb[0].mxu0 %v3172
      %v4556 = vpop.f32.mrb[0].mxu0
      %v4557 = vadd.f32 %v4396, %v4556
      %v4558 = vpop.f32.mrb[0].mxu0
      %v4559 = vpop.f32.mrb[0].mxu0
      %v4560 = vadd.f32 %v4399, %v4559
      %v4561 = vpop.f32.mrb[0].mxu0
      %4562 = vmatprep.mubr.bf16.mxu0 0
      %4563 = vmatmul.mubr.bf16.gmra.mrb[0].mxu0 %v3181
      %v4564 = vpop.f32.mrb[0].mxu0
      %v4565 = vadd.f32 %v4404, %v4564
      %v4566 = vpop.f32.mrb[0].mxu0
      %v4567 = vpop.f32.mrb[0].mxu0
      %v4568 = vadd.f32 %v4407, %v4567
      %v4569 = vpop.f32.mrb[0].mxu0
      %4570 = vmatprep.mubr.bf16.mxu0 0
      %4571 = vmatmul.mubr.bf16.gmra.mrb[0].mxu0 %v3190
      %v4572 = vpop.f32.mrb[0].mxu0
      %v4573 = vadd.f32 %v4412, %v4572
      %v4574 = vpop.f32.mrb[0].mxu0
      %v4575 = vpop.f32.mrb[0].mxu0
      %v4576 = vadd.f32 %v4415, %v4575
      %v4577 = vpop.f32.mrb[0].mxu0
      %4578 = vdwg.mxu0
      %4579 = vst [vmem:[%s194] sm:$0xff] %v4453
      %4580 = vst [vmem:[%s194 + $0x8] sm:$0xff] %v4456
      %4581 = vst [vmem:[%s194 + $0x10] sm:$0xff] %v4461
      %4582 = vst [vmem:[%s194 + $0x18] sm:$0xff] %v4464
      %4583 = vst [vmem:[%s194 + $0x20] sm:$0xff] %v4469
      %4584 = vst [vmem:[%s194 + $0x28] sm:$0xff] %v4472
      %4585 = vst [vmem:[%s194 + $0x30] sm:$0xff] %v4477
      %4586 = vst [vmem:[%s194 + $0x38] sm:$0xff] %v4480
      %4587 = vst [vmem:[%s194 + $0x40] sm:$0xff] %v4485
      %4588 = vst [vmem:[%s194 + $0x48] sm:$0xff] %v4488
      %4589 = vst [vmem:[%s194 + $0x50] sm:$0xff] %v4493
      %4590 = vst [vmem:[%s194 + $0x58] sm:$0xff] %v4496
      %4591 = vst [vmem:[%s194 + $0x60] sm:$0xff] %v4501
      %4592 = vst [vmem:[%s194 + $0x68] sm:$0xff] %v4504
      %4593 = vst [vmem:[%s194 + $0x70] sm:$0xff] %v4509
      %4594 = vst [vmem:[%s194 + $0x78] sm:$0xff] %v4512
      %4595 = vst [vmem:[%s194 + $0x80] sm:$0xff] %v4517
      %4596 = vst [vmem:[%s194 + $0x88] sm:$0xff] %v4520
      %4597 = vst [vmem:[%s194 + $0x90] sm:$0xff] %v4525
      %4598 = vst [vmem:[%s194 + $0x98] sm:$0xff] %v4528
      %4599 = vst [vmem:[%s194 + $0xa0] sm:$0xff] %v4533
      %4600 = vst [vmem:[%s194 + $0xa8] sm:$0xff] %v4536
      %4601 = vst [vmem:[%s194 + $0xb0] sm:$0xff] %v4541
      %4602 = vst [vmem:[%s194 + $0xb8] sm:$0xff] %v4544
      %4603 = vst [vmem:[%s194 + $0xc0] sm:$0xff] %v4549
      %4604 = vst [vmem:[%s194 + $0xc8] sm:$0xff] %v4552
      %4605 = vst [vmem:[%s194 + $0xd0] sm:$0xff] %v4557
      %4606 = vst [vmem:[%s194 + $0xd8] sm:$0xff] %v4560
      %4607 = vst [vmem:[%s194 + $0xe0] sm:$0xff] %v4565
      %4608 = vst [vmem:[%s194 + $0xe8] sm:$0xff] %v4568
      %4609 = vst [vmem:[%s194 + $0xf0] sm:$0xff] %v4573
      %4610 = vst [vmem:[%s194 + $0xf8] sm:$0xff] %v4576
      %s4611 = smul.u32 16, %s19
      %p4612 = scmp.lt.s32.totalorder %s18, 1
      %s4613 = scalar_select %p4612, %s18, 1
      %p4614 = scmp.lt.s32.totalorder %s4611, 15
      %s4615 = scalar_select %p4614, %s4611, 15
      %s4616 = smul.addr %s4615, 2
      %s4617 = smul.addr %s4613, 32
      %s4618 = sadd.s32 %s4616, %s4617
      %s4619 = smul.addr %s4618, 8
      %s4620 = scalar_lea.vmem %s3, %s4619
      // Predicated region
      $region33: #{carafe_module_forward.4} parent=31 // pred_check
        %p4621 = pneg %p114
      $region34: #{carafe_module_forward.4} parent=31 // pred_check_branch
        %4623 = sbr.rel (%p4621) target = $region36
      $region35: #{carafe_module_forward.4} parent=31 // pred_region
        %s4624 = smul.u32 16, %s19
      $region36: #{carafe_module_forward.4} parent=31 // pred_fallthru
        _
    $region32: #{carafe_module_forward.4} parent=5 // pred_fallthru
      _
    %p4625 = scmp.le.s32.totalorder 2, %s9
    // Predicated region
    $region37: #{carafe_module_forward.4} parent=5 // pred_check
      %p4626 = pneg %p4625
    $region38: #{carafe_module_forward.4} parent=5 // pred_check_branch
      %4628 = sbr.rel (%p4626) target = $region40
    $region39: #{carafe_module_forward.4} parent=5 // pred_region
      %s4629 = ssub.s32 %s9, 2
      // Predicated region
      $region41: #{carafe_module_forward.4} parent=39 // pred_check
        %p4630 = pneg %p120
      $region42: #{carafe_module_forward.4} parent=39 // pred_check_branch
        %4632 = sbr.rel (%p4630) target = $region44
      $region43: #{carafe_module_forward.4} parent=39 // pred_region
        %s4633 = smul.u32 16, %s21
        %p4634 = scmp.lt.s32.totalorder %s20, 1
        %s4635 = scalar_select %p4634, %s20, 1
        %p4636 = scmp.lt.s32.totalorder %s4633, 15
        %s4637 = scalar_select %p4636, %s4633, 15
        %s4638 = smul.addr %s4637, 2
        %s4639 = smul.addr %s4635, 32
        %s4640 = sadd.s32 %s4638, %s4639
        %s4641 = smul.addr %s4640, 8
        %s4642 = scalar_lea.vmem %s3, %s4641
      $region44: #{carafe_module_forward.4} parent=39 // pred_fallthru
        _
    $region40: #{carafe_module_forward.4} parent=5 // pred_fallthru
      _
  $region6: #{carafe_module_forward.4} parent=0 // loop_footer
    %s13 = sadd.s32 1, %s9
  $region7: #{carafe_module_forward.4} parent=0 // loop_footer_branch
    %8 = sbr.rel target = $region3
  $region8: #{carafe_module_forward.4} parent=0 // loop_exit
    _

// kernel: carafe_module_forward.5
$region0: #{carafe_module_forward.5}
  #allocation0 [shape = 'u32[]', space=smem, size = 0x4, offset = 0x4, fixed_abs, tag = 'smem constant byte address 0x4 - core index']
  #allocation1 [shape = 'u32[144,128]{1,0:T(1,128)}', space=vmem, size = 0x12000, scoped, tag = 'internal scratch']
  #allocation2 [shape = 'f32[4,16,16,25]{3,2,1,0:T(8,128)}', space=vmem, size = 0x80000, scoped, tag = 'scratch operand']
  %s0 = inlined_call_operand.vmem [shape: f32[8,16,16,25], index: 0, kind: input, shape index: {}]
  %s1 = inlined_call_operand.vmem [shape: bf16[2,20,20,128], index: 1, kind: input, shape index: {}]
  %s2 = inlined_call_operand.vmem [shape: bf16[8,16,16,128], index: 2, kind: output, shape index: {}]
  %s3 = sld [smem:[#allocation0]]
  $region52: #{carafe_module_forward.5} parent=0
    _
  %s5 = ssub.s32 1, %s3
  %s6 = scalar_select 0, %s5, %s3
  loop: start=0, step=1, limit=10
  $region2: #{carafe_module_forward.5} parent=0 // loop_pre_header
    _
  $region3: #{carafe_module_forward.5} parent=0 // loop_header
    %s8 = sphi 0, %s12
    %p9 = scmp.ge.s32.totalorder %s8, 10
    %s15 = sphi 0, %s34
    %s16 = sphi 0, %s30
    %s17 = sphi 0, %s26
    %s18 = sphi 0, %s15
    %s19 = sphi 0, %s16
    %s20 = sphi 0, %s17
    %s21 = sphi 0, %s18
    %s22 = sphi 0, %s19
    %s23 = sphi 0, %s20
    %s37 = sphi 0, %s39
    %s40 = sphi 0, %s37
    %s41 = sphi 0, %s40
    %s57 = sphi 0, %s41
    %s65 = sphi 0, %s67
    %s68 = sphi 0, %s65
    %s69 = sphi 0, %s68
    %s85 = sphi 0, %s69
    %s97 = sphi 0, %s99
    %s100 = sphi 0, %s97
    %s101 = sphi 0, %s100
    %s117 = sphi 0, %s101
  $region4: #{carafe_module_forward.5} parent=0 // loop_header_branch
    %11 = sbr.rel (%p9) target = $region8
  $region5: #{carafe_module_forward.5} parent=0 // loop_body
    %s13 = ssub.s32 %s8, 1
    %s14 = ssub.s32 %s8, 2
    %s24 = sadd.s32 1, %s17
    %p25 = scmp.ge.s32.totalorder %s24, 4
    %s26 = scalar_select %p25, 0, %s24
    %s27 = sadd.s32 1, %s16
    %s28 = scalar_select %p25, %s27, %s16
    %p29 = scmp.ge.s32.totalorder %s28, 1
    %s30 = scalar_select %p29, 0, %s28
    %s31 = sadd.s32 1, %s15
    %s32 = scalar_select %p29, %s31, %s15
    %p33 = scmp.ge.s32.totalorder %s32, 2
    %s34 = scalar_select %p33, 0, %s32
    %s35 = ssub.s32 %s15, %s34
    %p36 = scmp.eq.s32.totalorder %s35, 0
    %s38 = sadd.s32 %s37, 1
    %s39 = scalar_select %p36, %s37, %s38
    %p42 = pneg %p36
    %p43 = scmp.eq.s32.totalorder %s8, 7
    %p44 = por %p42, %p43
    %p45 = scmp.ne.s32.totalorder %s37, %s40
    %p46 = scmp.eq.s32.totalorder %s8, 0
    %p47 = por %p45, %p46
    %p48 = scmp.ne.s32.totalorder %s37, %s40
    %p49 = scmp.eq.s32.totalorder %s13, 7
    %p50 = por %p48, %p49
    %p51 = scmp.ne.s32.totalorder %s40, %s41
    %p52 = scmp.eq.s32.totalorder %s13, 0
    %p53 = por %p51, %p52
    %p54 = scmp.ne.s32.totalorder %s40, %s41
    %p55 = scmp.eq.s32.totalorder %s14, 7
    %p56 = por %p54, %p55
    %p58 = scmp.ne.s32.totalorder %s41, %s57
    %p59 = scmp.eq.s32.totalorder %s14, 0
    %p60 = por %p58, %p59
    %s61 = ssub.s32 %s15, %s34
    %s62 = ssub.s32 %s16, %s30
    %s63 = sor.u32 %s61, %s62
    %p64 = scmp.eq.s32.totalorder %s63, 0
    %s66 = sadd.s32 %s65, 1
    %s67 = scalar_select %p64, %s65, %s66
    %p70 = pneg %p64
    %p71 = scmp.eq.s32.totalorder %s8, 7
    %p72 = por %p70, %p71
    %p73 = scmp.ne.s32.totalorder %s65, %s68
    %p74 = scmp.eq.s32.totalorder %s8, 0
    %p75 = por %p73, %p74
    %p76 = scmp.ne.s32.totalorder %s65, %s68
    %p77 = scmp.eq.s32.totalorder %s13, 7
    %p78 = por %p76, %p77
    %p79 = scmp.ne.s32.totalorder %s68, %s69
    %p80 = scmp.eq.s32.totalorder %s13, 0
    %p81 = por %p79, %p80
    %p82 = scmp.ne.s32.totalorder %s68, %s69
    %p83 = scmp.eq.s32.totalorder %s14, 7
    %p84 = por %p82, %p83
    %p86 = scmp.ne.s32.totalorder %s69, %s85
    %p87 = scmp.eq.s32.totalorder %s14, 0
    %p88 = por %p86, %p87
    %s89 = smul.u32 %s15, 4
    %s90 = sadd.s32 %s89, %s17
    %s91 = smul.u32 %s34, 4
    %s92 = sadd.s32 %s91, %s26
    %s93 = ssub.s32 %s90, %s92
    %s94 = ssub.s32 %s16, %s30
    %s95 = sor.u32 %s93, %s94
    %p96 = scmp.eq.s32.totalorder %s95, 0
    %s98 = sadd.s32 %s97, 1
    %s99 = scalar_select %p96, %s97, %s98
    %p102 = pneg %p96
    %p103 = scmp.eq.s32.totalorder %s8, 7
    %p104 = por %p102, %p103
    %p105 = scmp.ne.s32.totalorder %s97, %s100
    %p106 = scmp.eq.s32.totalorder %s8, 0
    %p107 = por %p105, %p106
    %p108 = scmp.ne.s32.totalorder %s97, %s100
    %p109 = scmp.eq.s32.totalorder %s13, 7
    %p110 = por %p108, %p109
    %p111 = scmp.ne.s32.totalorder %s100, %s101
    %p112 = scmp.eq.s32.totalorder %s13, 0
    %p113 = por %p111, %p112
    %p114 = scmp.ne.s32.totalorder %s100, %s101
    %p115 = scmp.eq.s32.totalorder %s14, 7
    %p116 = por %p114, %p115
    %p118 = scmp.ne.s32.totalorder %s101, %s117
    %p119 = scmp.eq.s32.totalorder %s14, 0
    %p120 = por %p118, %p119
    %p121 = scmp.le.s32.totalorder 1, %s8
    %p122 = scmp.lt.s32.totalorder %s8, 9
    %p123 = pnand %p121, %p122
    %p124 = pneg %p123
    // Predicated region
    $region9: #{carafe_module_forward.5} parent=5 // pred_check
      _
    $region10: #{carafe_module_forward.5} parent=5 // pred_check_branch
      %126 = sbr.rel (%p123) target = $region12
    $region11: #{carafe_module_forward.5} parent=5 // pred_region
      %s127 = ssub.s32 %s8, 1
    $region12: #{carafe_module_forward.5} parent=5 // pred_fallthru
      _
    %p128 = scmp.lt.s32.totalorder %s8, 8
    // Predicated region
    $region13: #{carafe_module_forward.5} parent=5 // pred_check
      %p129 = pneg %p128
    $region14: #{carafe_module_forward.5} parent=5 // pred_check_branch
      %131 = sbr.rel (%p129) target = $region16
    $region15: #{carafe_module_forward.5} parent=5 // pred_region
      // Predicated region
      $region17: #{carafe_module_forward.5} parent=15 // pred_check
        %p132 = pneg %p47
      $region18: #{carafe_module_forward.5} parent=15 // pred_check_branch
        %134 = sbr.rel (%p132) target = $region20
      $region19: #{carafe_module_forward.5} parent=15 // pred_region
        %s135 = smul.u32 4, %s15
        %p136 = scmp.lt.s32.totalorder %s135, 7
        %s137 = scalar_select %p136, %s135, 7
        %s138 = smul.addr %s137, 32
        %s139 = smul.addr %s138, 8
        %s140 = scalar_lea.vmem %s0, %s139
        %s141 = smul.u32 4, %s15
      $region20: #{carafe_module_forward.5} parent=15 // pred_fallthru
        _
      // Predicated region
      $region21: #{carafe_module_forward.5} parent=15 // pred_check
        %p142 = pneg %p75
      $region22: #{carafe_module_forward.5} parent=15 // pred_check_branch
        %144 = sbr.rel (%p142) target = $region24
      $region23: #{carafe_module_forward.5} parent=15 // pred_region
        %p145 = scmp.lt.s32.totalorder %s15, 1
        %s146 = scalar_select %p145, %s15, 1
        %p147 = scmp.lt.s32.totalorder %s16, 0
        %s148 = scalar_select %p147, %s16, 0
        %s149 = smul.addr %s146, 60
        %s150 = sadd.s32 %s148, %s149
        %s151 = smul.addr %s150, 4
        %s152 = scalar_lea.vmem %s1, %s151
      $region24: #{carafe_module_forward.5} parent=15 // pred_fallthru
        _
    $region16: #{carafe_module_forward.5} parent=5 // pred_fallthru
      _
    %p153 = scmp.le.s32.totalorder 1, %s8
    %p154 = scmp.lt.s32.totalorder %s8, 9
    %p155 = pnand %p153, %p154
    %p156 = pneg %p155
    // Predicated region
    $region25: #{carafe_module_forward.5} parent=5 // pred_check
      _
    $region26: #{carafe_module_forward.5} parent=5 // pred_check_branch
      %158 = sbr.rel (%p155) target = $region28
    $region27: #{carafe_module_forward.5} parent=5 // pred_region
      %s159 = ssub.s32 %s8, 1
      %s160 = smul.u32 4, %s18
      %p161 = scmp.lt.s32.totalorder %s160, 7
      %s162 = scalar_select %p161, %s160, 7
      %s163 = smul.addr %s162, 32
      %s164 = smul.addr %s163, 8
      %s165 = scalar_lea.vmem %s0, %s164
      %p166 = pneg %p53
      %p167 = pneg %p50
      %p168 = scmp.lt.s32.totalorder %s18, 1
      %s169 = scalar_select %p168, %s18, 1
      %p170 = scmp.lt.s32.totalorder %s19, 0
      %s171 = scalar_select %p170, %s19, 0
      %s172 = smul.addr %s169, 60
      %s173 = sadd.s32 %s171, %s172
      %s174 = smul.addr %s173, 4
      %s175 = scalar_lea.vmem %s1, %s174
      %p176 = pneg %p81
      %p177 = pneg %p78
      %p178 = pneg %p113
      %p179 = pneg %p110
      %s180 = smul.u32 %s18, 4
      %s181 = sadd.s32 %s180, %s20
      %p182 = scmp.lt.s32.totalorder %s181, 7
      %s183 = scalar_select %p182, %s181, 7
      %p184 = scmp.lt.s32.totalorder %s19, 0
      %s185 = scalar_select %p184, %s19, 0
      %s186 = smul.addr %s183, 32
      %s187 = sadd.s32 %s185, %s186
      %s188 = smul.addr %s187, 4
      %s189 = scalar_lea.vmem %s2, %s188
      %s190 = smul.u32 4, %s18
      %p191 = scmp.lt.s32.totalorder %s190, 7
      %s192 = scalar_select %p191, %s190, 7
      %s193 = smul.addr %s192, 32
      %s194 = smul.addr %s193, 8
      %s195 = scalar_lea.vmem %s0, %s194
      %s196 = smul.u32 4, %s18
      %p197 = scmp.lt.s32.totalorder %s18, 1
      %s198 = scalar_select %p197, %s18, 1
      %p199 = scmp.lt.s32.totalorder %s19, 0
      %s200 = scalar_select %p199, %s19, 0
      %s201 = smul.addr %s198, 60
      %s202 = sadd.s32 %s200, %s201
      %s203 = smul.addr %s202, 4
      %s204 = scalar_lea.vmem %s1, %s203
      %s205 = smul.u32 %s18, 4
      %s206 = sadd.s32 %s205, %s20
      %p207 = scmp.lt.s32.totalorder %s206, 7
      %s208 = scalar_select %p207, %s206, 7
      %p209 = scmp.lt.s32.totalorder %s19, 0
      %s210 = scalar_select %p209, %s19, 0
      %s211 = smul.addr %s208, 32
      %s212 = sadd.s32 %s210, %s211
      %s213 = smul.addr %s212, 4
      %s214 = scalar_lea.vmem %s2, %s213
      %s215 = smul.u32 %s18, 4
      %s216 = sadd.s32 %s215, %s20
      %p217 = scmp.eq.s32.totalorder %s20, 0
      // Predicated region
      $region29: #{carafe_module_forward.5} parent=27 // pred_check
        %p218 = pneg %p217
      $region30: #{carafe_module_forward.5} parent=27 // pred_check_branch
        %220 = sbr.rel (%p218) target = $region32
      $region31: #{carafe_module_forward.5} parent=27 // pred_region
        %v221 = vld [vmem:[%s195] sm:$0xff]
        %v222 = vld [vmem:[%s195 + $0x8] sm:$0xff]
        %v223 = vld [vmem:[%s195 + $0x10] sm:$0xff]
        %v224 = vld [vmem:[%s195 + $0x18] sm:$0xff]
        %v225 = vld [vmem:[%s195 + $0x20] sm:$0xff]
        %v226 = vld [vmem:[%s195 + $0x28] sm:$0xff]
        %v227 = vld [vmem:[%s195 + $0x30] sm:$0xff]
        %v228 = vld [vmem:[%s195 + $0x38] sm:$0xff]
        %v229 = vld [vmem:[%s195 + $0x40] sm:$0xff]
        %v230 = vld [vmem:[%s195 + $0x48] sm:$0xff]
        %v231 = vld [vmem:[%s195 + $0x50] sm:$0xff]
        %v232 = vld [vmem:[%s195 + $0x58] sm:$0xff]
        %v233 = vld [vmem:[%s195 + $0x60] sm:$0xff]
        %v234 = vld [vmem:[%s195 + $0x68] sm:$0xff]
        %v235 = vld [vmem:[%s195 + $0x70] sm:$0xff]
        %v236 = vld [vmem:[%s195 + $0x78] sm:$0xff]
        %v237 = vld [vmem:[%s195 + $0x80] sm:$0xff]
        %v238 = vld [vmem:[%s195 + $0x88] sm:$0xff]
        %v239 = vld [vmem:[%s195 + $0x90] sm:$0xff]
        %v240 = vld [vmem:[%s195 + $0x98] sm:$0xff]
        %v241 = vld [vmem:[%s195 + $0xa0] sm:$0xff]
        %v242 = vld [vmem:[%s195 + $0xa8] sm:$0xff]
        %v243 = vld [vmem:[%s195 + $0xb0] sm:$0xff]
        %v244 = vld [vmem:[%s195 + $0xb8] sm:$0xff]
        %v245 = vld [vmem:[%s195 + $0xc0] sm:$0xff]
        %v246 = vld [vmem:[%s195 + $0xc8] sm:$0xff]
        %v247 = vld [vmem:[%s195 + $0xd0] sm:$0xff]
        %v248 = vld [vmem:[%s195 + $0xd8] sm:$0xff]
        %v249 = vld [vmem:[%s195 + $0xe0] sm:$0xff]
        %v250 = vld [vmem:[%s195 + $0xe8] sm:$0xff]
        %v251 = vld [vmem:[%s195 + $0xf0] sm:$0xff]
        %v252 = vld [vmem:[%s195 + $0xf8] sm:$0xff]
        %v253 = vld [vmem:[%s195 + $0x100] sm:$0xff]
        %v254 = vld [vmem:[%s195 + $0x108] sm:$0xff]
        %v255 = vld [vmem:[%s195 + $0x110] sm:$0xff]
        %v256 = vld [vmem:[%s195 + $0x118] sm:$0xff]
        %v257 = vld [vmem:[%s195 + $0x120] sm:$0xff]
        %v258 = vld [vmem:[%s195 + $0x128] sm:$0xff]
        %v259 = vld [vmem:[%s195 + $0x130] sm:$0xff]
        %v260 = vld [vmem:[%s195 + $0x138] sm:$0xff]
        %v261 = vld [vmem:[%s195 + $0x140] sm:$0xff]
        %v262 = vld [vmem:[%s195 + $0x148] sm:$0xff]
        %v263 = vld [vmem:[%s195 + $0x150] sm:$0xff]
        %v264 = vld [vmem:[%s195 + $0x158] sm:$0xff]
        %v265 = vld [vmem:[%s195 + $0x160] sm:$0xff]
        %v266 = vld [vmem:[%s195 + $0x168] sm:$0xff]
        %v267 = vld [vmem:[%s195 + $0x170] sm:$0xff]
        %v268 = vld [vmem:[%s195 + $0x178] sm:$0xff]
        %v269 = vld [vmem:[%s195 + $0x180] sm:$0xff]
        %v270 = vld [vmem:[%s195 + $0x188] sm:$0xff]
        %v271 = vld [vmem:[%s195 + $0x190] sm:$0xff]
        %v272 = vld [vmem:[%s195 + $0x198] sm:$0xff]
        %v273 = vld [vmem:[%s195 + $0x1a0] sm:$0xff]
        %v274 = vld [vmem:[%s195 + $0x1a8] sm:$0xff]
        %v275 = vld [vmem:[%s195 + $0x1b0] sm:$0xff]
        %v276 = vld [vmem:[%s195 + $0x1b8] sm:$0xff]
        %v277 = vld [vmem:[%s195 + $0x1c0] sm:$0xff]
        %v278 = vld [vmem:[%s195 + $0x1c8] sm:$0xff]
        %v279 = vld [vmem:[%s195 + $0x1d0] sm:$0xff]
        %v280 = vld [vmem:[%s195 + $0x1d8] sm:$0xff]
        %v281 = vld [vmem:[%s195 + $0x1e0] sm:$0xff]
        %v282 = vld [vmem:[%s195 + $0x1e8] sm:$0xff]
        %v283 = vld [vmem:[%s195 + $0x1f0] sm:$0xff]
        %v284 = vld [vmem:[%s195 + $0x1f8] sm:$0xff]
        %v285 = vld [vmem:[%s195 + $0x200] sm:$0xff]
        %v286 = vld [vmem:[%s195 + $0x208] sm:$0xff]
        %v287 = vld [vmem:[%s195 + $0x210] sm:$0xff]
        %v288 = vld [vmem:[%s195 + $0x218] sm:$0xff]
        %v289 = vld [vmem:[%s195 + $0x220] sm:$0xff]
        %v290 = vld [vmem:[%s195 + $0x228] sm:$0xff]
        %v291 = vld [vmem:[%s195 + $0x230] sm:$0xff]
        %v292 = vld [vmem:[%s195 + $0x238] sm:$0xff]
        %v293 = vld [vmem:[%s195 + $0x240] sm:$0xff]
        %v294 = vld [vmem:[%s195 + $0x248] sm:$0xff]
        %v295 = vld [vmem:[%s195 + $0x250] sm:$0xff]
        %v296 = vld [vmem:[%s195 + $0x258] sm:$0xff]
        %v297 = vld [vmem:[%s195 + $0x260] sm:$0xff]
        %v298 = vld [vmem:[%s195 + $0x268] sm:$0xff]
        %v299 = vld [vmem:[%s195 + $0x270] sm:$0xff]
        %v300 = vld [vmem:[%s195 + $0x278] sm:$0xff]
        %v301 = vld [vmem:[%s195 + $0x280] sm:$0xff]
        %v302 = vld [vmem:[%s195 + $0x288] sm:$0xff]
        %v303 = vld [vmem:[%s195 + $0x290] sm:$0xff]
        %v304 = vld [vmem:[%s195 + $0x298] sm:$0xff]
        %v305 = vld [vmem:[%s195 + $0x2a0] sm:$0xff]
        %v306 = vld [vmem:[%s195 + $0x2a8] sm:$0xff]
        %v307 = vld [vmem:[%s195 + $0x2b0] sm:$0xff]
        %v308 = vld [vmem:[%s195 + $0x2b8] sm:$0xff]
        %v309 = vld [vmem:[%s195 + $0x2c0] sm:$0xff]
        %v310 = vld [vmem:[%s195 + $0x2c8] sm:$0xff]
        %v311 = vld [vmem:[%s195 + $0x2d0] sm:$0xff]
        %v312 = vld [vmem:[%s195 + $0x2d8] sm:$0xff]
        %v313 = vld [vmem:[%s195 + $0x2e0] sm:$0xff]
        %v314 = vld [vmem:[%s195 + $0x2e8] sm:$0xff]
        %v315 = vld [vmem:[%s195 + $0x2f0] sm:$0xff]
        %v316 = vld [vmem:[%s195 + $0x2f8] sm:$0xff]
        %v317 = vld [vmem:[%s195 + $0x300] sm:$0xff]
        %v318 = vld [vmem:[%s195 + $0x308] sm:$0xff]
        %v319 = vld [vmem:[%s195 + $0x310] sm:$0xff]
        %v320 = vld [vmem:[%s195 + $0x318] sm:$0xff]
        %v321 = vld [vmem:[%s195 + $0x320] sm:$0xff]
        %v322 = vld [vmem:[%s195 + $0x328] sm:$0xff]
        %v323 = vld [vmem:[%s195 + $0x330] sm:$0xff]
        %v324 = vld [vmem:[%s195 + $0x338] sm:$0xff]
        %v325 = vld [vmem:[%s195 + $0x340] sm:$0xff]
        %v326 = vld [vmem:[%s195 + $0x348] sm:$0xff]
        %v327 = vld [vmem:[%s195 + $0x350] sm:$0xff]
        %v328 = vld [vmem:[%s195 + $0x358] sm:$0xff]
        %v329 = vld [vmem:[%s195 + $0x360] sm:$0xff]
        %v330 = vld [vmem:[%s195 + $0x368] sm:$0xff]
        %v331 = vld [vmem:[%s195 + $0x370] sm:$0xff]
        %v332 = vld [vmem:[%s195 + $0x378] sm:$0xff]
        %v333 = vld [vmem:[%s195 + $0x380] sm:$0xff]
        %v334 = vld [vmem:[%s195 + $0x388] sm:$0xff]
        %v335 = vld [vmem:[%s195 + $0x390] sm:$0xff]
        %v336 = vld [vmem:[%s195 + $0x398] sm:$0xff]
        %v337 = vld [vmem:[%s195 + $0x3a0] sm:$0xff]
        %v338 = vld [vmem:[%s195 + $0x3a8] sm:$0xff]
        %v339 = vld [vmem:[%s195 + $0x3b0] sm:$0xff]
        %v340 = vld [vmem:[%s195 + $0x3b8] sm:$0xff]
        %v341 = vld [vmem:[%s195 + $0x3c0] sm:$0xff]
        %v342 = vld [vmem:[%s195 + $0x3c8] sm:$0xff]
        %v343 = vld [vmem:[%s195 + $0x3d0] sm:$0xff]
        %v344 = vld [vmem:[%s195 + $0x3d8] sm:$0xff]
        %v345 = vld [vmem:[%s195 + $0x3e0] sm:$0xff]
        %v346 = vld [vmem:[%s195 + $0x3e8] sm:$0xff]
        %v347 = vld [vmem:[%s195 + $0x3f0] sm:$0xff]
        %v348 = vld [vmem:[%s195 + $0x3f8] sm:$0xff]
        %vm349 = vcmask 203776
        %v350 = vsel %vm349, %v221, -inf
        %351 = vmax.xlane.f32.xlu0 %v350
        %v352 = vpop.xlane.xlu0 %351
        %v353 = vsel %vm349, %v222, -inf
        %354 = vmax.xlane.f32.xlu0 %v353
        %v355 = vpop.xlane.xlu0 %354
        %v356 = vsel %vm349, %v223, -inf
        %357 = vmax.xlane.f32.xlu0 %v356
        %v358 = vpop.xlane.xlu0 %357
        %v359 = vsel %vm349, %v224, -inf
        %360 = vmax.xlane.f32.xlu0 %v359
        %v361 = vpop.xlane.xlu0 %360
        %v362 = vsel %vm349, %v225, -inf
        %363 = vmax.xlane.f32.xlu0 %v362
        %v364 = vpop.xlane.xlu0 %363
        %v365 = vsel %vm349, %v226, -inf
        %366 = vmax.xlane.f32.xlu0 %v365
        %v367 = vpop.xlane.xlu0 %366
        %v368 = vsel %vm349, %v227, -inf
        %369 = vmax.xlane.f32.xlu0 %v368
        %v370 = vpop.xlane.xlu0 %369
        %v371 = vsel %vm349, %v228, -inf
        %372 = vmax.xlane.f32.xlu0 %v371
        %v373 = vpop.xlane.xlu0 %372
        %v374 = vsel %vm349, %v229, -inf
        %375 = vmax.xlane.f32.xlu0 %v374
        %v376 = vpop.xlane.xlu0 %375
        %v377 = vsel %vm349, %v230, -inf
        %378 = vmax.xlane.f32.xlu0 %v377
        %v379 = vpop.xlane.xlu0 %378
        %v380 = vsel %vm349, %v231, -inf
        %381 = vmax.xlane.f32.xlu0 %v380
        %v382 = vpop.xlane.xlu0 %381
        %v383 = vsel %vm349, %v232, -inf
        %384 = vmax.xlane.f32.xlu0 %v383
        %v385 = vpop.xlane.xlu0 %384
        %v386 = vsel %vm349, %v233, -inf
        %387 = vmax.xlane.f32.xlu0 %v386
        %v388 = vpop.xlane.xlu0 %387
        %v389 = vsel %vm349, %v234, -inf
        %390 = vmax.xlane.f32.xlu0 %v389
        %v391 = vpop.xlane.xlu0 %390
        %v392 = vsel %vm349, %v235, -inf
        %393 = vmax.xlane.f32.xlu0 %v392
        %v394 = vpop.xlane.xlu0 %393
        %v395 = vsel %vm349, %v236, -inf
        %396 = vmax.xlane.f32.xlu0 %v395
        %v397 = vpop.xlane.xlu0 %396
        %v398 = vsel %vm349, %v237, -inf
        %399 = vmax.xlane.f32.xlu0 %v398
        %v400 = vpop.xlane.xlu0 %399
        %v401 = vsel %vm349, %v238, -inf
        %402 = vmax.xlane.f32.xlu0 %v401
        %v403 = vpop.xlane.xlu0 %402
        %v404 = vsel %vm349, %v239, -inf
        %405 = vmax.xlane.f32.xlu0 %v404
        %v406 = vpop.xlane.xlu0 %405
        %v407 = vsel %vm349, %v240, -inf
        %408 = vmax.xlane.f32.xlu0 %v407
        %v409 = vpop.xlane.xlu0 %408
        %v410 = vsel %vm349, %v241, -inf
        %411 = vmax.xlane.f32.xlu0 %v410
        %v412 = vpop.xlane.xlu0 %411
        %v413 = vsel %vm349, %v242, -inf
        %414 = vmax.xlane.f32.xlu0 %v413
        %v415 = vpop.xlane.xlu0 %414
        %v416 = vsel %vm349, %v243, -inf
        %417 = vmax.xlane.f32.xlu0 %v416
        %v418 = vpop.xlane.xlu0 %417
        %v419 = vsel %vm349, %v244, -inf
        %420 = vmax.xlane.f32.xlu0 %v419
        %v421 = vpop.xlane.xlu0 %420
        %v422 = vsel %vm349, %v245, -inf
        %423 = vmax.xlane.f32.xlu0 %v422
        %v424 = vpop.xlane.xlu0 %423
        %v425 = vsel %vm349, %v246, -inf
        %426 = vmax.xlane.f32.xlu0 %v425
        %v427 = vpop.xlane.xlu0 %426
        %v428 = vsel %vm349, %v247, -inf
        %429 = vmax.xlane.f32.xlu0 %v428
        %v430 = vpop.xlane.xlu0 %429
        %v431 = vsel %vm349, %v248, -inf
        %432 = vmax.xlane.f32.xlu0 %v431
        %v433 = vpop.xlane.xlu0 %432
        %v434 = vsel %vm349, %v249, -inf
        %435 = vmax.xlane.f32.xlu0 %v434
        %v436 = vpop.xlane.xlu0 %435
        %v437 = vsel %vm349, %v250, -inf
        %438 = vmax.xlane.f32.xlu0 %v437
        %v439 = vpop.xlane.xlu0 %438
        %v440 = vsel %vm349, %v251, -inf
        %441 = vmax.xlane.f32.xlu0 %v440
        %v442 = vpop.xlane.xlu0 %441
        %v443 = vsel %vm349, %v252, -inf
        %444 = vmax.xlane.f32.xlu0 %v443
        %v445 = vpop.xlane.xlu0 %444
        %v446 = vsel %vm349, %v253, -inf
        %447 = vmax.xlane.f32.xlu0 %v446
        %v448 = vpop.xlane.xlu0 %447
        %v449 = vsel %vm349, %v254, -inf
        %450 = vmax.xlane.f32.xlu0 %v449
        %v451 = vpop.xlane.xlu0 %450
        %v452 = vsel %vm349, %v255, -inf
        %453 = vmax.xlane.f32.xlu0 %v452
        %v454 = vpop.xlane.xlu0 %453
        %v455 = vsel %vm349, %v256, -inf
        %456 = vmax.xlane.f32.xlu0 %v455
        %v457 = vpop.xlane.xlu0 %456
        %v458 = vsel %vm349, %v257, -inf
        %459 = vmax.xlane.f32.xlu0 %v458
        %v460 = vpop.xlane.xlu0 %459
        %v461 = vsel %vm349, %v258, -inf
        %462 = vmax.xlane.f32.xlu0 %v461
        %v463 = vpop.xlane.xlu0 %462
        %v464 = vsel %vm349, %v259, -inf
        %465 = vmax.xlane.f32.xlu0 %v464
        %v466 = vpop.xlane.xlu0 %465
        %v467 = vsel %vm349, %v260, -inf
        %468 = vmax.xlane.f32.xlu0 %v467
        %v469 = vpop.xlane.xlu0 %468
        %v470 = vsel %vm349, %v261, -inf
        %471 = vmax.xlane.f32.xlu0 %v470
        %v472 = vpop.xlane.xlu0 %471
        %v473 = vsel %vm349, %v262, -inf
        %474 = vmax.xlane.f32.xlu0 %v473
        %v475 = vpop.xlane.xlu0 %474
        %v476 = vsel %vm349, %v263, -inf
        %477 = vmax.xlane.f32.xlu0 %v476
        %v478 = vpop.xlane.xlu0 %477
        %v479 = vsel %vm349, %v264, -inf
        %480 = vmax.xlane.f32.xlu0 %v479
        %v481 = vpop.xlane.xlu0 %480
        %v482 = vsel %vm349, %v265, -inf
        %483 = vmax.xlane.f32.xlu0 %v482
        %v484 = vpop.xlane.xlu0 %483
        %v485 = vsel %vm349, %v266, -inf
        %486 = vmax.xlane.f32.xlu0 %v485
        %v487 = vpop.xlane.xlu0 %486
        %v488 = vsel %vm349, %v267, -inf
        %489 = vmax.xlane.f32.xlu0 %v488
        %v490 = vpop.xlane.xlu0 %489
        %v491 = vsel %vm349, %v268, -inf
        %492 = vmax.xlane.f32.xlu0 %v491
        %v493 = vpop.xlane.xlu0 %492
        %v494 = vsel %vm349, %v269, -inf
        %495 = vmax.xlane.f32.xlu0 %v494
        %v496 = vpop.xlane.xlu0 %495
        %v497 = vsel %vm349, %v270, -inf
        %498 = vmax.xlane.f32.xlu0 %v497
        %v499 = vpop.xlane.xlu0 %498
        %v500 = vsel %vm349, %v271, -inf
        %501 = vmax.xlane.f32.xlu0 %v500
        %v502 = vpop.xlane.xlu0 %501
        %v503 = vsel %vm349, %v272, -inf
        %504 = vmax.xlane.f32.xlu0 %v503
        %v505 = vpop.xlane.xlu0 %504
        %v506 = vsel %vm349, %v273, -inf
        %507 = vmax.xlane.f32.xlu0 %v506
        %v508 = vpop.xlane.xlu0 %507
        %v509 = vsel %vm349, %v274, -inf
        %510 = vmax.xlane.f32.xlu0 %v509
        %v511 = vpop.xlane.xlu0 %510
        %v512 = vsel %vm349, %v275, -inf
        %513 = vmax.xlane.f32.xlu0 %v512
        %v514 = vpop.xlane.xlu0 %513
        %v515 = vsel %vm349, %v276, -inf
        %516 = vmax.xlane.f32.xlu0 %v515
        %v517 = vpop.xlane.xlu0 %516
        %v518 = vsel %vm349, %v277, -inf
        %519 = vmax.xlane.f32.xlu0 %v518
        %v520 = vpop.xlane.xlu0 %519
        %v521 = vsel %vm349, %v278, -inf
        %522 = vmax.xlane.f32.xlu0 %v521
        %v523 = vpop.xlane.xlu0 %522
        %v524 = vsel %vm349, %v279, -inf
        %525 = vmax.xlane.f32.xlu0 %v524
        %v526 = vpop.xlane.xlu0 %525
        %v527 = vsel %vm349, %v280, -inf
        %528 = vmax.xlane.f32.xlu0 %v527
        %v529 = vpop.xlane.xlu0 %528
        %v530 = vsel %vm349, %v281, -inf
        %531 = vmax.xlane.f32.xlu0 %v530
        %v532 = vpop.xlane.xlu0 %531
        %v533 = vsel %vm349, %v282, -inf
        %534 = vmax.xlane.f32.xlu0 %v533
        %v535 = vpop.xlane.xlu0 %534
        %v536 = vsel %vm349, %v283, -inf
        %537 = vmax.xlane.f32.xlu0 %v536
        %v538 = vpop.xlane.xlu0 %537
        %v539 = vsel %vm349, %v284, -inf
        %540 = vmax.xlane.f32.xlu0 %v539
        %v541 = vpop.xlane.xlu0 %540
        %v542 = vsel %vm349, %v285, -inf
        %543 = vmax.xlane.f32.xlu0 %v542
        %v544 = vpop.xlane.xlu0 %543
        %v545 = vsel %vm349, %v286, -inf
        %546 = vmax.xlane.f32.xlu0 %v545
        %v547 = vpop.xlane.xlu0 %546
        %v548 = vsel %vm349, %v287, -inf
        %549 = vmax.xlane.f32.xlu0 %v548
        %v550 = vpop.xlane.xlu0 %549
        %v551 = vsel %vm349, %v288, -inf
        %552 = vmax.xlane.f32.xlu0 %v551
        %v553 = vpop.xlane.xlu0 %552
        %v554 = vsel %vm349, %v289, -inf
        %555 = vmax.xlane.f32.xlu0 %v554
        %v556 = vpop.xlane.xlu0 %555
        %v557 = vsel %vm349, %v290, -inf
        %558 = vmax.xlane.f32.xlu0 %v557
        %v559 = vpop.xlane.xlu0 %558
        %v560 = vsel %vm349, %v291, -inf
        %561 = vmax.xlane.f32.xlu0 %v560
        %v562 = vpop.xlane.xlu0 %561
        %v563 = vsel %vm349, %v292, -inf
        %564 = vmax.xlane.f32.xlu0 %v563
        %v565 = vpop.xlane.xlu0 %564
        %v566 = vsel %vm349, %v293, -inf
        %567 = vmax.xlane.f32.xlu0 %v566
        %v568 = vpop.xlane.xlu0 %567
        %v569 = vsel %vm349, %v294, -inf
        %570 = vmax.xlane.f32.xlu0 %v569
        %v571 = vpop.xlane.xlu0 %570
        %v572 = vsel %vm349, %v295, -inf
        %573 = vmax.xlane.f32.xlu0 %v572
        %v574 = vpop.xlane.xlu0 %573
        %v575 = vsel %vm349, %v296, -inf
        %576 = vmax.xlane.f32.xlu0 %v575
        %v577 = vpop.xlane.xlu0 %576
        %v578 = vsel %vm349, %v297, -inf
        %579 = vmax.xlane.f32.xlu0 %v578
        %v580 = vpop.xlane.xlu0 %579
        %v581 = vsel %vm349, %v298, -inf
        %582 = vmax.xlane.f32.xlu0 %v581
        %v583 = vpop.xlane.xlu0 %582
        %v584 = vsel %vm349, %v299, -inf
        %585 = vmax.xlane.f32.xlu0 %v584
        %v586 = vpop.xlane.xlu0 %585
        %v587 = vsel %vm349, %v300, -inf
        %588 = vmax.xlane.f32.xlu0 %v587
        %v589 = vpop.xlane.xlu0 %588
        %v590 = vsel %vm349, %v301, -inf
        %591 = vmax.xlane.f32.xlu0 %v590
        %v592 = vpop.xlane.xlu0 %591
        %v593 = vsel %vm349, %v302, -inf
        %594 = vmax.xlane.f32.xlu0 %v593
        %v595 = vpop.xlane.xlu0 %594
        %v596 = vsel %vm349, %v303, -inf
        %597 = vmax.xlane.f32.xlu0 %v596
        %v598 = vpop.xlane.xlu0 %597
        %v599 = vsel %vm349, %v304, -inf
        %600 = vmax.xlane.f32.xlu0 %v599
        %v601 = vpop.xlane.xlu0 %600
        %v602 = vsel %vm349, %v305, -inf
        %603 = vmax.xlane.f32.xlu0 %v602
        %v604 = vpop.xlane.xlu0 %603
        %v605 = vsel %vm349, %v306, -inf
        %606 = vmax.xlane.f32.xlu0 %v605
        %v607 = vpop.xlane.xlu0 %606
        %v608 = vsel %vm349, %v307, -inf
        %609 = vmax.xlane.f32.xlu0 %v608
        %v610 = vpop.xlane.xlu0 %609
        %v611 = vsel %vm349, %v308, -inf
        %612 = vmax.xlane.f32.xlu0 %v611
        %v613 = vpop.xlane.xlu0 %612
        %v614 = vsel %vm349, %v309, -inf
        %615 = vmax.xlane.f32.xlu0 %v614
        %v616 = vpop.xlane.xlu0 %615
        %v617 = vsel %vm349, %v310, -inf
        %618 = vmax.xlane.f32.xlu0 %v617
        %v619 = vpop.xlane.xlu0 %618
        %v620 = vsel %vm349, %v311, -inf
        %621 = vmax.xlane.f32.xlu0 %v620
        %v622 = vpop.xlane.xlu0 %621
        %v623 = vsel %vm349, %v312, -inf
        %624 = vmax.xlane.f32.xlu0 %v623
        %v625 = vpop.xlane.xlu0 %624
        %v626 = vsel %vm349, %v313, -inf
        %627 = vmax.xlane.f32.xlu0 %v626
        %v628 = vpop.xlane.xlu0 %627
        %v629 = vsel %vm349, %v314, -inf
        %630 = vmax.xlane.f32.xlu0 %v629
        %v631 = vpop.xlane.xlu0 %630
        %v632 = vsel %vm349, %v315, -inf
        %633 = vmax.xlane.f32.xlu0 %v632
        %v634 = vpop.xlane.xlu0 %633
        %v635 = vsel %vm349, %v316, -inf
        %636 = vmax.xlane.f32.xlu0 %v635
        %v637 = vpop.xlane.xlu0 %636
        %v638 = vsel %vm349, %v317, -inf
        %639 = vmax.xlane.f32.xlu0 %v638
        %v640 = vpop.xlane.xlu0 %639
        %v641 = vsel %vm349, %v318, -inf
        %642 = vmax.xlane.f32.xlu0 %v641
        %v643 = vpop.xlane.xlu0 %642
        %v644 = vsel %vm349, %v319, -inf
        %645 = vmax.xlane.f32.xlu0 %v644
        %v646 = vpop.xlane.xlu0 %645
        %v647 = vsel %vm349, %v320, -inf
        %648 = vmax.xlane.f32.xlu0 %v647
        %v649 = vpop.xlane.xlu0 %648
        %v650 = vsel %vm349, %v321, -inf
        %651 = vmax.xlane.f32.xlu0 %v650
        %v652 = vpop.xlane.xlu0 %651
        %v653 = vsel %vm349, %v322, -inf
        %654 = vmax.xlane.f32.xlu0 %v653
        %v655 = vpop.xlane.xlu0 %654
        %v656 = vsel %vm349, %v323, -inf
        %657 = vmax.xlane.f32.xlu0 %v656
        %v658 = vpop.xlane.xlu0 %657
        %v659 = vsel %vm349, %v324, -inf
        %660 = vmax.xlane.f32.xlu0 %v659
        %v661 = vpop.xlane.xlu0 %660
        %v662 = vsel %vm349, %v325, -inf
        %663 = vmax.xlane.f32.xlu0 %v662
        %v664 = vpop.xlane.xlu0 %663
        %v665 = vsel %vm349, %v326, -inf
        %666 = vmax.xlane.f32.xlu0 %v665
        %v667 = vpop.xlane.xlu0 %666
        %v668 = vsel %vm349, %v327, -inf
        %669 = vmax.xlane.f32.xlu0 %v668
        %v670 = vpop.xlane.xlu0 %669
        %v671 = vsel %vm349, %v328, -inf
        %672 = vmax.xlane.f32.xlu0 %v671
        %v673 = vpop.xlane.xlu0 %672
        %v674 = vsel %vm349, %v329, -inf
        %675 = vmax.xlane.f32.xlu0 %v674
        %v676 = vpop.xlane.xlu0 %675
        %v677 = vsel %vm349, %v330, -inf
        %678 = vmax.xlane.f32.xlu0 %v677
        %v679 = vpop.xlane.xlu0 %678
        %v680 = vsel %vm349, %v331, -inf
        %681 = vmax.xlane.f32.xlu0 %v680
        %v682 = vpop.xlane.xlu0 %681
        %v683 = vsel %vm349, %v332, -inf
        %684 = vmax.xlane.f32.xlu0 %v683
        %v685 = vpop.xlane.xlu0 %684
        %v686 = vsel %vm349, %v333, -inf
        %687 = vmax.xlane.f32.xlu0 %v686
        %v688 = vpop.xlane.xlu0 %687
        %v689 = vsel %vm349, %v334, -inf
        %690 = vmax.xlane.f32.xlu0 %v689
        %v691 = vpop.xlane.xlu0 %690
        %v692 = vsel %vm349, %v335, -inf
        %693 = vmax.xlane.f32.xlu0 %v692
        %v694 = vpop.xlane.xlu0 %693
        %v695 = vsel %vm349, %v336, -inf
        %696 = vmax.xlane.f32.xlu0 %v695
        %v697 = vpop.xlane.xlu0 %696
        %v698 = vsel %vm349, %v337, -inf
        %699 = vmax.xlane.f32.xlu0 %v698
        %v700 = vpop.xlane.xlu0 %699
        %v701 = vsel %vm349, %v338, -inf
        %702 = vmax.xlane.f32.xlu0 %v701
        %v703 = vpop.xlane.xlu0 %702
        %v704 = vsel %vm349, %v339, -inf
        %705 = vmax.xlane.f32.xlu0 %v704
        %v706 = vpop.xlane.xlu0 %705
        %v707 = vsel %vm349, %v340, -inf
        %708 = vmax.xlane.f32.xlu0 %v707
        %v709 = vpop.xlane.xlu0 %708
        %v710 = vsel %vm349, %v341, -inf
        %711 = vmax.xlane.f32.xlu0 %v710
        %v712 = vpop.xlane.xlu0 %711
        %v713 = vsel %vm349, %v342, -inf
        %714 = vmax.xlane.f32.xlu0 %v713
        %v715 = vpop.xlane.xlu0 %714
        %v716 = vsel %vm349, %v343, -inf
        %717 = vmax.xlane.f32.xlu0 %v716
        %v718 = vpop.xlane.xlu0 %717
        %v719 = vsel %vm349, %v344, -inf
        %720 = vmax.xlane.f32.xlu0 %v719
        %v721 = vpop.xlane.xlu0 %720
        %v722 = vsel %vm349, %v345, -inf
        %723 = vmax.xlane.f32.xlu0 %v722
        %v724 = vpop.xlane.xlu0 %723
        %v725 = vsel %vm349, %v346, -inf
        %726 = vmax.xlane.f32.xlu0 %v725
        %v727 = vpop.xlane.xlu0 %726
        %v728 = vsel %vm349, %v347, -inf
        %729 = vmax.xlane.f32.xlu0 %v728
        %v730 = vpop.xlane.xlu0 %729
        %v731 = vsel %vm349, %v348, -inf
        %732 = vmax.xlane.f32.xlu0 %v731
        %v733 = vpop.xlane.xlu0 %732
        %v734 = vsub.f32 %v221, %v352
        %v735 = vsub.f32 %v222, %v355
        %v736 = vsub.f32 %v223, %v358
        %v737 = vsub.f32 %v224, %v361
        %v738 = vsub.f32 %v225, %v364
        %v739 = vsub.f32 %v226, %v367
        %v740 = vsub.f32 %v227, %v370
        %v741 = vsub.f32 %v228, %v373
        %v742 = vsub.f32 %v229, %v376
        %v743 = vsub.f32 %v230, %v379
        %v744 = vsub.f32 %v231, %v382
        %v745 = vsub.f32 %v232, %v385
        %v746 = vsub.f32 %v233, %v388
        %v747 = vsub.f32 %v234, %v391
        %v748 = vsub.f32 %v235, %v394
        %v749 = vsub.f32 %v236, %v397
        %v750 = vsub.f32 %v237, %v400
        %v751 = vsub.f32 %v238, %v403
        %v752 = vsub.f32 %v239, %v406
        %v753 = vsub.f32 %v240, %v409
        %v754 = vsub.f32 %v241, %v412
        %v755 = vsub.f32 %v242, %v415
        %v756 = vsub.f32 %v243, %v418
        %v757 = vsub.f32 %v244, %v421
        %v758 = vsub.f32 %v245, %v424
        %v759 = vsub.f32 %v246, %v427
        %v760 = vsub.f32 %v247, %v430
        %v761 = vsub.f32 %v248, %v433
        %v762 = vsub.f32 %v249, %v436
        %v763 = vsub.f32 %v250, %v439
        %v764 = vsub.f32 %v251, %v442
        %v765 = vsub.f32 %v252, %v445
        %v766 = vsub.f32 %v253, %v448
        %v767 = vsub.f32 %v254, %v451
        %v768 = vsub.f32 %v255, %v454
        %v769 = vsub.f32 %v256, %v457
        %v770 = vsub.f32 %v257, %v460
        %v771 = vsub.f32 %v258, %v463
        %v772 = vsub.f32 %v259, %v466
        %v773 = vsub.f32 %v260, %v469
        %v774 = vsub.f32 %v261, %v472
        %v775 = vsub.f32 %v262, %v475
        %v776 = vsub.f32 %v263, %v478
        %v777 = vsub.f32 %v264, %v481
        %v778 = vsub.f32 %v265, %v484
        %v779 = vsub.f32 %v266, %v487
        %v780 = vsub.f32 %v267, %v490
        %v781 = vsub.f32 %v268, %v493
        %v782 = vsub.f32 %v269, %v496
        %v783 = vsub.f32 %v270, %v499
        %v784 = vsub.f32 %v271, %v502
        %v785 = vsub.f32 %v272, %v505
        %v786 = vsub.f32 %v273, %v508
        %v787 = vsub.f32 %v274, %v511
        %v788 = vsub.f32 %v275, %v514
        %v789 = vsub.f32 %v276, %v517
        %v790 = vsub.f32 %v277, %v520
        %v791 = vsub.f32 %v278, %v523
        %v792 = vsub.f32 %v279, %v526
        %v793 = vsub.f32 %v280, %v529
        %v794 = vsub.f32 %v281, %v532
        %v795 = vsub.f32 %v282, %v535
        %v796 = vsub.f32 %v283, %v538
        %v797 = vsub.f32 %v284, %v541
        %v798 = vsub.f32 %v285, %v544
        %v799 = vsub.f32 %v286, %v547
        %v800 = vsub.f32 %v287, %v550
        %v801 = vsub.f32 %v288, %v553
        %v802 = vsub.f32 %v289, %v556
        %v803 = vsub.f32 %v290, %v559
        %v804 = vsub.f32 %v291, %v562
        %v805 = vsub.f32 %v292, %v565
        %v806 = vsub.f32 %v293, %v568
        %v807 = vsub.f32 %v294, %v571
        %v808 = vsub.f32 %v295, %v574
        %v809 = vsub.f32 %v296, %v577
        %v810 = vsub.f32 %v297, %v580
        %v811 = vsub.f32 %v298, %v583
        %v812 = vsub.f32 %v299, %v586
        %v813 = vsub.f32 %v300, %v589
        %v814 = vsub.f32 %v301, %v592
        %v815 = vsub.f32 %v302, %v595
        %v816 = vsub.f32 %v303, %v598
        %v817 = vsub.f32 %v304, %v601
        %v818 = vsub.f32 %v305, %v604
        %v819 = vsub.f32 %v306, %v607
        %v820 = vsub.f32 %v307, %v610
        %v821 = vsub.f32 %v308, %v613
        %v822 = vsub.f32 %v309, %v616
        %v823 = vsub.f32 %v310, %v619
        %v824 = vsub.f32 %v311, %v622
        %v825 = vsub.f32 %v312, %v625
        %v826 = vsub.f32 %v313, %v628
        %v827 = vsub.f32 %v314, %v631
        %v828 = vsub.f32 %v315, %v634
        %v829 = vsub.f32 %v316, %v637
        %v830 = vsub.f32 %v317, %v640
        %v831 = vsub.f32 %v318, %v643
        %v832 = vsub.f32 %v319, %v646
        %v833 = vsub.f32 %v320, %v649
        %v834 = vsub.f32 %v321, %v652
        %v835 = vsub.f32 %v322, %v655
        %v836 = vsub.f32 %v323, %v658
        %v837 = vsub.f32 %v324, %v661
        %v838 = vsub.f32 %v325, %v664
        %v839 = vsub.f32 %v326, %v667
        %v840 = vsub.f32 %v327, %v670
        %v841 = vsub.f32 %v328, %v673
        %v842 = vsub.f32 %v329, %v676
        %v843 = vsub.f32 %v330, %v679
        %v844 = vsub.f32 %v331, %v682
        %v845 = vsub.f32 %v332, %v685
        %v846 = vsub.f32 %v333, %v688
        %v847 = vsub.f32 %v334, %v691
        %v848 = vsub.f32 %v335, %v694
        %v849 = vsub.f32 %v336, %v697
        %v850 = vsub.f32 %v337, %v700
        %v851 = vsub.f32 %v338, %v703
        %v852 = vsub.f32 %v339, %v706
        %v853 = vsub.f32 %v340, %v709
        %v854 = vsub.f32 %v341, %v712
        %v855 = vsub.f32 %v342, %v715
        %v856 = vsub.f32 %v343, %v718
        %v857 = vsub.f32 %v344, %v721
        %v858 = vsub.f32 %v345, %v724
        %v859 = vsub.f32 %v346, %v727
        %v860 = vsub.f32 %v347, %v730
        %v861 = vsub.f32 %v348, %v733
        %v862 = vmul.f32 %v734, 1.442695
        %v863 = vpow.pop %v862
        %v864 = vmul.f32 %v735, 1.442695
        %v865 = vpow.pop %v864
        %v866 = vmul.f32 %v736, 1.442695
        %v867 = vpow.pop %v866
        %v868 = vmul.f32 %v737, 1.442695
        %v869 = vpow.pop %v868
        %v870 = vmul.f32 %v738, 1.442695
        %v871 = vpow.pop %v870
        %v872 = vmul.f32 %v739, 1.442695
        %v873 = vpow.pop %v872
        %v874 = vmul.f32 %v740, 1.442695
        %v875 = vpow.pop %v874
        %v876 = vmul.f32 %v741, 1.442695
        %v877 = vpow.pop %v876
        %v878 = vmul.f32 %v742, 1.442695
        %v879 = vpow.pop %v878
        %v880 = vmul.f32 %v743, 1.442695
        %v881 = vpow.pop %v880
        %v882 = vmul.f32 %v744, 1.442695
        %v883 = vpow.pop %v882
        %v884 = vmul.f32 %v745, 1.442695
        %v885 = vpow.pop %v884
        %v886 = vmul.f32 %v746, 1.442695
        %v887 = vpow.pop %v886
        %v888 = vmul.f32 %v747, 1.442695
        %v889 = vpow.pop %v888
        %v890 = vmul.f32 %v748, 1.442695
        %v891 = vpow.pop %v890
        %v892 = vmul.f32 %v749, 1.442695
        %v893 = vpow.pop %v892
        %v894 = vmul.f32 %v750, 1.442695
        %v895 = vpow.pop %v894
        %v896 = vmul.f32 %v751, 1.442695
        %v897 = vpow.pop %v896
        %v898 = vmul.f32 %v752, 1.442695
        %v899 = vpow.pop %v898
        %v900 = vmul.f32 %v753, 1.442695
        %v901 = vpow.pop %v900
        %v902 = vmul.f32 %v754, 1.442695
        %v903 = vpow.pop %v902
        %v904 = vmul.f32 %v755, 1.442695
        %v905 = vpow.pop %v904
        %v906 = vmul.f32 %v756, 1.442695
        %v907 = vpow.pop %v906
        %v908 = vmul.f32 %v757, 1.442695
        %v909 = vpow.pop %v908
        %v910 = vmul.f32 %v758, 1.442695
        %v911 = vpow.pop %v910
        %v912 = vmul.f32 %v759, 1.442695
        %v913 = vpow.pop %v912
        %v914 = vmul.f32 %v760, 1.442695
        %v915 = vpow.pop %v914
        %v916 = vmul.f32 %v761, 1.442695
        %v917 = vpow.pop %v916
        %v918 = vmul.f32 %v762, 1.442695
        %v919 = vpow.pop %v918
        %v920 = vmul.f32 %v763, 1.442695
        %v921 = vpow.pop %v920
        %v922 = vmul.f32 %v764, 1.442695
        %v923 = vpow.pop %v922
        %v924 = vmul.f32 %v765, 1.442695
        %v925 = vpow.pop %v924
        %v926 = vmul.f32 %v766, 1.442695
        %v927 = vpow.pop %v926
        %v928 = vmul.f32 %v767, 1.442695
        %v929 = vpow.pop %v928
        %v930 = vmul.f32 %v768, 1.442695
        %v931 = vpow.pop %v930
        %v932 = vmul.f32 %v769, 1.442695
        %v933 = vpow.pop %v932
        %v934 = vmul.f32 %v770, 1.442695
        %v935 = vpow.pop %v934
        %v936 = vmul.f32 %v771, 1.442695
        %v937 = vpow.pop %v936
        %v938 = vmul.f32 %v772, 1.442695
        %v939 = vpow.pop %v938
        %v940 = vmul.f32 %v773, 1.442695
        %v941 = vpow.pop %v940
        %v942 = vmul.f32 %v774, 1.442695
        %v943 = vpow.pop %v942
        %v944 = vmul.f32 %v775, 1.442695
        %v945 = vpow.pop %v944
        %v946 = vmul.f32 %v776, 1.442695
        %v947 = vpow.pop %v946
        %v948 = vmul.f32 %v777, 1.442695
        %v949 = vpow.pop %v948
        %v950 = vmul.f32 %v778, 1.442695
        %v951 = vpow.pop %v950
        %v952 = vmul.f32 %v779, 1.442695
        %v953 = vpow.pop %v952
        %v954 = vmul.f32 %v780, 1.442695
        %v955 = vpow.pop %v954
        %v956 = vmul.f32 %v781, 1.442695
        %v957 = vpow.pop %v956
        %v958 = vmul.f32 %v782, 1.442695
        %v959 = vpow.pop %v958
        %v960 = vmul.f32 %v783, 1.442695
        %v961 = vpow.pop %v960
        %v962 = vmul.f32 %v784, 1.442695
        %v963 = vpow.pop %v962
        %v964 = vmul.f32 %v785, 1.442695
        %v965 = vpow.pop %v964
        %v966 = vmul.f32 %v786, 1.442695
        %v967 = vpow.pop %v966
        %v968 = vmul.f32 %v787, 1.442695
        %v969 = vpow.pop %v968
        %v970 = vmul.f32 %v788, 1.442695
        %v971 = vpow.pop %v970
        %v972 = vmul.f32 %v789, 1.442695
        %v973 = vpow.pop %v972
        %v974 = vmul.f32 %v790, 1.442695
        %v975 = vpow.pop %v974
        %v976 = vmul.f32 %v791, 1.442695
        %v977 = vpow.pop %v976
        %v978 = vmul.f32 %v792, 1.442695
        %v979 = vpow.pop %v978
        %v980 = vmul.f32 %v793, 1.442695
        %v981 = vpow.pop %v980
        %v982 = vmul.f32 %v794, 1.442695
        %v983 = vpow.pop %v982
        %v984 = vmul.f32 %v795, 1.442695
        %v985 = vpow.pop %v984
        %v986 = vmul.f32 %v796, 1.442695
        %v987 = vpow.pop %v986
        %v988 = vmul.f32 %v797, 1.442695
        %v989 = vpow.pop %v988
        %v990 = vmul.f32 %v798, 1.442695
        %v991 = vpow.pop %v990
        %v992 = vmul.f32 %v799, 1.442695
        %v993 = vpow.pop %v992
        %v994 = vmul.f32 %v800, 1.442695
        %v995 = vpow.pop %v994
        %v996 = vmul.f32 %v801, 1.442695
        %v997 = vpow.pop %v996
        %v998 = vmul.f32 %v802, 1.442695
        %v999 = vpow.pop %v998
        %v1000 = vmul.f32 %v803, 1.442695
        %v1001 = vpow.pop %v1000
        %v1002 = vmul.f32 %v804, 1.442695
        %v1003 = vpow.pop %v1002
        %v1004 = vmul.f32 %v805, 1.442695
        %v1005 = vpow.pop %v1004
        %v1006 = vmul.f32 %v806, 1.442695
        %v1007 = vpow.pop %v1006
        %v1008 = vmul.f32 %v807, 1.442695
        %v1009 = vpow.pop %v1008
        %v1010 = vmul.f32 %v808, 1.442695
        %v1011 = vpow.pop %v1010
        %v1012 = vmul.f32 %v809, 1.442695
        %v1013 = vpow.pop %v1012
        %v1014 = vmul.f32 %v810, 1.442695
        %v1015 = vpow.pop %v1014
        %v1016 = vmul.f32 %v811, 1.442695
        %v1017 = vpow.pop %v1016
        %v1018 = vmul.f32 %v812, 1.442695
        %v1019 = vpow.pop %v1018
        %v1020 = vmul.f32 %v813, 1.442695
        %v1021 = vpow.pop %v1020
        %v1022 = vmul.f32 %v814, 1.442695
        %v1023 = vpow.pop %v1022
        %v1024 = vmul.f32 %v815, 1.442695
        %v1025 = vpow.pop %v1024
        %v1026 = vmul.f32 %v816, 1.442695
        %v1027 = vpow.pop %v1026
        %v1028 = vmul.f32 %v817, 1.442695
        %v1029 = vpow.pop %v1028
        %v1030 = vmul.f32 %v818, 1.442695
        %v1031 = vpow.pop %v1030
        %v1032 = vmul.f32 %v819, 1.442695
        %v1033 = vpow.pop %v1032
        %v1034 = vmul.f32 %v820, 1.442695
        %v1035 = vpow.pop %v1034
        %v1036 = vmul.f32 %v821, 1.442695
        %v1037 = vpow.pop %v1036
        %v1038 = vmul.f32 %v822, 1.442695
        %v1039 = vpow.pop %v1038
        %v1040 = vmul.f32 %v823, 1.442695
        %v1041 = vpow.pop %v1040
        %v1042 = vmul.f32 %v824, 1.442695
        %v1043 = vpow.pop %v1042
        %v1044 = vmul.f32 %v825, 1.442695
        %v1045 = vpow.pop %v1044
        %v1046 = vmul.f32 %v826, 1.442695
        %v1047 = vpow.pop %v1046
        %v1048 = vmul.f32 %v827, 1.442695
        %v1049 = vpow.pop %v1048
        %v1050 = vmul.f32 %v828, 1.442695
        %v1051 = vpow.pop %v1050
        %v1052 = vmul.f32 %v829, 1.442695
        %v1053 = vpow.pop %v1052
        %v1054 = vmul.f32 %v830, 1.442695
        %v1055 = vpow.pop %v1054
        %v1056 = vmul.f32 %v831, 1.442695
        %v1057 = vpow.pop %v1056
        %v1058 = vmul.f32 %v832, 1.442695
        %v1059 = vpow.pop %v1058
        %v1060 = vmul.f32 %v833, 1.442695
        %v1061 = vpow.pop %v1060
        %v1062 = vmul.f32 %v834, 1.442695
        %v1063 = vpow.pop %v1062
        %v1064 = vmul.f32 %v835, 1.442695
        %v1065 = vpow.pop %v1064
        %v1066 = vmul.f32 %v836, 1.442695
        %v1067 = vpow.pop %v1066
        %v1068 = vmul.f32 %v837, 1.442695
        %v1069 = vpow.pop %v1068
        %v1070 = vmul.f32 %v838, 1.442695
        %v1071 = vpow.pop %v1070
        %v1072 = vmul.f32 %v839, 1.442695
        %v1073 = vpow.pop %v1072
        %v1074 = vmul.f32 %v840, 1.442695
        %v1075 = vpow.pop %v1074
        %v1076 = vmul.f32 %v841, 1.442695
        %v1077 = vpow.pop %v1076
        %v1078 = vmul.f32 %v842, 1.442695
        %v1079 = vpow.pop %v1078
        %v1080 = vmul.f32 %v843, 1.442695
        %v1081 = vpow.pop %v1080
        %v1082 = vmul.f32 %v844, 1.442695
        %v1083 = vpow.pop %v1082
        %v1084 = vmul.f32 %v845, 1.442695
        %v1085 = vpow.pop %v1084
        %v1086 = vmul.f32 %v846, 1.442695
        %v1087 = vpow.pop %v1086
        %v1088 = vmul.f32 %v847, 1.442695
        %v1089 = vpow.pop %v1088
        %v1090 = vmul.f32 %v848, 1.442695
        %v1091 = vpow.pop %v1090
        %v1092 = vmul.f32 %v849, 1.442695
        %v1093 = vpow.pop %v1092
        %v1094 = vmul.f32 %v850, 1.442695
        %v1095 = vpow.pop %v1094
        %v1096 = vmul.f32 %v851, 1.442695
        %v1097 = vpow.pop %v1096
        %v1098 = vmul.f32 %v852, 1.442695
        %v1099 = vpow.pop %v1098
        %v1100 = vmul.f32 %v853, 1.442695
        %v1101 = vpow.pop %v1100
        %v1102 = vmul.f32 %v854, 1.442695
        %v1103 = vpow.pop %v1102
        %v1104 = vmul.f32 %v855, 1.442695
        %v1105 = vpow.pop %v1104
        %v1106 = vmul.f32 %v856, 1.442695
        %v1107 = vpow.pop %v1106
        %v1108 = vmul.f32 %v857, 1.442695
        %v1109 = vpow.pop %v1108
        %v1110 = vmul.f32 %v858, 1.442695
        %v1111 = vpow.pop %v1110
        %v1112 = vmul.f32 %v859, 1.442695
        %v1113 = vpow.pop %v1112
        %v1114 = vmul.f32 %v860, 1.442695
        %v1115 = vpow.pop %v1114
        %v1116 = vmul.f32 %v861, 1.442695
        %v1117 = vpow.pop %v1116
        %v1118 = vsel %vm349, %v863, 0.0
        %1119 = vadd.xlane.f32.xlu0 %v1118
        %v1120 = vpop.xlane.xlu0 %1119
        %v1121 = vsel %vm349, %v865, 0.0
        %1122 = vadd.xlane.f32.xlu0 %v1121
        %v1123 = vpop.xlane.xlu0 %1122
        %v1124 = vsel %vm349, %v867, 0.0
        %1125 = vadd.xlane.f32.xlu0 %v1124
        %v1126 = vpop.xlane.xlu0 %1125
        %v1127 = vsel %vm349, %v869, 0.0
        %1128 = vadd.xlane.f32.xlu0 %v1127
        %v1129 = vpop.xlane.xlu0 %1128
        %v1130 = vsel %vm349, %v871, 0.0
        %1131 = vadd.xlane.f32.xlu0 %v1130
        %v1132 = vpop.xlane.xlu0 %1131
        %v1133 = vsel %vm349, %v873, 0.0
        %1134 = vadd.xlane.f32.xlu0 %v1133
        %v1135 = vpop.xlane.xlu0 %1134
        %v1136 = vsel %vm349, %v875, 0.0
        %1137 = vadd.xlane.f32.xlu0 %v1136
        %v1138 = vpop.xlane.xlu0 %1137
        %v1139 = vsel %vm349, %v877, 0.0
        %1140 = vadd.xlane.f32.xlu0 %v1139
        %v1141 = vpop.xlane.xlu0 %1140
        %v1142 = vsel %vm349, %v879, 0.0
        %1143 = vadd.xlane.f32.xlu0 %v1142
        %v1144 = vpop.xlane.xlu0 %1143
        %v1145 = vsel %vm349, %v881, 0.0
        %1146 = vadd.xlane.f32.xlu0 %v1145
        %v1147 = vpop.xlane.xlu0 %1146
        %v1148 = vsel %vm349, %v883, 0.0
        %1149 = vadd.xlane.f32.xlu0 %v1148
        %v1150 = vpop.xlane.xlu0 %1149
        %v1151 = vsel %vm349, %v885, 0.0
        %1152 = vadd.xlane.f32.xlu0 %v1151
        %v1153 = vpop.xlane.xlu0 %1152
        %v1154 = vsel %vm349, %v887, 0.0
        %1155 = vadd.xlane.f32.xlu0 %v1154
        %v1156 = vpop.xlane.xlu0 %1155
        %v1157 = vsel %vm349, %v889, 0.0
        %1158 = vadd.xlane.f32.xlu0 %v1157
        %v1159 = vpop.xlane.xlu0 %1158
        %v1160 = vsel %vm349, %v891, 0.0
        %1161 = vadd.xlane.f32.xlu0 %v1160
        %v1162 = vpop.xlane.xlu0 %1161
        %v1163 = vsel %vm349, %v893, 0.0
        %1164 = vadd.xlane.f32.xlu0 %v1163
        %v1165 = vpop.xlane.xlu0 %1164
        %v1166 = vsel %vm349, %v895, 0.0
        %1167 = vadd.xlane.f32.xlu0 %v1166
        %v1168 = vpop.xlane.xlu0 %1167
        %v1169 = vsel %vm349, %v897, 0.0
        %1170 = vadd.xlane.f32.xlu0 %v1169
        %v1171 = vpop.xlane.xlu0 %1170
        %v1172 = vsel %vm349, %v899, 0.0
        %1173 = vadd.xlane.f32.xlu0 %v1172
        %v1174 = vpop.xlane.xlu0 %1173
        %v1175 = vsel %vm349, %v901, 0.0
        %1176 = vadd.xlane.f32.xlu0 %v1175
        %v1177 = vpop.xlane.xlu0 %1176
        %v1178 = vsel %vm349, %v903, 0.0
        %1179 = vadd.xlane.f32.xlu0 %v1178
        %v1180 = vpop.xlane.xlu0 %1179
        %v1181 = vsel %vm349, %v905, 0.0
        %1182 = vadd.xlane.f32.xlu0 %v1181
        %v1183 = vpop.xlane.xlu0 %1182
        %v1184 = vsel %vm349, %v907, 0.0
        %1185 = vadd.xlane.f32.xlu0 %v1184
        %v1186 = vpop.xlane.xlu0 %1185
        %v1187 = vsel %vm349, %v909, 0.0
        %1188 = vadd.xlane.f32.xlu0 %v1187
        %v1189 = vpop.xlane.xlu0 %1188
        %v1190 = vsel %vm349, %v911, 0.0
        %1191 = vadd.xlane.f32.xlu0 %v1190
        %v1192 = vpop.xlane.xlu0 %1191
        %v1193 = vsel %vm349, %v913, 0.0
        %1194 = vadd.xlane.f32.xlu0 %v1193
        %v1195 = vpop.xlane.xlu0 %1194
        %v1196 = vsel %vm349, %v915, 0.0
        %1197 = vadd.xlane.f32.xlu0 %v1196
        %v1198 = vpop.xlane.xlu0 %1197
        %v1199 = vsel %vm349, %v917, 0.0
        %1200 = vadd.xlane.f32.xlu0 %v1199
        %v1201 = vpop.xlane.xlu0 %1200
        %v1202 = vsel %vm349, %v919, 0.0
        %1203 = vadd.xlane.f32.xlu0 %v1202
        %v1204 = vpop.xlane.xlu0 %1203
        %v1205 = vsel %vm349, %v921, 0.0
        %1206 = vadd.xlane.f32.xlu0 %v1205
        %v1207 = vpop.xlane.xlu0 %1206
        %v1208 = vsel %vm349, %v923, 0.0
        %1209 = vadd.xlane.f32.xlu0 %v1208
        %v1210 = vpop.xlane.xlu0 %1209
        %v1211 = vsel %vm349, %v925, 0.0
        %1212 = vadd.xlane.f32.xlu0 %v1211
        %v1213 = vpop.xlane.xlu0 %1212
        %v1214 = vsel %vm349, %v927, 0.0
        %1215 = vadd.xlane.f32.xlu0 %v1214
        %v1216 = vpop.xlane.xlu0 %1215
        %v1217 = vsel %vm349, %v929, 0.0
        %1218 = vadd.xlane.f32.xlu0 %v1217
        %v1219 = vpop.xlane.xlu0 %1218
        %v1220 = vsel %vm349, %v931, 0.0
        %1221 = vadd.xlane.f32.xlu0 %v1220
        %v1222 = vpop.xlane.xlu0 %1221
        %v1223 = vsel %vm349, %v933, 0.0
        %1224 = vadd.xlane.f32.xlu0 %v1223
        %v1225 = vpop.xlane.xlu0 %1224
        %v1226 = vsel %vm349, %v935, 0.0
        %1227 = vadd.xlane.f32.xlu0 %v1226
        %v1228 = vpop.xlane.xlu0 %1227
        %v1229 = vsel %vm349, %v937, 0.0
        %1230 = vadd.xlane.f32.xlu0 %v1229
        %v1231 = vpop.xlane.xlu0 %1230
        %v1232 = vsel %vm349, %v939, 0.0
        %1233 = vadd.xlane.f32.xlu0 %v1232
        %v1234 = vpop.xlane.xlu0 %1233
        %v1235 = vsel %vm349, %v941, 0.0
        %1236 = vadd.xlane.f32.xlu0 %v1235
        %v1237 = vpop.xlane.xlu0 %1236
        %v1238 = vsel %vm349, %v943, 0.0
        %1239 = vadd.xlane.f32.xlu0 %v1238
        %v1240 = vpop.xlane.xlu0 %1239
        %v1241 = vsel %vm349, %v945, 0.0
        %1242 = vadd.xlane.f32.xlu0 %v1241
        %v1243 = vpop.xlane.xlu0 %1242
        %v1244 = vsel %vm349, %v947, 0.0
        %1245 = vadd.xlane.f32.xlu0 %v1244
        %v1246 = vpop.xlane.xlu0 %1245
        %v1247 = vsel %vm349, %v949, 0.0
        %1248 = vadd.xlane.f32.xlu0 %v1247
        %v1249 = vpop.xlane.xlu0 %1248
        %v1250 = vsel %vm349, %v951, 0.0
        %1251 = vadd.xlane.f32.xlu0 %v1250
        %v1252 = vpop.xlane.xlu0 %1251
        %v1253 = vsel %vm349, %v953, 0.0
        %1254 = vadd.xlane.f32.xlu0 %v1253
        %v1255 = vpop.xlane.xlu0 %1254
        %v1256 = vsel %vm349, %v955, 0.0
        %1257 = vadd.xlane.f32.xlu0 %v1256
        %v1258 = vpop.xlane.xlu0 %1257
        %v1259 = vsel %vm349, %v957, 0.0
        %1260 = vadd.xlane.f32.xlu0 %v1259
        %v1261 = vpop.xlane.xlu0 %1260
        %v1262 = vsel %vm349, %v959, 0.0
        %1263 = vadd.xlane.f32.xlu0 %v1262
        %v1264 = vpop.xlane.xlu0 %1263
        %v1265 = vsel %vm349, %v961, 0.0
        %1266 = vadd.xlane.f32.xlu0 %v1265
        %v1267 = vpop.xlane.xlu0 %1266
        %v1268 = vsel %vm349, %v963, 0.0
        %1269 = vadd.xlane.f32.xlu0 %v1268
        %v1270 = vpop.xlane.xlu0 %1269
        %v1271 = vsel %vm349, %v965, 0.0
        %1272 = vadd.xlane.f32.xlu0 %v1271
        %v1273 = vpop.xlane.xlu0 %1272
        %v1274 = vsel %vm349, %v967, 0.0
        %1275 = vadd.xlane.f32.xlu0 %v1274
        %v1276 = vpop.xlane.xlu0 %1275
        %v1277 = vsel %vm349, %v969, 0.0
        %1278 = vadd.xlane.f32.xlu0 %v1277
        %v1279 = vpop.xlane.xlu0 %1278
        %v1280 = vsel %vm349, %v971, 0.0
        %1281 = vadd.xlane.f32.xlu0 %v1280
        %v1282 = vpop.xlane.xlu0 %1281
        %v1283 = vsel %vm349, %v973, 0.0
        %1284 = vadd.xlane.f32.xlu0 %v1283
        %v1285 = vpop.xlane.xlu0 %1284
        %v1286 = vsel %vm349, %v975, 0.0
        %1287 = vadd.xlane.f32.xlu0 %v1286
        %v1288 = vpop.xlane.xlu0 %1287
        %v1289 = vsel %vm349, %v977, 0.0
        %1290 = vadd.xlane.f32.xlu0 %v1289
        %v1291 = vpop.xlane.xlu0 %1290
        %v1292 = vsel %vm349, %v979, 0.0
        %1293 = vadd.xlane.f32.xlu0 %v1292
        %v1294 = vpop.xlane.xlu0 %1293
        %v1295 = vsel %vm349, %v981, 0.0
        %1296 = vadd.xlane.f32.xlu0 %v1295
        %v1297 = vpop.xlane.xlu0 %1296
        %v1298 = vsel %vm349, %v983, 0.0
        %1299 = vadd.xlane.f32.xlu0 %v1298
        %v1300 = vpop.xlane.xlu0 %1299
        %v1301 = vsel %vm349, %v985, 0.0
        %1302 = vadd.xlane.f32.xlu0 %v1301
        %v1303 = vpop.xlane.xlu0 %1302
        %v1304 = vsel %vm349, %v987, 0.0
        %1305 = vadd.xlane.f32.xlu0 %v1304
        %v1306 = vpop.xlane.xlu0 %1305
        %v1307 = vsel %vm349, %v989, 0.0
        %1308 = vadd.xlane.f32.xlu0 %v1307
        %v1309 = vpop.xlane.xlu0 %1308
        %v1310 = vsel %vm349, %v991, 0.0
        %1311 = vadd.xlane.f32.xlu0 %v1310
        %v1312 = vpop.xlane.xlu0 %1311
        %v1313 = vsel %vm349, %v993, 0.0
        %1314 = vadd.xlane.f32.xlu0 %v1313
        %v1315 = vpop.xlane.xlu0 %1314
        %v1316 = vsel %vm349, %v995, 0.0
        %1317 = vadd.xlane.f32.xlu0 %v1316
        %v1318 = vpop.xlane.xlu0 %1317
        %v1319 = vsel %vm349, %v997, 0.0
        %1320 = vadd.xlane.f32.xlu0 %v1319
        %v1321 = vpop.xlane.xlu0 %1320
        %v1322 = vsel %vm349, %v999, 0.0
        %1323 = vadd.xlane.f32.xlu0 %v1322
        %v1324 = vpop.xlane.xlu0 %1323
        %v1325 = vsel %vm349, %v1001, 0.0
        %1326 = vadd.xlane.f32.xlu0 %v1325
        %v1327 = vpop.xlane.xlu0 %1326
        %v1328 = vsel %vm349, %v1003, 0.0
        %1329 = vadd.xlane.f32.xlu0 %v1328
        %v1330 = vpop.xlane.xlu0 %1329
        %v1331 = vsel %vm349, %v1005, 0.0
        %1332 = vadd.xlane.f32.xlu0 %v1331
        %v1333 = vpop.xlane.xlu0 %1332
        %v1334 = vsel %vm349, %v1007, 0.0
        %1335 = vadd.xlane.f32.xlu0 %v1334
        %v1336 = vpop.xlane.xlu0 %1335
        %v1337 = vsel %vm349, %v1009, 0.0
        %1338 = vadd.xlane.f32.xlu0 %v1337
        %v1339 = vpop.xlane.xlu0 %1338
        %v1340 = vsel %vm349, %v1011, 0.0
        %1341 = vadd.xlane.f32.xlu0 %v1340
        %v1342 = vpop.xlane.xlu0 %1341
        %v1343 = vsel %vm349, %v1013, 0.0
        %1344 = vadd.xlane.f32.xlu0 %v1343
        %v1345 = vpop.xlane.xlu0 %1344
        %v1346 = vsel %vm349, %v1015, 0.0
        %1347 = vadd.xlane.f32.xlu0 %v1346
        %v1348 = vpop.xlane.xlu0 %1347
        %v1349 = vsel %vm349, %v1017, 0.0
        %1350 = vadd.xlane.f32.xlu0 %v1349
        %v1351 = vpop.xlane.xlu0 %1350
        %v1352 = vsel %vm349, %v1019, 0.0
        %1353 = vadd.xlane.f32.xlu0 %v1352
        %v1354 = vpop.xlane.xlu0 %1353
        %v1355 = vsel %vm349, %v1021, 0.0
        %1356 = vadd.xlane.f32.xlu0 %v1355
        %v1357 = vpop.xlane.xlu0 %1356
        %v1358 = vsel %vm349, %v1023, 0.0
        %1359 = vadd.xlane.f32.xlu0 %v1358
        %v1360 = vpop.xlane.xlu0 %1359
        %v1361 = vsel %vm349, %v1025, 0.0
        %1362 = vadd.xlane.f32.xlu0 %v1361
        %v1363 = vpop.xlane.xlu0 %1362
        %v1364 = vsel %vm349, %v1027, 0.0
        %1365 = vadd.xlane.f32.xlu0 %v1364
        %v1366 = vpop.xlane.xlu0 %1365
        %v1367 = vsel %vm349, %v1029, 0.0
        %1368 = vadd.xlane.f32.xlu0 %v1367
        %v1369 = vpop.xlane.xlu0 %1368
        %v1370 = vsel %vm349, %v1031, 0.0
        %1371 = vadd.xlane.f32.xlu0 %v1370
        %v1372 = vpop.xlane.xlu0 %1371
        %v1373 = vsel %vm349, %v1033, 0.0
        %1374 = vadd.xlane.f32.xlu0 %v1373
        %v1375 = vpop.xlane.xlu0 %1374
        %v1376 = vsel %vm349, %v1035, 0.0
        %1377 = vadd.xlane.f32.xlu0 %v1376
        %v1378 = vpop.xlane.xlu0 %1377
        %v1379 = vsel %vm349, %v1037, 0.0
        %1380 = vadd.xlane.f32.xlu0 %v1379
        %v1381 = vpop.xlane.xlu0 %1380
        %v1382 = vsel %vm349, %v1039, 0.0
        %1383 = vadd.xlane.f32.xlu0 %v1382
        %v1384 = vpop.xlane.xlu0 %1383
        %v1385 = vsel %vm349, %v1041, 0.0
        %1386 = vadd.xlane.f32.xlu0 %v1385
        %v1387 = vpop.xlane.xlu0 %1386
        %v1388 = vsel %vm349, %v1043, 0.0
        %1389 = vadd.xlane.f32.xlu0 %v1388
        %v1390 = vpop.xlane.xlu0 %1389
        %v1391 = vsel %vm349, %v1045, 0.0
        %1392 = vadd.xlane.f32.xlu0 %v1391
        %v1393 = vpop.xlane.xlu0 %1392
        %v1394 = vsel %vm349, %v1047, 0.0
        %1395 = vadd.xlane.f32.xlu0 %v1394
        %v1396 = vpop.xlane.xlu0 %1395
        %v1397 = vsel %vm349, %v1049, 0.0
        %1398 = vadd.xlane.f32.xlu0 %v1397
        %v1399 = vpop.xlane.xlu0 %1398
        %v1400 = vsel %vm349, %v1051, 0.0
        %1401 = vadd.xlane.f32.xlu0 %v1400
        %v1402 = vpop.xlane.xlu0 %1401
        %v1403 = vsel %vm349, %v1053, 0.0
        %1404 = vadd.xlane.f32.xlu0 %v1403
        %v1405 = vpop.xlane.xlu0 %1404
        %v1406 = vsel %vm349, %v1055, 0.0
        %1407 = vadd.xlane.f32.xlu0 %v1406
        %v1408 = vpop.xlane.xlu0 %1407
        %v1409 = vsel %vm349, %v1057, 0.0
        %1410 = vadd.xlane.f32.xlu0 %v1409
        %v1411 = vpop.xlane.xlu0 %1410
        %v1412 = vsel %vm349, %v1059, 0.0
        %1413 = vadd.xlane.f32.xlu0 %v1412
        %v1414 = vpop.xlane.xlu0 %1413
        %v1415 = vsel %vm349, %v1061, 0.0
        %1416 = vadd.xlane.f32.xlu0 %v1415
        %v1417 = vpop.xlane.xlu0 %1416
        %v1418 = vsel %vm349, %v1063, 0.0
        %1419 = vadd.xlane.f32.xlu0 %v1418
        %v1420 = vpop.xlane.xlu0 %1419
        %v1421 = vsel %vm349, %v1065, 0.0
        %1422 = vadd.xlane.f32.xlu0 %v1421
        %v1423 = vpop.xlane.xlu0 %1422
        %v1424 = vsel %vm349, %v1067, 0.0
        %1425 = vadd.xlane.f32.xlu0 %v1424
        %v1426 = vpop.xlane.xlu0 %1425
        %v1427 = vsel %vm349, %v1069, 0.0
        %1428 = vadd.xlane.f32.xlu0 %v1427
        %v1429 = vpop.xlane.xlu0 %1428
        %v1430 = vsel %vm349, %v1071, 0.0
        %1431 = vadd.xlane.f32.xlu0 %v1430
        %v1432 = vpop.xlane.xlu0 %1431
        %v1433 = vsel %vm349, %v1073, 0.0
        %1434 = vadd.xlane.f32.xlu0 %v1433
        %v1435 = vpop.xlane.xlu0 %1434
        %v1436 = vsel %vm349, %v1075, 0.0
        %1437 = vadd.xlane.f32.xlu0 %v1436
        %v1438 = vpop.xlane.xlu0 %1437
        %v1439 = vsel %vm349, %v1077, 0.0
        %1440 = vadd.xlane.f32.xlu0 %v1439
        %v1441 = vpop.xlane.xlu0 %1440
        %v1442 = vsel %vm349, %v1079, 0.0
        %1443 = vadd.xlane.f32.xlu0 %v1442
        %v1444 = vpop.xlane.xlu0 %1443
        %v1445 = vsel %vm349, %v1081, 0.0
        %1446 = vadd.xlane.f32.xlu0 %v1445
        %v1447 = vpop.xlane.xlu0 %1446
        %v1448 = vsel %vm349, %v1083, 0.0
        %1449 = vadd.xlane.f32.xlu0 %v1448
        %v1450 = vpop.xlane.xlu0 %1449
        %v1451 = vsel %vm349, %v1085, 0.0
        %1452 = vadd.xlane.f32.xlu0 %v1451
        %v1453 = vpop.xlane.xlu0 %1452
        %v1454 = vsel %vm349, %v1087, 0.0
        %1455 = vadd.xlane.f32.xlu0 %v1454
        %v1456 = vpop.xlane.xlu0 %1455
        %v1457 = vsel %vm349, %v1089, 0.0
        %1458 = vadd.xlane.f32.xlu0 %v1457
        %v1459 = vpop.xlane.xlu0 %1458
        %v1460 = vsel %vm349, %v1091, 0.0
        %1461 = vadd.xlane.f32.xlu0 %v1460
        %v1462 = vpop.xlane.xlu0 %1461
        %v1463 = vsel %vm349, %v1093, 0.0
        %1464 = vadd.xlane.f32.xlu0 %v1463
        %v1465 = vpop.xlane.xlu0 %1464
        %v1466 = vsel %vm349, %v1095, 0.0
        %1467 = vadd.xlane.f32.xlu0 %v1466
        %v1468 = vpop.xlane.xlu0 %1467
        %v1469 = vsel %vm349, %v1097, 0.0
        %1470 = vadd.xlane.f32.xlu0 %v1469
        %v1471 = vpop.xlane.xlu0 %1470
        %v1472 = vsel %vm349, %v1099, 0.0
        %1473 = vadd.xlane.f32.xlu0 %v1472
        %v1474 = vpop.xlane.xlu0 %1473
        %v1475 = vsel %vm349, %v1101, 0.0
        %1476 = vadd.xlane.f32.xlu0 %v1475
        %v1477 = vpop.xlane.xlu0 %1476
        %v1478 = vsel %vm349, %v1103, 0.0
        %1479 = vadd.xlane.f32.xlu0 %v1478
        %v1480 = vpop.xlane.xlu0 %1479
        %v1481 = vsel %vm349, %v1105, 0.0
        %1482 = vadd.xlane.f32.xlu0 %v1481
        %v1483 = vpop.xlane.xlu0 %1482
        %v1484 = vsel %vm349, %v1107, 0.0
        %1485 = vadd.xlane.f32.xlu0 %v1484
        %v1486 = vpop.xlane.xlu0 %1485
        %v1487 = vsel %vm349, %v1109, 0.0
        %1488 = vadd.xlane.f32.xlu0 %v1487
        %v1489 = vpop.xlane.xlu0 %1488
        %v1490 = vsel %vm349, %v1111, 0.0
        %1491 = vadd.xlane.f32.xlu0 %v1490
        %v1492 = vpop.xlane.xlu0 %1491
        %v1493 = vsel %vm349, %v1113, 0.0
        %1494 = vadd.xlane.f32.xlu0 %v1493
        %v1495 = vpop.xlane.xlu0 %1494
        %v1496 = vsel %vm349, %v1115, 0.0
        %1497 = vadd.xlane.f32.xlu0 %v1496
        %v1498 = vpop.xlane.xlu0 %1497
        %v1499 = vsel %vm349, %v1117, 0.0
        %1500 = vadd.xlane.f32.xlu0 %v1499
        %v1501 = vpop.xlane.xlu0 %1500
        %v1502 = vrcp.pop %v1120
        %v1503 = vrcp.pop %v1123
        %v1504 = vrcp.pop %v1126
        %v1505 = vrcp.pop %v1129
        %v1506 = vrcp.pop %v1132
        %v1507 = vrcp.pop %v1135
        %v1508 = vrcp.pop %v1138
        %v1509 = vrcp.pop %v1141
        %v1510 = vrcp.pop %v1144
        %v1511 = vrcp.pop %v1147
        %v1512 = vrcp.pop %v1150
        %v1513 = vrcp.pop %v1153
        %v1514 = vrcp.pop %v1156
        %v1515 = vrcp.pop %v1159
        %v1516 = vrcp.pop %v1162
        %v1517 = vrcp.pop %v1165
        %v1518 = vrcp.pop %v1168
        %v1519 = vrcp.pop %v1171
        %v1520 = vrcp.pop %v1174
        %v1521 = vrcp.pop %v1177
        %v1522 = vrcp.pop %v1180
        %v1523 = vrcp.pop %v1183
        %v1524 = vrcp.pop %v1186
        %v1525 = vrcp.pop %v1189
        %v1526 = vrcp.pop %v1192
        %v1527 = vrcp.pop %v1195
        %v1528 = vrcp.pop %v1198
        %v1529 = vrcp.pop %v1201
        %v1530 = vrcp.pop %v1204
        %v1531 = vrcp.pop %v1207
        %v1532 = vrcp.pop %v1210
        %v1533 = vrcp.pop %v1213
        %v1534 = vrcp.pop %v1216
        %v1535 = vrcp.pop %v1219
        %v1536 = vrcp.pop %v1222
        %v1537 = vrcp.pop %v1225
        %v1538 = vrcp.pop %v1228
        %v1539 = vrcp.pop %v1231
        %v1540 = vrcp.pop %v1234
        %v1541 = vrcp.pop %v1237
        %v1542 = vrcp.pop %v1240
        %v1543 = vrcp.pop %v1243
        %v1544 = vrcp.pop %v1246
        %v1545 = vrcp.pop %v1249
        %v1546 = vrcp.pop %v1252
        %v1547 = vrcp.pop %v1255
        %v1548 = vrcp.pop %v1258
        %v1549 = vrcp.pop %v1261
        %v1550 = vrcp.pop %v1264
        %v1551 = vrcp.pop %v1267
        %v1552 = vrcp.pop %v1270
        %v1553 = vrcp.pop %v1273
        %v1554 = vrcp.pop %v1276
        %v1555 = vrcp.pop %v1279
        %v1556 = vrcp.pop %v1282
        %v1557 = vrcp.pop %v1285
        %v1558 = vrcp.pop %v1288
        %v1559 = vrcp.pop %v1291
        %v1560 = vrcp.pop %v1294
        %v1561 = vrcp.pop %v1297
        %v1562 = vrcp.pop %v1300
        %v1563 = vrcp.pop %v1303
        %v1564 = vrcp.pop %v1306
        %v1565 = vrcp.pop %v1309
        %v1566 = vrcp.pop %v1312
        %v1567 = vrcp.pop %v1315
        %v1568 = vrcp.pop %v1318
        %v1569 = vrcp.pop %v1321
        %v1570 = vrcp.pop %v1324
        %v1571 = vrcp.pop %v1327
        %v1572 = vrcp.pop %v1330
        %v1573 = vrcp.pop %v1333
        %v1574 = vrcp.pop %v1336
        %v1575 = vrcp.pop %v1339
        %v1576 = vrcp.pop %v1342
        %v1577 = vrcp.pop %v1345
        %v1578 = vrcp.pop %v1348
        %v1579 = vrcp.pop %v1351
        %v1580 = vrcp.pop %v1354
        %v1581 = vrcp.pop %v1357
        %v1582 = vrcp.pop %v1360
        %v1583 = vrcp.pop %v1363
        %v1584 = vrcp.pop %v1366
        %v1585 = vrcp.pop %v1369
        %v1586 = vrcp.pop %v1372
        %v1587 = vrcp.pop %v1375
        %v1588 = vrcp.pop %v1378
        %v1589 = vrcp.pop %v1381
        %v1590 = vrcp.pop %v1384
        %v1591 = vrcp.pop %v1387
        %v1592 = vrcp.pop %v1390
        %v1593 = vrcp.pop %v1393
        %v1594 = vrcp.pop %v1396
        %v1595 = vrcp.pop %v1399
        %v1596 = vrcp.pop %v1402
        %v1597 = vrcp.pop %v1405
        %v1598 = vrcp.pop %v1408
        %v1599 = vrcp.pop %v1411
        %v1600 = vrcp.pop %v1414
        %v1601 = vrcp.pop %v1417
        %v1602 = vrcp.pop %v1420
        %v1603 = vrcp.pop %v1423
        %v1604 = vrcp.pop %v1426
        %v1605 = vrcp.pop %v1429
        %v1606 = vrcp.pop %v1432
        %v1607 = vrcp.pop %v1435
        %v1608 = vrcp.pop %v1438
        %v1609 = vrcp.pop %v1441
        %v1610 = vrcp.pop %v1444
        %v1611 = vrcp.pop %v1447
        %v1612 = vrcp.pop %v1450
        %v1613 = vrcp.pop %v1453
        %v1614 = vrcp.pop %v1456
        %v1615 = vrcp.pop %v1459
        %v1616 = vrcp.pop %v1462
        %v1617 = vrcp.pop %v1465
        %v1618 = vrcp.pop %v1468
        %v1619 = vrcp.pop %v1471
        %v1620 = vrcp.pop %v1474
        %v1621 = vrcp.pop %v1477
        %v1622 = vrcp.pop %v1480
        %v1623 = vrcp.pop %v1483
        %v1624 = vrcp.pop %v1486
        %v1625 = vrcp.pop %v1489
        %v1626 = vrcp.pop %v1492
        %v1627 = vrcp.pop %v1495
        %v1628 = vrcp.pop %v1498
        %v1629 = vrcp.pop %v1501
        %v1630 = vmul.f32 %v863, %v1502
        %v1631 = vmul.f32 %v865, %v1503
        %v1632 = vmul.f32 %v867, %v1504
        %v1633 = vmul.f32 %v869, %v1505
        %v1634 = vmul.f32 %v871, %v1506
        %v1635 = vmul.f32 %v873, %v1507
        %v1636 = vmul.f32 %v875, %v1508
        %v1637 = vmul.f32 %v877, %v1509
        %v1638 = vmul.f32 %v879, %v1510
        %v1639 = vmul.f32 %v881, %v1511
        %v1640 = vmul.f32 %v883, %v1512
        %v1641 = vmul.f32 %v885, %v1513
        %v1642 = vmul.f32 %v887, %v1514
        %v1643 = vmul.f32 %v889, %v1515
        %v1644 = vmul.f32 %v891, %v1516
        %v1645 = vmul.f32 %v893, %v1517
        %v1646 = vmul.f32 %v895, %v1518
        %v1647 = vmul.f32 %v897, %v1519
        %v1648 = vmul.f32 %v899, %v1520
        %v1649 = vmul.f32 %v901, %v1521
        %v1650 = vmul.f32 %v903, %v1522
        %v1651 = vmul.f32 %v905, %v1523
        %v1652 = vmul.f32 %v907, %v1524
        %v1653 = vmul.f32 %v909, %v1525
        %v1654 = vmul.f32 %v911, %v1526
        %v1655 = vmul.f32 %v913, %v1527
        %v1656 = vmul.f32 %v915, %v1528
        %v1657 = vmul.f32 %v917, %v1529
        %v1658 = vmul.f32 %v919, %v1530
        %v1659 = vmul.f32 %v921, %v1531
        %v1660 = vmul.f32 %v923, %v1532
        %v1661 = vmul.f32 %v925, %v1533
        %v1662 = vmul.f32 %v927, %v1534
        %v1663 = vmul.f32 %v929, %v1535
        %v1664 = vmul.f32 %v931, %v1536
        %v1665 = vmul.f32 %v933, %v1537
        %v1666 = vmul.f32 %v935, %v1538
        %v1667 = vmul.f32 %v937, %v1539
        %v1668 = vmul.f32 %v939, %v1540
        %v1669 = vmul.f32 %v941, %v1541
        %v1670 = vmul.f32 %v943, %v1542
        %v1671 = vmul.f32 %v945, %v1543
        %v1672 = vmul.f32 %v947, %v1544
        %v1673 = vmul.f32 %v949, %v1545
        %v1674 = vmul.f32 %v951, %v1546
        %v1675 = vmul.f32 %v953, %v1547
        %v1676 = vmul.f32 %v955, %v1548
        %v1677 = vmul.f32 %v957, %v1549
        %v1678 = vmul.f32 %v959, %v1550
        %v1679 = vmul.f32 %v961, %v1551
        %v1680 = vmul.f32 %v963, %v1552
        %v1681 = vmul.f32 %v965, %v1553
        %v1682 = vmul.f32 %v967, %v1554
        %v1683 = vmul.f32 %v969, %v1555
        %v1684 = vmul.f32 %v971, %v1556
        %v1685 = vmul.f32 %v973, %v1557
        %v1686 = vmul.f32 %v975, %v1558
        %v1687 = vmul.f32 %v977, %v1559
        %v1688 = vmul.f32 %v979, %v1560
        %v1689 = vmul.f32 %v981, %v1561
        %v1690 = vmul.f32 %v983, %v1562
        %v1691 = vmul.f32 %v985, %v1563
        %v1692 = vmul.f32 %v987, %v1564
        %v1693 = vmul.f32 %v989, %v1565
        %v1694 = vmul.f32 %v991, %v1566
        %v1695 = vmul.f32 %v993, %v1567
        %v1696 = vmul.f32 %v995, %v1568
        %v1697 = vmul.f32 %v997, %v1569
        %v1698 = vmul.f32 %v999, %v1570
        %v1699 = vmul.f32 %v1001, %v1571
        %v1700 = vmul.f32 %v1003, %v1572
        %v1701 = vmul.f32 %v1005, %v1573
        %v1702 = vmul.f32 %v1007, %v1574
        %v1703 = vmul.f32 %v1009, %v1575
        %v1704 = vmul.f32 %v1011, %v1576
        %v1705 = vmul.f32 %v1013, %v1577
        %v1706 = vmul.f32 %v1015, %v1578
        %v1707 = vmul.f32 %v1017, %v1579
        %v1708 = vmul.f32 %v1019, %v1580
        %v1709 = vmul.f32 %v1021, %v1581
        %v1710 = vmul.f32 %v1023, %v1582
        %v1711 = vmul.f32 %v1025, %v1583
        %v1712 = vmul.f32 %v1027, %v1584
        %v1713 = vmul.f32 %v1029, %v1585
        %v1714 = vmul.f32 %v1031, %v1586
        %v1715 = vmul.f32 %v1033, %v1587
        %v1716 = vmul.f32 %v1035, %v1588
        %v1717 = vmul.f32 %v1037, %v1589
        %v1718 = vmul.f32 %v1039, %v1590
        %v1719 = vmul.f32 %v1041, %v1591
        %v1720 = vmul.f32 %v1043, %v1592
        %v1721 = vmul.f32 %v1045, %v1593
        %v1722 = vmul.f32 %v1047, %v1594
        %v1723 = vmul.f32 %v1049, %v1595
        %v1724 = vmul.f32 %v1051, %v1596
        %v1725 = vmul.f32 %v1053, %v1597
        %v1726 = vmul.f32 %v1055, %v1598
        %v1727 = vmul.f32 %v1057, %v1599
        %v1728 = vmul.f32 %v1059, %v1600
        %v1729 = vmul.f32 %v1061, %v1601
        %v1730 = vmul.f32 %v1063, %v1602
        %v1731 = vmul.f32 %v1065, %v1603
        %v1732 = vmul.f32 %v1067, %v1604
        %v1733 = vmul.f32 %v1069, %v1605
        %v1734 = vmul.f32 %v1071, %v1606
        %v1735 = vmul.f32 %v1073, %v1607
        %v1736 = vmul.f32 %v1075, %v1608
        %v1737 = vmul.f32 %v1077, %v1609
        %v1738 = vmul.f32 %v1079, %v1610
        %v1739 = vmul.f32 %v1081, %v1611
        %v1740 = vmul.f32 %v1083, %v1612
        %v1741 = vmul.f32 %v1085, %v1613
        %v1742 = vmul.f32 %v1087, %v1614
        %v1743 = vmul.f32 %v1089, %v1615
        %v1744 = vmul.f32 %v1091, %v1616
        %v1745 = vmul.f32 %v1093, %v1617
        %v1746 = vmul.f32 %v1095, %v1618
        %v1747 = vmul.f32 %v1097, %v1619
        %v1748 = vmul.f32 %v1099, %v1620
        %v1749 = vmul.f32 %v1101, %v1621
        %v1750 = vmul.f32 %v1103, %v1622
        %v1751 = vmul.f32 %v1105, %v1623
        %v1752 = vmul.f32 %v1107, %v1624
        %v1753 = vmul.f32 %v1109, %v1625
        %v1754 = vmul.f32 %v1111, %v1626
        %v1755 = vmul.f32 %v1113, %v1627
        %v1756 = vmul.f32 %v1115, %v1628
        %v1757 = vmul.f32 %v1117, %v1629
        %1758 = vst.msk [vmem:[#allocation2] sm:$0xff] %vm349, %v1630
        %1759 = vst.msk [vmem:[#allocation2 + $0x8] sm:$0xff] %vm349, %v1631
        %1760 = vst.msk [vmem:[#allocation2 + $0x10] sm:$0xff] %vm349, %v1632
        %1761 = vst.msk [vmem:[#allocation2 + $0x18] sm:$0xff] %vm349, %v1633
        %1762 = vst.msk [vmem:[#allocation2 + $0x20] sm:$0xff] %vm349, %v1634
        %1763 = vst.msk [vmem:[#allocation2 + $0x28] sm:$0xff] %vm349, %v1635
        %1764 = vst.msk [vmem:[#allocation2 + $0x30] sm:$0xff] %vm349, %v1636
        %1765 = vst.msk [vmem:[#allocation2 + $0x38] sm:$0xff] %vm349, %v1637
        %1766 = vst.msk [vmem:[#allocation2 + $0x40] sm:$0xff] %vm349, %v1638
        %1767 = vst.msk [vmem:[#allocation2 + $0x48] sm:$0xff] %vm349, %v1639
        %1768 = vst.msk [vmem:[#allocation2 + $0x50] sm:$0xff] %vm349, %v1640
        %1769 = vst.msk [vmem:[#allocation2 + $0x58] sm:$0xff] %vm349, %v1641
        %1770 = vst.msk [vmem:[#allocation2 + $0x60] sm:$0xff] %vm349, %v1642
        %1771 = vst.msk [vmem:[#allocation2 + $0x68] sm:$0xff] %vm349, %v1643
        %1772 = vst.msk [vmem:[#allocation2 + $0x70] sm:$0xff] %vm349, %v1644
        %1773 = vst.msk [vmem:[#allocation2 + $0x78] sm:$0xff] %vm349, %v1645
        %1774 = vst.msk [vmem:[#allocation2 + $0x80] sm:$0xff] %vm349, %v1646
        %1775 = vst.msk [vmem:[#allocation2 + $0x88] sm:$0xff] %vm349, %v1647
        %1776 = vst.msk [vmem:[#allocation2 + $0x90] sm:$0xff] %vm349, %v1648
        %1777 = vst.msk [vmem:[#allocation2 + $0x98] sm:$0xff] %vm349, %v1649
        %1778 = vst.msk [vmem:[#allocation2 + $0xa0] sm:$0xff] %vm349, %v1650
        %1779 = vst.msk [vmem:[#allocation2 + $0xa8] sm:$0xff] %vm349, %v1651
        %1780 = vst.msk [vmem:[#allocation2 + $0xb0] sm:$0xff] %vm349, %v1652
        %1781 = vst.msk [vmem:[#allocation2 + $0xb8] sm:$0xff] %vm349, %v1653
        %1782 = vst.msk [vmem:[#allocation2 + $0xc0] sm:$0xff] %vm349, %v1654
        %1783 = vst.msk [vmem:[#allocation2 + $0xc8] sm:$0xff] %vm349, %v1655
        %1784 = vst.msk [vmem:[#allocation2 + $0xd0] sm:$0xff] %vm349, %v1656
        %1785 = vst.msk [vmem:[#allocation2 + $0xd8] sm:$0xff] %vm349, %v1657
        %1786 = vst.msk [vmem:[#allocation2 + $0xe0] sm:$0xff] %vm349, %v1658
        %1787 = vst.msk [vmem:[#allocation2 + $0xe8] sm:$0xff] %vm349, %v1659
        %1788 = vst.msk [vmem:[#allocation2 + $0xf0] sm:$0xff] %vm349, %v1660
        %1789 = vst.msk [vmem:[#allocation2 + $0xf8] sm:$0xff] %vm349, %v1661
        %1790 = vst.msk [vmem:[#allocation2 + $0x100] sm:$0xff] %vm349, %v1662
        %1791 = vst.msk [vmem:[#allocation2 + $0x108] sm:$0xff] %vm349, %v1663
        %1792 = vst.msk [vmem:[#allocation2 + $0x110] sm:$0xff] %vm349, %v1664
        %1793 = vst.msk [vmem:[#allocation2 + $0x118] sm:$0xff] %vm349, %v1665
        %1794 = vst.msk [vmem:[#allocation2 + $0x120] sm:$0xff] %vm349, %v1666
        %1795 = vst.msk [vmem:[#allocation2 + $0x128] sm:$0xff] %vm349, %v1667
        %1796 = vst.msk [vmem:[#allocation2 + $0x130] sm:$0xff] %vm349, %v1668
        %1797 = vst.msk [vmem:[#allocation2 + $0x138] sm:$0xff] %vm349, %v1669
        %1798 = vst.msk [vmem:[#allocation2 + $0x140] sm:$0xff] %vm349, %v1670
        %1799 = vst.msk [vmem:[#allocation2 + $0x148] sm:$0xff] %vm349, %v1671
        %1800 = vst.msk [vmem:[#allocation2 + $0x150] sm:$0xff] %vm349, %v1672
        %1801 = vst.msk [vmem:[#allocation2 + $0x158] sm:$0xff] %vm349, %v1673
        %1802 = vst.msk [vmem:[#allocation2 + $0x160] sm:$0xff] %vm349, %v1674
        %1803 = vst.msk [vmem:[#allocation2 + $0x168] sm:$0xff] %vm349, %v1675
        %1804 = vst.msk [vmem:[#allocation2 + $0x170] sm:$0xff] %vm349, %v1676
        %1805 = vst.msk [vmem:[#allocation2 + $0x178] sm:$0xff] %vm349, %v1677
        %1806 = vst.msk [vmem:[#allocation2 + $0x180] sm:$0xff] %vm349, %v1678
        %1807 = vst.msk [vmem:[#allocation2 + $0x188] sm:$0xff] %vm349, %v1679
        %1808 = vst.msk [vmem:[#allocation2 + $0x190] sm:$0xff] %vm349, %v1680
        %1809 = vst.msk [vmem:[#allocation2 + $0x198] sm:$0xff] %vm349, %v1681
        %1810 = vst.msk [vmem:[#allocation2 + $0x1a0] sm:$0xff] %vm349, %v1682
        %1811 = vst.msk [vmem:[#allocation2 + $0x1a8] sm:$0xff] %vm349, %v1683
        %1812 = vst.msk [vmem:[#allocation2 + $0x1b0] sm:$0xff] %vm349, %v1684
        %1813 = vst.msk [vmem:[#allocation2 + $0x1b8] sm:$0xff] %vm349, %v1685
        %1814 = vst.msk [vmem:[#allocation2 + $0x1c0] sm:$0xff] %vm349, %v1686
        %1815 = vst.msk [vmem:[#allocation2 + $0x1c8] sm:$0xff] %vm349, %v1687
        %1816 = vst.msk [vmem:[#allocation2 + $0x1d0] sm:$0xff] %vm349, %v1688
        %1817 = vst.msk [vmem:[#allocation2 + $0x1d8] sm:$0xff] %vm349, %v1689
        %1818 = vst.msk [vmem:[#allocation2 + $0x1e0] sm:$0xff] %vm349, %v1690
        %1819 = vst.msk [vmem:[#allocation2 + $0x1e8] sm:$0xff] %vm349, %v1691
        %1820 = vst.msk [vmem:[#allocation2 + $0x1f0] sm:$0xff] %vm349, %v1692
        %1821 = vst.msk [vmem:[#allocation2 + $0x1f8] sm:$0xff] %vm349, %v1693
        %1822 = vst.msk [vmem:[#allocation2 + $0x200] sm:$0xff] %vm349, %v1694
        %1823 = vst.msk [vmem:[#allocation2 + $0x208] sm:$0xff] %vm349, %v1695
        %1824 = vst.msk [vmem:[#allocation2 + $0x210] sm:$0xff] %vm349, %v1696
        %1825 = vst.msk [vmem:[#allocation2 + $0x218] sm:$0xff] %vm349, %v1697
        %1826 = vst.msk [vmem:[#allocation2 + $0x220] sm:$0xff] %vm349, %v1698
        %1827 = vst.msk [vmem:[#allocation2 + $0x228] sm:$0xff] %vm349, %v1699
        %1828 = vst.msk [vmem:[#allocation2 + $0x230] sm:$0xff] %vm349, %v1700
        %1829 = vst.msk [vmem:[#allocation2 + $0x238] sm:$0xff] %vm349, %v1701
        %1830 = vst.msk [vmem:[#allocation2 + $0x240] sm:$0xff] %vm349, %v1702
        %1831 = vst.msk [vmem:[#allocation2 + $0x248] sm:$0xff] %vm349, %v1703
        %1832 = vst.msk [vmem:[#allocation2 + $0x250] sm:$0xff] %vm349, %v1704
        %1833 = vst.msk [vmem:[#allocation2 + $0x258] sm:$0xff] %vm349, %v1705
        %1834 = vst.msk [vmem:[#allocation2 + $0x260] sm:$0xff] %vm349, %v1706
        %1835 = vst.msk [vmem:[#allocation2 + $0x268] sm:$0xff] %vm349, %v1707
        %1836 = vst.msk [vmem:[#allocation2 + $0x270] sm:$0xff] %vm349, %v1708
        %1837 = vst.msk [vmem:[#allocation2 + $0x278] sm:$0xff] %vm349, %v1709
        %1838 = vst.msk [vmem:[#allocation2 + $0x280] sm:$0xff] %vm349, %v1710
        %1839 = vst.msk [vmem:[#allocation2 + $0x288] sm:$0xff] %vm349, %v1711
        %1840 = vst.msk [vmem:[#allocation2 + $0x290] sm:$0xff] %vm349, %v1712
        %1841 = vst.msk [vmem:[#allocation2 + $0x298] sm:$0xff] %vm349, %v1713
        %1842 = vst.msk [vmem:[#allocation2 + $0x2a0] sm:$0xff] %vm349, %v1714
        %1843 = vst.msk [vmem:[#allocation2 + $0x2a8] sm:$0xff] %vm349, %v1715
        %1844 = vst.msk [vmem:[#allocation2 + $0x2b0] sm:$0xff] %vm349, %v1716
        %1845 = vst.msk [vmem:[#allocation2 + $0x2b8] sm:$0xff] %vm349, %v1717
        %1846 = vst.msk [vmem:[#allocation2 + $0x2c0] sm:$0xff] %vm349, %v1718
        %1847 = vst.msk [vmem:[#allocation2 + $0x2c8] sm:$0xff] %vm349, %v1719
        %1848 = vst.msk [vmem:[#allocation2 + $0x2d0] sm:$0xff] %vm349, %v1720
        %1849 = vst.msk [vmem:[#allocation2 + $0x2d8] sm:$0xff] %vm349, %v1721
        %1850 = vst.msk [vmem:[#allocation2 + $0x2e0] sm:$0xff] %vm349, %v1722
        %1851 = vst.msk [vmem:[#allocation2 + $0x2e8] sm:$0xff] %vm349, %v1723
        %1852 = vst.msk [vmem:[#allocation2 + $0x2f0] sm:$0xff] %vm349, %v1724
        %1853 = vst.msk [vmem:[#allocation2 + $0x2f8] sm:$0xff] %vm349, %v1725
        %1854 = vst.msk [vmem:[#allocation2 + $0x300] sm:$0xff] %vm349, %v1726
        %1855 = vst.msk [vmem:[#allocation2 + $0x308] sm:$0xff] %vm349, %v1727
        %1856 = vst.msk [vmem:[#allocation2 + $0x310] sm:$0xff] %vm349, %v1728
        %1857 = vst.msk [vmem:[#allocation2 + $0x318] sm:$0xff] %vm349, %v1729
        %1858 = vst.msk [vmem:[#allocation2 + $0x320] sm:$0xff] %vm349, %v1730
        %1859 = vst.msk [vmem:[#allocation2 + $0x328] sm:$0xff] %vm349, %v1731
        %1860 = vst.msk [vmem:[#allocation2 + $0x330] sm:$0xff] %vm349, %v1732
        %1861 = vst.msk [vmem:[#allocation2 + $0x338] sm:$0xff] %vm349, %v1733
        %1862 = vst.msk [vmem:[#allocation2 + $0x340] sm:$0xff] %vm349, %v1734
        %1863 = vst.msk [vmem:[#allocation2 + $0x348] sm:$0xff] %vm349, %v1735
        %1864 = vst.msk [vmem:[#allocation2 + $0x350] sm:$0xff] %vm349, %v1736
        %1865 = vst.msk [vmem:[#allocation2 + $0x358] sm:$0xff] %vm349, %v1737
        %1866 = vst.msk [vmem:[#allocation2 + $0x360] sm:$0xff] %vm349, %v1738
        %1867 = vst.msk [vmem:[#allocation2 + $0x368] sm:$0xff] %vm349, %v1739
        %1868 = vst.msk [vmem:[#allocation2 + $0x370] sm:$0xff] %vm349, %v1740
        %1869 = vst.msk [vmem:[#allocation2 + $0x378] sm:$0xff] %vm349, %v1741
        %1870 = vst.msk [vmem:[#allocation2 + $0x380] sm:$0xff] %vm349, %v1742
        %1871 = vst.msk [vmem:[#allocation2 + $0x388] sm:$0xff] %vm349, %v1743
        %1872 = vst.msk [vmem:[#allocation2 + $0x390] sm:$0xff] %vm349, %v1744
        %1873 = vst.msk [vmem:[#allocation2 + $0x398] sm:$0xff] %vm349, %v1745
        %1874 = vst.msk [vmem:[#allocation2 + $0x3a0] sm:$0xff] %vm349, %v1746
        %1875 = vst.msk [vmem:[#allocation2 + $0x3a8] sm:$0xff] %vm349, %v1747
        %1876 = vst.msk [vmem:[#allocation2 + $0x3b0] sm:$0xff] %vm349, %v1748
        %1877 = vst.msk [vmem:[#allocation2 + $0x3b8] sm:$0xff] %vm349, %v1749
        %1878 = vst.msk [vmem:[#allocation2 + $0x3c0] sm:$0xff] %vm349, %v1750
        %1879 = vst.msk [vmem:[#allocation2 + $0x3c8] sm:$0xff] %vm349, %v1751
        %1880 = vst.msk [vmem:[#allocation2 + $0x3d0] sm:$0xff] %vm349, %v1752
        %1881 = vst.msk [vmem:[#allocation2 + $0x3d8] sm:$0xff] %vm349, %v1753
        %1882 = vst.msk [vmem:[#allocation2 + $0x3e0] sm:$0xff] %vm349, %v1754
        %1883 = vst.msk [vmem:[#allocation2 + $0x3e8] sm:$0xff] %vm349, %v1755
        %1884 = vst.msk [vmem:[#allocation2 + $0x3f0] sm:$0xff] %vm349, %v1756
        %1885 = vst.msk [vmem:[#allocation2 + $0x3f8] sm:$0xff] %vm349, %v1757
      $region32: #{carafe_module_forward.5} parent=27 // pred_fallthru
        _
      loop: start=0, step=1, limit=2
      $region33: #{carafe_module_forward.5} parent=27 // loop_pre_header
        _
      $region34: #{carafe_module_forward.5} parent=27 // loop_header
        %s1887 = sphi 0, %s1891
        %p1888 = scmp.ge.s32.totalorder %s1887, 2
      $region35: #{carafe_module_forward.5} parent=27 // loop_header_branch
        %1890 = sbr.rel (%p1888) target = $region39
      $region36: #{carafe_module_forward.5} parent=27 // loop_body
        %s1892 = smul.u32 %s1887, 8
        %s1893 = smul.u32 %s1892, 16
        %s1894 = smul.u32 %s20, 256
        %s1895 = sadd.s32 %s1893, %s1894
        %s1896 = scalar_lea.vmem [#allocation2], %s1895
        %v1897 = vld [vmem:[%s1896] sm:$0xff]
        %v1898 = vld [vmem:[%s1896 + $0x8] sm:$0xff]
        %v1899 = vld [vmem:[%s1896 + $0x10] sm:$0xff]
        %v1900 = vld [vmem:[%s1896 + $0x18] sm:$0xff]
        %v1901 = vld [vmem:[%s1896 + $0x20] sm:$0xff]
        %v1902 = vld [vmem:[%s1896 + $0x28] sm:$0xff]
        %v1903 = vld [vmem:[%s1896 + $0x30] sm:$0xff]
        %v1904 = vld [vmem:[%s1896 + $0x38] sm:$0xff]
        %v1905 = vld [vmem:[%s1896 + $0x40] sm:$0xff]
        %v1906 = vld [vmem:[%s1896 + $0x48] sm:$0xff]
        %v1907 = vld [vmem:[%s1896 + $0x50] sm:$0xff]
        %v1908 = vld [vmem:[%s1896 + $0x58] sm:$0xff]
        %v1909 = vld [vmem:[%s1896 + $0x60] sm:$0xff]
        %v1910 = vld [vmem:[%s1896 + $0x68] sm:$0xff]
        %v1911 = vld [vmem:[%s1896 + $0x70] sm:$0xff]
        %v1912 = vld [vmem:[%s1896 + $0x78] sm:$0xff]
        %s1913 = smul.u32 %s1892, 3
        %s1914 = smul.addr %s1913, 4
        %s1915 = scalar_lea.vmem %s204, %s1914
        %v1916 = vld [vmem:[%s1915] sm:$0xf]
        %v1917 = vld [vmem:[%s1915 + $0x4] sm:$0xf]
        %v1918 = vld [vmem:[%s1915 + $0xc] sm:$0xf]
        %v1919 = vld [vmem:[%s1915 + $0x10] sm:$0xf]
        %v1920 = vld [vmem:[%s1915 + $0x18] sm:$0xf]
        %v1921 = vld [vmem:[%s1915 + $0x1c] sm:$0xf]
        %v1922 = vld [vmem:[%s1915 + $0x24] sm:$0xf]
        %v1923 = vld [vmem:[%s1915 + $0x28] sm:$0xf]
        %v1924 = vld [vmem:[%s1915 + $0x30] sm:$0xf]
        %v1925 = vld [vmem:[%s1915 + $0x34] sm:$0xf]
        %v1926 = vld [vmem:[%s1915 + $0x3c] sm:$0xf]
        %v1927 = vld [vmem:[%s1915 + $0x40] sm:$0xf]
        %v1928 = vld [vmem:[%s1915 + $0x48] sm:$0xf]
        %v1929 = vld [vmem:[%s1915 + $0x4c] sm:$0xf]
        %v1930 = vld [vmem:[%s1915 + $0x54] sm:$0xf]
        %v1931 = vld [vmem:[%s1915 + $0x58] sm:$0xf]
        %v1932 = vunpack.c.l.bf16 %v1916
        %v1933 = vunpack.c.l.bf16 %v1917
        %v1934 = vunpack.c.l.bf16 %v1918
        %v1935 = vunpack.c.l.bf16 %v1919
        %v1936 = vunpack.c.l.bf16 %v1920
        %v1937 = vunpack.c.l.bf16 %v1921
        %v1938 = vunpack.c.l.bf16 %v1922
        %v1939 = vunpack.c.l.bf16 %v1923
        %v1940 = vunpack.c.l.bf16 %v1924
        %v1941 = vunpack.c.l.bf16 %v1925
        %v1942 = vunpack.c.l.bf16 %v1926
        %v1943 = vunpack.c.l.bf16 %v1927
        %v1944 = vunpack.c.l.bf16 %v1928
        %v1945 = vunpack.c.l.bf16 %v1929
        %v1946 = vunpack.c.l.bf16 %v1930
        %v1947 = vunpack.c.l.bf16 %v1931
        %1949 = vset.pattern.permute.xlu0 0
        %1950 = vperm.xlu0 %1949, %v1897
        %v1951 = vpop.permute.xlu0 %1950
        %1954 = vset.pattern.permute.xlu0 0
        %1955 = vperm.xlu0 %1954, %v1898
        %v1956 = vpop.permute.xlu0 %1955
        %1959 = vset.pattern.permute.xlu0 0
        %1960 = vperm.xlu0 %1959, %v1899
        %v1961 = vpop.permute.xlu0 %1960
        %1964 = vset.pattern.permute.xlu0 0
        %1965 = vperm.xlu0 %1964, %v1900
        %v1966 = vpop.permute.xlu0 %1965
        %1969 = vset.pattern.permute.xlu0 0
        %1970 = vperm.xlu0 %1969, %v1901
        %v1971 = vpop.permute.xlu0 %1970
        %1974 = vset.pattern.permute.xlu0 0
        %1975 = vperm.xlu0 %1974, %v1902
        %v1976 = vpop.permute.xlu0 %1975
        %1979 = vset.pattern.permute.xlu0 0
        %1980 = vperm.xlu0 %1979, %v1903
        %v1981 = vpop.permute.xlu0 %1980
        %1984 = vset.pattern.permute.xlu0 0
        %1985 = vperm.xlu0 %1984, %v1904
        %v1986 = vpop.permute.xlu0 %1985
        %1989 = vset.pattern.permute.xlu0 0
        %1990 = vperm.xlu0 %1989, %v1905
        %v1991 = vpop.permute.xlu0 %1990
        %1994 = vset.pattern.permute.xlu0 0
        %1995 = vperm.xlu0 %1994, %v1906
        %v1996 = vpop.permute.xlu0 %1995
        %1999 = vset.pattern.permute.xlu0 0
        %2000 = vperm.xlu0 %1999, %v1907
        %v2001 = vpop.permute.xlu0 %2000
        %2004 = vset.pattern.permute.xlu0 0
        %2005 = vperm.xlu0 %2004, %v1908
        %v2006 = vpop.permute.xlu0 %2005
        %2009 = vset.pattern.permute.xlu0 0
        %2010 = vperm.xlu0 %2009, %v1909
        %v2011 = vpop.permute.xlu0 %2010
        %2014 = vset.pattern.permute.xlu0 0
        %2015 = vperm.xlu0 %2014, %v1910
        %v2016 = vpop.permute.xlu0 %2015
        %2019 = vset.pattern.permute.xlu0 0
        %2020 = vperm.xlu0 %2019, %v1911
        %v2021 = vpop.permute.xlu0 %2020
        %2024 = vset.pattern.permute.xlu0 0
        %2025 = vperm.xlu0 %2024, %v1912
        %v2026 = vpop.permute.xlu0 %2025
        %v2028 = vmul.f32 %v1951, %v1932
        %v2029 = vmul.f32 %v1956, %v1933
        %v2030 = vmul.f32 %v1961, %v1934
        %v2031 = vmul.f32 %v1966, %v1935
        %v2032 = vmul.f32 %v1971, %v1936
        %v2033 = vmul.f32 %v1976, %v1937
        %v2034 = vmul.f32 %v1981, %v1938
        %v2035 = vmul.f32 %v1986, %v1939
        %v2036 = vmul.f32 %v1991, %v1940
        %v2037 = vmul.f32 %v1996, %v1941
        %v2038 = vmul.f32 %v2001, %v1942
        %v2039 = vmul.f32 %v2006, %v1943
        %v2040 = vmul.f32 %v2011, %v1944
        %v2041 = vmul.f32 %v2016, %v1945
        %v2042 = vmul.f32 %v2021, %v1946
        %v2043 = vmul.f32 %v2026, %v1947
        %v2044 = vadd.f32 %v2028, 0.0
        %v2045 = vadd.f32 %v2029, 0.0
        %v2046 = vadd.f32 %v2030, 0.0
        %v2047 = vadd.f32 %v2031, 0.0
        %v2048 = vadd.f32 %v2032, 0.0
        %v2049 = vadd.f32 %v2033, 0.0
        %v2050 = vadd.f32 %v2034, 0.0
        %v2051 = vadd.f32 %v2035, 0.0
        %v2052 = vadd.f32 %v2036, 0.0
        %v2053 = vadd.f32 %v2037, 0.0
        %v2054 = vadd.f32 %v2038, 0.0
        %v2055 = vadd.f32 %v2039, 0.0
        %v2056 = vadd.f32 %v2040, 0.0
        %v2057 = vadd.f32 %v2041, 0.0
        %v2058 = vadd.f32 %v2042, 0.0
        %v2059 = vadd.f32 %v2043, 0.0
        %v2060 = vld [vmem:[%s1915] sm:$0xf]
        %v2061 = vld [vmem:[%s1915 + $0x4] sm:$0xf]
        %v2062 = vld [vmem:[%s1915 + $0x8] sm:$0x1]
        %v2063 = vld [vmem:[%s1915 + $0xc] sm:$0xf]
        %v2064 = vld [vmem:[%s1915 + $0x10] sm:$0xf]
        %v2065 = vld [vmem:[%s1915 + $0x14] sm:$0x1]
        %v2066 = vld [vmem:[%s1915 + $0x18] sm:$0xf]
        %v2067 = vld [vmem:[%s1915 + $0x1c] sm:$0xf]
        %v2068 = vld [vmem:[%s1915 + $0x20] sm:$0x1]
        %v2069 = vld [vmem:[%s1915 + $0x24] sm:$0xf]
        %v2070 = vld [vmem:[%s1915 + $0x28] sm:$0xf]
        %v2071 = vld [vmem:[%s1915 + $0x2c] sm:$0x1]
        %v2072 = vld [vmem:[%s1915 + $0x30] sm:$0xf]
        %v2073 = vld [vmem:[%s1915 + $0x34] sm:$0xf]
        %v2074 = vld [vmem:[%s1915 + $0x38] sm:$0x1]
        %v2075 = vld [vmem:[%s1915 + $0x3c] sm:$0xf]
        %v2076 = vld [vmem:[%s1915 + $0x40] sm:$0xf]
        %v2077 = vld [vmem:[%s1915 + $0x44] sm:$0x1]
        %v2078 = vld [vmem:[%s1915 + $0x48] sm:$0xf]
        %v2079 = vld [vmem:[%s1915 + $0x4c] sm:$0xf]
        %v2080 = vld [vmem:[%s1915 + $0x50] sm:$0x1]
        %v2081 = vld [vmem:[%s1915 + $0x54] sm:$0xf]
        %v2082 = vld [vmem:[%s1915 + $0x58] sm:$0xf]
        %v2083 = vld [vmem:[%s1915 + $0x5c] sm:$0x1]
        %v2084 = vunpack.c.l.bf16 %v2060
        %v2085 = vunpack.c.l.bf16 %v2061
        %v2086 = vunpack.c.l.bf16 %v2062
        %v2087 = vunpack.c.l.bf16 %v2063
        %v2088 = vunpack.c.l.bf16 %v2064
        %v2089 = vunpack.c.l.bf16 %v2065
        %v2090 = vunpack.c.l.bf16 %v2066
        %v2091 = vunpack.c.l.bf16 %v2067
        %v2092 = vunpack.c.l.bf16 %v2068
        %v2093 = vunpack.c.l.bf16 %v2069
        %v2094 = vunpack.c.l.bf16 %v2070
        %v2095 = vunpack.c.l.bf16 %v2071
        %v2096 = vunpack.c.l.bf16 %v2072
        %v2097 = vunpack.c.l.bf16 %v2073
        %v2098 = vunpack.c.l.bf16 %v2074
        %v2099 = vunpack.c.l.bf16 %v2075
        %v2100 = vunpack.c.l.bf16 %v2076
        %v2101 = vunpack.c.l.bf16 %v2077
        %v2102 = vunpack.c.l.bf16 %v2078
        %v2103 = vunpack.c.l.bf16 %v2079
        %v2104 = vunpack.c.l.bf16 %v2080
        %v2105 = vunpack.c.l.bf16 %v2081
        %v2106 = vunpack.c.l.bf16 %v2082
        %v2107 = vunpack.c.l.bf16 %v2083
        %2108 = vset.pattern.permute.xlu0 1
        %2109 = vperm.xlu0 %2108, %v1897
        %v2110 = vpop.permute.xlu0 %2109
        %2112 = vset.pattern.permute.xlu0 1
        %2113 = vperm.xlu0 %2112, %v1898
        %v2114 = vpop.permute.xlu0 %2113
        %2116 = vset.pattern.permute.xlu0 1
        %2117 = vperm.xlu0 %2116, %v1899
        %v2118 = vpop.permute.xlu0 %2117
        %2120 = vset.pattern.permute.xlu0 1
        %2121 = vperm.xlu0 %2120, %v1900
        %v2122 = vpop.permute.xlu0 %2121
        %2124 = vset.pattern.permute.xlu0 1
        %2125 = vperm.xlu0 %2124, %v1901
        %v2126 = vpop.permute.xlu0 %2125
        %2128 = vset.pattern.permute.xlu0 1
        %2129 = vperm.xlu0 %2128, %v1902
        %v2130 = vpop.permute.xlu0 %2129
        %2132 = vset.pattern.permute.xlu0 1
        %2133 = vperm.xlu0 %2132, %v1903
        %v2134 = vpop.permute.xlu0 %2133
        %2136 = vset.pattern.permute.xlu0 1
        %2137 = vperm.xlu0 %2136, %v1904
        %v2138 = vpop.permute.xlu0 %2137
        %2140 = vset.pattern.permute.xlu0 1
        %2141 = vperm.xlu0 %2140, %v1905
        %v2142 = vpop.permute.xlu0 %2141
        %2144 = vset.pattern.permute.xlu0 1
        %2145 = vperm.xlu0 %2144, %v1906
        %v2146 = vpop.permute.xlu0 %2145
        %2148 = vset.pattern.permute.xlu0 1
        %2149 = vperm.xlu0 %2148, %v1907
        %v2150 = vpop.permute.xlu0 %2149
        %2152 = vset.pattern.permute.xlu0 1
        %2153 = vperm.xlu0 %2152, %v1908
        %v2154 = vpop.permute.xlu0 %2153
        %2156 = vset.pattern.permute.xlu0 1
        %2157 = vperm.xlu0 %2156, %v1909
        %v2158 = vpop.permute.xlu0 %2157
        %2160 = vset.pattern.permute.xlu0 1
        %2161 = vperm.xlu0 %2160, %v1910
        %v2162 = vpop.permute.xlu0 %2161
        %2164 = vset.pattern.permute.xlu0 1
        %2165 = vperm.xlu0 %2164, %v1911
        %v2166 = vpop.permute.xlu0 %2165
        %2168 = vset.pattern.permute.xlu0 1
        %2169 = vperm.xlu0 %2168, %v1912
        %v2170 = vpop.permute.xlu0 %2169
        %vm2196 = vcmask 1046528
        %v2197 = vrot.slane %v2084, 1
        %v2198 = vrot.slane %v2085, 1
        %v2199 = vsel %vm2196, %v2197, %v2198
        %v2200 = vrot.slane %v2086, 1
        %v2201 = vsel %vm2196, %v2198, %v2200
        %v2202 = vrot.slane %v2087, 1
        %v2203 = vrot.slane %v2088, 1
        %v2204 = vsel %vm2196, %v2202, %v2203
        %v2205 = vrot.slane %v2089, 1
        %v2206 = vsel %vm2196, %v2203, %v2205
        %v2207 = vrot.slane %v2090, 1
        %v2208 = vrot.slane %v2091, 1
        %v2209 = vsel %vm2196, %v2207, %v2208
        %v2210 = vrot.slane %v2092, 1
        %v2211 = vsel %vm2196, %v2208, %v2210
        %v2212 = vrot.slane %v2093, 1
        %v2213 = vrot.slane %v2094, 1
        %v2214 = vsel %vm2196, %v2212, %v2213
        %v2215 = vrot.slane %v2095, 1
        %v2216 = vsel %vm2196, %v2213, %v2215
        %v2217 = vrot.slane %v2096, 1
        %v2218 = vrot.slane %v2097, 1
        %v2219 = vsel %vm2196, %v2217, %v2218
        %v2220 = vrot.slane %v2098, 1
        %v2221 = vsel %vm2196, %v2218, %v2220
        %v2222 = vrot.slane %v2099, 1
        %v2223 = vrot.slane %v2100, 1
        %v2224 = vsel %vm2196, %v2222, %v2223
        %v2225 = vrot.slane %v2101, 1
        %v2226 = vsel %vm2196, %v2223, %v2225
        %v2227 = vrot.slane %v2102, 1
        %v2228 = vrot.slane %v2103, 1
        %v2229 = vsel %vm2196, %v2227, %v2228
        %v2230 = vrot.slane %v2104, 1
        %v2231 = vsel %vm2196, %v2228, %v2230
        %v2232 = vrot.slane %v2105, 1
        %v2233 = vrot.slane %v2106, 1
        %v2234 = vsel %vm2196, %v2232, %v2233
        %v2235 = vrot.slane %v2107, 1
        %v2236 = vsel %vm2196, %v2233, %v2235
        %v2253 = vmul.f32 %v2110, %v2199
        %v2254 = vmul.f32 %v2114, %v2201
        %v2255 = vmul.f32 %v2118, %v2204
        %v2256 = vmul.f32 %v2122, %v2206
        %v2257 = vmul.f32 %v2126, %v2209
        %v2258 = vmul.f32 %v2130, %v2211
        %v2259 = vmul.f32 %v2134, %v2214
        %v2260 = vmul.f32 %v2138, %v2216
        %v2261 = vmul.f32 %v2142, %v2219
        %v2262 = vmul.f32 %v2146, %v2221
        %v2263 = vmul.f32 %v2150, %v2224
        %v2264 = vmul.f32 %v2154, %v2226
        %v2265 = vmul.f32 %v2158, %v2229
        %v2266 = vmul.f32 %v2162, %v2231
        %v2267 = vmul.f32 %v2166, %v2234
        %v2268 = vmul.f32 %v2170, %v2236
        %v2269 = vadd.f32 %v2044, %v2253
        %v2270 = vadd.f32 %v2045, %v2254
        %v2271 = vadd.f32 %v2046, %v2255
        %v2272 = vadd.f32 %v2047, %v2256
        %v2273 = vadd.f32 %v2048, %v2257
        %v2274 = vadd.f32 %v2049, %v2258
        %v2275 = vadd.f32 %v2050, %v2259
        %v2276 = vadd.f32 %v2051, %v2260
        %v2277 = vadd.f32 %v2052, %v2261
        %v2278 = vadd.f32 %v2053, %v2262
        %v2279 = vadd.f32 %v2054, %v2263
        %v2280 = vadd.f32 %v2055, %v2264
        %v2281 = vadd.f32 %v2056, %v2265
        %v2282 = vadd.f32 %v2057, %v2266
        %v2283 = vadd.f32 %v2058, %v2267
        %v2284 = vadd.f32 %v2059, %v2268
        %v2285 = vld [vmem:[%s1915] sm:$0xe]
        %v2286 = vld [vmem:[%s1915 + $0xc] sm:$0xe]
        %v2287 = vld [vmem:[%s1915 + $0x18] sm:$0xe]
        %v2288 = vld [vmem:[%s1915 + $0x24] sm:$0xe]
        %v2289 = vld [vmem:[%s1915 + $0x30] sm:$0xe]
        %v2290 = vld [vmem:[%s1915 + $0x3c] sm:$0xe]
        %v2291 = vld [vmem:[%s1915 + $0x48] sm:$0xe]
        %v2292 = vld [vmem:[%s1915 + $0x54] sm:$0xe]
        %v2293 = vunpack.c.l.bf16 %v2285
        %v2294 = vunpack.c.l.bf16 %v2286
        %v2295 = vunpack.c.l.bf16 %v2287
        %v2296 = vunpack.c.l.bf16 %v2288
        %v2297 = vunpack.c.l.bf16 %v2289
        %v2298 = vunpack.c.l.bf16 %v2290
        %v2299 = vunpack.c.l.bf16 %v2291
        %v2300 = vunpack.c.l.bf16 %v2292
        %2301 = vset.pattern.permute.xlu0 2
        %2302 = vperm.xlu0 %2301, %v1897
        %v2303 = vpop.permute.xlu0 %2302
        %2305 = vset.pattern.permute.xlu0 2
        %2306 = vperm.xlu0 %2305, %v1898
        %v2307 = vpop.permute.xlu0 %2306
        %2309 = vset.pattern.permute.xlu0 2
        %2310 = vperm.xlu0 %2309, %v1899
        %v2311 = vpop.permute.xlu0 %2310
        %2313 = vset.pattern.permute.xlu0 2
        %2314 = vperm.xlu0 %2313, %v1900
        %v2315 = vpop.permute.xlu0 %2314
        %2317 = vset.pattern.permute.xlu0 2
        %2318 = vperm.xlu0 %2317, %v1901
        %v2319 = vpop.permute.xlu0 %2318
        %2321 = vset.pattern.permute.xlu0 2
        %2322 = vperm.xlu0 %2321, %v1902
        %v2323 = vpop.permute.xlu0 %2322
        %2325 = vset.pattern.permute.xlu0 2
        %2326 = vperm.xlu0 %2325, %v1903
        %v2327 = vpop.permute.xlu0 %2326
        %2329 = vset.pattern.permute.xlu0 2
        %2330 = vperm.xlu0 %2329, %v1904
        %v2331 = vpop.permute.xlu0 %2330
        %2333 = vset.pattern.permute.xlu0 2
        %2334 = vperm.xlu0 %2333, %v1905
        %v2335 = vpop.permute.xlu0 %2334
        %2337 = vset.pattern.permute.xlu0 2
        %2338 = vperm.xlu0 %2337, %v1906
        %v2339 = vpop.permute.xlu0 %2338
        %2341 = vset.pattern.permute.xlu0 2
        %2342 = vperm.xlu0 %2341, %v1907
        %v2343 = vpop.permute.xlu0 %2342
        %2345 = vset.pattern.permute.xlu0 2
        %2346 = vperm.xlu0 %2345, %v1908
        %v2347 = vpop.permute.xlu0 %2346
        %2349 = vset.pattern.permute.xlu0 2
        %2350 = vperm.xlu0 %2349, %v1909
        %v2351 = vpop.permute.xlu0 %2350
        %2353 = vset.pattern.permute.xlu0 2
        %2354 = vperm.xlu0 %2353, %v1910
        %v2355 = vpop.permute.xlu0 %2354
        %2357 = vset.pattern.permute.xlu0 2
        %2358 = vperm.xlu0 %2357, %v1911
        %v2359 = vpop.permute.xlu0 %2358
        %2361 = vset.pattern.permute.xlu0 2
        %2362 = vperm.xlu0 %2361, %v1912
        %v2363 = vpop.permute.xlu0 %2362
        %vm2373 = vcmask 1045504
        %v2374 = vrot.slane %v2293, 2
        %v2375 = vrot.slane %v2085, 2
        %v2376 = vsel %vm2373, %v2374, %v2375
        %v2377 = vrot.slane %v2086, 2
        %v2378 = vsel %vm2373, %v2375, %v2377
        %v2379 = vrot.slane %v2294, 2
        %v2380 = vrot.slane %v2088, 2
        %v2381 = vsel %vm2373, %v2379, %v2380
        %v2382 = vrot.slane %v2089, 2
        %v2383 = vsel %vm2373, %v2380, %v2382
        %v2384 = vrot.slane %v2295, 2
        %v2385 = vrot.slane %v2091, 2
        %v2386 = vsel %vm2373, %v2384, %v2385
        %v2387 = vrot.slane %v2092, 2
        %v2388 = vsel %vm2373, %v2385, %v2387
        %v2389 = vrot.slane %v2296, 2
        %v2390 = vrot.slane %v2094, 2
        %v2391 = vsel %vm2373, %v2389, %v2390
        %v2392 = vrot.slane %v2095, 2
        %v2393 = vsel %vm2373, %v2390, %v2392
        %v2394 = vrot.slane %v2297, 2
        %v2395 = vrot.slane %v2097, 2
        %v2396 = vsel %vm2373, %v2394, %v2395
        %v2397 = vrot.slane %v2098, 2
        %v2398 = vsel %vm2373, %v2395, %v2397
        %v2399 = vrot.slane %v2298, 2
        %v2400 = vrot.slane %v2100, 2
        %v2401 = vsel %vm2373, %v2399, %v2400
        %v2402 = vrot.slane %v2101, 2
        %v2403 = vsel %vm2373, %v2400, %v2402
        %v2404 = vrot.slane %v2299, 2
        %v2405 = vrot.slane %v2103, 2
        %v2406 = vsel %vm2373, %v2404, %v2405
        %v2407 = vrot.slane %v2104, 2
        %v2408 = vsel %vm2373, %v2405, %v2407
        %v2409 = vrot.slane %v2300, 2
        %v2410 = vrot.slane %v2106, 2
        %v2411 = vsel %vm2373, %v2409, %v2410
        %v2412 = vrot.slane %v2107, 2
        %v2413 = vsel %vm2373, %v2410, %v2412
        %v2430 = vmul.f32 %v2303, %v2376
        %v2431 = vmul.f32 %v2307, %v2378
        %v2432 = vmul.f32 %v2311, %v2381
        %v2433 = vmul.f32 %v2315, %v2383
        %v2434 = vmul.f32 %v2319, %v2386
        %v2435 = vmul.f32 %v2323, %v2388
        %v2436 = vmul.f32 %v2327, %v2391
        %v2437 = vmul.f32 %v2331, %v2393
        %v2438 = vmul.f32 %v2335, %v2396
        %v2439 = vmul.f32 %v2339, %v2398
        %v2440 = vmul.f32 %v2343, %v2401
        %v2441 = vmul.f32 %v2347, %v2403
        %v2442 = vmul.f32 %v2351, %v2406
        %v2443 = vmul.f32 %v2355, %v2408
        %v2444 = vmul.f32 %v2359, %v2411
        %v2445 = vmul.f32 %v2363, %v2413
        %v2446 = vadd.f32 %v2269, %v2430
        %v2447 = vadd.f32 %v2270, %v2431
        %v2448 = vadd.f32 %v2271, %v2432
        %v2449 = vadd.f32 %v2272, %v2433
        %v2450 = vadd.f32 %v2273, %v2434
        %v2451 = vadd.f32 %v2274, %v2435
        %v2452 = vadd.f32 %v2275, %v2436
        %v2453 = vadd.f32 %v2276, %v2437
        %v2454 = vadd.f32 %v2277, %v2438
        %v2455 = vadd.f32 %v2278, %v2439
        %v2456 = vadd.f32 %v2279, %v2440
        %v2457 = vadd.f32 %v2280, %v2441
        %v2458 = vadd.f32 %v2281, %v2442
        %v2459 = vadd.f32 %v2282, %v2443
        %v2460 = vadd.f32 %v2283, %v2444
        %v2461 = vadd.f32 %v2284, %v2445
        %v2462 = vld [vmem:[%s1915 + $0x8] sm:$0x3]
        %v2463 = vld [vmem:[%s1915 + $0x14] sm:$0x3]
        %v2464 = vld [vmem:[%s1915 + $0x20] sm:$0x3]
        %v2465 = vld [vmem:[%s1915 + $0x2c] sm:$0x3]
        %v2466 = vld [vmem:[%s1915 + $0x38] sm:$0x3]
        %v2467 = vld [vmem:[%s1915 + $0x44] sm:$0x3]
        %v2468 = vld [vmem:[%s1915 + $0x50] sm:$0x3]
        %v2469 = vld [vmem:[%s1915 + $0x5c] sm:$0x3]
        %v2470 = vunpack.c.l.bf16 %v2462
        %v2471 = vunpack.c.l.bf16 %v2463
        %v2472 = vunpack.c.l.bf16 %v2464
        %v2473 = vunpack.c.l.bf16 %v2465
        %v2474 = vunpack.c.l.bf16 %v2466
        %v2475 = vunpack.c.l.bf16 %v2467
        %v2476 = vunpack.c.l.bf16 %v2468
        %v2477 = vunpack.c.l.bf16 %v2469
        %2478 = vset.pattern.permute.xlu0 3
        %2479 = vperm.xlu0 %2478, %v1897
        %v2480 = vpop.permute.xlu0 %2479
        %2482 = vset.pattern.permute.xlu0 3
        %2483 = vperm.xlu0 %2482, %v1898
        %v2484 = vpop.permute.xlu0 %2483
        %2486 = vset.pattern.permute.xlu0 3
        %2487 = vperm.xlu0 %2486, %v1899
        %v2488 = vpop.permute.xlu0 %2487
        %2490 = vset.pattern.permute.xlu0 3
        %2491 = vperm.xlu0 %2490, %v1900
        %v2492 = vpop.permute.xlu0 %2491
        %2494 = vset.pattern.permute.xlu0 3
        %2495 = vperm.xlu0 %2494, %v1901
        %v2496 = vpop.permute.xlu0 %2495
        %2498 = vset.pattern.permute.xlu0 3
        %2499 = vperm.xlu0 %2498, %v1902
        %v2500 = vpop.permute.xlu0 %2499
        %2502 = vset.pattern.permute.xlu0 3
        %2503 = vperm.xlu0 %2502, %v1903
        %v2504 = vpop.permute.xlu0 %2503
        %2506 = vset.pattern.permute.xlu0 3
        %2507 = vperm.xlu0 %2506, %v1904
        %v2508 = vpop.permute.xlu0 %2507
        %2510 = vset.pattern.permute.xlu0 3
        %2511 = vperm.xlu0 %2510, %v1905
        %v2512 = vpop.permute.xlu0 %2511
        %2514 = vset.pattern.permute.xlu0 3
        %2515 = vperm.xlu0 %2514, %v1906
        %v2516 = vpop.permute.xlu0 %2515
        %2518 = vset.pattern.permute.xlu0 3
        %2519 = vperm.xlu0 %2518, %v1907
        %v2520 = vpop.permute.xlu0 %2519
        %2522 = vset.pattern.permute.xlu0 3
        %2523 = vperm.xlu0 %2522, %v1908
        %v2524 = vpop.permute.xlu0 %2523
        %2526 = vset.pattern.permute.xlu0 3
        %2527 = vperm.xlu0 %2526, %v1909
        %v2528 = vpop.permute.xlu0 %2527
        %2530 = vset.pattern.permute.xlu0 3
        %2531 = vperm.xlu0 %2530, %v1910
        %v2532 = vpop.permute.xlu0 %2531
        %2534 = vset.pattern.permute.xlu0 3
        %2535 = vperm.xlu0 %2534, %v1911
        %v2536 = vpop.permute.xlu0 %2535
        %2538 = vset.pattern.permute.xlu0 3
        %2539 = vperm.xlu0 %2538, %v1912
        %v2540 = vpop.permute.xlu0 %2539
        %vm2550 = vcmask 1044480
        %v2551 = vrot.slane %v2293, 3
        %v2552 = vrot.slane %v2085, 3
        %v2553 = vsel %vm2550, %v2551, %v2552
        %v2554 = vrot.slane %v2470, 3
        %v2555 = vsel %vm2550, %v2552, %v2554
        %v2556 = vrot.slane %v2294, 3
        %v2557 = vrot.slane %v2088, 3
        %v2558 = vsel %vm2550, %v2556, %v2557
        %v2559 = vrot.slane %v2471, 3
        %v2560 = vsel %vm2550, %v2557, %v2559
        %v2561 = vrot.slane %v2295, 3
        %v2562 = vrot.slane %v2091, 3
        %v2563 = vsel %vm2550, %v2561, %v2562
        %v2564 = vrot.slane %v2472, 3
        %v2565 = vsel %vm2550, %v2562, %v2564
        %v2566 = vrot.slane %v2296, 3
        %v2567 = vrot.slane %v2094, 3
        %v2568 = vsel %vm2550, %v2566, %v2567
        %v2569 = vrot.slane %v2473, 3
        %v2570 = vsel %vm2550, %v2567, %v2569
        %v2571 = vrot.slane %v2297, 3
        %v2572 = vrot.slane %v2097, 3
        %v2573 = vsel %vm2550, %v2571, %v2572
        %v2574 = vrot.slane %v2474, 3
        %v2575 = vsel %vm2550, %v2572, %v2574
        %v2576 = vrot.slane %v2298, 3
        %v2577 = vrot.slane %v2100, 3
        %v2578 = vsel %vm2550, %v2576, %v2577
        %v2579 = vrot.slane %v2475, 3
        %v2580 = vsel %vm2550, %v2577, %v2579
        %v2581 = vrot.slane %v2299, 3
        %v2582 = vrot.slane %v2103, 3
        %v2583 = vsel %vm2550, %v2581, %v2582
        %v2584 = vrot.slane %v2476, 3
        %v2585 = vsel %vm2550, %v2582, %v2584
        %v2586 = vrot.slane %v2300, 3
        %v2587 = vrot.slane %v2106, 3
        %v2588 = vsel %vm2550, %v2586, %v2587
        %v2589 = vrot.slane %v2477, 3
        %v2590 = vsel %vm2550, %v2587, %v2589
        %v2607 = vmul.f32 %v2480, %v2553
        %v2608 = vmul.f32 %v2484, %v2555
        %v2609 = vmul.f32 %v2488, %v2558
        %v2610 = vmul.f32 %v2492, %v2560
        %v2611 = vmul.f32 %v2496, %v2563
        %v2612 = vmul.f32 %v2500, %v2565
        %v2613 = vmul.f32 %v2504, %v2568
        %v2614 = vmul.f32 %v2508, %v2570
        %v2615 = vmul.f32 %v2512, %v2573
        %v2616 = vmul.f32 %v2516, %v2575
        %v2617 = vmul.f32 %v2520, %v2578
        %v2618 = vmul.f32 %v2524, %v2580
        %v2619 = vmul.f32 %v2528, %v2583
        %v2620 = vmul.f32 %v2532, %v2585
        %v2621 = vmul.f32 %v2536, %v2588
        %v2622 = vmul.f32 %v2540, %v2590
        %v2623 = vadd.f32 %v2446, %v2607
        %v2624 = vadd.f32 %v2447, %v2608
        %v2625 = vadd.f32 %v2448, %v2609
        %v2626 = vadd.f32 %v2449, %v2610
        %v2627 = vadd.f32 %v2450, %v2611
        %v2628 = vadd.f32 %v2451, %v2612
        %v2629 = vadd.f32 %v2452, %v2613
        %v2630 = vadd.f32 %v2453, %v2614
        %v2631 = vadd.f32 %v2454, %v2615
        %v2632 = vadd.f32 %v2455, %v2616
        %v2633 = vadd.f32 %v2456, %v2617
        %v2634 = vadd.f32 %v2457, %v2618
        %v2635 = vadd.f32 %v2458, %v2619
        %v2636 = vadd.f32 %v2459, %v2620
        %v2637 = vadd.f32 %v2460, %v2621
        %v2638 = vadd.f32 %v2461, %v2622
        %v2639 = vld [vmem:[%s1915] sm:$0xc]
        %v2640 = vld [vmem:[%s1915 + $0xc] sm:$0xc]
        %v2641 = vld [vmem:[%s1915 + $0x18] sm:$0xc]
        %v2642 = vld [vmem:[%s1915 + $0x24] sm:$0xc]
        %v2643 = vld [vmem:[%s1915 + $0x30] sm:$0xc]
        %v2644 = vld [vmem:[%s1915 + $0x3c] sm:$0xc]
        %v2645 = vld [vmem:[%s1915 + $0x48] sm:$0xc]
        %v2646 = vld [vmem:[%s1915 + $0x54] sm:$0xc]
        %v2647 = vunpack.c.l.bf16 %v2639
        %v2648 = vunpack.c.l.bf16 %v2640
        %v2649 = vunpack.c.l.bf16 %v2641
        %v2650 = vunpack.c.l.bf16 %v2642
        %v2651 = vunpack.c.l.bf16 %v2643
        %v2652 = vunpack.c.l.bf16 %v2644
        %v2653 = vunpack.c.l.bf16 %v2645
        %v2654 = vunpack.c.l.bf16 %v2646
        %2655 = vset.pattern.permute.xlu0 4
        %2656 = vperm.xlu0 %2655, %v1897
        %v2657 = vpop.permute.xlu0 %2656
        %2659 = vset.pattern.permute.xlu0 4
        %2660 = vperm.xlu0 %2659, %v1898
        %v2661 = vpop.permute.xlu0 %2660
        %2663 = vset.pattern.permute.xlu0 4
        %2664 = vperm.xlu0 %2663, %v1899
        %v2665 = vpop.permute.xlu0 %2664
        %2667 = vset.pattern.permute.xlu0 4
        %2668 = vperm.xlu0 %2667, %v1900
        %v2669 = vpop.permute.xlu0 %2668
        %2671 = vset.pattern.permute.xlu0 4
        %2672 = vperm.xlu0 %2671, %v1901
        %v2673 = vpop.permute.xlu0 %2672
        %2675 = vset.pattern.permute.xlu0 4
        %2676 = vperm.xlu0 %2675, %v1902
        %v2677 = vpop.permute.xlu0 %2676
        %2679 = vset.pattern.permute.xlu0 4
        %2680 = vperm.xlu0 %2679, %v1903
        %v2681 = vpop.permute.xlu0 %2680
        %2683 = vset.pattern.permute.xlu0 4
        %2684 = vperm.xlu0 %2683, %v1904
        %v2685 = vpop.permute.xlu0 %2684
        %2687 = vset.pattern.permute.xlu0 4
        %2688 = vperm.xlu0 %2687, %v1905
        %v2689 = vpop.permute.xlu0 %2688
        %2691 = vset.pattern.permute.xlu0 4
        %2692 = vperm.xlu0 %2691, %v1906
        %v2693 = vpop.permute.xlu0 %2692
        %2695 = vset.pattern.permute.xlu0 4
        %2696 = vperm.xlu0 %2695, %v1907
        %v2697 = vpop.permute.xlu0 %2696
        %2699 = vset.pattern.permute.xlu0 4
        %2700 = vperm.xlu0 %2699, %v1908
        %v2701 = vpop.permute.xlu0 %2700
        %2703 = vset.pattern.permute.xlu0 4
        %2704 = vperm.xlu0 %2703, %v1909
        %v2705 = vpop.permute.xlu0 %2704
        %2707 = vset.pattern.permute.xlu0 4
        %2708 = vperm.xlu0 %2707, %v1910
        %v2709 = vpop.permute.xlu0 %2708
        %2711 = vset.pattern.permute.xlu0 4
        %2712 = vperm.xlu0 %2711, %v1911
        %v2713 = vpop.permute.xlu0 %2712
        %2715 = vset.pattern.permute.xlu0 4
        %2716 = vperm.xlu0 %2715, %v1912
        %v2717 = vpop.permute.xlu0 %2716
        %vm2727 = vcmask 1043456
        %v2728 = vrot.slane %v2647, 4
        %v2729 = vrot.slane %v2085, 4
        %v2730 = vsel %vm2727, %v2728, %v2729
        %v2731 = vrot.slane %v2470, 4
        %v2732 = vsel %vm2727, %v2729, %v2731
        %v2733 = vrot.slane %v2648, 4
        %v2734 = vrot.slane %v2088, 4
        %v2735 = vsel %vm2727, %v2733, %v2734
        %v2736 = vrot.slane %v2471, 4
        %v2737 = vsel %vm2727, %v2734, %v2736
        %v2738 = vrot.slane %v2649, 4
        %v2739 = vrot.slane %v2091, 4
        %v2740 = vsel %vm2727, %v2738, %v2739
        %v2741 = vrot.slane %v2472, 4
        %v2742 = vsel %vm2727, %v2739, %v2741
        %v2743 = vrot.slane %v2650, 4
        %v2744 = vrot.slane %v2094, 4
        %v2745 = vsel %vm2727, %v2743, %v2744
        %v2746 = vrot.slane %v2473, 4
        %v2747 = vsel %vm2727, %v2744, %v2746
        %v2748 = vrot.slane %v2651, 4
        %v2749 = vrot.slane %v2097, 4
        %v2750 = vsel %vm2727, %v2748, %v2749
        %v2751 = vrot.slane %v2474, 4
        %v2752 = vsel %vm2727, %v2749, %v2751
        %v2753 = vrot.slane %v2652, 4
        %v2754 = vrot.slane %v2100, 4
        %v2755 = vsel %vm2727, %v2753, %v2754
        %v2756 = vrot.slane %v2475, 4
        %v2757 = vsel %vm2727, %v2754, %v2756
        %v2758 = vrot.slane %v2653, 4
        %v2759 = vrot.slane %v2103, 4
        %v2760 = vsel %vm2727, %v2758, %v2759
        %v2761 = vrot.slane %v2476, 4
        %v2762 = vsel %vm2727, %v2759, %v2761
        %v2763 = vrot.slane %v2654, 4
        %v2764 = vrot.slane %v2106, 4
        %v2765 = vsel %vm2727, %v2763, %v2764
        %v2766 = vrot.slane %v2477, 4
        %v2767 = vsel %vm2727, %v2764, %v2766
        %v2784 = vmul.f32 %v2657, %v2730
        %v2785 = vmul.f32 %v2661, %v2732
        %v2786 = vmul.f32 %v2665, %v2735
        %v2787 = vmul.f32 %v2669, %v2737
        %v2788 = vmul.f32 %v2673, %v2740
        %v2789 = vmul.f32 %v2677, %v2742
        %v2790 = vmul.f32 %v2681, %v2745
        %v2791 = vmul.f32 %v2685, %v2747
        %v2792 = vmul.f32 %v2689, %v2750
        %v2793 = vmul.f32 %v2693, %v2752
        %v2794 = vmul.f32 %v2697, %v2755
        %v2795 = vmul.f32 %v2701, %v2757
        %v2796 = vmul.f32 %v2705, %v2760
        %v2797 = vmul.f32 %v2709, %v2762
        %v2798 = vmul.f32 %v2713, %v2765
        %v2799 = vmul.f32 %v2717, %v2767
        %v2800 = vadd.f32 %v2623, %v2784
        %v2801 = vadd.f32 %v2624, %v2785
        %v2802 = vadd.f32 %v2625, %v2786
        %v2803 = vadd.f32 %v2626, %v2787
        %v2804 = vadd.f32 %v2627, %v2788
        %v2805 = vadd.f32 %v2628, %v2789
        %v2806 = vadd.f32 %v2629, %v2790
        %v2807 = vadd.f32 %v2630, %v2791
        %v2808 = vadd.f32 %v2631, %v2792
        %v2809 = vadd.f32 %v2632, %v2793
        %v2810 = vadd.f32 %v2633, %v2794
        %v2811 = vadd.f32 %v2634, %v2795
        %v2812 = vadd.f32 %v2635, %v2796
        %v2813 = vadd.f32 %v2636, %v2797
        %v2814 = vadd.f32 %v2637, %v2798
        %v2815 = vadd.f32 %v2638, %v2799
        %s2816 = sadd.s32 %s1892, 1
        %s2817 = smul.u32 %s2816, 3
        %s2818 = smul.addr %s2817, 4
        %s2819 = scalar_lea.vmem %s204, %s2818
        %v2820 = vld [vmem:[%s2819] sm:$0xf]
        %v2821 = vld [vmem:[%s2819 + $0x4] sm:$0xf]
        %v2822 = vld [vmem:[%s2819 + $0xc] sm:$0xf]
        %v2823 = vld [vmem:[%s2819 + $0x10] sm:$0xf]
        %v2824 = vld [vmem:[%s2819 + $0x18] sm:$0xf]
        %v2825 = vld [vmem:[%s2819 + $0x1c] sm:$0xf]
        %v2826 = vld [vmem:[%s2819 + $0x24] sm:$0xf]
        %v2827 = vld [vmem:[%s2819 + $0x28] sm:$0xf]
        %v2828 = vld [vmem:[%s2819 + $0x30] sm:$0xf]
        %v2829 = vld [vmem:[%s2819 + $0x34] sm:$0xf]
        %v2830 = vld [vmem:[%s2819 + $0x3c] sm:$0xf]
        %v2831 = vld [vmem:[%s2819 + $0x40] sm:$0xf]
        %v2832 = vld [vmem:[%s2819 + $0x48] sm:$0xf]
        %v2833 = vld [vmem:[%s2819 + $0x4c] sm:$0xf]
        %v2834 = vld [vmem:[%s2819 + $0x54] sm:$0xf]
        %v2835 = vld [vmem:[%s2819 + $0x58] sm:$0xf]
        %v2836 = vunpack.c.l.bf16 %v2820
        %v2837 = vunpack.c.l.bf16 %v2821
        %v2838 = vunpack.c.l.bf16 %v2822
        %v2839 = vunpack.c.l.bf16 %v2823
        %v2840 = vunpack.c.l.bf16 %v2824
        %v2841 = vunpack.c.l.bf16 %v2825
        %v2842 = vunpack.c.l.bf16 %v2826
        %v2843 = vunpack.c.l.bf16 %v2827
        %v2844 = vunpack.c.l.bf16 %v2828
        %v2845 = vunpack.c.l.bf16 %v2829
        %v2846 = vunpack.c.l.bf16 %v2830
        %v2847 = vunpack.c.l.bf16 %v2831
        %v2848 = vunpack.c.l.bf16 %v2832
        %v2849 = vunpack.c.l.bf16 %v2833
        %v2850 = vunpack.c.l.bf16 %v2834
        %v2851 = vunpack.c.l.bf16 %v2835
        %2852 = vset.pattern.permute.xlu0 5
        %2853 = vperm.xlu0 %2852, %v1897
        %v2854 = vpop.permute.xlu0 %2853
        %2856 = vset.pattern.permute.xlu0 5
        %2857 = vperm.xlu0 %2856, %v1898
        %v2858 = vpop.permute.xlu0 %2857
        %2860 = vset.pattern.permute.xlu0 5
        %2861 = vperm.xlu0 %2860, %v1899
        %v2862 = vpop.permute.xlu0 %2861
        %2864 = vset.pattern.permute.xlu0 5
        %2865 = vperm.xlu0 %2864, %v1900
        %v2866 = vpop.permute.xlu0 %2865
        %2868 = vset.pattern.permute.xlu0 5
        %2869 = vperm.xlu0 %2868, %v1901
        %v2870 = vpop.permute.xlu0 %2869
        %2872 = vset.pattern.permute.xlu0 5
        %2873 = vperm.xlu0 %2872, %v1902
        %v2874 = vpop.permute.xlu0 %2873
        %2876 = vset.pattern.permute.xlu0 5
        %2877 = vperm.xlu0 %2876, %v1903
        %v2878 = vpop.permute.xlu0 %2877
        %2880 = vset.pattern.permute.xlu0 5
        %2881 = vperm.xlu0 %2880, %v1904
        %v2882 = vpop.permute.xlu0 %2881
        %2884 = vset.pattern.permute.xlu0 5
        %2885 = vperm.xlu0 %2884, %v1905
        %v2886 = vpop.permute.xlu0 %2885
        %2888 = vset.pattern.permute.xlu0 5
        %2889 = vperm.xlu0 %2888, %v1906
        %v2890 = vpop.permute.xlu0 %2889
        %2892 = vset.pattern.permute.xlu0 5
        %2893 = vperm.xlu0 %2892, %v1907
        %v2894 = vpop.permute.xlu0 %2893
        %2896 = vset.pattern.permute.xlu0 5
        %2897 = vperm.xlu0 %2896, %v1908
        %v2898 = vpop.permute.xlu0 %2897
        %2900 = vset.pattern.permute.xlu0 5
        %2901 = vperm.xlu0 %2900, %v1909
        %v2902 = vpop.permute.xlu0 %2901
        %2904 = vset.pattern.permute.xlu0 5
        %2905 = vperm.xlu0 %2904, %v1910
        %v2906 = vpop.permute.xlu0 %2905
        %2908 = vset.pattern.permute.xlu0 5
        %2909 = vperm.xlu0 %2908, %v1911
        %v2910 = vpop.permute.xlu0 %2909
        %2912 = vset.pattern.permute.xlu0 5
        %2913 = vperm.xlu0 %2912, %v1912
        %v2914 = vpop.permute.xlu0 %2913
        %v2916 = vmul.f32 %v2854, %v2836
        %v2917 = vmul.f32 %v2858, %v2837
        %v2918 = vmul.f32 %v2862, %v2838
        %v2919 = vmul.f32 %v2866, %v2839
        %v2920 = vmul.f32 %v2870, %v2840
        %v2921 = vmul.f32 %v2874, %v2841
        %v2922 = vmul.f32 %v2878, %v2842
        %v2923 = vmul.f32 %v2882, %v2843
        %v2924 = vmul.f32 %v2886, %v2844
        %v2925 = vmul.f32 %v2890, %v2845
        %v2926 = vmul.f32 %v2894, %v2846
        %v2927 = vmul.f32 %v2898, %v2847
        %v2928 = vmul.f32 %v2902, %v2848
        %v2929 = vmul.f32 %v2906, %v2849
        %v2930 = vmul.f32 %v2910, %v2850
        %v2931 = vmul.f32 %v2914, %v2851
        %v2932 = vadd.f32 %v2800, %v2916
        %v2933 = vadd.f32 %v2801, %v2917
        %v2934 = vadd.f32 %v2802, %v2918
        %v2935 = vadd.f32 %v2803, %v2919
        %v2936 = vadd.f32 %v2804, %v2920
        %v2937 = vadd.f32 %v2805, %v2921
        %v2938 = vadd.f32 %v2806, %v2922
        %v2939 = vadd.f32 %v2807, %v2923
        %v2940 = vadd.f32 %v2808, %v2924
        %v2941 = vadd.f32 %v2809, %v2925
        %v2942 = vadd.f32 %v2810, %v2926
        %v2943 = vadd.f32 %v2811, %v2927
        %v2944 = vadd.f32 %v2812, %v2928
        %v2945 = vadd.f32 %v2813, %v2929
        %v2946 = vadd.f32 %v2814, %v2930
        %v2947 = vadd.f32 %v2815, %v2931
        %v2948 = vld [vmem:[%s2819] sm:$0xf]
        %v2949 = vld [vmem:[%s2819 + $0x4] sm:$0xf]
        %v2950 = vld [vmem:[%s2819 + $0x8] sm:$0x1]
        %v2951 = vld [vmem:[%s2819 + $0xc] sm:$0xf]
        %v2952 = vld [vmem:[%s2819 + $0x10] sm:$0xf]
        %v2953 = vld [vmem:[%s2819 + $0x14] sm:$0x1]
        %v2954 = vld [vmem:[%s2819 + $0x18] sm:$0xf]
        %v2955 = vld [vmem:[%s2819 + $0x1c] sm:$0xf]
        %v2956 = vld [vmem:[%s2819 + $0x20] sm:$0x1]
        %v2957 = vld [vmem:[%s2819 + $0x24] sm:$0xf]
        %v2958 = vld [vmem:[%s2819 + $0x28] sm:$0xf]
        %v2959 = vld [vmem:[%s2819 + $0x2c] sm:$0x1]
        %v2960 = vld [vmem:[%s2819 + $0x30] sm:$0xf]
        %v2961 = vld [vmem:[%s2819 + $0x34] sm:$0xf]
        %v2962 = vld [vmem:[%s2819 + $0x38] sm:$0x1]
        %v2963 = vld [vmem:[%s2819 + $0x3c] sm:$0xf]
        %v2964 = vld [vmem:[%s2819 + $0x40] sm:$0xf]
        %v2965 = vld [vmem:[%s2819 + $0x44] sm:$0x1]
        %v2966 = vld [vmem:[%s2819 + $0x48] sm:$0xf]
        %v2967 = vld [vmem:[%s2819 + $0x4c] sm:$0xf]
        %v2968 = vld [vmem:[%s2819 + $0x50] sm:$0x1]
        %v2969 = vld [vmem:[%s2819 + $0x54] sm:$0xf]
        %v2970 = vld [vmem:[%s2819 + $0x58] sm:$0xf]
        %v2971 = vld [vmem:[%s2819 + $0x5c] sm:$0x1]
        %v2972 = vunpack.c.l.bf16 %v2948
        %v2973 = vunpack.c.l.bf16 %v2949
        %v2974 = vunpack.c.l.bf16 %v2950
        %v2975 = vunpack.c.l.bf16 %v2951
        %v2976 = vunpack.c.l.bf16 %v2952
        %v2977 = vunpack.c.l.bf16 %v2953
        %v2978 = vunpack.c.l.bf16 %v2954
        %v2979 = vunpack.c.l.bf16 %v2955
        %v2980 = vunpack.c.l.bf16 %v2956
        %v2981 = vunpack.c.l.bf16 %v2957
        %v2982 = vunpack.c.l.bf16 %v2958
        %v2983 = vunpack.c.l.bf16 %v2959
        %v2984 = vunpack.c.l.bf16 %v2960
        %v2985 = vunpack.c.l.bf16 %v2961
        %v2986 = vunpack.c.l.bf16 %v2962
        %v2987 = vunpack.c.l.bf16 %v2963
        %v2988 = vunpack.c.l.bf16 %v2964
        %v2989 = vunpack.c.l.bf16 %v2965
        %v2990 = vunpack.c.l.bf16 %v2966
        %v2991 = vunpack.c.l.bf16 %v2967
        %v2992 = vunpack.c.l.bf16 %v2968
        %v2993 = vunpack.c.l.bf16 %v2969
        %v2994 = vunpack.c.l.bf16 %v2970
        %v2995 = vunpack.c.l.bf16 %v2971
        %2996 = vset.pattern.permute.xlu0 6
        %2997 = vperm.xlu0 %2996, %v1897
        %v2998 = vpop.permute.xlu0 %2997
        %3000 = vset.pattern.permute.xlu0 6
        %3001 = vperm.xlu0 %3000, %v1898
        %v3002 = vpop.permute.xlu0 %3001
        %3004 = vset.pattern.permute.xlu0 6
        %3005 = vperm.xlu0 %3004, %v1899
        %v3006 = vpop.permute.xlu0 %3005
        %3008 = vset.pattern.permute.xlu0 6
        %3009 = vperm.xlu0 %3008, %v1900
        %v3010 = vpop.permute.xlu0 %3009
        %3012 = vset.pattern.permute.xlu0 6
        %3013 = vperm.xlu0 %3012, %v1901
        %v3014 = vpop.permute.xlu0 %3013
        %3016 = vset.pattern.permute.xlu0 6
        %3017 = vperm.xlu0 %3016, %v1902
        %v3018 = vpop.permute.xlu0 %3017
        %3020 = vset.pattern.permute.xlu0 6
        %3021 = vperm.xlu0 %3020, %v1903
        %v3022 = vpop.permute.xlu0 %3021
        %3024 = vset.pattern.permute.xlu0 6
        %3025 = vperm.xlu0 %3024, %v1904
        %v3026 = vpop.permute.xlu0 %3025
        %3028 = vset.pattern.permute.xlu0 6
        %3029 = vperm.xlu0 %3028, %v1905
        %v3030 = vpop.permute.xlu0 %3029
        %3032 = vset.pattern.permute.xlu0 6
        %3033 = vperm.xlu0 %3032, %v1906
        %v3034 = vpop.permute.xlu0 %3033
        %3036 = vset.pattern.permute.xlu0 6
        %3037 = vperm.xlu0 %3036, %v1907
        %v3038 = vpop.permute.xlu0 %3037
        %3040 = vset.pattern.permute.xlu0 6
        %3041 = vperm.xlu0 %3040, %v1908
        %v3042 = vpop.permute.xlu0 %3041
        %3044 = vset.pattern.permute.xlu0 6
        %3045 = vperm.xlu0 %3044, %v1909
        %v3046 = vpop.permute.xlu0 %3045
        %3048 = vset.pattern.permute.xlu0 6
        %3049 = vperm.xlu0 %3048, %v1910
        %v3050 = vpop.permute.xlu0 %3049
        %3052 = vset.pattern.permute.xlu0 6
        %3053 = vperm.xlu0 %3052, %v1911
        %v3054 = vpop.permute.xlu0 %3053
        %3056 = vset.pattern.permute.xlu0 6
        %3057 = vperm.xlu0 %3056, %v1912
        %v3058 = vpop.permute.xlu0 %3057
        %v3084 = vrot.slane %v2972, 1
        %v3085 = vrot.slane %v2973, 1
        %v3086 = vsel %vm2196, %v3084, %v3085
        %v3087 = vrot.slane %v2974, 1
        %v3088 = vsel %vm2196, %v3085, %v3087
        %v3089 = vrot.slane %v2975, 1
        %v3090 = vrot.slane %v2976, 1
        %v3091 = vsel %vm2196, %v3089, %v3090
        %v3092 = vrot.slane %v2977, 1
        %v3093 = vsel %vm2196, %v3090, %v3092
        %v3094 = vrot.slane %v2978, 1
        %v3095 = vrot.slane %v2979, 1
        %v3096 = vsel %vm2196, %v3094, %v3095
        %v3097 = vrot.slane %v2980, 1
        %v3098 = vsel %vm2196, %v3095, %v3097
        %v3099 = vrot.slane %v2981, 1
        %v3100 = vrot.slane %v2982, 1
        %v3101 = vsel %vm2196, %v3099, %v3100
        %v3102 = vrot.slane %v2983, 1
        %v3103 = vsel %vm2196, %v3100, %v3102
        %v3104 = vrot.slane %v2984, 1
        %v3105 = vrot.slane %v2985, 1
        %v3106 = vsel %vm2196, %v3104, %v3105
        %v3107 = vrot.slane %v2986, 1
        %v3108 = vsel %vm2196, %v3105, %v3107
        %v3109 = vrot.slane %v2987, 1
        %v3110 = vrot.slane %v2988, 1
        %v3111 = vsel %vm2196, %v3109, %v3110
        %v3112 = vrot.slane %v2989, 1
        %v3113 = vsel %vm2196, %v3110, %v3112
        %v3114 = vrot.slane %v2990, 1
        %v3115 = vrot.slane %v2991, 1
        %v3116 = vsel %vm2196, %v3114, %v3115
        %v3117 = vrot.slane %v2992, 1
        %v3118 = vsel %vm2196, %v3115, %v3117
        %v3119 = vrot.slane %v2993, 1
        %v3120 = vrot.slane %v2994, 1
        %v3121 = vsel %vm2196, %v3119, %v3120
        %v3122 = vrot.slane %v2995, 1
        %v3123 = vsel %vm2196, %v3120, %v3122
        %v3140 = vmul.f32 %v2998, %v3086
        %v3141 = vmul.f32 %v3002, %v3088
        %v3142 = vmul.f32 %v3006, %v3091
        %v3143 = vmul.f32 %v3010, %v3093
        %v3144 = vmul.f32 %v3014, %v3096
        %v3145 = vmul.f32 %v3018, %v3098
        %v3146 = vmul.f32 %v3022, %v3101
        %v3147 = vmul.f32 %v3026, %v3103
        %v3148 = vmul.f32 %v3030, %v3106
        %v3149 = vmul.f32 %v3034, %v3108
        %v3150 = vmul.f32 %v3038, %v3111
        %v3151 = vmul.f32 %v3042, %v3113
        %v3152 = vmul.f32 %v3046, %v3116
        %v3153 = vmul.f32 %v3050, %v3118
        %v3154 = vmul.f32 %v3054, %v3121
        %v3155 = vmul.f32 %v3058, %v3123
        %v3156 = vadd.f32 %v2932, %v3140
        %v3157 = vadd.f32 %v2933, %v3141
        %v3158 = vadd.f32 %v2934, %v3142
        %v3159 = vadd.f32 %v2935, %v3143
        %v3160 = vadd.f32 %v2936, %v3144
        %v3161 = vadd.f32 %v2937, %v3145
        %v3162 = vadd.f32 %v2938, %v3146
        %v3163 = vadd.f32 %v2939, %v3147
        %v3164 = vadd.f32 %v2940, %v3148
        %v3165 = vadd.f32 %v2941, %v3149
        %v3166 = vadd.f32 %v2942, %v3150
        %v3167 = vadd.f32 %v2943, %v3151
        %v3168 = vadd.f32 %v2944, %v3152
        %v3169 = vadd.f32 %v2945, %v3153
        %v3170 = vadd.f32 %v2946, %v3154
        %v3171 = vadd.f32 %v2947, %v3155
        %v3172 = vld [vmem:[%s2819] sm:$0xe]
        %v3173 = vld [vmem:[%s2819 + $0xc] sm:$0xe]
        %v3174 = vld [vmem:[%s2819 + $0x18] sm:$0xe]
        %v3175 = vld [vmem:[%s2819 + $0x24] sm:$0xe]
        %v3176 = vld [vmem:[%s2819 + $0x30] sm:$0xe]
        %v3177 = vld [vmem:[%s2819 + $0x3c] sm:$0xe]
        %v3178 = vld [vmem:[%s2819 + $0x48] sm:$0xe]
        %v3179 = vld [vmem:[%s2819 + $0x54] sm:$0xe]
        %v3180 = vunpack.c.l.bf16 %v3172
        %v3181 = vunpack.c.l.bf16 %v3173
        %v3182 = vunpack.c.l.bf16 %v3174
        %v3183 = vunpack.c.l.bf16 %v3175
        %v3184 = vunpack.c.l.bf16 %v3176
        %v3185 = vunpack.c.l.bf16 %v3177
        %v3186 = vunpack.c.l.bf16 %v3178
        %v3187 = vunpack.c.l.bf16 %v3179
        %3188 = vset.pattern.permute.xlu0 7
        %3189 = vperm.xlu0 %3188, %v1897
        %v3190 = vpop.permute.xlu0 %3189
        %3192 = vset.pattern.permute.xlu0 7
        %3193 = vperm.xlu0 %3192, %v1898
        %v3194 = vpop.permute.xlu0 %3193
        %3196 = vset.pattern.permute.xlu0 7
        %3197 = vperm.xlu0 %3196, %v1899
        %v3198 = vpop.permute.xlu0 %3197
        %3200 = vset.pattern.permute.xlu0 7
        %3201 = vperm.xlu0 %3200, %v1900
        %v3202 = vpop.permute.xlu0 %3201
        %3204 = vset.pattern.permute.xlu0 7
        %3205 = vperm.xlu0 %3204, %v1901
        %v3206 = vpop.permute.xlu0 %3205
        %3208 = vset.pattern.permute.xlu0 7
        %3209 = vperm.xlu0 %3208, %v1902
        %v3210 = vpop.permute.xlu0 %3209
        %3212 = vset.pattern.permute.xlu0 7
        %3213 = vperm.xlu0 %3212, %v1903
        %v3214 = vpop.permute.xlu0 %3213
        %3216 = vset.pattern.permute.xlu0 7
        %3217 = vperm.xlu0 %3216, %v1904
        %v3218 = vpop.permute.xlu0 %3217
        %3220 = vset.pattern.permute.xlu0 7
        %3221 = vperm.xlu0 %3220, %v1905
        %v3222 = vpop.permute.xlu0 %3221
        %3224 = vset.pattern.permute.xlu0 7
        %3225 = vperm.xlu0 %3224, %v1906
        %v3226 = vpop.permute.xlu0 %3225
        %3228 = vset.pattern.permute.xlu0 7
        %3229 = vperm.xlu0 %3228, %v1907
        %v3230 = vpop.permute.xlu0 %3229
        %3232 = vset.pattern.permute.xlu0 7
        %3233 = vperm.xlu0 %3232, %v1908
        %v3234 = vpop.permute.xlu0 %3233
        %3236 = vset.pattern.permute.xlu0 7
        %3237 = vperm.xlu0 %3236, %v1909
        %v3238 = vpop.permute.xlu0 %3237
        %3240 = vset.pattern.permute.xlu0 7
        %3241 = vperm.xlu0 %3240, %v1910
        %v3242 = vpop.permute.xlu0 %3241
        %3244 = vset.pattern.permute.xlu0 7
        %3245 = vperm.xlu0 %3244, %v1911
        %v3246 = vpop.permute.xlu0 %3245
        %3248 = vset.pattern.permute.xlu0 7
        %3249 = vperm.xlu0 %3248, %v1912
        %v3250 = vpop.permute.xlu0 %3249
        %v3260 = vrot.slane %v3180, 2
        %v3261 = vrot.slane %v2973, 2
        %v3262 = vsel %vm2373, %v3260, %v3261
        %v3263 = vrot.slane %v2974, 2
        %v3264 = vsel %vm2373, %v3261, %v3263
        %v3265 = vrot.slane %v3181, 2
        %v3266 = vrot.slane %v2976, 2
        %v3267 = vsel %vm2373, %v3265, %v3266
        %v3268 = vrot.slane %v2977, 2
        %v3269 = vsel %vm2373, %v3266, %v3268
        %v3270 = vrot.slane %v3182, 2
        %v3271 = vrot.slane %v2979, 2
        %v3272 = vsel %vm2373, %v3270, %v3271
        %v3273 = vrot.slane %v2980, 2
        %v3274 = vsel %vm2373, %v3271, %v3273
        %v3275 = vrot.slane %v3183, 2
        %v3276 = vrot.slane %v2982, 2
        %v3277 = vsel %vm2373, %v3275, %v3276
        %v3278 = vrot.slane %v2983, 2
        %v3279 = vsel %vm2373, %v3276, %v3278
        %v3280 = vrot.slane %v3184, 2
        %v3281 = vrot.slane %v2985, 2
        %v3282 = vsel %vm2373, %v3280, %v3281
        %v3283 = vrot.slane %v2986, 2
        %v3284 = vsel %vm2373, %v3281, %v3283
        %v3285 = vrot.slane %v3185, 2
        %v3286 = vrot.slane %v2988, 2
        %v3287 = vsel %vm2373, %v3285, %v3286
        %v3288 = vrot.slane %v2989, 2
        %v3289 = vsel %vm2373, %v3286, %v3288
        %v3290 = vrot.slane %v3186, 2
        %v3291 = vrot.slane %v2991, 2
        %v3292 = vsel %vm2373, %v3290, %v3291
        %v3293 = vrot.slane %v2992, 2
        %v3294 = vsel %vm2373, %v3291, %v3293
        %v3295 = vrot.slane %v3187, 2
        %v3296 = vrot.slane %v2994, 2
        %v3297 = vsel %vm2373, %v3295, %v3296
        %v3298 = vrot.slane %v2995, 2
        %v3299 = vsel %vm2373, %v3296, %v3298
        %v3316 = vmul.f32 %v3190, %v3262
        %v3317 = vmul.f32 %v3194, %v3264
        %v3318 = vmul.f32 %v3198, %v3267
        %v3319 = vmul.f32 %v3202, %v3269
        %v3320 = vmul.f32 %v3206, %v3272
        %v3321 = vmul.f32 %v3210, %v3274
        %v3322 = vmul.f32 %v3214, %v3277
        %v3323 = vmul.f32 %v3218, %v3279
        %v3324 = vmul.f32 %v3222, %v3282
        %v3325 = vmul.f32 %v3226, %v3284
        %v3326 = vmul.f32 %v3230, %v3287
        %v3327 = vmul.f32 %v3234, %v3289
        %v3328 = vmul.f32 %v3238, %v3292
        %v3329 = vmul.f32 %v3242, %v3294
        %v3330 = vmul.f32 %v3246, %v3297
        %v3331 = vmul.f32 %v3250, %v3299
        %v3332 = vadd.f32 %v3156, %v3316
        %v3333 = vadd.f32 %v3157, %v3317
        %v3334 = vadd.f32 %v3158, %v3318
        %v3335 = vadd.f32 %v3159, %v3319
        %v3336 = vadd.f32 %v3160, %v3320
        %v3337 = vadd.f32 %v3161, %v3321
        %v3338 = vadd.f32 %v3162, %v3322
        %v3339 = vadd.f32 %v3163, %v3323
        %v3340 = vadd.f32 %v3164, %v3324
        %v3341 = vadd.f32 %v3165, %v3325
        %v3342 = vadd.f32 %v3166, %v3326
        %v3343 = vadd.f32 %v3167, %v3327
        %v3344 = vadd.f32 %v3168, %v3328
        %v3345 = vadd.f32 %v3169, %v3329
        %v3346 = vadd.f32 %v3170, %v3330
        %v3347 = vadd.f32 %v3171, %v3331
        %v3348 = vld [vmem:[%s2819 + $0x8] sm:$0x3]
        %v3349 = vld [vmem:[%s2819 + $0x14] sm:$0x3]
        %v3350 = vld [vmem:[%s2819 + $0x20] sm:$0x3]
        %v3351 = vld [vmem:[%s2819 + $0x2c] sm:$0x3]
        %v3352 = vld [vmem:[%s2819 + $0x38] sm:$0x3]
        %v3353 = vld [vmem:[%s2819 + $0x44] sm:$0x3]
        %v3354 = vld [vmem:[%s2819 + $0x50] sm:$0x3]
        %v3355 = vld [vmem:[%s2819 + $0x5c] sm:$0x3]
        %v3356 = vunpack.c.l.bf16 %v3348
        %v3357 = vunpack.c.l.bf16 %v3349
        %v3358 = vunpack.c.l.bf16 %v3350
        %v3359 = vunpack.c.l.bf16 %v3351
        %v3360 = vunpack.c.l.bf16 %v3352
        %v3361 = vunpack.c.l.bf16 %v3353
        %v3362 = vunpack.c.l.bf16 %v3354
        %v3363 = vunpack.c.l.bf16 %v3355
        %3364 = vset.pattern.permute.xlu0 8
        %3365 = vperm.xlu0 %3364, %v1897
        %v3366 = vpop.permute.xlu0 %3365
        %3368 = vset.pattern.permute.xlu0 8
        %3369 = vperm.xlu0 %3368, %v1898
        %v3370 = vpop.permute.xlu0 %3369
        %3372 = vset.pattern.permute.xlu0 8
        %3373 = vperm.xlu0 %3372, %v1899
        %v3374 = vpop.permute.xlu0 %3373
        %3376 = vset.pattern.permute.xlu0 8
        %3377 = vperm.xlu0 %3376, %v1900
        %v3378 = vpop.permute.xlu0 %3377
        %3380 = vset.pattern.permute.xlu0 8
        %3381 = vperm.xlu0 %3380, %v1901
        %v3382 = vpop.permute.xlu0 %3381
        %3384 = vset.pattern.permute.xlu0 8
        %3385 = vperm.xlu0 %3384, %v1902
        %v3386 = vpop.permute.xlu0 %3385
        %3388 = vset.pattern.permute.xlu0 8
        %3389 = vperm.xlu0 %3388, %v1903
        %v3390 = vpop.permute.xlu0 %3389
        %3392 = vset.pattern.permute.xlu0 8
        %3393 = vperm.xlu0 %3392, %v1904
        %v3394 = vpop.permute.xlu0 %3393
        %3396 = vset.pattern.permute.xlu0 8
        %3397 = vperm.xlu0 %3396, %v1905
        %v3398 = vpop.permute.xlu0 %3397
        %3400 = vset.pattern.permute.xlu0 8
        %3401 = vperm.xlu0 %3400, %v1906
        %v3402 = vpop.permute.xlu0 %3401
        %3404 = vset.pattern.permute.xlu0 8
        %3405 = vperm.xlu0 %3404, %v1907
        %v3406 = vpop.permute.xlu0 %3405
        %3408 = vset.pattern.permute.xlu0 8
        %3409 = vperm.xlu0 %3408, %v1908
        %v3410 = vpop.permute.xlu0 %3409
        %3412 = vset.pattern.permute.xlu0 8
        %3413 = vperm.xlu0 %3412, %v1909
        %v3414 = vpop.permute.xlu0 %3413
        %3416 = vset.pattern.permute.xlu0 8
        %3417 = vperm.xlu0 %3416, %v1910
        %v3418 = vpop.permute.xlu0 %3417
        %3420 = vset.pattern.permute.xlu0 8
        %3421 = vperm.xlu0 %3420, %v1911
        %v3422 = vpop.permute.xlu0 %3421
        %3424 = vset.pattern.permute.xlu0 8
        %3425 = vperm.xlu0 %3424, %v1912
        %v3426 = vpop.permute.xlu0 %3425
        %v3436 = vrot.slane %v3180, 3
        %v3437 = vrot.slane %v2973, 3
        %v3438 = vsel %vm2550, %v3436, %v3437
        %v3439 = vrot.slane %v3356, 3
        %v3440 = vsel %vm2550, %v3437, %v3439
        %v3441 = vrot.slane %v3181, 3
        %v3442 = vrot.slane %v2976, 3
        %v3443 = vsel %vm2550, %v3441, %v3442
        %v3444 = vrot.slane %v3357, 3
        %v3445 = vsel %vm2550, %v3442, %v3444
        %v3446 = vrot.slane %v3182, 3
        %v3447 = vrot.slane %v2979, 3
        %v3448 = vsel %vm2550, %v3446, %v3447
        %v3449 = vrot.slane %v3358, 3
        %v3450 = vsel %vm2550, %v3447, %v3449
        %v3451 = vrot.slane %v3183, 3
        %v3452 = vrot.slane %v2982, 3
        %v3453 = vsel %vm2550, %v3451, %v3452
        %v3454 = vrot.slane %v3359, 3
        %v3455 = vsel %vm2550, %v3452, %v3454
        %v3456 = vrot.slane %v3184, 3
        %v3457 = vrot.slane %v2985, 3
        %v3458 = vsel %vm2550, %v3456, %v3457
        %v3459 = vrot.slane %v3360, 3
        %v3460 = vsel %vm2550, %v3457, %v3459
        %v3461 = vrot.slane %v3185, 3
        %v3462 = vrot.slane %v2988, 3
        %v3463 = vsel %vm2550, %v3461, %v3462
        %v3464 = vrot.slane %v3361, 3
        %v3465 = vsel %vm2550, %v3462, %v3464
        %v3466 = vrot.slane %v3186, 3
        %v3467 = vrot.slane %v2991, 3
        %v3468 = vsel %vm2550, %v3466, %v3467
        %v3469 = vrot.slane %v3362, 3
        %v3470 = vsel %vm2550, %v3467, %v3469
        %v3471 = vrot.slane %v3187, 3
        %v3472 = vrot.slane %v2994, 3
        %v3473 = vsel %vm2550, %v3471, %v3472
        %v3474 = vrot.slane %v3363, 3
        %v3475 = vsel %vm2550, %v3472, %v3474
        %v3492 = vmul.f32 %v3366, %v3438
        %v3493 = vmul.f32 %v3370, %v3440
        %v3494 = vmul.f32 %v3374, %v3443
        %v3495 = vmul.f32 %v3378, %v3445
        %v3496 = vmul.f32 %v3382, %v3448
        %v3497 = vmul.f32 %v3386, %v3450
        %v3498 = vmul.f32 %v3390, %v3453
        %v3499 = vmul.f32 %v3394, %v3455
        %v3500 = vmul.f32 %v3398, %v3458
        %v3501 = vmul.f32 %v3402, %v3460
        %v3502 = vmul.f32 %v3406, %v3463
        %v3503 = vmul.f32 %v3410, %v3465
        %v3504 = vmul.f32 %v3414, %v3468
        %v3505 = vmul.f32 %v3418, %v3470
        %v3506 = vmul.f32 %v3422, %v3473
        %v3507 = vmul.f32 %v3426, %v3475
        %v3508 = vadd.f32 %v3332, %v3492
        %v3509 = vadd.f32 %v3333, %v3493
        %v3510 = vadd.f32 %v3334, %v3494
        %v3511 = vadd.f32 %v3335, %v3495
        %v3512 = vadd.f32 %v3336, %v3496
        %v3513 = vadd.f32 %v3337, %v3497
        %v3514 = vadd.f32 %v3338, %v3498
        %v3515 = vadd.f32 %v3339, %v3499
        %v3516 = vadd.f32 %v3340, %v3500
        %v3517 = vadd.f32 %v3341, %v3501
        %v3518 = vadd.f32 %v3342, %v3502
        %v3519 = vadd.f32 %v3343, %v3503
        %v3520 = vadd.f32 %v3344, %v3504
        %v3521 = vadd.f32 %v3345, %v3505
        %v3522 = vadd.f32 %v3346, %v3506
        %v3523 = vadd.f32 %v3347, %v3507
        %v3524 = vld [vmem:[%s2819] sm:$0xc]
        %v3525 = vld [vmem:[%s2819 + $0xc] sm:$0xc]
        %v3526 = vld [vmem:[%s2819 + $0x18] sm:$0xc]
        %v3527 = vld [vmem:[%s2819 + $0x24] sm:$0xc]
        %v3528 = vld [vmem:[%s2819 + $0x30] sm:$0xc]
        %v3529 = vld [vmem:[%s2819 + $0x3c] sm:$0xc]
        %v3530 = vld [vmem:[%s2819 + $0x48] sm:$0xc]
        %v3531 = vld [vmem:[%s2819 + $0x54] sm:$0xc]
        %v3532 = vunpack.c.l.bf16 %v3524
        %v3533 = vunpack.c.l.bf16 %v3525
        %v3534 = vunpack.c.l.bf16 %v3526
        %v3535 = vunpack.c.l.bf16 %v3527
        %v3536 = vunpack.c.l.bf16 %v3528
        %v3537 = vunpack.c.l.bf16 %v3529
        %v3538 = vunpack.c.l.bf16 %v3530
        %v3539 = vunpack.c.l.bf16 %v3531
        %3540 = vset.pattern.permute.xlu0 9
        %3541 = vperm.xlu0 %3540, %v1897
        %v3542 = vpop.permute.xlu0 %3541
        %3544 = vset.pattern.permute.xlu0 9
        %3545 = vperm.xlu0 %3544, %v1898
        %v3546 = vpop.permute.xlu0 %3545
        %3548 = vset.pattern.permute.xlu0 9
        %3549 = vperm.xlu0 %3548, %v1899
        %v3550 = vpop.permute.xlu0 %3549
        %3552 = vset.pattern.permute.xlu0 9
        %3553 = vperm.xlu0 %3552, %v1900
        %v3554 = vpop.permute.xlu0 %3553
        %3556 = vset.pattern.permute.xlu0 9
        %3557 = vperm.xlu0 %3556, %v1901
        %v3558 = vpop.permute.xlu0 %3557
        %3560 = vset.pattern.permute.xlu0 9
        %3561 = vperm.xlu0 %3560, %v1902
        %v3562 = vpop.permute.xlu0 %3561
        %3564 = vset.pattern.permute.xlu0 9
        %3565 = vperm.xlu0 %3564, %v1903
        %v3566 = vpop.permute.xlu0 %3565
        %3568 = vset.pattern.permute.xlu0 9
        %3569 = vperm.xlu0 %3568, %v1904
        %v3570 = vpop.permute.xlu0 %3569
        %3572 = vset.pattern.permute.xlu0 9
        %3573 = vperm.xlu0 %3572, %v1905
        %v3574 = vpop.permute.xlu0 %3573
        %3576 = vset.pattern.permute.xlu0 9
        %3577 = vperm.xlu0 %3576, %v1906
        %v3578 = vpop.permute.xlu0 %3577
        %3580 = vset.pattern.permute.xlu0 9
        %3581 = vperm.xlu0 %3580, %v1907
        %v3582 = vpop.permute.xlu0 %3581
        %3584 = vset.pattern.permute.xlu0 9
        %3585 = vperm.xlu0 %3584, %v1908
        %v3586 = vpop.permute.xlu0 %3585
        %3588 = vset.pattern.permute.xlu0 9
        %3589 = vperm.xlu0 %3588, %v1909
        %v3590 = vpop.permute.xlu0 %3589
        %3592 = vset.pattern.permute.xlu0 9
        %3593 = vperm.xlu0 %3592, %v1910
        %v3594 = vpop.permute.xlu0 %3593
        %3596 = vset.pattern.permute.xlu0 9
        %3597 = vperm.xlu0 %3596, %v1911
        %v3598 = vpop.permute.xlu0 %3597
        %3600 = vset.pattern.permute.xlu0 9
        %3601 = vperm.xlu0 %3600, %v1912
        %v3602 = vpop.permute.xlu0 %3601
        %v3612 = vrot.slane %v3532, 4
        %v3613 = vrot.slane %v2973, 4
        %v3614 = vsel %vm2727, %v3612, %v3613
        %v3615 = vrot.slane %v3356, 4
        %v3616 = vsel %vm2727, %v3613, %v3615
        %v3617 = vrot.slane %v3533, 4
        %v3618 = vrot.slane %v2976, 4
        %v3619 = vsel %vm2727, %v3617, %v3618
        %v3620 = vrot.slane %v3357, 4
        %v3621 = vsel %vm2727, %v3618, %v3620
        %v3622 = vrot.slane %v3534, 4
        %v3623 = vrot.slane %v2979, 4
        %v3624 = vsel %vm2727, %v3622, %v3623
        %v3625 = vrot.slane %v3358, 4
        %v3626 = vsel %vm2727, %v3623, %v3625
        %v3627 = vrot.slane %v3535, 4
        %v3628 = vrot.slane %v2982, 4
        %v3629 = vsel %vm2727, %v3627, %v3628
        %v3630 = vrot.slane %v3359, 4
        %v3631 = vsel %vm2727, %v3628, %v3630
        %v3632 = vrot.slane %v3536, 4
        %v3633 = vrot.slane %v2985, 4
        %v3634 = vsel %vm2727, %v3632, %v3633
        %v3635 = vrot.slane %v3360, 4
        %v3636 = vsel %vm2727, %v3633, %v3635
        %v3637 = vrot.slane %v3537, 4
        %v3638 = vrot.slane %v2988, 4
        %v3639 = vsel %vm2727, %v3637, %v3638
        %v3640 = vrot.slane %v3361, 4
        %v3641 = vsel %vm2727, %v3638, %v3640
        %v3642 = vrot.slane %v3538, 4
        %v3643 = vrot.slane %v2991, 4
        %v3644 = vsel %vm2727, %v3642, %v3643
        %v3645 = vrot.slane %v3362, 4
        %v3646 = vsel %vm2727, %v3643, %v3645
        %v3647 = vrot.slane %v3539, 4
        %v3648 = vrot.slane %v2994, 4
        %v3649 = vsel %vm2727, %v3647, %v3648
        %v3650 = vrot.slane %v3363, 4
        %v3651 = vsel %vm2727, %v3648, %v3650
        %v3668 = vmul.f32 %v3542, %v3614
        %v3669 = vmul.f32 %v3546, %v3616
        %v3670 = vmul.f32 %v3550, %v3619
        %v3671 = vmul.f32 %v3554, %v3621
        %v3672 = vmul.f32 %v3558, %v3624
        %v3673 = vmul.f32 %v3562, %v3626
        %v3674 = vmul.f32 %v3566, %v3629
        %v3675 = vmul.f32 %v3570, %v3631
        %v3676 = vmul.f32 %v3574, %v3634
        %v3677 = vmul.f32 %v3578, %v3636
        %v3678 = vmul.f32 %v3582, %v3639
        %v3679 = vmul.f32 %v3586, %v3641
        %v3680 = vmul.f32 %v3590, %v3644
        %v3681 = vmul.f32 %v3594, %v3646
        %v3682 = vmul.f32 %v3598, %v3649
        %v3683 = vmul.f32 %v3602, %v3651
        %v3684 = vadd.f32 %v3508, %v3668
        %v3685 = vadd.f32 %v3509, %v3669
        %v3686 = vadd.f32 %v3510, %v3670
        %v3687 = vadd.f32 %v3511, %v3671
        %v3688 = vadd.f32 %v3512, %v3672
        %v3689 = vadd.f32 %v3513, %v3673
        %v3690 = vadd.f32 %v3514, %v3674
        %v3691 = vadd.f32 %v3515, %v3675
        %v3692 = vadd.f32 %v3516, %v3676
        %v3693 = vadd.f32 %v3517, %v3677
        %v3694 = vadd.f32 %v3518, %v3678
        %v3695 = vadd.f32 %v3519, %v3679
        %v3696 = vadd.f32 %v3520, %v3680
        %v3697 = vadd.f32 %v3521, %v3681
        %v3698 = vadd.f32 %v3522, %v3682
        %v3699 = vadd.f32 %v3523, %v3683
        %s3700 = sadd.s32 %s1892, 2
        %s3701 = smul.u32 %s3700, 3
        %s3702 = smul.addr %s3701, 4
        %s3703 = scalar_lea.vmem %s204, %s3702
        %v3704 = vld [vmem:[%s3703] sm:$0xf]
        %v3705 = vld [vmem:[%s3703 + $0x4] sm:$0xf]
        %v3706 = vld [vmem:[%s3703 + $0xc] sm:$0xf]
        %v3707 = vld [vmem:[%s3703 + $0x10] sm:$0xf]
        %v3708 = vld [vmem:[%s3703 + $0x18] sm:$0xf]
        %v3709 = vld [vmem:[%s3703 + $0x1c] sm:$0xf]
        %v3710 = vld [vmem:[%s3703 + $0x24] sm:$0xf]
        %v3711 = vld [vmem:[%s3703 + $0x28] sm:$0xf]
        %v3712 = vld [vmem:[%s3703 + $0x30] sm:$0xf]
        %v3713 = vld [vmem:[%s3703 + $0x34] sm:$0xf]
        %v3714 = vld [vmem:[%s3703 + $0x3c] sm:$0xf]
        %v3715 = vld [vmem:[%s3703 + $0x40] sm:$0xf]
        %v3716 = vld [vmem:[%s3703 + $0x48] sm:$0xf]
        %v3717 = vld [vmem:[%s3703 + $0x4c] sm:$0xf]
        %v3718 = vld [vmem:[%s3703 + $0x54] sm:$0xf]
        %v3719 = vld [vmem:[%s3703 + $0x58] sm:$0xf]
        %v3720 = vunpack.c.l.bf16 %v3704
        %v3721 = vunpack.c.l.bf16 %v3705
        %v3722 = vunpack.c.l.bf16 %v3706
        %v3723 = vunpack.c.l.bf16 %v3707
        %v3724 = vunpack.c.l.bf16 %v3708
        %v3725 = vunpack.c.l.bf16 %v3709
        %v3726 = vunpack.c.l.bf16 %v3710
        %v3727 = vunpack.c.l.bf16 %v3711
        %v3728 = vunpack.c.l.bf16 %v3712
        %v3729 = vunpack.c.l.bf16 %v3713
        %v3730 = vunpack.c.l.bf16 %v3714
        %v3731 = vunpack.c.l.bf16 %v3715
        %v3732 = vunpack.c.l.bf16 %v3716
        %v3733 = vunpack.c.l.bf16 %v3717
        %v3734 = vunpack.c.l.bf16 %v3718
        %v3735 = vunpack.c.l.bf16 %v3719
        %3736 = vset.pattern.permute.xlu0 10
        %3737 = vperm.xlu0 %3736, %v1897
        %v3738 = vpop.permute.xlu0 %3737
        %3740 = vset.pattern.permute.xlu0 10
        %3741 = vperm.xlu0 %3740, %v1898
        %v3742 = vpop.permute.xlu0 %3741
        %3744 = vset.pattern.permute.xlu0 10
        %3745 = vperm.xlu0 %3744, %v1899
        %v3746 = vpop.permute.xlu0 %3745
        %3748 = vset.pattern.permute.xlu0 10
        %3749 = vperm.xlu0 %3748, %v1900
        %v3750 = vpop.permute.xlu0 %3749
        %3752 = vset.pattern.permute.xlu0 10
        %3753 = vperm.xlu0 %3752, %v1901
        %v3754 = vpop.permute.xlu0 %3753
        %3756 = vset.pattern.permute.xlu0 10
        %3757 = vperm.xlu0 %3756, %v1902
        %v3758 = vpop.permute.xlu0 %3757
        %3760 = vset.pattern.permute.xlu0 10
        %3761 = vperm.xlu0 %3760, %v1903
        %v3762 = vpop.permute.xlu0 %3761
        %3764 = vset.pattern.permute.xlu0 10
        %3765 = vperm.xlu0 %3764, %v1904
        %v3766 = vpop.permute.xlu0 %3765
        %3768 = vset.pattern.permute.xlu0 10
        %3769 = vperm.xlu0 %3768, %v1905
        %v3770 = vpop.permute.xlu0 %3769
        %3772 = vset.pattern.permute.xlu0 10
        %3773 = vperm.xlu0 %3772, %v1906
        %v3774 = vpop.permute.xlu0 %3773
        %3776 = vset.pattern.permute.xlu0 10
        %3777 = vperm.xlu0 %3776, %v1907
        %v3778 = vpop.permute.xlu0 %3777
        %3780 = vset.pattern.permute.xlu0 10
        %3781 = vperm.xlu0 %3780, %v1908
        %v3782 = vpop.permute.xlu0 %3781
        %3784 = vset.pattern.permute.xlu0 10
        %3785 = vperm.xlu0 %3784, %v1909
        %v3786 = vpop.permute.xlu0 %3785
        %3788 = vset.pattern.permute.xlu0 10
        %3789 = vperm.xlu0 %3788, %v1910
        %v3790 = vpop.permute.xlu0 %3789
        %3792 = vset.pattern.permute.xlu0 10
        %3793 = vperm.xlu0 %3792, %v1911
        %v3794 = vpop.permute.xlu0 %3793
        %3796 = vset.pattern.permute.xlu0 10
        %3797 = vperm.xlu0 %3796, %v1912
        %v3798 = vpop.permute.xlu0 %3797
        %v3800 = vmul.f32 %v3738, %v3720
        %v3801 = vmul.f32 %v3742, %v3721
        %v3802 = vmul.f32 %v3746, %v3722
        %v3803 = vmul.f32 %v3750, %v3723
        %v3804 = vmul.f32 %v3754, %v3724
        %v3805 = vmul.f32 %v3758, %v3725
        %v3806 = vmul.f32 %v3762, %v3726
        %v3807 = vmul.f32 %v3766, %v3727
        %v3808 = vmul.f32 %v3770, %v3728
        %v3809 = vmul.f32 %v3774, %v3729
        %v3810 = vmul.f32 %v3778, %v3730
        %v3811 = vmul.f32 %v3782, %v3731
        %v3812 = vmul.f32 %v3786, %v3732
        %v3813 = vmul.f32 %v3790, %v3733
        %v3814 = vmul.f32 %v3794, %v3734
        %v3815 = vmul.f32 %v3798, %v3735
        %v3816 = vadd.f32 %v3684, %v3800
        %v3817 = vadd.f32 %v3685, %v3801
        %v3818 = vadd.f32 %v3686, %v3802
        %v3819 = vadd.f32 %v3687, %v3803
        %v3820 = vadd.f32 %v3688, %v3804
        %v3821 = vadd.f32 %v3689, %v3805
        %v3822 = vadd.f32 %v3690, %v3806
        %v3823 = vadd.f32 %v3691, %v3807
        %v3824 = vadd.f32 %v3692, %v3808
        %v3825 = vadd.f32 %v3693, %v3809
        %v3826 = vadd.f32 %v3694, %v3810
        %v3827 = vadd.f32 %v3695, %v3811
        %v3828 = vadd.f32 %v3696, %v3812
        %v3829 = vadd.f32 %v3697, %v3813
        %v3830 = vadd.f32 %v3698, %v3814
        %v3831 = vadd.f32 %v3699, %v3815
        %v3832 = vld [vmem:[%s3703] sm:$0xf]
        %v3833 = vld [vmem:[%s3703 + $0x4] sm:$0xf]
        %v3834 = vld [vmem:[%s3703 + $0x8] sm:$0x1]
        %v3835 = vld [vmem:[%s3703 + $0xc] sm:$0xf]
        %v3836 = vld [vmem:[%s3703 + $0x10] sm:$0xf]
        %v3837 = vld [vmem:[%s3703 + $0x14] sm:$0x1]
        %v3838 = vld [vmem:[%s3703 + $0x18] sm:$0xf]
        %v3839 = vld [vmem:[%s3703 + $0x1c] sm:$0xf]
        %v3840 = vld [vmem:[%s3703 + $0x20] sm:$0x1]
        %v3841 = vld [vmem:[%s3703 + $0x24] sm:$0xf]
        %v3842 = vld [vmem:[%s3703 + $0x28] sm:$0xf]
        %v3843 = vld [vmem:[%s3703 + $0x2c] sm:$0x1]
        %v3844 = vld [vmem:[%s3703 + $0x30] sm:$0xf]
        %v3845 = vld [vmem:[%s3703 + $0x34] sm:$0xf]
        %v3846 = vld [vmem:[%s3703 + $0x38] sm:$0x1]
        %v3847 = vld [vmem:[%s3703 + $0x3c] sm:$0xf]
        %v3848 = vld [vmem:[%s3703 + $0x40] sm:$0xf]
        %v3849 = vld [vmem:[%s3703 + $0x44] sm:$0x1]
        %v3850 = vld [vmem:[%s3703 + $0x48] sm:$0xf]
        %v3851 = vld [vmem:[%s3703 + $0x4c] sm:$0xf]
        %v3852 = vld [vmem:[%s3703 + $0x50] sm:$0x1]
        %v3853 = vld [vmem:[%s3703 + $0x54] sm:$0xf]
        %v3854 = vld [vmem:[%s3703 + $0x58] sm:$0xf]
        %v3855 = vld [vmem:[%s3703 + $0x5c] sm:$0x1]
        %v3856 = vunpack.c.l.bf16 %v3832
        %v3857 = vunpack.c.l.bf16 %v3833
        %v3858 = vunpack.c.l.bf16 %v3834
        %v3859 = vunpack.c.l.bf16 %v3835
        %v3860 = vunpack.c.l.bf16 %v3836
        %v3861 = vunpack.c.l.bf16 %v3837
        %v3862 = vunpack.c.l.bf16 %v3838
        %v3863 = vunpack.c.l.bf16 %v3839
        %v3864 = vunpack.c.l.bf16 %v3840
        %v3865 = vunpack.c.l.bf16 %v3841
        %v3866 = vunpack.c.l.bf16 %v3842
        %v3867 = vunpack.c.l.bf16 %v3843
        %v3868 = vunpack.c.l.bf16 %v3844
        %v3869 = vunpack.c.l.bf16 %v3845
        %v3870 = vunpack.c.l.bf16 %v3846
        %v3871 = vunpack.c.l.bf16 %v3847
        %v3872 = vunpack.c.l.bf16 %v3848
        %v3873 = vunpack.c.l.bf16 %v3849
        %v3874 = vunpack.c.l.bf16 %v3850
        %v3875 = vunpack.c.l.bf16 %v3851
        %v3876 = vunpack.c.l.bf16 %v3852
        %v3877 = vunpack.c.l.bf16 %v3853
        %v3878 = vunpack.c.l.bf16 %v3854
        %v3879 = vunpack.c.l.bf16 %v3855
        %3880 = vset.pattern.permute.xlu0 11
        %3881 = vperm.xlu0 %3880, %v1897
        %v3882 = vpop.permute.xlu0 %3881
        %3884 = vset.pattern.permute.xlu0 11
        %3885 = vperm.xlu0 %3884, %v1898
        %v3886 = vpop.permute.xlu0 %3885
        %3888 = vset.pattern.permute.xlu0 11
        %3889 = vperm.xlu0 %3888, %v1899
        %v3890 = vpop.permute.xlu0 %3889
        %3892 = vset.pattern.permute.xlu0 11
        %3893 = vperm.xlu0 %3892, %v1900
        %v3894 = vpop.permute.xlu0 %3893
        %3896 = vset.pattern.permute.xlu0 11
        %3897 = vperm.xlu0 %3896, %v1901
        %v3898 = vpop.permute.xlu0 %3897
        %3900 = vset.pattern.permute.xlu0 11
        %3901 = vperm.xlu0 %3900, %v1902
        %v3902 = vpop.permute.xlu0 %3901
        %3904 = vset.pattern.permute.xlu0 11
        %3905 = vperm.xlu0 %3904, %v1903
        %v3906 = vpop.permute.xlu0 %3905
        %3908 = vset.pattern.permute.xlu0 11
        %3909 = vperm.xlu0 %3908, %v1904
        %v3910 = vpop.permute.xlu0 %3909
        %3912 = vset.pattern.permute.xlu0 11
        %3913 = vperm.xlu0 %3912, %v1905
        %v3914 = vpop.permute.xlu0 %3913
        %3916 = vset.pattern.permute.xlu0 11
        %3917 = vperm.xlu0 %3916, %v1906
        %v3918 = vpop.permute.xlu0 %3917
        %3920 = vset.pattern.permute.xlu0 11
        %3921 = vperm.xlu0 %3920, %v1907
        %v3922 = vpop.permute.xlu0 %3921
        %3924 = vset.pattern.permute.xlu0 11
        %3925 = vperm.xlu0 %3924, %v1908
        %v3926 = vpop.permute.xlu0 %3925
        %3928 = vset.pattern.permute.xlu0 11
        %3929 = vperm.xlu0 %3928, %v1909
        %v3930 = vpop.permute.xlu0 %3929
        %3932 = vset.pattern.permute.xlu0 11
        %3933 = vperm.xlu0 %3932, %v1910
        %v3934 = vpop.permute.xlu0 %3933
        %3936 = vset.pattern.permute.xlu0 11
        %3937 = vperm.xlu0 %3936, %v1911
        %v3938 = vpop.permute.xlu0 %3937
        %3940 = vset.pattern.permute.xlu0 11
        %3941 = vperm.xlu0 %3940, %v1912
        %v3942 = vpop.permute.xlu0 %3941
        %v3968 = vrot.slane %v3856, 1
        %v3969 = vrot.slane %v3857, 1
        %v3970 = vsel %vm2196, %v3968, %v3969
        %v3971 = vrot.slane %v3858, 1
        %v3972 = vsel %vm2196, %v3969, %v3971
        %v3973 = vrot.slane %v3859, 1
        %v3974 = vrot.slane %v3860, 1
        %v3975 = vsel %vm2196, %v3973, %v3974
        %v3976 = vrot.slane %v3861, 1
        %v3977 = vsel %vm2196, %v3974, %v3976
        %v3978 = vrot.slane %v3862, 1
        %v3979 = vrot.slane %v3863, 1
        %v3980 = vsel %vm2196, %v3978, %v3979
        %v3981 = vrot.slane %v3864, 1
        %v3982 = vsel %vm2196, %v3979, %v3981
        %v3983 = vrot.slane %v3865, 1
        %v3984 = vrot.slane %v3866, 1
        %v3985 = vsel %vm2196, %v3983, %v3984
        %v3986 = vrot.slane %v3867, 1
        %v3987 = vsel %vm2196, %v3984, %v3986
        %v3988 = vrot.slane %v3868, 1
        %v3989 = vrot.slane %v3869, 1
        %v3990 = vsel %vm2196, %v3988, %v3989
        %v3991 = vrot.slane %v3870, 1
        %v3992 = vsel %vm2196, %v3989, %v3991
        %v3993 = vrot.slane %v3871, 1
        %v3994 = vrot.slane %v3872, 1
        %v3995 = vsel %vm2196, %v3993, %v3994
        %v3996 = vrot.slane %v3873, 1
        %v3997 = vsel %vm2196, %v3994, %v3996
        %v3998 = vrot.slane %v3874, 1
        %v3999 = vrot.slane %v3875, 1
        %v4000 = vsel %vm2196, %v3998, %v3999
        %v4001 = vrot.slane %v3876, 1
        %v4002 = vsel %vm2196, %v3999, %v4001
        %v4003 = vrot.slane %v3877, 1
        %v4004 = vrot.slane %v3878, 1
        %v4005 = vsel %vm2196, %v4003, %v4004
        %v4006 = vrot.slane %v3879, 1
        %v4007 = vsel %vm2196, %v4004, %v4006
        %v4024 = vmul.f32 %v3882, %v3970
        %v4025 = vmul.f32 %v3886, %v3972
        %v4026 = vmul.f32 %v3890, %v3975
        %v4027 = vmul.f32 %v3894, %v3977
        %v4028 = vmul.f32 %v3898, %v3980
        %v4029 = vmul.f32 %v3902, %v3982
        %v4030 = vmul.f32 %v3906, %v3985
        %v4031 = vmul.f32 %v3910, %v3987
        %v4032 = vmul.f32 %v3914, %v3990
        %v4033 = vmul.f32 %v3918, %v3992
        %v4034 = vmul.f32 %v3922, %v3995
        %v4035 = vmul.f32 %v3926, %v3997
        %v4036 = vmul.f32 %v3930, %v4000
        %v4037 = vmul.f32 %v3934, %v4002
        %v4038 = vmul.f32 %v3938, %v4005
        %v4039 = vmul.f32 %v3942, %v4007
        %v4040 = vadd.f32 %v3816, %v4024
        %v4041 = vadd.f32 %v3817, %v4025
        %v4042 = vadd.f32 %v3818, %v4026
        %v4043 = vadd.f32 %v3819, %v4027
        %v4044 = vadd.f32 %v3820, %v4028
        %v4045 = vadd.f32 %v3821, %v4029
        %v4046 = vadd.f32 %v3822, %v4030
        %v4047 = vadd.f32 %v3823, %v4031
        %v4048 = vadd.f32 %v3824, %v4032
        %v4049 = vadd.f32 %v3825, %v4033
        %v4050 = vadd.f32 %v3826, %v4034
        %v4051 = vadd.f32 %v3827, %v4035
        %v4052 = vadd.f32 %v3828, %v4036
        %v4053 = vadd.f32 %v3829, %v4037
        %v4054 = vadd.f32 %v3830, %v4038
        %v4055 = vadd.f32 %v3831, %v4039
        %v4056 = vld [vmem:[%s3703] sm:$0xe]
        %v4057 = vld [vmem:[%s3703 + $0xc] sm:$0xe]
        %v4058 = vld [vmem:[%s3703 + $0x18] sm:$0xe]
        %v4059 = vld [vmem:[%s3703 + $0x24] sm:$0xe]
        %v4060 = vld [vmem:[%s3703 + $0x30] sm:$0xe]
        %v4061 = vld [vmem:[%s3703 + $0x3c] sm:$0xe]
        %v4062 = vld [vmem:[%s3703 + $0x48] sm:$0xe]
        %v4063 = vld [vmem:[%s3703 + $0x54] sm:$0xe]
        %v4064 = vunpack.c.l.bf16 %v4056
        %v4065 = vunpack.c.l.bf16 %v4057
        %v4066 = vunpack.c.l.bf16 %v4058
        %v4067 = vunpack.c.l.bf16 %v4059
        %v4068 = vunpack.c.l.bf16 %v4060
        %v4069 = vunpack.c.l.bf16 %v4061
        %v4070 = vunpack.c.l.bf16 %v4062
        %v4071 = vunpack.c.l.bf16 %v4063
        %4072 = vset.pattern.permute.xlu0 12
        %4073 = vperm.xlu0 %4072, %v1897
        %v4074 = vpop.permute.xlu0 %4073
        %4076 = vset.pattern.permute.xlu0 12
        %4077 = vperm.xlu0 %4076, %v1898
        %v4078 = vpop.permute.xlu0 %4077
        %4080 = vset.pattern.permute.xlu0 12
        %4081 = vperm.xlu0 %4080, %v1899
        %v4082 = vpop.permute.xlu0 %4081
        %4084 = vset.pattern.permute.xlu0 12
        %4085 = vperm.xlu0 %4084, %v1900
        %v4086 = vpop.permute.xlu0 %4085
        %4088 = vset.pattern.permute.xlu0 12
        %4089 = vperm.xlu0 %4088, %v1901
        %v4090 = vpop.permute.xlu0 %4089
        %4092 = vset.pattern.permute.xlu0 12
        %4093 = vperm.xlu0 %4092, %v1902
        %v4094 = vpop.permute.xlu0 %4093
        %4096 = vset.pattern.permute.xlu0 12
        %4097 = vperm.xlu0 %4096, %v1903
        %v4098 = vpop.permute.xlu0 %4097
        %4100 = vset.pattern.permute.xlu0 12
        %4101 = vperm.xlu0 %4100, %v1904
        %v4102 = vpop.permute.xlu0 %4101
        %4104 = vset.pattern.permute.xlu0 12
        %4105 = vperm.xlu0 %4104, %v1905
        %v4106 = vpop.permute.xlu0 %4105
        %4108 = vset.pattern.permute.xlu0 12
        %4109 = vperm.xlu0 %4108, %v1906
        %v4110 = vpop.permute.xlu0 %4109
        %4112 = vset.pattern.permute.xlu0 12
        %4113 = vperm.xlu0 %4112, %v1907
        %v4114 = vpop.permute.xlu0 %4113
        %4116 = vset.pattern.permute.xlu0 12
        %4117 = vperm.xlu0 %4116, %v1908
        %v4118 = vpop.permute.xlu0 %4117
        %4120 = vset.pattern.permute.xlu0 12
        %4121 = vperm.xlu0 %4120, %v1909
        %v4122 = vpop.permute.xlu0 %4121
        %4124 = vset.pattern.permute.xlu0 12
        %4125 = vperm.xlu0 %4124, %v1910
        %v4126 = vpop.permute.xlu0 %4125
        %4128 = vset.pattern.permute.xlu0 12
        %4129 = vperm.xlu0 %4128, %v1911
        %v4130 = vpop.permute.xlu0 %4129
        %4132 = vset.pattern.permute.xlu0 12
        %4133 = vperm.xlu0 %4132, %v1912
        %v4134 = vpop.permute.xlu0 %4133
        %v4144 = vrot.slane %v4064, 2
        %v4145 = vrot.slane %v3857, 2
        %v4146 = vsel %vm2373, %v4144, %v4145
        %v4147 = vrot.slane %v3858, 2
        %v4148 = vsel %vm2373, %v4145, %v4147
        %v4149 = vrot.slane %v4065, 2
        %v4150 = vrot.slane %v3860, 2
        %v4151 = vsel %vm2373, %v4149, %v4150
        %v4152 = vrot.slane %v3861, 2
        %v4153 = vsel %vm2373, %v4150, %v4152
        %v4154 = vrot.slane %v4066, 2
        %v4155 = vrot.slane %v3863, 2
        %v4156 = vsel %vm2373, %v4154, %v4155
        %v4157 = vrot.slane %v3864, 2
        %v4158 = vsel %vm2373, %v4155, %v4157
        %v4159 = vrot.slane %v4067, 2
        %v4160 = vrot.slane %v3866, 2
        %v4161 = vsel %vm2373, %v4159, %v4160
        %v4162 = vrot.slane %v3867, 2
        %v4163 = vsel %vm2373, %v4160, %v4162
        %v4164 = vrot.slane %v4068, 2
        %v4165 = vrot.slane %v3869, 2
        %v4166 = vsel %vm2373, %v4164, %v4165
        %v4167 = vrot.slane %v3870, 2
        %v4168 = vsel %vm2373, %v4165, %v4167
        %v4169 = vrot.slane %v4069, 2
        %v4170 = vrot.slane %v3872, 2
        %v4171 = vsel %vm2373, %v4169, %v4170
        %v4172 = vrot.slane %v3873, 2
        %v4173 = vsel %vm2373, %v4170, %v4172
        %v4174 = vrot.slane %v4070, 2
        %v4175 = vrot.slane %v3875, 2
        %v4176 = vsel %vm2373, %v4174, %v4175
        %v4177 = vrot.slane %v3876, 2
        %v4178 = vsel %vm2373, %v4175, %v4177
        %v4179 = vrot.slane %v4071, 2
        %v4180 = vrot.slane %v3878, 2
        %v4181 = vsel %vm2373, %v4179, %v4180
        %v4182 = vrot.slane %v3879, 2
        %v4183 = vsel %vm2373, %v4180, %v4182
        %v4200 = vmul.f32 %v4074, %v4146
        %v4201 = vmul.f32 %v4078, %v4148
        %v4202 = vmul.f32 %v4082, %v4151
        %v4203 = vmul.f32 %v4086, %v4153
        %v4204 = vmul.f32 %v4090, %v4156
        %v4205 = vmul.f32 %v4094, %v4158
        %v4206 = vmul.f32 %v4098, %v4161
        %v4207 = vmul.f32 %v4102, %v4163
        %v4208 = vmul.f32 %v4106, %v4166
        %v4209 = vmul.f32 %v4110, %v4168
        %v4210 = vmul.f32 %v4114, %v4171
        %v4211 = vmul.f32 %v4118, %v4173
        %v4212 = vmul.f32 %v4122, %v4176
        %v4213 = vmul.f32 %v4126, %v4178
        %v4214 = vmul.f32 %v4130, %v4181
        %v4215 = vmul.f32 %v4134, %v4183
        %v4216 = vadd.f32 %v4040, %v4200
        %v4217 = vadd.f32 %v4041, %v4201
        %v4218 = vadd.f32 %v4042, %v4202
        %v4219 = vadd.f32 %v4043, %v4203
        %v4220 = vadd.f32 %v4044, %v4204
        %v4221 = vadd.f32 %v4045, %v4205
        %v4222 = vadd.f32 %v4046, %v4206
        %v4223 = vadd.f32 %v4047, %v4207
        %v4224 = vadd.f32 %v4048, %v4208
        %v4225 = vadd.f32 %v4049, %v4209
        %v4226 = vadd.f32 %v4050, %v4210
        %v4227 = vadd.f32 %v4051, %v4211
        %v4228 = vadd.f32 %v4052, %v4212
        %v4229 = vadd.f32 %v4053, %v4213
        %v4230 = vadd.f32 %v4054, %v4214
        %v4231 = vadd.f32 %v4055, %v4215
        %v4232 = vld [vmem:[%s3703 + $0x8] sm:$0x3]
        %v4233 = vld [vmem:[%s3703 + $0x14] sm:$0x3]
        %v4234 = vld [vmem:[%s3703 + $0x20] sm:$0x3]
        %v4235 = vld [vmem:[%s3703 + $0x2c] sm:$0x3]
        %v4236 = vld [vmem:[%s3703 + $0x38] sm:$0x3]
        %v4237 = vld [vmem:[%s3703 + $0x44] sm:$0x3]
        %v4238 = vld [vmem:[%s3703 + $0x50] sm:$0x3]
        %v4239 = vld [vmem:[%s3703 + $0x5c] sm:$0x3]
        %v4240 = vunpack.c.l.bf16 %v4232
        %v4241 = vunpack.c.l.bf16 %v4233
        %v4242 = vunpack.c.l.bf16 %v4234
        %v4243 = vunpack.c.l.bf16 %v4235
        %v4244 = vunpack.c.l.bf16 %v4236
        %v4245 = vunpack.c.l.bf16 %v4237
        %v4246 = vunpack.c.l.bf16 %v4238
        %v4247 = vunpack.c.l.bf16 %v4239
        %4248 = vset.pattern.permute.xlu0 13
        %4249 = vperm.xlu0 %4248, %v1897
        %v4250 = vpop.permute.xlu0 %4249
        %4252 = vset.pattern.permute.xlu0 13
        %4253 = vperm.xlu0 %4252, %v1898
        %v4254 = vpop.permute.xlu0 %4253
        %4256 = vset.pattern.permute.xlu0 13
        %4257 = vperm.xlu0 %4256, %v1899
        %v4258 = vpop.permute.xlu0 %4257
        %4260 = vset.pattern.permute.xlu0 13
        %4261 = vperm.xlu0 %4260, %v1900
        %v4262 = vpop.permute.xlu0 %4261
        %4264 = vset.pattern.permute.xlu0 13
        %4265 = vperm.xlu0 %4264, %v1901
        %v4266 = vpop.permute.xlu0 %4265
        %4268 = vset.pattern.permute.xlu0 13
        %4269 = vperm.xlu0 %4268, %v1902
        %v4270 = vpop.permute.xlu0 %4269
        %4272 = vset.pattern.permute.xlu0 13
        %4273 = vperm.xlu0 %4272, %v1903
        %v4274 = vpop.permute.xlu0 %4273
        %4276 = vset.pattern.permute.xlu0 13
        %4277 = vperm.xlu0 %4276, %v1904
        %v4278 = vpop.permute.xlu0 %4277
        %4280 = vset.pattern.permute.xlu0 13
        %4281 = vperm.xlu0 %4280, %v1905
        %v4282 = vpop.permute.xlu0 %4281
        %4284 = vset.pattern.permute.xlu0 13
        %4285 = vperm.xlu0 %4284, %v1906
        %v4286 = vpop.permute.xlu0 %4285
        %4288 = vset.pattern.permute.xlu0 13
        %4289 = vperm.xlu0 %4288, %v1907
        %v4290 = vpop.permute.xlu0 %4289
        %4292 = vset.pattern.permute.xlu0 13
        %4293 = vperm.xlu0 %4292, %v1908
        %v4294 = vpop.permute.xlu0 %4293
        %4296 = vset.pattern.permute.xlu0 13
        %4297 = vperm.xlu0 %4296, %v1909
        %v4298 = vpop.permute.xlu0 %4297
        %4300 = vset.pattern.permute.xlu0 13
        %4301 = vperm.xlu0 %4300, %v1910
        %v4302 = vpop.permute.xlu0 %4301
        %4304 = vset.pattern.permute.xlu0 13
        %4305 = vperm.xlu0 %4304, %v1911
        %v4306 = vpop.permute.xlu0 %4305
        %4308 = vset.pattern.permute.xlu0 13
        %4309 = vperm.xlu0 %4308, %v1912
        %v4310 = vpop.permute.xlu0 %4309
        %v4320 = vrot.slane %v4064, 3
        %v4321 = vrot.slane %v3857, 3
        %v4322 = vsel %vm2550, %v4320, %v4321
        %v4323 = vrot.slane %v4240, 3
        %v4324 = vsel %vm2550, %v4321, %v4323
        %v4325 = vrot.slane %v4065, 3
        %v4326 = vrot.slane %v3860, 3
        %v4327 = vsel %vm2550, %v4325, %v4326
        %v4328 = vrot.slane %v4241, 3
        %v4329 = vsel %vm2550, %v4326, %v4328
        %v4330 = vrot.slane %v4066, 3
        %v4331 = vrot.slane %v3863, 3
        %v4332 = vsel %vm2550, %v4330, %v4331
        %v4333 = vrot.slane %v4242, 3
        %v4334 = vsel %vm2550, %v4331, %v4333
        %v4335 = vrot.slane %v4067, 3
        %v4336 = vrot.slane %v3866, 3
        %v4337 = vsel %vm2550, %v4335, %v4336
        %v4338 = vrot.slane %v4243, 3
        %v4339 = vsel %vm2550, %v4336, %v4338
        %v4340 = vrot.slane %v4068, 3
        %v4341 = vrot.slane %v3869, 3
        %v4342 = vsel %vm2550, %v4340, %v4341
        %v4343 = vrot.slane %v4244, 3
        %v4344 = vsel %vm2550, %v4341, %v4343
        %v4345 = vrot.slane %v4069, 3
        %v4346 = vrot.slane %v3872, 3
        %v4347 = vsel %vm2550, %v4345, %v4346
        %v4348 = vrot.slane %v4245, 3
        %v4349 = vsel %vm2550, %v4346, %v4348
        %v4350 = vrot.slane %v4070, 3
        %v4351 = vrot.slane %v3875, 3
        %v4352 = vsel %vm2550, %v4350, %v4351
        %v4353 = vrot.slane %v4246, 3
        %v4354 = vsel %vm2550, %v4351, %v4353
        %v4355 = vrot.slane %v4071, 3
        %v4356 = vrot.slane %v3878, 3
        %v4357 = vsel %vm2550, %v4355, %v4356
        %v4358 = vrot.slane %v4247, 3
        %v4359 = vsel %vm2550, %v4356, %v4358
        %v4376 = vmul.f32 %v4250, %v4322
        %v4377 = vmul.f32 %v4254, %v4324
        %v4378 = vmul.f32 %v4258, %v4327
        %v4379 = vmul.f32 %v4262, %v4329
        %v4380 = vmul.f32 %v4266, %v4332
        %v4381 = vmul.f32 %v4270, %v4334
        %v4382 = vmul.f32 %v4274, %v4337
        %v4383 = vmul.f32 %v4278, %v4339
        %v4384 = vmul.f32 %v4282, %v4342
        %v4385 = vmul.f32 %v4286, %v4344
        %v4386 = vmul.f32 %v4290, %v4347
        %v4387 = vmul.f32 %v4294, %v4349
        %v4388 = vmul.f32 %v4298, %v4352
        %v4389 = vmul.f32 %v4302, %v4354
        %v4390 = vmul.f32 %v4306, %v4357
        %v4391 = vmul.f32 %v4310, %v4359
        %v4392 = vadd.f32 %v4216, %v4376
        %v4393 = vadd.f32 %v4217, %v4377
        %v4394 = vadd.f32 %v4218, %v4378
        %v4395 = vadd.f32 %v4219, %v4379
        %v4396 = vadd.f32 %v4220, %v4380
        %v4397 = vadd.f32 %v4221, %v4381
        %v4398 = vadd.f32 %v4222, %v4382
        %v4399 = vadd.f32 %v4223, %v4383
        %v4400 = vadd.f32 %v4224, %v4384
        %v4401 = vadd.f32 %v4225, %v4385
        %v4402 = vadd.f32 %v4226, %v4386
        %v4403 = vadd.f32 %v4227, %v4387
        %v4404 = vadd.f32 %v4228, %v4388
        %v4405 = vadd.f32 %v4229, %v4389
        %v4406 = vadd.f32 %v4230, %v4390
        %v4407 = vadd.f32 %v4231, %v4391
        %v4408 = vld [vmem:[%s3703] sm:$0xc]
        %v4409 = vld [vmem:[%s3703 + $0xc] sm:$0xc]
        %v4410 = vld [vmem:[%s3703 + $0x18] sm:$0xc]
        %v4411 = vld [vmem:[%s3703 + $0x24] sm:$0xc]
        %v4412 = vld [vmem:[%s3703 + $0x30] sm:$0xc]
        %v4413 = vld [vmem:[%s3703 + $0x3c] sm:$0xc]
        %v4414 = vld [vmem:[%s3703 + $0x48] sm:$0xc]
        %v4415 = vld [vmem:[%s3703 + $0x54] sm:$0xc]
        %v4416 = vunpack.c.l.bf16 %v4408
        %v4417 = vunpack.c.l.bf16 %v4409
        %v4418 = vunpack.c.l.bf16 %v4410
        %v4419 = vunpack.c.l.bf16 %v4411
        %v4420 = vunpack.c.l.bf16 %v4412
        %v4421 = vunpack.c.l.bf16 %v4413
        %v4422 = vunpack.c.l.bf16 %v4414
        %v4423 = vunpack.c.l.bf16 %v4415
        %4424 = vset.pattern.permute.xlu0 14
        %4425 = vperm.xlu0 %4424, %v1897
        %v4426 = vpop.permute.xlu0 %4425
        %4428 = vset.pattern.permute.xlu0 14
        %4429 = vperm.xlu0 %4428, %v1898
        %v4430 = vpop.permute.xlu0 %4429
        %4432 = vset.pattern.permute.xlu0 14
        %4433 = vperm.xlu0 %4432, %v1899
        %v4434 = vpop.permute.xlu0 %4433
        %4436 = vset.pattern.permute.xlu0 14
        %4437 = vperm.xlu0 %4436, %v1900
        %v4438 = vpop.permute.xlu0 %4437
        %4440 = vset.pattern.permute.xlu0 14
        %4441 = vperm.xlu0 %4440, %v1901
        %v4442 = vpop.permute.xlu0 %4441
        %4444 = vset.pattern.permute.xlu0 14
        %4445 = vperm.xlu0 %4444, %v1902
        %v4446 = vpop.permute.xlu0 %4445
        %4448 = vset.pattern.permute.xlu0 14
        %4449 = vperm.xlu0 %4448, %v1903
        %v4450 = vpop.permute.xlu0 %4449
        %4452 = vset.pattern.permute.xlu0 14
        %4453 = vperm.xlu0 %4452, %v1904
        %v4454 = vpop.permute.xlu0 %4453
        %4456 = vset.pattern.permute.xlu0 14
        %4457 = vperm.xlu0 %4456, %v1905
        %v4458 = vpop.permute.xlu0 %4457
        %4460 = vset.pattern.permute.xlu0 14
        %4461 = vperm.xlu0 %4460, %v1906
        %v4462 = vpop.permute.xlu0 %4461
        %4464 = vset.pattern.permute.xlu0 14
        %4465 = vperm.xlu0 %4464, %v1907
        %v4466 = vpop.permute.xlu0 %4465
        %4468 = vset.pattern.permute.xlu0 14
        %4469 = vperm.xlu0 %4468, %v1908
        %v4470 = vpop.permute.xlu0 %4469
        %4472 = vset.pattern.permute.xlu0 14
        %4473 = vperm.xlu0 %4472, %v1909
        %v4474 = vpop.permute.xlu0 %4473
        %4476 = vset.pattern.permute.xlu0 14
        %4477 = vperm.xlu0 %4476, %v1910
        %v4478 = vpop.permute.xlu0 %4477
        %4480 = vset.pattern.permute.xlu0 14
        %4481 = vperm.xlu0 %4480, %v1911
        %v4482 = vpop.permute.xlu0 %4481
        %4484 = vset.pattern.permute.xlu0 14
        %4485 = vperm.xlu0 %4484, %v1912
        %v4486 = vpop.permute.xlu0 %4485
        %v4496 = vrot.slane %v4416, 4
        %v4497 = vrot.slane %v3857, 4
        %v4498 = vsel %vm2727, %v4496, %v4497
        %v4499 = vrot.slane %v4240, 4
        %v4500 = vsel %vm2727, %v4497, %v4499
        %v4501 = vrot.slane %v4417, 4
        %v4502 = vrot.slane %v3860, 4
        %v4503 = vsel %vm2727, %v4501, %v4502
        %v4504 = vrot.slane %v4241, 4
        %v4505 = vsel %vm2727, %v4502, %v4504
        %v4506 = vrot.slane %v4418, 4
        %v4507 = vrot.slane %v3863, 4
        %v4508 = vsel %vm2727, %v4506, %v4507
        %v4509 = vrot.slane %v4242, 4
        %v4510 = vsel %vm2727, %v4507, %v4509
        %v4511 = vrot.slane %v4419, 4
        %v4512 = vrot.slane %v3866, 4
        %v4513 = vsel %vm2727, %v4511, %v4512
        %v4514 = vrot.slane %v4243, 4
        %v4515 = vsel %vm2727, %v4512, %v4514
        %v4516 = vrot.slane %v4420, 4
        %v4517 = vrot.slane %v3869, 4
        %v4518 = vsel %vm2727, %v4516, %v4517
        %v4519 = vrot.slane %v4244, 4
        %v4520 = vsel %vm2727, %v4517, %v4519
        %v4521 = vrot.slane %v4421, 4
        %v4522 = vrot.slane %v3872, 4
        %v4523 = vsel %vm2727, %v4521, %v4522
        %v4524 = vrot.slane %v4245, 4
        %v4525 = vsel %vm2727, %v4522, %v4524
        %v4526 = vrot.slane %v4422, 4
        %v4527 = vrot.slane %v3875, 4
        %v4528 = vsel %vm2727, %v4526, %v4527
        %v4529 = vrot.slane %v4246, 4
        %v4530 = vsel %vm2727, %v4527, %v4529
        %v4531 = vrot.slane %v4423, 4
        %v4532 = vrot.slane %v3878, 4
        %v4533 = vsel %vm2727, %v4531, %v4532
        %v4534 = vrot.slane %v4247, 4
        %v4535 = vsel %vm2727, %v4532, %v4534
        %v4552 = vmul.f32 %v4426, %v4498
        %v4553 = vmul.f32 %v4430, %v4500
        %v4554 = vmul.f32 %v4434, %v4503
        %v4555 = vmul.f32 %v4438, %v4505
        %v4556 = vmul.f32 %v4442, %v4508
        %v4557 = vmul.f32 %v4446, %v4510
        %v4558 = vmul.f32 %v4450, %v4513
        %v4559 = vmul.f32 %v4454, %v4515
        %v4560 = vmul.f32 %v4458, %v4518
        %v4561 = vmul.f32 %v4462, %v4520
        %v4562 = vmul.f32 %v4466, %v4523
        %v4563 = vmul.f32 %v4470, %v4525
        %v4564 = vmul.f32 %v4474, %v4528
        %v4565 = vmul.f32 %v4478, %v4530
        %v4566 = vmul.f32 %v4482, %v4533
        %v4567 = vmul.f32 %v4486, %v4535
        %v4568 = vadd.f32 %v4392, %v4552
        %v4569 = vadd.f32 %v4393, %v4553
        %v4570 = vadd.f32 %v4394, %v4554
        %v4571 = vadd.f32 %v4395, %v4555
        %v4572 = vadd.f32 %v4396, %v4556
        %v4573 = vadd.f32 %v4397, %v4557
        %v4574 = vadd.f32 %v4398, %v4558
        %v4575 = vadd.f32 %v4399, %v4559
        %v4576 = vadd.f32 %v4400, %v4560
        %v4577 = vadd.f32 %v4401, %v4561
        %v4578 = vadd.f32 %v4402, %v4562
        %v4579 = vadd.f32 %v4403, %v4563
        %v4580 = vadd.f32 %v4404, %v4564
        %v4581 = vadd.f32 %v4405, %v4565
        %v4582 = vadd.f32 %v4406, %v4566
        %v4583 = vadd.f32 %v4407, %v4567
        %s4584 = sadd.s32 %s1892, 3
        %s4585 = smul.u32 %s4584, 3
        %s4586 = smul.addr %s4585, 4
        %s4587 = scalar_lea.vmem %s204, %s4586
        %v4588 = vld [vmem:[%s4587] sm:$0xf]
        %v4589 = vld [vmem:[%s4587 + $0x4] sm:$0xf]
        %v4590 = vld [vmem:[%s4587 + $0xc] sm:$0xf]
        %v4591 = vld [vmem:[%s4587 + $0x10] sm:$0xf]
        %v4592 = vld [vmem:[%s4587 + $0x18] sm:$0xf]
        %v4593 = vld [vmem:[%s4587 + $0x1c] sm:$0xf]
        %v4594 = vld [vmem:[%s4587 + $0x24] sm:$0xf]
        %v4595 = vld [vmem:[%s4587 + $0x28] sm:$0xf]
        %v4596 = vld [vmem:[%s4587 + $0x30] sm:$0xf]
        %v4597 = vld [vmem:[%s4587 + $0x34] sm:$0xf]
        %v4598 = vld [vmem:[%s4587 + $0x3c] sm:$0xf]
        %v4599 = vld [vmem:[%s4587 + $0x40] sm:$0xf]
        %v4600 = vld [vmem:[%s4587 + $0x48] sm:$0xf]
        %v4601 = vld [vmem:[%s4587 + $0x4c] sm:$0xf]
        %v4602 = vld [vmem:[%s4587 + $0x54] sm:$0xf]
        %v4603 = vld [vmem:[%s4587 + $0x58] sm:$0xf]
        %v4604 = vunpack.c.l.bf16 %v4588
        %v4605 = vunpack.c.l.bf16 %v4589
        %v4606 = vunpack.c.l.bf16 %v4590
        %v4607 = vunpack.c.l.bf16 %v4591
        %v4608 = vunpack.c.l.bf16 %v4592
        %v4609 = vunpack.c.l.bf16 %v4593
        %v4610 = vunpack.c.l.bf16 %v4594
        %v4611 = vunpack.c.l.bf16 %v4595
        %v4612 = vunpack.c.l.bf16 %v4596
        %v4613 = vunpack.c.l.bf16 %v4597
        %v4614 = vunpack.c.l.bf16 %v4598
        %v4615 = vunpack.c.l.bf16 %v4599
        %v4616 = vunpack.c.l.bf16 %v4600
        %v4617 = vunpack.c.l.bf16 %v4601
        %v4618 = vunpack.c.l.bf16 %v4602
        %v4619 = vunpack.c.l.bf16 %v4603
        %4620 = vset.pattern.permute.xlu0 15
        %4621 = vperm.xlu0 %4620, %v1897
        %v4622 = vpop.permute.xlu0 %4621
        %4624 = vset.pattern.permute.xlu0 15
        %4625 = vperm.xlu0 %4624, %v1898
        %v4626 = vpop.permute.xlu0 %4625
        %4628 = vset.pattern.permute.xlu0 15
        %4629 = vperm.xlu0 %4628, %v1899
        %v4630 = vpop.permute.xlu0 %4629
        %4632 = vset.pattern.permute.xlu0 15
        %4633 = vperm.xlu0 %4632, %v1900
        %v4634 = vpop.permute.xlu0 %4633
        %4636 = vset.pattern.permute.xlu0 15
        %4637 = vperm.xlu0 %4636, %v1901
        %v4638 = vpop.permute.xlu0 %4637
        %4640 = vset.pattern.permute.xlu0 15
        %4641 = vperm.xlu0 %4640, %v1902
        %v4642 = vpop.permute.xlu0 %4641
        %4644 = vset.pattern.permute.xlu0 15
        %4645 = vperm.xlu0 %4644, %v1903
        %v4646 = vpop.permute.xlu0 %4645
        %4648 = vset.pattern.permute.xlu0 15
        %4649 = vperm.xlu0 %4648, %v1904
        %v4650 = vpop.permute.xlu0 %4649
        %4652 = vset.pattern.permute.xlu0 15
        %4653 = vperm.xlu0 %4652, %v1905
        %v4654 = vpop.permute.xlu0 %4653
        %4656 = vset.pattern.permute.xlu0 15
        %4657 = vperm.xlu0 %4656, %v1906
        %v4658 = vpop.permute.xlu0 %4657
        %4660 = vset.pattern.permute.xlu0 15
        %4661 = vperm.xlu0 %4660, %v1907
        %v4662 = vpop.permute.xlu0 %4661
        %4664 = vset.pattern.permute.xlu0 15
        %4665 = vperm.xlu0 %4664, %v1908
        %v4666 = vpop.permute.xlu0 %4665
        %4668 = vset.pattern.permute.xlu0 15
        %4669 = vperm.xlu0 %4668, %v1909
        %v4670 = vpop.permute.xlu0 %4669
        %4672 = vset.pattern.permute.xlu0 15
        %4673 = vperm.xlu0 %4672, %v1910
        %v4674 = vpop.permute.xlu0 %4673
        %4676 = vset.pattern.permute.xlu0 15
        %4677 = vperm.xlu0 %4676, %v1911
        %v4678 = vpop.permute.xlu0 %4677
        %4680 = vset.pattern.permute.xlu0 15
        %4681 = vperm.xlu0 %4680, %v1912
        %v4682 = vpop.permute.xlu0 %4681
        %v4684 = vmul.f32 %v4622, %v4604
        %v4685 = vmul.f32 %v4626, %v4605
        %v4686 = vmul.f32 %v4630, %v4606
        %v4687 = vmul.f32 %v4634, %v4607
        %v4688 = vmul.f32 %v4638, %v4608
        %v4689 = vmul.f32 %v4642, %v4609
        %v4690 = vmul.f32 %v4646, %v4610
        %v4691 = vmul.f32 %v4650, %v4611
        %v4692 = vmul.f32 %v4654, %v4612
        %v4693 = vmul.f32 %v4658, %v4613
        %v4694 = vmul.f32 %v4662, %v4614
        %v4695 = vmul.f32 %v4666, %v4615
        %v4696 = vmul.f32 %v4670, %v4616
        %v4697 = vmul.f32 %v4674, %v4617
        %v4698 = vmul.f32 %v4678, %v4618
        %v4699 = vmul.f32 %v4682, %v4619
        %v4700 = vadd.f32 %v4568, %v4684
        %v4701 = vadd.f32 %v4569, %v4685
        %v4702 = vadd.f32 %v4570, %v4686
        %v4703 = vadd.f32 %v4571, %v4687
        %v4704 = vadd.f32 %v4572, %v4688
        %v4705 = vadd.f32 %v4573, %v4689
        %v4706 = vadd.f32 %v4574, %v4690
        %v4707 = vadd.f32 %v4575, %v4691
        %v4708 = vadd.f32 %v4576, %v4692
        %v4709 = vadd.f32 %v4577, %v4693
        %v4710 = vadd.f32 %v4578, %v4694
        %v4711 = vadd.f32 %v4579, %v4695
        %v4712 = vadd.f32 %v4580, %v4696
        %v4713 = vadd.f32 %v4581, %v4697
        %v4714 = vadd.f32 %v4582, %v4698
        %v4715 = vadd.f32 %v4583, %v4699
        %v4716 = vld [vmem:[%s4587] sm:$0xf]
        %v4717 = vld [vmem:[%s4587 + $0x4] sm:$0xf]
        %v4718 = vld [vmem:[%s4587 + $0x8] sm:$0x1]
        %v4719 = vld [vmem:[%s4587 + $0xc] sm:$0xf]
        %v4720 = vld [vmem:[%s4587 + $0x10] sm:$0xf]
        %v4721 = vld [vmem:[%s4587 + $0x14] sm:$0x1]
        %v4722 = vld [vmem:[%s4587 + $0x18] sm:$0xf]
        %v4723 = vld [vmem:[%s4587 + $0x1c] sm:$0xf]
        %v4724 = vld [vmem:[%s4587 + $0x20] sm:$0x1]
        %v4725 = vld [vmem:[%s4587 + $0x24] sm:$0xf]
        %v4726 = vld [vmem:[%s4587 + $0x28] sm:$0xf]
        %v4727 = vld [vmem:[%s4587 + $0x2c] sm:$0x1]
        %v4728 = vld [vmem:[%s4587 + $0x30] sm:$0xf]
        %v4729 = vld [vmem:[%s4587 + $0x34] sm:$0xf]
        %v4730 = vld [vmem:[%s4587 + $0x38] sm:$0x1]
        %v4731 = vld [vmem:[%s4587 + $0x3c] sm:$0xf]
        %v4732 = vld [vmem:[%s4587 + $0x40] sm:$0xf]
        %v4733 = vld [vmem:[%s4587 + $0x44] sm:$0x1]
        %v4734 = vld [vmem:[%s4587 + $0x48] sm:$0xf]
        %v4735 = vld [vmem:[%s4587 + $0x4c] sm:$0xf]
        %v4736 = vld [vmem:[%s4587 + $0x50] sm:$0x1]
        %v4737 = vld [vmem:[%s4587 + $0x54] sm:$0xf]
        %v4738 = vld [vmem:[%s4587 + $0x58] sm:$0xf]
        %v4739 = vld [vmem:[%s4587 + $0x5c] sm:$0x1]
        %v4740 = vunpack.c.l.bf16 %v4716
        %v4741 = vunpack.c.l.bf16 %v4717
        %v4742 = vunpack.c.l.bf16 %v4718
        %v4743 = vunpack.c.l.bf16 %v4719
        %v4744 = vunpack.c.l.bf16 %v4720
        %v4745 = vunpack.c.l.bf16 %v4721
        %v4746 = vunpack.c.l.bf16 %v4722
        %v4747 = vunpack.c.l.bf16 %v4723
        %v4748 = vunpack.c.l.bf16 %v4724
        %v4749 = vunpack.c.l.bf16 %v4725
        %v4750 = vunpack.c.l.bf16 %v4726
        %v4751 = vunpack.c.l.bf16 %v4727
        %v4752 = vunpack.c.l.bf16 %v4728
        %v4753 = vunpack.c.l.bf16 %v4729
        %v4754 = vunpack.c.l.bf16 %v4730
        %v4755 = vunpack.c.l.bf16 %v4731
        %v4756 = vunpack.c.l.bf16 %v4732
        %v4757 = vunpack.c.l.bf16 %v4733
        %v4758 = vunpack.c.l.bf16 %v4734
        %v4759 = vunpack.c.l.bf16 %v4735
        %v4760 = vunpack.c.l.bf16 %v4736
        %v4761 = vunpack.c.l.bf16 %v4737
        %v4762 = vunpack.c.l.bf16 %v4738
        %v4763 = vunpack.c.l.bf16 %v4739
        %4764 = vset.pattern.permute.xlu0 16
        %4765 = vperm.xlu0 %4764, %v1897
        %v4766 = vpop.permute.xlu0 %4765
        %4768 = vset.pattern.permute.xlu0 16
        %4769 = vperm.xlu0 %4768, %v1898
        %v4770 = vpop.permute.xlu0 %4769
        %4772 = vset.pattern.permute.xlu0 16
        %4773 = vperm.xlu0 %4772, %v1899
        %v4774 = vpop.permute.xlu0 %4773
        %4776 = vset.pattern.permute.xlu0 16
        %4777 = vperm.xlu0 %4776, %v1900
        %v4778 = vpop.permute.xlu0 %4777
        %4780 = vset.pattern.permute.xlu0 16
        %4781 = vperm.xlu0 %4780, %v1901
        %v4782 = vpop.permute.xlu0 %4781
        %4784 = vset.pattern.permute.xlu0 16
        %4785 = vperm.xlu0 %4784, %v1902
        %v4786 = vpop.permute.xlu0 %4785
        %4788 = vset.pattern.permute.xlu0 16
        %4789 = vperm.xlu0 %4788, %v1903
        %v4790 = vpop.permute.xlu0 %4789
        %4792 = vset.pattern.permute.xlu0 16
        %4793 = vperm.xlu0 %4792, %v1904
        %v4794 = vpop.permute.xlu0 %4793
        %4796 = vset.pattern.permute.xlu0 16
        %4797 = vperm.xlu0 %4796, %v1905
        %v4798 = vpop.permute.xlu0 %4797
        %4800 = vset.pattern.permute.xlu0 16
        %4801 = vperm.xlu0 %4800, %v1906
        %v4802 = vpop.permute.xlu0 %4801
        %4804 = vset.pattern.permute.xlu0 16
        %4805 = vperm.xlu0 %4804, %v1907
        %v4806 = vpop.permute.xlu0 %4805
        %4808 = vset.pattern.permute.xlu0 16
        %4809 = vperm.xlu0 %4808, %v1908
        %v4810 = vpop.permute.xlu0 %4809
        %4812 = vset.pattern.permute.xlu0 16
        %4813 = vperm.xlu0 %4812, %v1909
        %v4814 = vpop.permute.xlu0 %4813
        %4816 = vset.pattern.permute.xlu0 16
        %4817 = vperm.xlu0 %4816, %v1910
        %v4818 = vpop.permute.xlu0 %4817
        %4820 = vset.pattern.permute.xlu0 16
        %4821 = vperm.xlu0 %4820, %v1911
        %v4822 = vpop.permute.xlu0 %4821
        %4824 = vset.pattern.permute.xlu0 16
        %4825 = vperm.xlu0 %4824, %v1912
        %v4826 = vpop.permute.xlu0 %4825
        %v4852 = vrot.slane %v4740, 1
        %v4853 = vrot.slane %v4741, 1
        %v4854 = vsel %vm2196, %v4852, %v4853
        %v4855 = vrot.slane %v4742, 1
        %v4856 = vsel %vm2196, %v4853, %v4855
        %v4857 = vrot.slane %v4743, 1
        %v4858 = vrot.slane %v4744, 1
        %v4859 = vsel %vm2196, %v4857, %v4858
        %v4860 = vrot.slane %v4745, 1
        %v4861 = vsel %vm2196, %v4858, %v4860
        %v4862 = vrot.slane %v4746, 1
        %v4863 = vrot.slane %v4747, 1
        %v4864 = vsel %vm2196, %v4862, %v4863
        %v4865 = vrot.slane %v4748, 1
        %v4866 = vsel %vm2196, %v4863, %v4865
        %v4867 = vrot.slane %v4749, 1
        %v4868 = vrot.slane %v4750, 1
        %v4869 = vsel %vm2196, %v4867, %v4868
        %v4870 = vrot.slane %v4751, 1
        %v4871 = vsel %vm2196, %v4868, %v4870
        %v4872 = vrot.slane %v4752, 1
        %v4873 = vrot.slane %v4753, 1
        %v4874 = vsel %vm2196, %v4872, %v4873
        %v4875 = vrot.slane %v4754, 1
        %v4876 = vsel %vm2196, %v4873, %v4875
        %v4877 = vrot.slane %v4755, 1
        %v4878 = vrot.slane %v4756, 1
        %v4879 = vsel %vm2196, %v4877, %v4878
        %v4880 = vrot.slane %v4757, 1
        %v4881 = vsel %vm2196, %v4878, %v4880
        %v4882 = vrot.slane %v4758, 1
        %v4883 = vrot.slane %v4759, 1
        %v4884 = vsel %vm2196, %v4882, %v4883
        %v4885 = vrot.slane %v4760, 1
        %v4886 = vsel %vm2196, %v4883, %v4885
        %v4887 = vrot.slane %v4761, 1
        %v4888 = vrot.slane %v4762, 1
        %v4889 = vsel %vm2196, %v4887, %v4888
        %v4890 = vrot.slane %v4763, 1
        %v4891 = vsel %vm2196, %v4888, %v4890
        %v4908 = vmul.f32 %v4766, %v4854
        %v4909 = vmul.f32 %v4770, %v4856
        %v4910 = vmul.f32 %v4774, %v4859
        %v4911 = vmul.f32 %v4778, %v4861
        %v4912 = vmul.f32 %v4782, %v4864
        %v4913 = vmul.f32 %v4786, %v4866
        %v4914 = vmul.f32 %v4790, %v4869
        %v4915 = vmul.f32 %v4794, %v4871
        %v4916 = vmul.f32 %v4798, %v4874
        %v4917 = vmul.f32 %v4802, %v4876
        %v4918 = vmul.f32 %v4806, %v4879
        %v4919 = vmul.f32 %v4810, %v4881
        %v4920 = vmul.f32 %v4814, %v4884
        %v4921 = vmul.f32 %v4818, %v4886
        %v4922 = vmul.f32 %v4822, %v4889
        %v4923 = vmul.f32 %v4826, %v4891
        %v4924 = vadd.f32 %v4700, %v4908
        %v4925 = vadd.f32 %v4701, %v4909
        %v4926 = vadd.f32 %v4702, %v4910
        %v4927 = vadd.f32 %v4703, %v4911
        %v4928 = vadd.f32 %v4704, %v4912
        %v4929 = vadd.f32 %v4705, %v4913
        %v4930 = vadd.f32 %v4706, %v4914
        %v4931 = vadd.f32 %v4707, %v4915
        %v4932 = vadd.f32 %v4708, %v4916
        %v4933 = vadd.f32 %v4709, %v4917
        %v4934 = vadd.f32 %v4710, %v4918
        %v4935 = vadd.f32 %v4711, %v4919
        %v4936 = vadd.f32 %v4712, %v4920
        %v4937 = vadd.f32 %v4713, %v4921
        %v4938 = vadd.f32 %v4714, %v4922
        %v4939 = vadd.f32 %v4715, %v4923
        %v4940 = vld [vmem:[%s4587] sm:$0xe]
        %v4941 = vld [vmem:[%s4587 + $0xc] sm:$0xe]
        %v4942 = vld [vmem:[%s4587 + $0x18] sm:$0xe]
        %v4943 = vld [vmem:[%s4587 + $0x24] sm:$0xe]
        %v4944 = vld [vmem:[%s4587 + $0x30] sm:$0xe]
        %v4945 = vld [vmem:[%s4587 + $0x3c] sm:$0xe]
        %v4946 = vld [vmem:[%s4587 + $0x48] sm:$0xe]
        %v4947 = vld [vmem:[%s4587 + $0x54] sm:$0xe]
        %v4948 = vunpack.c.l.bf16 %v4940
        %v4949 = vunpack.c.l.bf16 %v4941
        %v4950 = vunpack.c.l.bf16 %v4942
        %v4951 = vunpack.c.l.bf16 %v4943
        %v4952 = vunpack.c.l.bf16 %v4944
        %v4953 = vunpack.c.l.bf16 %v4945
        %v4954 = vunpack.c.l.bf16 %v4946
        %v4955 = vunpack.c.l.bf16 %v4947
        %4956 = vset.pattern.permute.xlu0 17
        %4957 = vperm.xlu0 %4956, %v1897
        %v4958 = vpop.permute.xlu0 %4957
        %4960 = vset.pattern.permute.xlu0 17
        %4961 = vperm.xlu0 %4960, %v1898
        %v4962 = vpop.permute.xlu0 %4961
        %4964 = vset.pattern.permute.xlu0 17
        %4965 = vperm.xlu0 %4964, %v1899
        %v4966 = vpop.permute.xlu0 %4965
        %4968 = vset.pattern.permute.xlu0 17
        %4969 = vperm.xlu0 %4968, %v1900
        %v4970 = vpop.permute.xlu0 %4969
        %4972 = vset.pattern.permute.xlu0 17
        %4973 = vperm.xlu0 %4972, %v1901
        %v4974 = vpop.permute.xlu0 %4973
        %4976 = vset.pattern.permute.xlu0 17
        %4977 = vperm.xlu0 %4976, %v1902
        %v4978 = vpop.permute.xlu0 %4977
        %4980 = vset.pattern.permute.xlu0 17
        %4981 = vperm.xlu0 %4980, %v1903
        %v4982 = vpop.permute.xlu0 %4981
        %4984 = vset.pattern.permute.xlu0 17
        %4985 = vperm.xlu0 %4984, %v1904
        %v4986 = vpop.permute.xlu0 %4985
        %4988 = vset.pattern.permute.xlu0 17
        %4989 = vperm.xlu0 %4988, %v1905
        %v4990 = vpop.permute.xlu0 %4989
        %4992 = vset.pattern.permute.xlu0 17
        %4993 = vperm.xlu0 %4992, %v1906
        %v4994 = vpop.permute.xlu0 %4993
        %4996 = vset.pattern.permute.xlu0 17
        %4997 = vperm.xlu0 %4996, %v1907
        %v4998 = vpop.permute.xlu0 %4997
        %5000 = vset.pattern.permute.xlu0 17
        %5001 = vperm.xlu0 %5000, %v1908
        %v5002 = vpop.permute.xlu0 %5001
        %5004 = vset.pattern.permute.xlu0 17
        %5005 = vperm.xlu0 %5004, %v1909
        %v5006 = vpop.permute.xlu0 %5005
        %5008 = vset.pattern.permute.xlu0 17
        %5009 = vperm.xlu0 %5008, %v1910
        %v5010 = vpop.permute.xlu0 %5009
        %5012 = vset.pattern.permute.xlu0 17
        %5013 = vperm.xlu0 %5012, %v1911
        %v5014 = vpop.permute.xlu0 %5013
        %5016 = vset.pattern.permute.xlu0 17
        %5017 = vperm.xlu0 %5016, %v1912
        %v5018 = vpop.permute.xlu0 %5017
        %v5028 = vrot.slane %v4948, 2
        %v5029 = vrot.slane %v4741, 2
        %v5030 = vsel %vm2373, %v5028, %v5029
        %v5031 = vrot.slane %v4742, 2
        %v5032 = vsel %vm2373, %v5029, %v5031
        %v5033 = vrot.slane %v4949, 2
        %v5034 = vrot.slane %v4744, 2
        %v5035 = vsel %vm2373, %v5033, %v5034
        %v5036 = vrot.slane %v4745, 2
        %v5037 = vsel %vm2373, %v5034, %v5036
        %v5038 = vrot.slane %v4950, 2
        %v5039 = vrot.slane %v4747, 2
        %v5040 = vsel %vm2373, %v5038, %v5039
        %v5041 = vrot.slane %v4748, 2
        %v5042 = vsel %vm2373, %v5039, %v5041
        %v5043 = vrot.slane %v4951, 2
        %v5044 = vrot.slane %v4750, 2
        %v5045 = vsel %vm2373, %v5043, %v5044
        %v5046 = vrot.slane %v4751, 2
        %v5047 = vsel %vm2373, %v5044, %v5046
        %v5048 = vrot.slane %v4952, 2
        %v5049 = vrot.slane %v4753, 2
        %v5050 = vsel %vm2373, %v5048, %v5049
        %v5051 = vrot.slane %v4754, 2
        %v5052 = vsel %vm2373, %v5049, %v5051
        %v5053 = vrot.slane %v4953, 2
        %v5054 = vrot.slane %v4756, 2
        %v5055 = vsel %vm2373, %v5053, %v5054
        %v5056 = vrot.slane %v4757, 2
        %v5057 = vsel %vm2373, %v5054, %v5056
        %v5058 = vrot.slane %v4954, 2
        %v5059 = vrot.slane %v4759, 2
        %v5060 = vsel %vm2373, %v5058, %v5059
        %v5061 = vrot.slane %v4760, 2
        %v5062 = vsel %vm2373, %v5059, %v5061
        %v5063 = vrot.slane %v4955, 2
        %v5064 = vrot.slane %v4762, 2
        %v5065 = vsel %vm2373, %v5063, %v5064
        %v5066 = vrot.slane %v4763, 2
        %v5067 = vsel %vm2373, %v5064, %v5066
        %v5084 = vmul.f32 %v4958, %v5030
        %v5085 = vmul.f32 %v4962, %v5032
        %v5086 = vmul.f32 %v4966, %v5035
        %v5087 = vmul.f32 %v4970, %v5037
        %v5088 = vmul.f32 %v4974, %v5040
        %v5089 = vmul.f32 %v4978, %v5042
        %v5090 = vmul.f32 %v4982, %v5045
        %v5091 = vmul.f32 %v4986, %v5047
        %v5092 = vmul.f32 %v4990, %v5050
        %v5093 = vmul.f32 %v4994, %v5052
        %v5094 = vmul.f32 %v4998, %v5055
        %v5095 = vmul.f32 %v5002, %v5057
        %v5096 = vmul.f32 %v5006, %v5060
        %v5097 = vmul.f32 %v5010, %v5062
        %v5098 = vmul.f32 %v5014, %v5065
        %v5099 = vmul.f32 %v5018, %v5067
        %v5100 = vadd.f32 %v4924, %v5084
        %v5101 = vadd.f32 %v4925, %v5085
        %v5102 = vadd.f32 %v4926, %v5086
        %v5103 = vadd.f32 %v4927, %v5087
        %v5104 = vadd.f32 %v4928, %v5088
        %v5105 = vadd.f32 %v4929, %v5089
        %v5106 = vadd.f32 %v4930, %v5090
        %v5107 = vadd.f32 %v4931, %v5091
        %v5108 = vadd.f32 %v4932, %v5092
        %v5109 = vadd.f32 %v4933, %v5093
        %v5110 = vadd.f32 %v4934, %v5094
        %v5111 = vadd.f32 %v4935, %v5095
        %v5112 = vadd.f32 %v4936, %v5096
        %v5113 = vadd.f32 %v4937, %v5097
        %v5114 = vadd.f32 %v4938, %v5098
        %v5115 = vadd.f32 %v4939, %v5099
        %v5116 = vld [vmem:[%s4587 + $0x8] sm:$0x3]
        %v5117 = vld [vmem:[%s4587 + $0x14] sm:$0x3]
        %v5118 = vld [vmem:[%s4587 + $0x20] sm:$0x3]
        %v5119 = vld [vmem:[%s4587 + $0x2c] sm:$0x3]
        %v5120 = vld [vmem:[%s4587 + $0x38] sm:$0x3]
        %v5121 = vld [vmem:[%s4587 + $0x44] sm:$0x3]
        %v5122 = vld [vmem:[%s4587 + $0x50] sm:$0x3]
        %v5123 = vld [vmem:[%s4587 + $0x5c] sm:$0x3]
        %v5124 = vunpack.c.l.bf16 %v5116
        %v5125 = vunpack.c.l.bf16 %v5117
        %v5126 = vunpack.c.l.bf16 %v5118
        %v5127 = vunpack.c.l.bf16 %v5119
        %v5128 = vunpack.c.l.bf16 %v5120
        %v5129 = vunpack.c.l.bf16 %v5121
        %v5130 = vunpack.c.l.bf16 %v5122
        %v5131 = vunpack.c.l.bf16 %v5123
        %5132 = vset.pattern.permute.xlu0 18
        %5133 = vperm.xlu0 %5132, %v1897
        %v5134 = vpop.permute.xlu0 %5133
        %5136 = vset.pattern.permute.xlu0 18
        %5137 = vperm.xlu0 %5136, %v1898
        %v5138 = vpop.permute.xlu0 %5137
        %5140 = vset.pattern.permute.xlu0 18
        %5141 = vperm.xlu0 %5140, %v1899
        %v5142 = vpop.permute.xlu0 %5141
        %5144 = vset.pattern.permute.xlu0 18
        %5145 = vperm.xlu0 %5144, %v1900
        %v5146 = vpop.permute.xlu0 %5145
        %5148 = vset.pattern.permute.xlu0 18
        %5149 = vperm.xlu0 %5148, %v1901
        %v5150 = vpop.permute.xlu0 %5149
        %5152 = vset.pattern.permute.xlu0 18
        %5153 = vperm.xlu0 %5152, %v1902
        %v5154 = vpop.permute.xlu0 %5153
        %5156 = vset.pattern.permute.xlu0 18
        %5157 = vperm.xlu0 %5156, %v1903
        %v5158 = vpop.permute.xlu0 %5157
        %5160 = vset.pattern.permute.xlu0 18
        %5161 = vperm.xlu0 %5160, %v1904
        %v5162 = vpop.permute.xlu0 %5161
        %5164 = vset.pattern.permute.xlu0 18
        %5165 = vperm.xlu0 %5164, %v1905
        %v5166 = vpop.permute.xlu0 %5165
        %5168 = vset.pattern.permute.xlu0 18
        %5169 = vperm.xlu0 %5168, %v1906
        %v5170 = vpop.permute.xlu0 %5169
        %5172 = vset.pattern.permute.xlu0 18
        %5173 = vperm.xlu0 %5172, %v1907
        %v5174 = vpop.permute.xlu0 %5173
        %5176 = vset.pattern.permute.xlu0 18
        %5177 = vperm.xlu0 %5176, %v1908
        %v5178 = vpop.permute.xlu0 %5177
        %5180 = vset.pattern.permute.xlu0 18
        %5181 = vperm.xlu0 %5180, %v1909
        %v5182 = vpop.permute.xlu0 %5181
        %5184 = vset.pattern.permute.xlu0 18
        %5185 = vperm.xlu0 %5184, %v1910
        %v5186 = vpop.permute.xlu0 %5185
        %5188 = vset.pattern.permute.xlu0 18
        %5189 = vperm.xlu0 %5188, %v1911
        %v5190 = vpop.permute.xlu0 %5189
        %5192 = vset.pattern.permute.xlu0 18
        %5193 = vperm.xlu0 %5192, %v1912
        %v5194 = vpop.permute.xlu0 %5193
        %v5204 = vrot.slane %v4948, 3
        %v5205 = vrot.slane %v4741, 3
        %v5206 = vsel %vm2550, %v5204, %v5205
        %v5207 = vrot.slane %v5124, 3
        %v5208 = vsel %vm2550, %v5205, %v5207
        %v5209 = vrot.slane %v4949, 3
        %v5210 = vrot.slane %v4744, 3
        %v5211 = vsel %vm2550, %v5209, %v5210
        %v5212 = vrot.slane %v5125, 3
        %v5213 = vsel %vm2550, %v5210, %v5212
        %v5214 = vrot.slane %v4950, 3
        %v5215 = vrot.slane %v4747, 3
        %v5216 = vsel %vm2550, %v5214, %v5215
        %v5217 = vrot.slane %v5126, 3
        %v5218 = vsel %vm2550, %v5215, %v5217
        %v5219 = vrot.slane %v4951, 3
        %v5220 = vrot.slane %v4750, 3
        %v5221 = vsel %vm2550, %v5219, %v5220
        %v5222 = vrot.slane %v5127, 3
        %v5223 = vsel %vm2550, %v5220, %v5222
        %v5224 = vrot.slane %v4952, 3
        %v5225 = vrot.slane %v4753, 3
        %v5226 = vsel %vm2550, %v5224, %v5225
        %v5227 = vrot.slane %v5128, 3
        %v5228 = vsel %vm2550, %v5225, %v5227
        %v5229 = vrot.slane %v4953, 3
        %v5230 = vrot.slane %v4756, 3
        %v5231 = vsel %vm2550, %v5229, %v5230
        %v5232 = vrot.slane %v5129, 3
        %v5233 = vsel %vm2550, %v5230, %v5232
        %v5234 = vrot.slane %v4954, 3
        %v5235 = vrot.slane %v4759, 3
        %v5236 = vsel %vm2550, %v5234, %v5235
        %v5237 = vrot.slane %v5130, 3
        %v5238 = vsel %vm2550, %v5235, %v5237
        %v5239 = vrot.slane %v4955, 3
        %v5240 = vrot.slane %v4762, 3
        %v5241 = vsel %vm2550, %v5239, %v5240
        %v5242 = vrot.slane %v5131, 3
        %v5243 = vsel %vm2550, %v5240, %v5242
        %v5260 = vmul.f32 %v5134, %v5206
        %v5261 = vmul.f32 %v5138, %v5208
        %v5262 = vmul.f32 %v5142, %v5211
        %v5263 = vmul.f32 %v5146, %v5213
        %v5264 = vmul.f32 %v5150, %v5216
        %v5265 = vmul.f32 %v5154, %v5218
        %v5266 = vmul.f32 %v5158, %v5221
        %v5267 = vmul.f32 %v5162, %v5223
        %v5268 = vmul.f32 %v5166, %v5226
        %v5269 = vmul.f32 %v5170, %v5228
        %v5270 = vmul.f32 %v5174, %v5231
        %v5271 = vmul.f32 %v5178, %v5233
        %v5272 = vmul.f32 %v5182, %v5236
        %v5273 = vmul.f32 %v5186, %v5238
        %v5274 = vmul.f32 %v5190, %v5241
        %v5275 = vmul.f32 %v5194, %v5243
        %v5276 = vadd.f32 %v5100, %v5260
        %v5277 = vadd.f32 %v5101, %v5261
        %v5278 = vadd.f32 %v5102, %v5262
        %v5279 = vadd.f32 %v5103, %v5263
        %v5280 = vadd.f32 %v5104, %v5264
        %v5281 = vadd.f32 %v5105, %v5265
        %v5282 = vadd.f32 %v5106, %v5266
        %v5283 = vadd.f32 %v5107, %v5267
        %v5284 = vadd.f32 %v5108, %v5268
        %v5285 = vadd.f32 %v5109, %v5269
        %v5286 = vadd.f32 %v5110, %v5270
        %v5287 = vadd.f32 %v5111, %v5271
        %v5288 = vadd.f32 %v5112, %v5272
        %v5289 = vadd.f32 %v5113, %v5273
        %v5290 = vadd.f32 %v5114, %v5274
        %v5291 = vadd.f32 %v5115, %v5275
        %v5292 = vld [vmem:[%s4587] sm:$0xc]
        %v5293 = vld [vmem:[%s4587 + $0xc] sm:$0xc]
        %v5294 = vld [vmem:[%s4587 + $0x18] sm:$0xc]
        %v5295 = vld [vmem:[%s4587 + $0x24] sm:$0xc]
        %v5296 = vld [vmem:[%s4587 + $0x30] sm:$0xc]
        %v5297 = vld [vmem:[%s4587 + $0x3c] sm:$0xc]
        %v5298 = vld [vmem:[%s4587 + $0x48] sm:$0xc]
        %v5299 = vld [vmem:[%s4587 + $0x54] sm:$0xc]
        %v5300 = vunpack.c.l.bf16 %v5292
        %v5301 = vunpack.c.l.bf16 %v5293
        %v5302 = vunpack.c.l.bf16 %v5294
        %v5303 = vunpack.c.l.bf16 %v5295
        %v5304 = vunpack.c.l.bf16 %v5296
        %v5305 = vunpack.c.l.bf16 %v5297
        %v5306 = vunpack.c.l.bf16 %v5298
        %v5307 = vunpack.c.l.bf16 %v5299
        %5308 = vset.pattern.permute.xlu0 19
        %5309 = vperm.xlu0 %5308, %v1897
        %v5310 = vpop.permute.xlu0 %5309
        %5312 = vset.pattern.permute.xlu0 19
        %5313 = vperm.xlu0 %5312, %v1898
        %v5314 = vpop.permute.xlu0 %5313
        %5316 = vset.pattern.permute.xlu0 19
        %5317 = vperm.xlu0 %5316, %v1899
        %v5318 = vpop.permute.xlu0 %5317
        %5320 = vset.pattern.permute.xlu0 19
        %5321 = vperm.xlu0 %5320, %v1900
        %v5322 = vpop.permute.xlu0 %5321
        %5324 = vset.pattern.permute.xlu0 19
        %5325 = vperm.xlu0 %5324, %v1901
        %v5326 = vpop.permute.xlu0 %5325
        %5328 = vset.pattern.permute.xlu0 19
        %5329 = vperm.xlu0 %5328, %v1902
        %v5330 = vpop.permute.xlu0 %5329
        %5332 = vset.pattern.permute.xlu0 19
        %5333 = vperm.xlu0 %5332, %v1903
        %v5334 = vpop.permute.xlu0 %5333
        %5336 = vset.pattern.permute.xlu0 19
        %5337 = vperm.xlu0 %5336, %v1904
        %v5338 = vpop.permute.xlu0 %5337
        %5340 = vset.pattern.permute.xlu0 19
        %5341 = vperm.xlu0 %5340, %v1905
        %v5342 = vpop.permute.xlu0 %5341
        %5344 = vset.pattern.permute.xlu0 19
        %5345 = vperm.xlu0 %5344, %v1906
        %v5346 = vpop.permute.xlu0 %5345
        %5348 = vset.pattern.permute.xlu0 19
        %5349 = vperm.xlu0 %5348, %v1907
        %v5350 = vpop.permute.xlu0 %5349
        %5352 = vset.pattern.permute.xlu0 19
        %5353 = vperm.xlu0 %5352, %v1908
        %v5354 = vpop.permute.xlu0 %5353
        %5356 = vset.pattern.permute.xlu0 19
        %5357 = vperm.xlu0 %5356, %v1909
        %v5358 = vpop.permute.xlu0 %5357
        %5360 = vset.pattern.permute.xlu0 19
        %5361 = vperm.xlu0 %5360, %v1910
        %v5362 = vpop.permute.xlu0 %5361
        %5364 = vset.pattern.permute.xlu0 19
        %5365 = vperm.xlu0 %5364, %v1911
        %v5366 = vpop.permute.xlu0 %5365
        %5368 = vset.pattern.permute.xlu0 19
        %5369 = vperm.xlu0 %5368, %v1912
        %v5370 = vpop.permute.xlu0 %5369
        %v5380 = vrot.slane %v5300, 4
        %v5381 = vrot.slane %v4741, 4
        %v5382 = vsel %vm2727, %v5380, %v5381
        %v5383 = vrot.slane %v5124, 4
        %v5384 = vsel %vm2727, %v5381, %v5383
        %v5385 = vrot.slane %v5301, 4
        %v5386 = vrot.slane %v4744, 4
        %v5387 = vsel %vm2727, %v5385, %v5386
        %v5388 = vrot.slane %v5125, 4
        %v5389 = vsel %vm2727, %v5386, %v5388
        %v5390 = vrot.slane %v5302, 4
        %v5391 = vrot.slane %v4747, 4
        %v5392 = vsel %vm2727, %v5390, %v5391
        %v5393 = vrot.slane %v5126, 4
        %v5394 = vsel %vm2727, %v5391, %v5393
        %v5395 = vrot.slane %v5303, 4
        %v5396 = vrot.slane %v4750, 4
        %v5397 = vsel %vm2727, %v5395, %v5396
        %v5398 = vrot.slane %v5127, 4
        %v5399 = vsel %vm2727, %v5396, %v5398
        %v5400 = vrot.slane %v5304, 4
        %v5401 = vrot.slane %v4753, 4
        %v5402 = vsel %vm2727, %v5400, %v5401
        %v5403 = vrot.slane %v5128, 4
        %v5404 = vsel %vm2727, %v5401, %v5403
        %v5405 = vrot.slane %v5305, 4
        %v5406 = vrot.slane %v4756, 4
        %v5407 = vsel %vm2727, %v5405, %v5406
        %v5408 = vrot.slane %v5129, 4
        %v5409 = vsel %vm2727, %v5406, %v5408
        %v5410 = vrot.slane %v5306, 4
        %v5411 = vrot.slane %v4759, 4
        %v5412 = vsel %vm2727, %v5410, %v5411
        %v5413 = vrot.slane %v5130, 4
        %v5414 = vsel %vm2727, %v5411, %v5413
        %v5415 = vrot.slane %v5307, 4
        %v5416 = vrot.slane %v4762, 4
        %v5417 = vsel %vm2727, %v5415, %v5416
        %v5418 = vrot.slane %v5131, 4
        %v5419 = vsel %vm2727, %v5416, %v5418
        %v5436 = vmul.f32 %v5310, %v5382
        %v5437 = vmul.f32 %v5314, %v5384
        %v5438 = vmul.f32 %v5318, %v5387
        %v5439 = vmul.f32 %v5322, %v5389
        %v5440 = vmul.f32 %v5326, %v5392
        %v5441 = vmul.f32 %v5330, %v5394
        %v5442 = vmul.f32 %v5334, %v5397
        %v5443 = vmul.f32 %v5338, %v5399
        %v5444 = vmul.f32 %v5342, %v5402
        %v5445 = vmul.f32 %v5346, %v5404
        %v5446 = vmul.f32 %v5350, %v5407
        %v5447 = vmul.f32 %v5354, %v5409
        %v5448 = vmul.f32 %v5358, %v5412
        %v5449 = vmul.f32 %v5362, %v5414
        %v5450 = vmul.f32 %v5366, %v5417
        %v5451 = vmul.f32 %v5370, %v5419
        %v5452 = vadd.f32 %v5276, %v5436
        %v5453 = vadd.f32 %v5277, %v5437
        %v5454 = vadd.f32 %v5278, %v5438
        %v5455 = vadd.f32 %v5279, %v5439
        %v5456 = vadd.f32 %v5280, %v5440
        %v5457 = vadd.f32 %v5281, %v5441
        %v5458 = vadd.f32 %v5282, %v5442
        %v5459 = vadd.f32 %v5283, %v5443
        %v5460 = vadd.f32 %v5284, %v5444
        %v5461 = vadd.f32 %v5285, %v5445
        %v5462 = vadd.f32 %v5286, %v5446
        %v5463 = vadd.f32 %v5287, %v5447
        %v5464 = vadd.f32 %v5288, %v5448
        %v5465 = vadd.f32 %v5289, %v5449
        %v5466 = vadd.f32 %v5290, %v5450
        %v5467 = vadd.f32 %v5291, %v5451
        %s5468 = sadd.s32 %s1892, 4
        %s5469 = smul.u32 %s5468, 3
        %s5470 = smul.addr %s5469, 4
        %s5471 = scalar_lea.vmem %s204, %s5470
        %v5472 = vld [vmem:[%s5471] sm:$0xf]
        %v5473 = vld [vmem:[%s5471 + $0x4] sm:$0xf]
        %v5474 = vld [vmem:[%s5471 + $0xc] sm:$0xf]
        %v5475 = vld [vmem:[%s5471 + $0x10] sm:$0xf]
        %v5476 = vld [vmem:[%s5471 + $0x18] sm:$0xf]
        %v5477 = vld [vmem:[%s5471 + $0x1c] sm:$0xf]
        %v5478 = vld [vmem:[%s5471 + $0x24] sm:$0xf]
        %v5479 = vld [vmem:[%s5471 + $0x28] sm:$0xf]
        %v5480 = vld [vmem:[%s5471 + $0x30] sm:$0xf]
        %v5481 = vld [vmem:[%s5471 + $0x34] sm:$0xf]
        %v5482 = vld [vmem:[%s5471 + $0x3c] sm:$0xf]
        %v5483 = vld [vmem:[%s5471 + $0x40] sm:$0xf]
        %v5484 = vld [vmem:[%s5471 + $0x48] sm:$0xf]
        %v5485 = vld [vmem:[%s5471 + $0x4c] sm:$0xf]
        %v5486 = vld [vmem:[%s5471 + $0x54] sm:$0xf]
        %v5487 = vld [vmem:[%s5471 + $0x58] sm:$0xf]
        %v5488 = vunpack.c.l.bf16 %v5472
        %v5489 = vunpack.c.l.bf16 %v5473
        %v5490 = vunpack.c.l.bf16 %v5474
        %v5491 = vunpack.c.l.bf16 %v5475
        %v5492 = vunpack.c.l.bf16 %v5476
        %v5493 = vunpack.c.l.bf16 %v5477
        %v5494 = vunpack.c.l.bf16 %v5478
        %v5495 = vunpack.c.l.bf16 %v5479
        %v5496 = vunpack.c.l.bf16 %v5480
        %v5497 = vunpack.c.l.bf16 %v5481
        %v5498 = vunpack.c.l.bf16 %v5482
        %v5499 = vunpack.c.l.bf16 %v5483
        %v5500 = vunpack.c.l.bf16 %v5484
        %v5501 = vunpack.c.l.bf16 %v5485
        %v5502 = vunpack.c.l.bf16 %v5486
        %v5503 = vunpack.c.l.bf16 %v5487
        %5504 = vset.pattern.permute.xlu0 20
        %5505 = vperm.xlu0 %5504, %v1897
        %v5506 = vpop.permute.xlu0 %5505
        %5508 = vset.pattern.permute.xlu0 20
        %5509 = vperm.xlu0 %5508, %v1898
        %v5510 = vpop.permute.xlu0 %5509
        %5512 = vset.pattern.permute.xlu0 20
        %5513 = vperm.xlu0 %5512, %v1899
        %v5514 = vpop.permute.xlu0 %5513
        %5516 = vset.pattern.permute.xlu0 20
        %5517 = vperm.xlu0 %5516, %v1900
        %v5518 = vpop.permute.xlu0 %5517
        %5520 = vset.pattern.permute.xlu0 20
        %5521 = vperm.xlu0 %5520, %v1901
        %v5522 = vpop.permute.xlu0 %5521
        %5524 = vset.pattern.permute.xlu0 20
        %5525 = vperm.xlu0 %5524, %v1902
        %v5526 = vpop.permute.xlu0 %5525
        %5528 = vset.pattern.permute.xlu0 20
        %5529 = vperm.xlu0 %5528, %v1903
        %v5530 = vpop.permute.xlu0 %5529
        %5532 = vset.pattern.permute.xlu0 20
        %5533 = vperm.xlu0 %5532, %v1904
        %v5534 = vpop.permute.xlu0 %5533
        %5536 = vset.pattern.permute.xlu0 20
        %5537 = vperm.xlu0 %5536, %v1905
        %v5538 = vpop.permute.xlu0 %5537
        %5540 = vset.pattern.permute.xlu0 20
        %5541 = vperm.xlu0 %5540, %v1906
        %v5542 = vpop.permute.xlu0 %5541
        %5544 = vset.pattern.permute.xlu0 20
        %5545 = vperm.xlu0 %5544, %v1907
        %v5546 = vpop.permute.xlu0 %5545
        %5548 = vset.pattern.permute.xlu0 20
        %5549 = vperm.xlu0 %5548, %v1908
        %v5550 = vpop.permute.xlu0 %5549
        %5552 = vset.pattern.permute.xlu0 20
        %5553 = vperm.xlu0 %5552, %v1909
        %v5554 = vpop.permute.xlu0 %5553
        %5556 = vset.pattern.permute.xlu0 20
        %5557 = vperm.xlu0 %5556, %v1910
        %v5558 = vpop.permute.xlu0 %5557
        %5560 = vset.pattern.permute.xlu0 20
        %5561 = vperm.xlu0 %5560, %v1911
        %v5562 = vpop.permute.xlu0 %5561
        %5564 = vset.pattern.permute.xlu0 20
        %5565 = vperm.xlu0 %5564, %v1912
        %v5566 = vpop.permute.xlu0 %5565
        %v5568 = vmul.f32 %v5506, %v5488
        %v5569 = vmul.f32 %v5510, %v5489
        %v5570 = vmul.f32 %v5514, %v5490
        %v5571 = vmul.f32 %v5518, %v5491
        %v5572 = vmul.f32 %v5522, %v5492
        %v5573 = vmul.f32 %v5526, %v5493
        %v5574 = vmul.f32 %v5530, %v5494
        %v5575 = vmul.f32 %v5534, %v5495
        %v5576 = vmul.f32 %v5538, %v5496
        %v5577 = vmul.f32 %v5542, %v5497
        %v5578 = vmul.f32 %v5546, %v5498
        %v5579 = vmul.f32 %v5550, %v5499
        %v5580 = vmul.f32 %v5554, %v5500
        %v5581 = vmul.f32 %v5558, %v5501
        %v5582 = vmul.f32 %v5562, %v5502
        %v5583 = vmul.f32 %v5566, %v5503
        %v5584 = vadd.f32 %v5452, %v5568
        %v5585 = vadd.f32 %v5453, %v5569
        %v5586 = vadd.f32 %v5454, %v5570
        %v5587 = vadd.f32 %v5455, %v5571
        %v5588 = vadd.f32 %v5456, %v5572
        %v5589 = vadd.f32 %v5457, %v5573
        %v5590 = vadd.f32 %v5458, %v5574
        %v5591 = vadd.f32 %v5459, %v5575
        %v5592 = vadd.f32 %v5460, %v5576
        %v5593 = vadd.f32 %v5461, %v5577
        %v5594 = vadd.f32 %v5462, %v5578
        %v5595 = vadd.f32 %v5463, %v5579
        %v5596 = vadd.f32 %v5464, %v5580
        %v5597 = vadd.f32 %v5465, %v5581
        %v5598 = vadd.f32 %v5466, %v5582
        %v5599 = vadd.f32 %v5467, %v5583
        %v5600 = vld [vmem:[%s5471] sm:$0xf]
        %v5601 = vld [vmem:[%s5471 + $0x4] sm:$0xf]
        %v5602 = vld [vmem:[%s5471 + $0x8] sm:$0x1]
        %v5603 = vld [vmem:[%s5471 + $0xc] sm:$0xf]
        %v5604 = vld [vmem:[%s5471 + $0x10] sm:$0xf]
        %v5605 = vld [vmem:[%s5471 + $0x14] sm:$0x1]
        %v5606 = vld [vmem:[%s5471 + $0x18] sm:$0xf]
        %v5607 = vld [vmem:[%s5471 + $0x1c] sm:$0xf]
        %v5608 = vld [vmem:[%s5471 + $0x20] sm:$0x1]
        %v5609 = vld [vmem:[%s5471 + $0x24] sm:$0xf]
        %v5610 = vld [vmem:[%s5471 + $0x28] sm:$0xf]
        %v5611 = vld [vmem:[%s5471 + $0x2c] sm:$0x1]
        %v5612 = vld [vmem:[%s5471 + $0x30] sm:$0xf]
        %v5613 = vld [vmem:[%s5471 + $0x34] sm:$0xf]
        %v5614 = vld [vmem:[%s5471 + $0x38] sm:$0x1]
        %v5615 = vld [vmem:[%s5471 + $0x3c] sm:$0xf]
        %v5616 = vld [vmem:[%s5471 + $0x40] sm:$0xf]
        %v5617 = vld [vmem:[%s5471 + $0x44] sm:$0x1]
        %v5618 = vld [vmem:[%s5471 + $0x48] sm:$0xf]
        %v5619 = vld [vmem:[%s5471 + $0x4c] sm:$0xf]
        %v5620 = vld [vmem:[%s5471 + $0x50] sm:$0x1]
        %v5621 = vld [vmem:[%s5471 + $0x54] sm:$0xf]
        %v5622 = vld [vmem:[%s5471 + $0x58] sm:$0xf]
        %v5623 = vld [vmem:[%s5471 + $0x5c] sm:$0x1]
        %v5624 = vunpack.c.l.bf16 %v5600
        %v5625 = vunpack.c.l.bf16 %v5601
        %v5626 = vunpack.c.l.bf16 %v5602
        %v5627 = vunpack.c.l.bf16 %v5603
        %v5628 = vunpack.c.l.bf16 %v5604
        %v5629 = vunpack.c.l.bf16 %v5605
        %v5630 = vunpack.c.l.bf16 %v5606
        %v5631 = vunpack.c.l.bf16 %v5607
        %v5632 = vunpack.c.l.bf16 %v5608
        %v5633 = vunpack.c.l.bf16 %v5609
        %v5634 = vunpack.c.l.bf16 %v5610
        %v5635 = vunpack.c.l.bf16 %v5611
        %v5636 = vunpack.c.l.bf16 %v5612
        %v5637 = vunpack.c.l.bf16 %v5613
        %v5638 = vunpack.c.l.bf16 %v5614
        %v5639 = vunpack.c.l.bf16 %v5615
        %v5640 = vunpack.c.l.bf16 %v5616
        %v5641 = vunpack.c.l.bf16 %v5617
        %v5642 = vunpack.c.l.bf16 %v5618
        %v5643 = vunpack.c.l.bf16 %v5619
        %v5644 = vunpack.c.l.bf16 %v5620
        %v5645 = vunpack.c.l.bf16 %v5621
        %v5646 = vunpack.c.l.bf16 %v5622
        %v5647 = vunpack.c.l.bf16 %v5623
        %5648 = vset.pattern.permute.xlu0 21
        %5649 = vperm.xlu0 %5648, %v1897
        %v5650 = vpop.permute.xlu0 %5649
        %5652 = vset.pattern.permute.xlu0 21
        %5653 = vperm.xlu0 %5652, %v1898
        %v5654 = vpop.permute.xlu0 %5653
        %5656 = vset.pattern.permute.xlu0 21
        %5657 = vperm.xlu0 %5656, %v1899
        %v5658 = vpop.permute.xlu0 %5657
        %5660 = vset.pattern.permute.xlu0 21
        %5661 = vperm.xlu0 %5660, %v1900
        %v5662 = vpop.permute.xlu0 %5661
        %5664 = vset.pattern.permute.xlu0 21
        %5665 = vperm.xlu0 %5664, %v1901
        %v5666 = vpop.permute.xlu0 %5665
        %5668 = vset.pattern.permute.xlu0 21
        %5669 = vperm.xlu0 %5668, %v1902
        %v5670 = vpop.permute.xlu0 %5669
        %5672 = vset.pattern.permute.xlu0 21
        %5673 = vperm.xlu0 %5672, %v1903
        %v5674 = vpop.permute.xlu0 %5673
        %5676 = vset.pattern.permute.xlu0 21
        %5677 = vperm.xlu0 %5676, %v1904
        %v5678 = vpop.permute.xlu0 %5677
        %5680 = vset.pattern.permute.xlu0 21
        %5681 = vperm.xlu0 %5680, %v1905
        %v5682 = vpop.permute.xlu0 %5681
        %5684 = vset.pattern.permute.xlu0 21
        %5685 = vperm.xlu0 %5684, %v1906
        %v5686 = vpop.permute.xlu0 %5685
        %5688 = vset.pattern.permute.xlu0 21
        %5689 = vperm.xlu0 %5688, %v1907
        %v5690 = vpop.permute.xlu0 %5689
        %5692 = vset.pattern.permute.xlu0 21
        %5693 = vperm.xlu0 %5692, %v1908
        %v5694 = vpop.permute.xlu0 %5693
        %5696 = vset.pattern.permute.xlu0 21
        %5697 = vperm.xlu0 %5696, %v1909
        %v5698 = vpop.permute.xlu0 %5697
        %5700 = vset.pattern.permute.xlu0 21
        %5701 = vperm.xlu0 %5700, %v1910
        %v5702 = vpop.permute.xlu0 %5701
        %5704 = vset.pattern.permute.xlu0 21
        %5705 = vperm.xlu0 %5704, %v1911
        %v5706 = vpop.permute.xlu0 %5705
        %5708 = vset.pattern.permute.xlu0 21
        %5709 = vperm.xlu0 %5708, %v1912
        %v5710 = vpop.permute.xlu0 %5709
        %v5736 = vrot.slane %v5624, 1
        %v5737 = vrot.slane %v5625, 1
        %v5738 = vsel %vm2196, %v5736, %v5737
        %v5739 = vrot.slane %v5626, 1
        %v5740 = vsel %vm2196, %v5737, %v5739
        %v5741 = vrot.slane %v5627, 1
        %v5742 = vrot.slane %v5628, 1
        %v5743 = vsel %vm2196, %v5741, %v5742
        %v5744 = vrot.slane %v5629, 1
        %v5745 = vsel %vm2196, %v5742, %v5744
        %v5746 = vrot.slane %v5630, 1
        %v5747 = vrot.slane %v5631, 1
        %v5748 = vsel %vm2196, %v5746, %v5747
        %v5749 = vrot.slane %v5632, 1
        %v5750 = vsel %vm2196, %v5747, %v5749
        %v5751 = vrot.slane %v5633, 1
        %v5752 = vrot.slane %v5634, 1
        %v5753 = vsel %vm2196, %v5751, %v5752
        %v5754 = vrot.slane %v5635, 1
        %v5755 = vsel %vm2196, %v5752, %v5754
        %v5756 = vrot.slane %v5636, 1
        %v5757 = vrot.slane %v5637, 1
        %v5758 = vsel %vm2196, %v5756, %v5757
        %v5759 = vrot.slane %v5638, 1
        %v5760 = vsel %vm2196, %v5757, %v5759
        %v5761 = vrot.slane %v5639, 1
        %v5762 = vrot.slane %v5640, 1
        %v5763 = vsel %vm2196, %v5761, %v5762
        %v5764 = vrot.slane %v5641, 1
        %v5765 = vsel %vm2196, %v5762, %v5764
        %v5766 = vrot.slane %v5642, 1
        %v5767 = vrot.slane %v5643, 1
        %v5768 = vsel %vm2196, %v5766, %v5767
        %v5769 = vrot.slane %v5644, 1
        %v5770 = vsel %vm2196, %v5767, %v5769
        %v5771 = vrot.slane %v5645, 1
        %v5772 = vrot.slane %v5646, 1
        %v5773 = vsel %vm2196, %v5771, %v5772
        %v5774 = vrot.slane %v5647, 1
        %v5775 = vsel %vm2196, %v5772, %v5774
        %v5792 = vmul.f32 %v5650, %v5738
        %v5793 = vmul.f32 %v5654, %v5740
        %v5794 = vmul.f32 %v5658, %v5743
        %v5795 = vmul.f32 %v5662, %v5745
        %v5796 = vmul.f32 %v5666, %v5748
        %v5797 = vmul.f32 %v5670, %v5750
        %v5798 = vmul.f32 %v5674, %v5753
        %v5799 = vmul.f32 %v5678, %v5755
        %v5800 = vmul.f32 %v5682, %v5758
        %v5801 = vmul.f32 %v5686, %v5760
        %v5802 = vmul.f32 %v5690, %v5763
        %v5803 = vmul.f32 %v5694, %v5765
        %v5804 = vmul.f32 %v5698, %v5768
        %v5805 = vmul.f32 %v5702, %v5770
        %v5806 = vmul.f32 %v5706, %v5773
        %v5807 = vmul.f32 %v5710, %v5775
        %v5808 = vadd.f32 %v5584, %v5792
        %v5809 = vadd.f32 %v5585, %v5793
        %v5810 = vadd.f32 %v5586, %v5794
        %v5811 = vadd.f32 %v5587, %v5795
        %v5812 = vadd.f32 %v5588, %v5796
        %v5813 = vadd.f32 %v5589, %v5797
        %v5814 = vadd.f32 %v5590, %v5798
        %v5815 = vadd.f32 %v5591, %v5799
        %v5816 = vadd.f32 %v5592, %v5800
        %v5817 = vadd.f32 %v5593, %v5801
        %v5818 = vadd.f32 %v5594, %v5802
        %v5819 = vadd.f32 %v5595, %v5803
        %v5820 = vadd.f32 %v5596, %v5804
        %v5821 = vadd.f32 %v5597, %v5805
        %v5822 = vadd.f32 %v5598, %v5806
        %v5823 = vadd.f32 %v5599, %v5807
        %v5824 = vld [vmem:[%s5471] sm:$0xe]
        %v5825 = vld [vmem:[%s5471 + $0xc] sm:$0xe]
        %v5826 = vld [vmem:[%s5471 + $0x18] sm:$0xe]
        %v5827 = vld [vmem:[%s5471 + $0x24] sm:$0xe]
        %v5828 = vld [vmem:[%s5471 + $0x30] sm:$0xe]
        %v5829 = vld [vmem:[%s5471 + $0x3c] sm:$0xe]
        %v5830 = vld [vmem:[%s5471 + $0x48] sm:$0xe]
        %v5831 = vld [vmem:[%s5471 + $0x54] sm:$0xe]
        %v5832 = vunpack.c.l.bf16 %v5824
        %v5833 = vunpack.c.l.bf16 %v5825
        %v5834 = vunpack.c.l.bf16 %v5826
        %v5835 = vunpack.c.l.bf16 %v5827
        %v5836 = vunpack.c.l.bf16 %v5828
        %v5837 = vunpack.c.l.bf16 %v5829
        %v5838 = vunpack.c.l.bf16 %v5830
        %v5839 = vunpack.c.l.bf16 %v5831
        %5840 = vset.pattern.permute.xlu0 22
        %5841 = vperm.xlu0 %5840, %v1897
        %v5842 = vpop.permute.xlu0 %5841
        %5844 = vset.pattern.permute.xlu0 22
        %5845 = vperm.xlu0 %5844, %v1898
        %v5846 = vpop.permute.xlu0 %5845
        %5848 = vset.pattern.permute.xlu0 22
        %5849 = vperm.xlu0 %5848, %v1899
        %v5850 = vpop.permute.xlu0 %5849
        %5852 = vset.pattern.permute.xlu0 22
        %5853 = vperm.xlu0 %5852, %v1900
        %v5854 = vpop.permute.xlu0 %5853
        %5856 = vset.pattern.permute.xlu0 22
        %5857 = vperm.xlu0 %5856, %v1901
        %v5858 = vpop.permute.xlu0 %5857
        %5860 = vset.pattern.permute.xlu0 22
        %5861 = vperm.xlu0 %5860, %v1902
        %v5862 = vpop.permute.xlu0 %5861
        %5864 = vset.pattern.permute.xlu0 22
        %5865 = vperm.xlu0 %5864, %v1903
        %v5866 = vpop.permute.xlu0 %5865
        %5868 = vset.pattern.permute.xlu0 22
        %5869 = vperm.xlu0 %5868, %v1904
        %v5870 = vpop.permute.xlu0 %5869
        %5872 = vset.pattern.permute.xlu0 22
        %5873 = vperm.xlu0 %5872, %v1905
        %v5874 = vpop.permute.xlu0 %5873
        %5876 = vset.pattern.permute.xlu0 22
        %5877 = vperm.xlu0 %5876, %v1906
        %v5878 = vpop.permute.xlu0 %5877
        %5880 = vset.pattern.permute.xlu0 22
        %5881 = vperm.xlu0 %5880, %v1907
        %v5882 = vpop.permute.xlu0 %5881
        %5884 = vset.pattern.permute.xlu0 22
        %5885 = vperm.xlu0 %5884, %v1908
        %v5886 = vpop.permute.xlu0 %5885
        %5888 = vset.pattern.permute.xlu0 22
        %5889 = vperm.xlu0 %5888, %v1909
        %v5890 = vpop.permute.xlu0 %5889
        %5892 = vset.pattern.permute.xlu0 22
        %5893 = vperm.xlu0 %5892, %v1910
        %v5894 = vpop.permute.xlu0 %5893
        %5896 = vset.pattern.permute.xlu0 22
        %5897 = vperm.xlu0 %5896, %v1911
        %v5898 = vpop.permute.xlu0 %5897
        %5900 = vset.pattern.permute.xlu0 22
        %5901 = vperm.xlu0 %5900, %v1912
        %v5902 = vpop.permute.xlu0 %5901
        %v5912 = vrot.slane %v5832, 2
        %v5913 = vrot.slane %v5625, 2
        %v5914 = vsel %vm2373, %v5912, %v5913
        %v5915 = vrot.slane %v5626, 2
        %v5916 = vsel %vm2373, %v5913, %v5915
        %v5917 = vrot.slane %v5833, 2
        %v5918 = vrot.slane %v5628, 2
        %v5919 = vsel %vm2373, %v5917, %v5918
        %v5920 = vrot.slane %v5629, 2
        %v5921 = vsel %vm2373, %v5918, %v5920
        %v5922 = vrot.slane %v5834, 2
        %v5923 = vrot.slane %v5631, 2
        %v5924 = vsel %vm2373, %v5922, %v5923
        %v5925 = vrot.slane %v5632, 2
        %v5926 = vsel %vm2373, %v5923, %v5925
        %v5927 = vrot.slane %v5835, 2
        %v5928 = vrot.slane %v5634, 2
        %v5929 = vsel %vm2373, %v5927, %v5928
        %v5930 = vrot.slane %v5635, 2
        %v5931 = vsel %vm2373, %v5928, %v5930
        %v5932 = vrot.slane %v5836, 2
        %v5933 = vrot.slane %v5637, 2
        %v5934 = vsel %vm2373, %v5932, %v5933
        %v5935 = vrot.slane %v5638, 2
        %v5936 = vsel %vm2373, %v5933, %v5935
        %v5937 = vrot.slane %v5837, 2
        %v5938 = vrot.slane %v5640, 2
        %v5939 = vsel %vm2373, %v5937, %v5938
        %v5940 = vrot.slane %v5641, 2
        %v5941 = vsel %vm2373, %v5938, %v5940
        %v5942 = vrot.slane %v5838, 2
        %v5943 = vrot.slane %v5643, 2
        %v5944 = vsel %vm2373, %v5942, %v5943
        %v5945 = vrot.slane %v5644, 2
        %v5946 = vsel %vm2373, %v5943, %v5945
        %v5947 = vrot.slane %v5839, 2
        %v5948 = vrot.slane %v5646, 2
        %v5949 = vsel %vm2373, %v5947, %v5948
        %v5950 = vrot.slane %v5647, 2
        %v5951 = vsel %vm2373, %v5948, %v5950
        %v5968 = vmul.f32 %v5842, %v5914
        %v5969 = vmul.f32 %v5846, %v5916
        %v5970 = vmul.f32 %v5850, %v5919
        %v5971 = vmul.f32 %v5854, %v5921
        %v5972 = vmul.f32 %v5858, %v5924
        %v5973 = vmul.f32 %v5862, %v5926
        %v5974 = vmul.f32 %v5866, %v5929
        %v5975 = vmul.f32 %v5870, %v5931
        %v5976 = vmul.f32 %v5874, %v5934
        %v5977 = vmul.f32 %v5878, %v5936
        %v5978 = vmul.f32 %v5882, %v5939
        %v5979 = vmul.f32 %v5886, %v5941
        %v5980 = vmul.f32 %v5890, %v5944
        %v5981 = vmul.f32 %v5894, %v5946
        %v5982 = vmul.f32 %v5898, %v5949
        %v5983 = vmul.f32 %v5902, %v5951
        %v5984 = vadd.f32 %v5808, %v5968
        %v5985 = vadd.f32 %v5809, %v5969
        %v5986 = vadd.f32 %v5810, %v5970
        %v5987 = vadd.f32 %v5811, %v5971
        %v5988 = vadd.f32 %v5812, %v5972
        %v5989 = vadd.f32 %v5813, %v5973
        %v5990 = vadd.f32 %v5814, %v5974
        %v5991 = vadd.f32 %v5815, %v5975
        %v5992 = vadd.f32 %v5816, %v5976
        %v5993 = vadd.f32 %v5817, %v5977
        %v5994 = vadd.f32 %v5818, %v5978
        %v5995 = vadd.f32 %v5819, %v5979
        %v5996 = vadd.f32 %v5820, %v5980
        %v5997 = vadd.f32 %v5821, %v5981
        %v5998 = vadd.f32 %v5822, %v5982
        %v5999 = vadd.f32 %v5823, %v5983
        %v6000 = vld [vmem:[%s5471 + $0x8] sm:$0x3]
        %v6001 = vld [vmem:[%s5471 + $0x14] sm:$0x3]
        %v6002 = vld [vmem:[%s5471 + $0x20] sm:$0x3]
        %v6003 = vld [vmem:[%s5471 + $0x2c] sm:$0x3]
        %v6004 = vld [vmem:[%s5471 + $0x38] sm:$0x3]
        %v6005 = vld [vmem:[%s5471 + $0x44] sm:$0x3]
        %v6006 = vld [vmem:[%s5471 + $0x50] sm:$0x3]
        %v6007 = vld [vmem:[%s5471 + $0x5c] sm:$0x3]
        %v6008 = vunpack.c.l.bf16 %v6000
        %v6009 = vunpack.c.l.bf16 %v6001
        %v6010 = vunpack.c.l.bf16 %v6002
        %v6011 = vunpack.c.l.bf16 %v6003
        %v6012 = vunpack.c.l.bf16 %v6004
        %v6013 = vunpack.c.l.bf16 %v6005
        %v6014 = vunpack.c.l.bf16 %v6006
        %v6015 = vunpack.c.l.bf16 %v6007
        %6016 = vset.pattern.permute.xlu0 23
        %6017 = vperm.xlu0 %6016, %v1897
        %v6018 = vpop.permute.xlu0 %6017
        %6020 = vset.pattern.permute.xlu0 23
        %6021 = vperm.xlu0 %6020, %v1898
        %v6022 = vpop.permute.xlu0 %6021
        %6024 = vset.pattern.permute.xlu0 23
        %6025 = vperm.xlu0 %6024, %v1899
        %v6026 = vpop.permute.xlu0 %6025
        %6028 = vset.pattern.permute.xlu0 23
        %6029 = vperm.xlu0 %6028, %v1900
        %v6030 = vpop.permute.xlu0 %6029
        %6032 = vset.pattern.permute.xlu0 23
        %6033 = vperm.xlu0 %6032, %v1901
        %v6034 = vpop.permute.xlu0 %6033
        %6036 = vset.pattern.permute.xlu0 23
        %6037 = vperm.xlu0 %6036, %v1902
        %v6038 = vpop.permute.xlu0 %6037
        %6040 = vset.pattern.permute.xlu0 23
        %6041 = vperm.xlu0 %6040, %v1903
        %v6042 = vpop.permute.xlu0 %6041
        %6044 = vset.pattern.permute.xlu0 23
        %6045 = vperm.xlu0 %6044, %v1904
        %v6046 = vpop.permute.xlu0 %6045
        %6048 = vset.pattern.permute.xlu0 23
        %6049 = vperm.xlu0 %6048, %v1905
        %v6050 = vpop.permute.xlu0 %6049
        %6052 = vset.pattern.permute.xlu0 23
        %6053 = vperm.xlu0 %6052, %v1906
        %v6054 = vpop.permute.xlu0 %6053
        %6056 = vset.pattern.permute.xlu0 23
        %6057 = vperm.xlu0 %6056, %v1907
        %v6058 = vpop.permute.xlu0 %6057
        %6060 = vset.pattern.permute.xlu0 23
        %6061 = vperm.xlu0 %6060, %v1908
        %v6062 = vpop.permute.xlu0 %6061
        %6064 = vset.pattern.permute.xlu0 23
        %6065 = vperm.xlu0 %6064, %v1909
        %v6066 = vpop.permute.xlu0 %6065
        %6068 = vset.pattern.permute.xlu0 23
        %6069 = vperm.xlu0 %6068, %v1910
        %v6070 = vpop.permute.xlu0 %6069
        %6072 = vset.pattern.permute.xlu0 23
        %6073 = vperm.xlu0 %6072, %v1911
        %v6074 = vpop.permute.xlu0 %6073
        %6076 = vset.pattern.permute.xlu0 23
        %6077 = vperm.xlu0 %6076, %v1912
        %v6078 = vpop.permute.xlu0 %6077
        %v6088 = vrot.slane %v5832, 3
        %v6089 = vrot.slane %v5625, 3
        %v6090 = vsel %vm2550, %v6088, %v6089
        %v6091 = vrot.slane %v6008, 3
        %v6092 = vsel %vm2550, %v6089, %v6091
        %v6093 = vrot.slane %v5833, 3
        %v6094 = vrot.slane %v5628, 3
        %v6095 = vsel %vm2550, %v6093, %v6094
        %v6096 = vrot.slane %v6009, 3
        %v6097 = vsel %vm2550, %v6094, %v6096
        %v6098 = vrot.slane %v5834, 3
        %v6099 = vrot.slane %v5631, 3
        %v6100 = vsel %vm2550, %v6098, %v6099
        %v6101 = vrot.slane %v6010, 3
        %v6102 = vsel %vm2550, %v6099, %v6101
        %v6103 = vrot.slane %v5835, 3
        %v6104 = vrot.slane %v5634, 3
        %v6105 = vsel %vm2550, %v6103, %v6104
        %v6106 = vrot.slane %v6011, 3
        %v6107 = vsel %vm2550, %v6104, %v6106
        %v6108 = vrot.slane %v5836, 3
        %v6109 = vrot.slane %v5637, 3
        %v6110 = vsel %vm2550, %v6108, %v6109
        %v6111 = vrot.slane %v6012, 3
        %v6112 = vsel %vm2550, %v6109, %v6111
        %v6113 = vrot.slane %v5837, 3
        %v6114 = vrot.slane %v5640, 3
        %v6115 = vsel %vm2550, %v6113, %v6114
        %v6116 = vrot.slane %v6013, 3
        %v6117 = vsel %vm2550, %v6114, %v6116
        %v6118 = vrot.slane %v5838, 3
        %v6119 = vrot.slane %v5643, 3
        %v6120 = vsel %vm2550, %v6118, %v6119
        %v6121 = vrot.slane %v6014, 3
        %v6122 = vsel %vm2550, %v6119, %v6121
        %v6123 = vrot.slane %v5839, 3
        %v6124 = vrot.slane %v5646, 3
        %v6125 = vsel %vm2550, %v6123, %v6124
        %v6126 = vrot.slane %v6015, 3
        %v6127 = vsel %vm2550, %v6124, %v6126
        %v6144 = vmul.f32 %v6018, %v6090
        %v6145 = vmul.f32 %v6022, %v6092
        %v6146 = vmul.f32 %v6026, %v6095
        %v6147 = vmul.f32 %v6030, %v6097
        %v6148 = vmul.f32 %v6034, %v6100
        %v6149 = vmul.f32 %v6038, %v6102
        %v6150 = vmul.f32 %v6042, %v6105
        %v6151 = vmul.f32 %v6046, %v6107
        %v6152 = vmul.f32 %v6050, %v6110
        %v6153 = vmul.f32 %v6054, %v6112
        %v6154 = vmul.f32 %v6058, %v6115
        %v6155 = vmul.f32 %v6062, %v6117
        %v6156 = vmul.f32 %v6066, %v6120
        %v6157 = vmul.f32 %v6070, %v6122
        %v6158 = vmul.f32 %v6074, %v6125
        %v6159 = vmul.f32 %v6078, %v6127
        %v6160 = vadd.f32 %v5984, %v6144
        %v6161 = vadd.f32 %v5985, %v6145
        %v6162 = vadd.f32 %v5986, %v6146
        %v6163 = vadd.f32 %v5987, %v6147
        %v6164 = vadd.f32 %v5988, %v6148
        %v6165 = vadd.f32 %v5989, %v6149
        %v6166 = vadd.f32 %v5990, %v6150
        %v6167 = vadd.f32 %v5991, %v6151
        %v6168 = vadd.f32 %v5992, %v6152
        %v6169 = vadd.f32 %v5993, %v6153
        %v6170 = vadd.f32 %v5994, %v6154
        %v6171 = vadd.f32 %v5995, %v6155
        %v6172 = vadd.f32 %v5996, %v6156
        %v6173 = vadd.f32 %v5997, %v6157
        %v6174 = vadd.f32 %v5998, %v6158
        %v6175 = vadd.f32 %v5999, %v6159
        %v6176 = vld [vmem:[%s5471] sm:$0xc]
        %v6177 = vld [vmem:[%s5471 + $0xc] sm:$0xc]
        %v6178 = vld [vmem:[%s5471 + $0x18] sm:$0xc]
        %v6179 = vld [vmem:[%s5471 + $0x24] sm:$0xc]
        %v6180 = vld [vmem:[%s5471 + $0x30] sm:$0xc]
        %v6181 = vld [vmem:[%s5471 + $0x3c] sm:$0xc]
        %v6182 = vld [vmem:[%s5471 + $0x48] sm:$0xc]
        %v6183 = vld [vmem:[%s5471 + $0x54] sm:$0xc]
        %v6184 = vunpack.c.l.bf16 %v6176
        %v6185 = vunpack.c.l.bf16 %v6177
        %v6186 = vunpack.c.l.bf16 %v6178
        %v6187 = vunpack.c.l.bf16 %v6179
        %v6188 = vunpack.c.l.bf16 %v6180
        %v6189 = vunpack.c.l.bf16 %v6181
        %v6190 = vunpack.c.l.bf16 %v6182
        %v6191 = vunpack.c.l.bf16 %v6183
        %6192 = vset.pattern.permute.xlu0 24
        %6193 = vperm.xlu0 %6192, %v1897
        %v6194 = vpop.permute.xlu0 %6193
        %6196 = vset.pattern.permute.xlu0 24
        %6197 = vperm.xlu0 %6196, %v1898
        %v6198 = vpop.permute.xlu0 %6197
        %6200 = vset.pattern.permute.xlu0 24
        %6201 = vperm.xlu0 %6200, %v1899
        %v6202 = vpop.permute.xlu0 %6201
        %6204 = vset.pattern.permute.xlu0 24
        %6205 = vperm.xlu0 %6204, %v1900
        %v6206 = vpop.permute.xlu0 %6205
        %6208 = vset.pattern.permute.xlu0 24
        %6209 = vperm.xlu0 %6208, %v1901
        %v6210 = vpop.permute.xlu0 %6209
        %6212 = vset.pattern.permute.xlu0 24
        %6213 = vperm.xlu0 %6212, %v1902
        %v6214 = vpop.permute.xlu0 %6213
        %6216 = vset.pattern.permute.xlu0 24
        %6217 = vperm.xlu0 %6216, %v1903
        %v6218 = vpop.permute.xlu0 %6217
        %6220 = vset.pattern.permute.xlu0 24
        %6221 = vperm.xlu0 %6220, %v1904
        %v6222 = vpop.permute.xlu0 %6221
        %6224 = vset.pattern.permute.xlu0 24
        %6225 = vperm.xlu0 %6224, %v1905
        %v6226 = vpop.permute.xlu0 %6225
        %6228 = vset.pattern.permute.xlu0 24
        %6229 = vperm.xlu0 %6228, %v1906
        %v6230 = vpop.permute.xlu0 %6229
        %6232 = vset.pattern.permute.xlu0 24
        %6233 = vperm.xlu0 %6232, %v1907
        %v6234 = vpop.permute.xlu0 %6233
        %6236 = vset.pattern.permute.xlu0 24
        %6237 = vperm.xlu0 %6236, %v1908
        %v6238 = vpop.permute.xlu0 %6237
        %6240 = vset.pattern.permute.xlu0 24
        %6241 = vperm.xlu0 %6240, %v1909
        %v6242 = vpop.permute.xlu0 %6241
        %6244 = vset.pattern.permute.xlu0 24
        %6245 = vperm.xlu0 %6244, %v1910
        %v6246 = vpop.permute.xlu0 %6245
        %6248 = vset.pattern.permute.xlu0 24
        %6249 = vperm.xlu0 %6248, %v1911
        %v6250 = vpop.permute.xlu0 %6249
        %6252 = vset.pattern.permute.xlu0 24
        %6253 = vperm.xlu0 %6252, %v1912
        %v6254 = vpop.permute.xlu0 %6253
        %v6264 = vrot.slane %v6184, 4
        %v6265 = vrot.slane %v5625, 4
        %v6266 = vsel %vm2727, %v6264, %v6265
        %v6267 = vrot.slane %v6008, 4
        %v6268 = vsel %vm2727, %v6265, %v6267
        %v6269 = vrot.slane %v6185, 4
        %v6270 = vrot.slane %v5628, 4
        %v6271 = vsel %vm2727, %v6269, %v6270
        %v6272 = vrot.slane %v6009, 4
        %v6273 = vsel %vm2727, %v6270, %v6272
        %v6274 = vrot.slane %v6186, 4
        %v6275 = vrot.slane %v5631, 4
        %v6276 = vsel %vm2727, %v6274, %v6275
        %v6277 = vrot.slane %v6010, 4
        %v6278 = vsel %vm2727, %v6275, %v6277
        %v6279 = vrot.slane %v6187, 4
        %v6280 = vrot.slane %v5634, 4
        %v6281 = vsel %vm2727, %v6279, %v6280
        %v6282 = vrot.slane %v6011, 4
        %v6283 = vsel %vm2727, %v6280, %v6282
        %v6284 = vrot.slane %v6188, 4
        %v6285 = vrot.slane %v5637, 4
        %v6286 = vsel %vm2727, %v6284, %v6285
        %v6287 = vrot.slane %v6012, 4
        %v6288 = vsel %vm2727, %v6285, %v6287
        %v6289 = vrot.slane %v6189, 4
        %v6290 = vrot.slane %v5640, 4
        %v6291 = vsel %vm2727, %v6289, %v6290
        %v6292 = vrot.slane %v6013, 4
        %v6293 = vsel %vm2727, %v6290, %v6292
        %v6294 = vrot.slane %v6190, 4
        %v6295 = vrot.slane %v5643, 4
        %v6296 = vsel %vm2727, %v6294, %v6295
        %v6297 = vrot.slane %v6014, 4
        %v6298 = vsel %vm2727, %v6295, %v6297
        %v6299 = vrot.slane %v6191, 4
        %v6300 = vrot.slane %v5646, 4
        %v6301 = vsel %vm2727, %v6299, %v6300
        %v6302 = vrot.slane %v6015, 4
        %v6303 = vsel %vm2727, %v6300, %v6302
        %v6320 = vmul.f32 %v6194, %v6266
        %v6321 = vmul.f32 %v6198, %v6268
        %v6322 = vmul.f32 %v6202, %v6271
        %v6323 = vmul.f32 %v6206, %v6273
        %v6324 = vmul.f32 %v6210, %v6276
        %v6325 = vmul.f32 %v6214, %v6278
        %v6326 = vmul.f32 %v6218, %v6281
        %v6327 = vmul.f32 %v6222, %v6283
        %v6328 = vmul.f32 %v6226, %v6286
        %v6329 = vmul.f32 %v6230, %v6288
        %v6330 = vmul.f32 %v6234, %v6291
        %v6331 = vmul.f32 %v6238, %v6293
        %v6332 = vmul.f32 %v6242, %v6296
        %v6333 = vmul.f32 %v6246, %v6298
        %v6334 = vmul.f32 %v6250, %v6301
        %v6335 = vmul.f32 %v6254, %v6303
        %v6336 = vadd.f32 %v6160, %v6320
        %v6337 = vadd.f32 %v6161, %v6321
        %v6338 = vadd.f32 %v6162, %v6322
        %v6339 = vadd.f32 %v6163, %v6323
        %v6340 = vadd.f32 %v6164, %v6324
        %v6341 = vadd.f32 %v6165, %v6325
        %v6342 = vadd.f32 %v6166, %v6326
        %v6343 = vadd.f32 %v6167, %v6327
        %v6344 = vadd.f32 %v6168, %v6328
        %v6345 = vadd.f32 %v6169, %v6329
        %v6346 = vadd.f32 %v6170, %v6330
        %v6347 = vadd.f32 %v6171, %v6331
        %v6348 = vadd.f32 %v6172, %v6332
        %v6349 = vadd.f32 %v6173, %v6333
        %v6350 = vadd.f32 %v6174, %v6334
        %v6351 = vadd.f32 %v6175, %v6335
        %v6352 = vpack.c.bf16 %v6337, %v6336
        %v6353 = vpack.c.bf16 %v6339, %v6338
        %v6354 = vpack.c.bf16 %v6341, %v6340
        %v6355 = vpack.c.bf16 %v6343, %v6342
        %v6356 = vpack.c.bf16 %v6345, %v6344
        %v6357 = vpack.c.bf16 %v6347, %v6346
        %v6358 = vpack.c.bf16 %v6349, %v6348
        %v6359 = vpack.c.bf16 %v6351, %v6350
        %v6368 = vunpack.c.l.b16 %v6352
        %v6369 = vunpack.c.h.b16 %v6352
        %v6370 = vunpack.c.l.b16 %v6353
        %v6371 = vunpack.c.h.b16 %v6353
        %v6372 = vunpack.c.l.b16 %v6354
        %v6373 = vunpack.c.h.b16 %v6354
        %v6374 = vunpack.c.l.b16 %v6355
        %v6375 = vunpack.c.h.b16 %v6355
        %v6376 = vunpack.c.l.b16 %v6356
        %v6377 = vunpack.c.h.b16 %v6356
        %v6378 = vunpack.c.l.b16 %v6357
        %v6379 = vunpack.c.h.b16 %v6357
        %v6380 = vunpack.c.l.b16 %v6358
        %v6381 = vunpack.c.h.b16 %v6358
        %v6382 = vunpack.c.l.b16 %v6359
        %v6383 = vunpack.c.h.b16 %v6359
        %v6384 = vpack.c.b16 %v6368, %v6368
        %v6385 = vpack.c.b16 %v6369, %v6369
        %v6386 = vpack.c.b16 %v6370, %v6370
        %v6387 = vpack.c.b16 %v6371, %v6371
        %v6388 = vpack.c.b16 %v6372, %v6372
        %v6389 = vpack.c.b16 %v6373, %v6373
        %v6390 = vpack.c.b16 %v6374, %v6374
        %v6391 = vpack.c.b16 %v6375, %v6375
        %v6392 = vpack.c.b16 %v6376, %v6376
        %v6393 = vpack.c.b16 %v6377, %v6377
        %v6394 = vpack.c.b16 %v6378, %v6378
        %v6395 = vpack.c.b16 %v6379, %v6379
        %v6396 = vpack.c.b16 %v6380, %v6380
        %v6397 = vpack.c.b16 %v6381, %v6381
        %v6398 = vpack.c.b16 %v6382, %v6382
        %v6399 = vpack.c.b16 %v6383, %v6383
        %s6416 = smul.u32 %s1892, 2
        %s6417 = smul.addr %s6416, 4
        %s6418 = scalar_lea.vmem %s214, %s6417
        %6419 = vst [vmem:[%s6418] sm:$0xf] %v6384
        %6420 = vst [vmem:[%s6418 + $0x4] sm:$0xf] %v6385
        %6421 = vst [vmem:[%s6418 + $0x8] sm:$0xf] %v6386
        %6422 = vst [vmem:[%s6418 + $0xc] sm:$0xf] %v6387
        %6423 = vst [vmem:[%s6418 + $0x10] sm:$0xf] %v6388
        %6424 = vst [vmem:[%s6418 + $0x14] sm:$0xf] %v6389
        %6425 = vst [vmem:[%s6418 + $0x18] sm:$0xf] %v6390
        %6426 = vst [vmem:[%s6418 + $0x1c] sm:$0xf] %v6391
        %6427 = vst [vmem:[%s6418 + $0x20] sm:$0xf] %v6392
        %6428 = vst [vmem:[%s6418 + $0x24] sm:$0xf] %v6393
        %6429 = vst [vmem:[%s6418 + $0x28] sm:$0xf] %v6394
        %6430 = vst [vmem:[%s6418 + $0x2c] sm:$0xf] %v6395
        %6431 = vst [vmem:[%s6418 + $0x30] sm:$0xf] %v6396
        %6432 = vst [vmem:[%s6418 + $0x34] sm:$0xf] %v6397
        %6433 = vst [vmem:[%s6418 + $0x38] sm:$0xf] %v6398
        %6434 = vst [vmem:[%s6418 + $0x3c] sm:$0xf] %v6399
      $region37: #{carafe_module_forward.5} parent=27 // loop_footer
        %s1891 = sadd.s32 1, %s1887
      $region38: #{carafe_module_forward.5} parent=27 // loop_footer_branch
        %1886 = sbr.rel target = $region34
      $region39: #{carafe_module_forward.5} parent=27 // loop_exit
        _
      %s6435 = smul.u32 %s18, 4
      %s6436 = sadd.s32 %s6435, %s20
      %p6437 = scmp.lt.s32.totalorder %s6436, 7
      %s6438 = scalar_select %p6437, %s6436, 7
      %p6439 = scmp.lt.s32.totalorder %s19, 0
      %s6440 = scalar_select %p6439, %s19, 0
      %s6441 = smul.addr %s6438, 32
      %s6442 = sadd.s32 %s6440, %s6441
      %s6443 = smul.addr %s6442, 4
      %s6444 = scalar_lea.vmem %s2, %s6443
      // Predicated region
      $region40: #{carafe_module_forward.5} parent=27 // pred_check
        %p6445 = pneg %p110
      $region41: #{carafe_module_forward.5} parent=27 // pred_check_branch
        %6447 = sbr.rel (%p6445) target = $region43
      $region42: #{carafe_module_forward.5} parent=27 // pred_region
        %s6448 = smul.u32 %s18, 4
        %s6449 = sadd.s32 %s6448, %s20
      $region43: #{carafe_module_forward.5} parent=27 // pred_fallthru
        _
    $region28: #{carafe_module_forward.5} parent=5 // pred_fallthru
      _
    %p6450 = scmp.le.s32.totalorder 2, %s8
    // Predicated region
    $region44: #{carafe_module_forward.5} parent=5 // pred_check
      %p6451 = pneg %p6450
    $region45: #{carafe_module_forward.5} parent=5 // pred_check_branch
      %6453 = sbr.rel (%p6451) target = $region47
    $region46: #{carafe_module_forward.5} parent=5 // pred_region
      %s6454 = ssub.s32 %s8, 2
      // Predicated region
      $region48: #{carafe_module_forward.5} parent=46 // pred_check
        %p6455 = pneg %p116
      $region49: #{carafe_module_forward.5} parent=46 // pred_check_branch
        %6457 = sbr.rel (%p6455) target = $region51
      $region50: #{carafe_module_forward.5} parent=46 // pred_region
        %s6458 = smul.u32 %s21, 4
        %s6459 = sadd.s32 %s6458, %s23
        %p6460 = scmp.lt.s32.totalorder %s6459, 7
        %s6461 = scalar_select %p6460, %s6459, 7
        %p6462 = scmp.lt.s32.totalorder %s22, 0
        %s6463 = scalar_select %p6462, %s22, 0
        %s6464 = smul.addr %s6461, 32
        %s6465 = sadd.s32 %s6463, %s6464
        %s6466 = smul.addr %s6465, 4
        %s6467 = scalar_lea.vmem %s2, %s6466
      $region51: #{carafe_module_forward.5} parent=46 // pred_fallthru
        _
    $region47: #{carafe_module_forward.5} parent=5 // pred_fallthru
      _
  $region6: #{carafe_module_forward.5} parent=0 // loop_footer
    %s12 = sadd.s32 1, %s8
  $region7: #{carafe_module_forward.5} parent=0 // loop_footer_branch
    %7 = sbr.rel target = $region3
  $region8: #{carafe_module_forward.5} parent=0 // loop_exit
    _

</llo_original>
